<compile_context>
chip_gen: v7x
topology: tpu7x:2x2x1
jax: 0.10.0
libtpu: 0.0.40
codegen_flags: <defaults>
</compile_context>

<pallas_src>
import math

import numpy as np

import jax
import jax.numpy as jnp
from jax import lax
from jax.experimental import pallas as pl
from jax.experimental.pallas import tpu as pltpu


# ----------------------------------------------------------------------------
# Block-Toeplitz weight folding (kw tap, W, W zero-pad, W nearest-2x upsample)
# ----------------------------------------------------------------------------
def _pad_cout(cout, w_out):
    """Smallest Cout' >= cout such that w_out * Cout' is a multiple of 128."""
    step = 128 // math.gcd(w_out, 128)
    return -(-cout // step) * step


def _w_selection(w_out, upsample):
    """S[w_in, kw, w_out] = 1 iff input column w_in feeds output column w_out
    through tap kw (SAME zero padding; optional nearest-2x W-upsample folded)."""
    fine = np.arange(w_out)[None, :] + np.arange(3)[:, None] - 1   # (3, w_out)
    valid = (fine >= 0) & (fine < w_out)
    div = 2 if upsample else 1
    w_in = w_out // div
    src = np.clip(fine // div, 0, w_in - 1)     # clip only hits masked entries
    S = np.zeros((w_in, 3, w_out), np.float32)
    kw_idx, out_idx = np.meshgrid(np.arange(3), np.arange(w_out), indexing="ij")
    S[src[valid], kw_idx[valid], out_idx[valid]] = 1.0
    return S


def _toeplitz_weight(w, w_out, upsample):
    """w: (3,3,3,Cin,Cout) -> (3, 3, W_in*Cin, W_out*Cout) block-Toeplitz."""
    S = jnp.asarray(_w_selection(w_out, upsample))                 # (Win,3,Wout)
    big = jnp.einsum("iko,tfkcd->tficod", S, w.astype(jnp.float32))
    kt, kh, w_in, cin, wo, cout = big.shape
    return big.reshape(kt, kh, w_in * cin, wo * cout)


def _prep_level(w, b, *, cx, cx_pad, wo, upsample):
    """Fused (main||skip) Toeplitz weight + lane-tiled bias for one level.

    w: (3,3,3, cx + cs, cout) raw conv weight (main channels first),
    cx_pad >= cx accounts for zero channel padding of the previous level.
    Returns (w_big (3,3,K,Wo*Cout_p) bf16, b_big (1, Wo*Cout_p) f32, Cout_p).
    """
    cout = b.shape[0]
    cs = w.shape[3] - cx
    cout_p = _pad_cout(cout, wo)
    if cout_p != cout:
        w = jnp.pad(w, ((0, 0),) * 4 + ((0, cout_p - cout),))
        b = jnp.pad(b, (0, cout_p - cout))
    w_main = w[..., :cx, :]
    if cx_pad != cx:        # zero rows for the padded channels of the previous level
        w_main = jnp.pad(w_main, ((0, 0),) * 3 + ((0, cx_pad - cx), (0, 0)))
    parts = [_toeplitz_weight(w_main, wo, upsample)]
    if cs > 0:
        parts.append(_toeplitz_weight(w[..., cx:, :], wo, False))
    w_big = jnp.concatenate(parts, axis=2).astype(jnp.bfloat16)
    b_big = jnp.tile(b.astype(jnp.float32), (wo,)).reshape(1, wo * cout_p)
    return w_big, b_big, cout_p


def _full_spec(shape):
    return pl.BlockSpec(shape, lambda n: (0,) * len(shape))


def _per_batch_spec(shape):
    return pl.BlockSpec(shape, lambda n: (n,) + (0,) * (len(shape) - 1))


# ----------------------------------------------------------------------------
# Fused 3-level decoder forward (single pallas_call, grid over batch)
# ----------------------------------------------------------------------------
def unet3d_decoder_forward(params, lth, vid_feat):
    """PyTorch-facing signature: lth = skip features (NCDHW, coarse->fine),
    vid_feat = bottleneck feature (NCDHW); returns NCDHW RGB frames."""
    to_nthwc = lambda a: jnp.transpose(a, (0, 2, 3, 4, 1))
    x = to_nthwc(vid_feat)          # (N, T, H4, W4, Cb)
    s0 = to_nthwc(lth[0])           # (N, T, H2, W2, Cs0)
    s1 = to_nthwc(lth[1])           # (N, T, H,  W,  Cs1)

    N, T, H4, W4, Cb = x.shape
    _, _, H2, W2, Cs0 = s0.shape
    _, _, H1, W1, Cs1 = s1.shape
    assert (H2, W2) == (2 * H4, 2 * W4) and (H1, W1) == (2 * H2, 2 * W2)

    (w1, b1) = params["conv1"]
    (w2, b2) = params["conv2"]
    (w3, b3) = params["conv_out"]
    c1, c2, c3 = b1.shape[0], b2.shape[0], b3.shape[0]

    ho1, wo1 = H2, W2
    ho2, wo2 = H1, W1
    ho3, wo3 = H1, W1

    # Fold kw / W / W-pad / W-upsample and the concat join into the weights.
    w1_big, b1_big, c1p = _prep_level(w1, b1, cx=Cb, cx_pad=Cb, wo=wo1, upsample=True)
    w2_big, b2_big, c2p = _prep_level(w2, b2, cx=c1, cx_pad=c1p, wo=wo2, upsample=True)
    w3_big, b3_big, c3p = _prep_level(w3, b3, cx=c2, cx_pad=c2p, wo=wo3, upsample=False)

    k1x, k1s = W4 * Cb, wo1 * Cs0
    n1 = wo1 * c1p
    k2x, k2s = n1, wo2 * Cs1
    n2 = wo2 * c2p
    k3 = n2
    n3 = wo3 * c3p
    k1, k2 = k1x + k1s, k2x + k2s

    # Flatten (W, C) -> lanes once, in bf16; no repeat/pad copies in HBM.
    xf = x.reshape(N, T, H4, k1x).astype(jnp.bfloat16)
    s0f = s0.reshape(N, T, ho1, k1s).astype(jnp.bfloat16)
    s1f = s1.reshape(N, T, ho2, k2s).astype(jnp.bfloat16)

    # ---------------- in-kernel helpers (traced) ----------------
    def fill_buffer(buf_ref, x_main, x_skip, upsample_h):
        """Zero-padded (T+2, Ho+2, Kx[+Ks]) tap buffer: [H-upsampled main || skip]."""
        t_, hin, kx = x_main.shape
        tb, hb, kb = buf_ref.shape
        ho = hb - 2
        buf_ref[...] = jnp.zeros((tb, hb, kb), buf_ref.dtype)
        if upsample_h:      # nearest 2x along H, in-kernel (rows duplicated)
            x_main = jnp.broadcast_to(
                x_main[:, :, None, :], (t_, hin, 2, kx)).reshape(t_, 2 * hin, kx)
        buf_ref[1:t_ + 1, 1:ho + 1, 0:kx] = x_main
        if x_skip is not None:
            ks = x_skip.shape[-1]
            buf_ref[1:t_ + 1, 1:ho + 1, kx:kx + ks] = x_skip

    def conv_level(buf_ref, w_ref, b_ref, ho, lrelu):
        """9 taps x 1 matmul each: LHS (T*Ho, K) bf16 sliced straight off the Ref."""
        kdim = buf_ref.shape[-1]
        nout = w_ref.shape[-1]
        acc = jnp.zeros((T * ho, nout), jnp.float32)
        for kt in range(3):
            for kh in range(3):
                lhs = buf_ref[kt:kt + T, kh:kh + ho, :].reshape(T * ho, kdim)
                acc = acc + jnp.dot(lhs, w_ref[kt, kh],
                                    preferred_element_type=jnp.float32)
        acc = acc + b_ref[...]                      # f32 epilogue
        if lrelu:
            acc = jnp.where(acc >= 0, acc, 0.2 * acc)   # LeakyReLU(0.2)
        return acc

    def kernel(x_ref, s0_ref, s1_ref, w1_ref, b1_ref, w2_ref, b2_ref,
               w3_ref, b3_ref, o_ref, buf1, buf2, buf3):
        # level 1: up2 -> concat skip0 -> conv -> lrelu
        fill_buffer(buf1, x_ref[0], s0_ref[0], True)
        a1 = conv_level(buf1, w1_ref, b1_ref, ho1, True)
        a1 = a1.astype(jnp.bfloat16).reshape(T, ho1, n1)
        # level 2: up2 -> concat skip1 -> conv -> lrelu (a1 never leaves VMEM)
        fill_buffer(buf2, a1, s1_ref[0], True)
        a2 = conv_level(buf2, w2_ref, b2_ref, ho2, True)
        a2 = a2.astype(jnp.bfloat16).reshape(T, ho2, n2)
        # level 3: conv to RGB (channel-padded to keep lanes a multiple of 128)
        fill_buffer(buf3, a2, None, False)
        a3 = conv_level(buf3, w3_ref, b3_ref, ho3, False)
        o_ref[...] = a3.reshape(1, T, ho3, n3).astype(o_ref.dtype)

    flops = 2 * N * 9 * (T * ho1 * k1 * n1 + T * ho2 * k2 * n2 + T * ho3 * k3 * n3)
    bytes_accessed = (2 * (xf.size + s0f.size + s1f.size
                           + w1_big.size + w2_big.size + w3_big.size)
                      + 4 * (b1_big.size + b2_big.size + b3_big.size
                             + N * T * ho3 * n3))

    out = pl.pallas_call(
        kernel,
        out_shape=jax.ShapeDtypeStruct((N, T, ho3, n3), jnp.float32),
        grid=(N,),
        in_specs=[
            _per_batch_spec((1, T, H4, k1x)),
            _per_batch_spec((1, T, ho1, k1s)),
            _per_batch_spec((1, T, ho2, k2s)),
            _full_spec(w1_big.shape), _full_spec(b1_big.shape),
            _full_spec(w2_big.shape), _full_spec(b2_big.shape),
            _full_spec(w3_big.shape), _full_spec(b3_big.shape),
        ],
        out_specs=_per_batch_spec((1, T, ho3, n3)),
        scratch_shapes=[
            pltpu.VMEM((T + 2, ho1 + 2, k1), jnp.bfloat16),
            pltpu.VMEM((T + 2, ho2 + 2, k2), jnp.bfloat16),
            pltpu.VMEM((T + 2, ho3 + 2, k3), jnp.bfloat16),
        ],
        compiler_params=pltpu.CompilerParams(
            dimension_semantics=("parallel",),
            vmem_limit_bytes=32 * 1024 * 1024),
        cost_estimate=pl.CostEstimate(
            flops=int(flops), transcendentals=0, bytes_accessed=int(bytes_accessed)),
    )(xf, s0f, s1f, w1_big, b1_big, w2_big, b2_big, w3_big, b3_big)

    out = out.reshape(N, T, ho3, wo3, c3p)[..., :c3]
    return jnp.transpose(out, (0, 4, 1, 2, 3))


# ----------------------------------------------------------------------------
# Parameter init
# ----------------------------------------------------------------------------
def _init_conv(key, cin, cout):
    kw_, kb_ = jax.random.split(key)
    scale = 1.0 / jnp.sqrt(jnp.float32(cin * 27))
    w = scale * jax.random.normal(kw_, (3, 3, 3, cin, cout), jnp.float32)
    b = 0.01 * jax.random.normal(kb_, (cout,), jnp.float32)
    return w, b


def init_decoder_params(key, c_bottleneck, c_skips, c_hidden, c_out):
    k1, k2, k3 = jax.random.split(key, 3)
    return {
        "conv1": _init_conv(k1, c_bottleneck + c_skips[0], c_hidden[0]),
        "conv2": _init_conv(k2, c_hidden[0] + c_skips[1], c_hidden[1]),
        "conv_out": _init_conv(k3, c_hidden[1], c_out),
    }


# ----------------------------------------------------------------------------
# Plain-JAX reference (end-to-end correctness check)
# ----------------------------------------------------------------------------
def _conv3d_ref(x, w, b, *, apply_lrelu):
    y = lax.conv_general_dilated(
        x.astype(jnp.bfloat16), w.astype(jnp.bfloat16),
        window_strides=(1, 1, 1), padding="SAME",
        dimension_numbers=("NDHWC", "DHWIO", "NDHWC"),
        preferred_element_type=jnp.float32)
    y = y + b
    if apply_lrelu:
        y = jnp.where(y >= 0, y, 0.2 * y)
    return y


def reference_decoder_forward(params, lth, vid_feat):
    to_nthwc = lambda a: jnp.transpose(a, (0, 2, 3, 4, 1))
    up2 = lambda a: jnp.repeat(jnp.repeat(a, 2, axis=2), 2, axis=3)
    x = to_nthwc(vid_feat)
    x = _conv3d_ref(jnp.concatenate([up2(x), to_nthwc(lth[0])], axis=-1),
                    *params["conv1"], apply_lrelu=True)
    x = _conv3d_ref(jnp.concatenate([up2(x), to_nthwc(lth[1])], axis=-1),
                    *params["conv2"], apply_lrelu=True)
    x = _conv3d_ref(x, *params["conv_out"], apply_lrelu=False)
    return jnp.transpose(x, (0, 4, 1, 2, 3))


# ----------------------------------------------------------------------------
# Main
# ----------------------------------------------------------------------------
if __name__ == "__main__":
    key = jax.random.PRNGKey(0)
    k_param, k_feat, k_s0, k_s1 = jax.random.split(key, 4)

    # Small shapes: batch=2, T=4 frames, full resolution 16x16.
    N, T, H, W = 2, 4, 16, 16
    C_BOT, C_SKIPS, C_HID, C_OUT = 32, (16, 8), (16, 8), 3

    # PyTorch NCDHW inputs.
    vid_feat = jax.random.normal(k_feat, (N, C_BOT, T, H // 4, W // 4), jnp.float32)
    lth = [
        jax.random.normal(k_s0, (N, C_SKIPS[0], T, H // 2, W // 2), jnp.float32),
        jax.random.normal(k_s1, (N, C_SKIPS[1], T, H, W), jnp.float32),
    ]

    params = init_decoder_params(k_param, C_BOT, C_SKIPS, C_HID, C_OUT)

    out = jax.block_until_ready(jax.jit(unet3d_decoder_forward)(params, lth, vid_feat))
    ref = jax.block_until_ready(jax.jit(reference_decoder_forward)(params, lth, vid_feat))

    assert out.shape == (N, C_OUT, T, H, W)
    assert bool(jnp.all(jnp.isfinite(out)))
    max_err = float(jnp.max(jnp.abs(out - ref)))
    assert jnp.allclose(out, ref, rtol=6e-2, atol=6e-2), (
        "decoder mismatch, max abs err = %f" % max_err)
    print("KERNEL_OK")
</pallas_src>

<mosaic_0001>
module attributes {stable_mosaic.version = 11 : i64} {
  func.func @kernel(%arg0: i32, %arg1: memref<1x4x4x128xbf16, #tpu.memory_space<vmem>>, %arg2: memref<1x4x8x128xbf16, #tpu.memory_space<vmem>>, %arg3: memref<1x4x16x128xbf16, #tpu.memory_space<vmem>>, %arg4: memref<3x3x256x128xbf16, #tpu.memory_space<vmem>>, %arg5: memref<1x128xf32, #tpu.memory_space<vmem>>, %arg6: memref<3x3x256x128xbf16, #tpu.memory_space<vmem>>, %arg7: memref<1x128xf32, #tpu.memory_space<vmem>>, %arg8: memref<3x3x128x128xbf16, #tpu.memory_space<vmem>>, %arg9: memref<1x128xf32, #tpu.memory_space<vmem>>, %arg10: memref<1x4x16x128xf32, #tpu.memory_space<vmem>>, %arg11: memref<6x10x256xbf16, #tpu.memory_space<vmem>>, %arg12: memref<6x18x256xbf16, #tpu.memory_space<vmem>>, %arg13: memref<6x18x128xbf16, #tpu.memory_space<vmem>>) attributes {dimension_semantics = [#tpu.dimension_semantics<parallel>], iteration_bounds = array<i64: 2>, scalar_prefetch = 0 : i64, scratch_operands = 3 : i64, tpu.core_type = #tpu.core_type<tc>, window_params = [{transform_indices = @transform_0, window_bounds = array<i64: 1, 4, 4, 128>}, {transform_indices = @transform_1, window_bounds = array<i64: 1, 4, 8, 128>}, {transform_indices = @transform_2, window_bounds = array<i64: 1, 4, 16, 128>}, {pipeline_mode = #tpu.pipeline_mode<synchronous>, transform_indices = @transform_3, window_bounds = array<i64: 3, 3, 256, 128>}, {pipeline_mode = #tpu.pipeline_mode<synchronous>, transform_indices = @transform_4, window_bounds = array<i64: 1, 128>}, {pipeline_mode = #tpu.pipeline_mode<synchronous>, transform_indices = @transform_5, window_bounds = array<i64: 3, 3, 256, 128>}, {pipeline_mode = #tpu.pipeline_mode<synchronous>, transform_indices = @transform_6, window_bounds = array<i64: 1, 128>}, {pipeline_mode = #tpu.pipeline_mode<synchronous>, transform_indices = @transform_7, window_bounds = array<i64: 3, 3, 128, 128>}, {pipeline_mode = #tpu.pipeline_mode<synchronous>, transform_indices = @transform_8, window_bounds = array<i64: 1, 128>}, {transform_indices = @transform_9, window_bounds = array<i64: 1, 4, 16, 128>}]} {
    %c0 = arith.constant 0 : index
    %c0_0 = arith.constant 0 : index
    %c0_1 = arith.constant 0 : index
    %c0_2 = arith.constant 0 : index
    %0 = vector.load %arg1[%c0, %c0_0, %c0_1, %c0_2] : memref<1x4x4x128xbf16, #tpu.memory_space<vmem>>, vector<1x4x4x128xbf16>
    %1 = vector.shape_cast %0 : vector<1x4x4x128xbf16> to vector<4x4x128xbf16>
    %c0_3 = arith.constant 0 : index
    %c0_4 = arith.constant 0 : index
    %c0_5 = arith.constant 0 : index
    %c0_6 = arith.constant 0 : index
    %2 = vector.load %arg2[%c0_3, %c0_4, %c0_5, %c0_6] : memref<1x4x8x128xbf16, #tpu.memory_space<vmem>>, vector<1x4x8x128xbf16>
    %3 = vector.shape_cast %2 : vector<1x4x8x128xbf16> to vector<4x8x128xbf16>
    %cst = arith.constant 0.000000e+00 : bf16
    %4 = vector.broadcast %cst : bf16 to vector<6x10x256xbf16>
    %c0_7 = arith.constant 0 : index
    %c0_8 = arith.constant 0 : index
    %c0_9 = arith.constant 0 : index
    %5 = vector.load %arg11[%c0_7, %c0_8, %c0_9] : memref<6x10x256xbf16, #tpu.memory_space<vmem>>, vector<6x10x256xbf16>
    tpu.vector_store %arg11[%c0_7, %c0_8, %c0_9], %4 {strides = array<i32>} : memref<6x10x256xbf16, #tpu.memory_space<vmem>>, vector<6x10x256xbf16>,
    %6 = vector.shape_cast %1 : vector<4x4x128xbf16> to vector<4x4x1x128xbf16>
    %7 = vector.shape_cast %6 : vector<4x4x1x128xbf16> to vector<4x4x1x128xbf16>
    %8 = vector.broadcast %7 : vector<4x4x1x128xbf16> to vector<4x4x2x128xbf16>
    %9 = vector.shape_cast %8 : vector<4x4x2x128xbf16> to vector<4x8x128xbf16>
    %c1 = arith.constant 1 : index
    %c1_10 = arith.constant 1 : index
    %c0_11 = arith.constant 0 : index
    %10 = vector.load %arg11[%c1, %c1_10, %c0_11] : memref<6x10x256xbf16, #tpu.memory_space<vmem>>, vector<4x8x128xbf16>
    tpu.vector_store %arg11[%c1, %c1_10, %c0_11], %9 {strides = array<i32>} : memref<6x10x256xbf16, #tpu.memory_space<vmem>>, vector<4x8x128xbf16>,
    %c1_12 = arith.constant 1 : index
    %c1_13 = arith.constant 1 : index
    %c128 = arith.constant 128 : index
    %11 = vector.load %arg11[%c1_12, %c1_13, %c128] : memref<6x10x256xbf16, #tpu.memory_space<vmem>>, vector<4x8x128xbf16>
    tpu.vector_store %arg11[%c1_12, %c1_13, %c128], %3 {strides = array<i32>} : memref<6x10x256xbf16, #tpu.memory_space<vmem>>, vector<4x8x128xbf16>,
    %cst_14 = arith.constant 0.000000e+00 : f32
    %12 = vector.broadcast %cst_14 : f32 to vector<32x128xf32>
    %c0_15 = arith.constant 0 : index
    %c0_16 = arith.constant 0 : index
    %c0_17 = arith.constant 0 : index
    %13 = vector.load %arg11[%c0_15, %c0_16, %c0_17] : memref<6x10x256xbf16, #tpu.memory_space<vmem>>, vector<4x8x256xbf16>
    %14 = vector.shape_cast %13 : vector<4x8x256xbf16> to vector<32x256xbf16>
    %c0_18 = arith.constant 0 : index
    %c0_19 = arith.constant 0 : index
    %c0_20 = arith.constant 0 : index
    %c0_21 = arith.constant 0 : index
    %15 = vector.load %arg4[%c0_18, %c0_19, %c0_20, %c0_21] : memref<3x3x256x128xbf16, #tpu.memory_space<vmem>>, vector<1x1x256x128xbf16>
    %16 = vector.shape_cast %15 : vector<1x1x256x128xbf16> to vector<256x128xbf16>
    %cst_22 = arith.constant dense<0.000000e+00> : vector<32x128xf32>
    %17 = tpu.matmul %14, %16, %cst_22 {dimension_numbers = #tpu.dot_dimension_numbers<[1], [0], [0], [1], [0, 0, 1, 1], [], []>} : vector<32x256xbf16>, vector<256x128xbf16>, vector<32x128xf32> -> vector<32x128xf32>
    %18 = arith.addf %12, %17 : vector<32x128xf32>
    %c0_23 = arith.constant 0 : index
    %c1_24 = arith.constant 1 : index
    %c0_25 = arith.constant 0 : index
    %19 = vector.load %arg11[%c0_23, %c1_24, %c0_25] : memref<6x10x256xbf16, #tpu.memory_space<vmem>>, vector<4x8x256xbf16>
    %20 = vector.shape_cast %19 : vector<4x8x256xbf16> to vector<32x256xbf16>
    %c0_26 = arith.constant 0 : index
    %c1_27 = arith.constant 1 : index
    %c0_28 = arith.constant 0 : index
    %c0_29 = arith.constant 0 : index
    %21 = vector.load %arg4[%c0_26, %c1_27, %c0_28, %c0_29] : memref<3x3x256x128xbf16, #tpu.memory_space<vmem>>, vector<1x1x256x128xbf16>
    %22 = vector.shape_cast %21 : vector<1x1x256x128xbf16> to vector<256x128xbf16>
    %cst_30 = arith.constant dense<0.000000e+00> : vector<32x128xf32>
    %23 = tpu.matmul %20, %22, %cst_30 {dimension_numbers = #tpu.dot_dimension_numbers<[1], [0], [0], [1], [0, 0, 1, 1], [], []>} : vector<32x256xbf16>, vector<256x128xbf16>, vector<32x128xf32> -> vector<32x128xf32>
    %24 = arith.addf %18, %23 : vector<32x128xf32>
    %c0_31 = arith.constant 0 : index
    %c2 = arith.constant 2 : index
    %c0_32 = arith.constant 0 : index
    %25 = vector.load %arg11[%c0_31, %c2, %c0_32] : memref<6x10x256xbf16, #tpu.memory_space<vmem>>, vector<4x8x256xbf16>
    %26 = vector.shape_cast %25 : vector<4x8x256xbf16> to vector<32x256xbf16>
    %c0_33 = arith.constant 0 : index
    %c2_34 = arith.constant 2 : index
    %c0_35 = arith.constant 0 : index
    %c0_36 = arith.constant 0 : index
    %27 = vector.load %arg4[%c0_33, %c2_34, %c0_35, %c0_36] : memref<3x3x256x128xbf16, #tpu.memory_space<vmem>>, vector<1x1x256x128xbf16>
    %28 = vector.shape_cast %27 : vector<1x1x256x128xbf16> to vector<256x128xbf16>
    %cst_37 = arith.constant dense<0.000000e+00> : vector<32x128xf32>
    %29 = tpu.matmul %26, %28, %cst_37 {dimension_numbers = #tpu.dot_dimension_numbers<[1], [0], [0], [1], [0, 0, 1, 1], [], []>} : vector<32x256xbf16>, vector<256x128xbf16>, vector<32x128xf32> -> vector<32x128xf32>
    %30 = arith.addf %24, %29 : vector<32x128xf32>
    %c1_38 = arith.constant 1 : index
    %c0_39 = arith.constant 0 : index
    %c0_40 = arith.constant 0 : index
    %31 = vector.load %arg11[%c1_38, %c0_39, %c0_40] : memref<6x10x256xbf16, #tpu.memory_space<vmem>>, vector<4x8x256xbf16>
    %32 = vector.shape_cast %31 : vector<4x8x256xbf16> to vector<32x256xbf16>
    %c1_41 = arith.constant 1 : index
    %c0_42 = arith.constant 0 : index
    %c0_43 = arith.constant 0 : index
    %c0_44 = arith.constant 0 : index
    %33 = vector.load %arg4[%c1_41, %c0_42, %c0_43, %c0_44] : memref<3x3x256x128xbf16, #tpu.memory_space<vmem>>, vector<1x1x256x128xbf16>
    %34 = vector.shape_cast %33 : vector<1x1x256x128xbf16> to vector<256x128xbf16>
    %cst_45 = arith.constant dense<0.000000e+00> : vector<32x128xf32>
    %35 = tpu.matmul %32, %34, %cst_45 {dimension_numbers = #tpu.dot_dimension_numbers<[1], [0], [0], [1], [0, 0, 1, 1], [], []>} : vector<32x256xbf16>, vector<256x128xbf16>, vector<32x128xf32> -> vector<32x128xf32>
    %36 = arith.addf %30, %35 : vector<32x128xf32>
    %c1_46 = arith.constant 1 : index
    %c1_47 = arith.constant 1 : index
    %c0_48 = arith.constant 0 : index
    %37 = vector.load %arg11[%c1_46, %c1_47, %c0_48] : memref<6x10x256xbf16, #tpu.memory_space<vmem>>, vector<4x8x256xbf16>
    %38 = vector.shape_cast %37 : vector<4x8x256xbf16> to vector<32x256xbf16>
    %c1_49 = arith.constant 1 : index
    %c1_50 = arith.constant 1 : index
    %c0_51 = arith.constant 0 : index
    %c0_52 = arith.constant 0 : index
    %39 = vector.load %arg4[%c1_49, %c1_50, %c0_51, %c0_52] : memref<3x3x256x128xbf16, #tpu.memory_space<vmem>>, vector<1x1x256x128xbf16>
    %40 = vector.shape_cast %39 : vector<1x1x256x128xbf16> to vector<256x128xbf16>
    %cst_53 = arith.constant dense<0.000000e+00> : vector<32x128xf32>
    %41 = tpu.matmul %38, %40, %cst_53 {dimension_numbers = #tpu.dot_dimension_numbers<[1], [0], [0], [1], [0, 0, 1, 1], [], []>} : vector<32x256xbf16>, vector<256x128xbf16>, vector<32x128xf32> -> vector<32x128xf32>
    %42 = arith.addf %36, %41 : vector<32x128xf32>
    %c1_54 = arith.constant 1 : index
    %c2_55 = arith.constant 2 : index
    %c0_56 = arith.constant 0 : index
    %43 = vector.load %arg11[%c1_54, %c2_55, %c0_56] : memref<6x10x256xbf16, #tpu.memory_space<vmem>>, vector<4x8x256xbf16>
    %44 = vector.shape_cast %43 : vector<4x8x256xbf16> to vector<32x256xbf16>
    %c1_57 = arith.constant 1 : index
    %c2_58 = arith.constant 2 : index
    %c0_59 = arith.constant 0 : index
    %c0_60 = arith.constant 0 : index
    %45 = vector.load %arg4[%c1_57, %c2_58, %c0_59, %c0_60] : memref<3x3x256x128xbf16, #tpu.memory_space<vmem>>, vector<1x1x256x128xbf16>
    %46 = vector.shape_cast %45 : vector<1x1x256x128xbf16> to vector<256x128xbf16>
    %cst_61 = arith.constant dense<0.000000e+00> : vector<32x128xf32>
    %47 = tpu.matmul %44, %46, %cst_61 {dimension_numbers = #tpu.dot_dimension_numbers<[1], [0], [0], [1], [0, 0, 1, 1], [], []>} : vector<32x256xbf16>, vector<256x128xbf16>, vector<32x128xf32> -> vector<32x128xf32>
    %48 = arith.addf %42, %47 : vector<32x128xf32>
    %c2_62 = arith.constant 2 : index
    %c0_63 = arith.constant 0 : index
    %c0_64 = arith.constant 0 : index
    %49 = vector.load %arg11[%c2_62, %c0_63, %c0_64] : memref<6x10x256xbf16, #tpu.memory_space<vmem>>, vector<4x8x256xbf16>
    %50 = vector.shape_cast %49 : vector<4x8x256xbf16> to vector<32x256xbf16>
    %c2_65 = arith.constant 2 : index
    %c0_66 = arith.constant 0 : index
    %c0_67 = arith.constant 0 : index
    %c0_68 = arith.constant 0 : index
    %51 = vector.load %arg4[%c2_65, %c0_66, %c0_67, %c0_68] : memref<3x3x256x128xbf16, #tpu.memory_space<vmem>>, vector<1x1x256x128xbf16>
    %52 = vector.shape_cast %51 : vector<1x1x256x128xbf16> to vector<256x128xbf16>
    %cst_69 = arith.constant dense<0.000000e+00> : vector<32x128xf32>
    %53 = tpu.matmul %50, %52, %cst_69 {dimension_numbers = #tpu.dot_dimension_numbers<[1], [0], [0], [1], [0, 0, 1, 1], [], []>} : vector<32x256xbf16>, vector<256x128xbf16>, vector<32x128xf32> -> vector<32x128xf32>
    %54 = arith.addf %48, %53 : vector<32x128xf32>
    %c2_70 = arith.constant 2 : index
    %c1_71 = arith.constant 1 : index
    %c0_72 = arith.constant 0 : index
    %55 = vector.load %arg11[%c2_70, %c1_71, %c0_72] : memref<6x10x256xbf16, #tpu.memory_space<vmem>>, vector<4x8x256xbf16>
    %56 = vector.shape_cast %55 : vector<4x8x256xbf16> to vector<32x256xbf16>
    %c2_73 = arith.constant 2 : index
    %c1_74 = arith.constant 1 : index
    %c0_75 = arith.constant 0 : index
    %c0_76 = arith.constant 0 : index
    %57 = vector.load %arg4[%c2_73, %c1_74, %c0_75, %c0_76] : memref<3x3x256x128xbf16, #tpu.memory_space<vmem>>, vector<1x1x256x128xbf16>
    %58 = vector.shape_cast %57 : vector<1x1x256x128xbf16> to vector<256x128xbf16>
    %cst_77 = arith.constant dense<0.000000e+00> : vector<32x128xf32>
    %59 = tpu.matmul %56, %58, %cst_77 {dimension_numbers = #tpu.dot_dimension_numbers<[1], [0], [0], [1], [0, 0, 1, 1], [], []>} : vector<32x256xbf16>, vector<256x128xbf16>, vector<32x128xf32> -> vector<32x128xf32>
    %60 = arith.addf %54, %59 : vector<32x128xf32>
    %c2_78 = arith.constant 2 : index
    %c2_79 = arith.constant 2 : index
    %c0_80 = arith.constant 0 : index
    %61 = vector.load %arg11[%c2_78, %c2_79, %c0_80] : memref<6x10x256xbf16, #tpu.memory_space<vmem>>, vector<4x8x256xbf16>
    %62 = vector.shape_cast %61 : vector<4x8x256xbf16> to vector<32x256xbf16>
    %c2_81 = arith.constant 2 : index
    %c2_82 = arith.constant 2 : index
    %c0_83 = arith.constant 0 : index
    %c0_84 = arith.constant 0 : index
    %63 = vector.load %arg4[%c2_81, %c2_82, %c0_83, %c0_84] : memref<3x3x256x128xbf16, #tpu.memory_space<vmem>>, vector<1x1x256x128xbf16>
    %64 = vector.shape_cast %63 : vector<1x1x256x128xbf16> to vector<256x128xbf16>
    %cst_85 = arith.constant dense<0.000000e+00> : vector<32x128xf32>
    %65 = tpu.matmul %62, %64, %cst_85 {dimension_numbers = #tpu.dot_dimension_numbers<[1], [0], [0], [1], [0, 0, 1, 1], [], []>} : vector<32x256xbf16>, vector<256x128xbf16>, vector<32x128xf32> -> vector<32x128xf32>
    %66 = arith.addf %60, %65 : vector<32x128xf32>
    %c0_86 = arith.constant 0 : index
    %c0_87 = arith.constant 0 : index
    %67 = vector.load %arg5[%c0_86, %c0_87] : memref<1x128xf32, #tpu.memory_space<vmem>>, vector<1x128xf32>
    %68 = vector.broadcast %67 : vector<1x128xf32> to vector<32x128xf32>
    %69 = arith.addf %66, %68 : vector<32x128xf32>
    %cst_88 = arith.constant 0.000000e+00 : f32
    %70 = vector.broadcast %cst_88 : f32 to vector<32x128xf32>
    %71 = arith.cmpf oge, %69, %70 : vector<32x128xf32>
    %cst_89 = arith.constant 2.000000e-01 : f32
    %72 = vector.broadcast %cst_89 : f32 to vector<32x128xf32>
    %73 = arith.mulf %72, %69 : vector<32x128xf32>
    %74 = arith.select %71, %69, %73 : vector<32x128xi1>, vector<32x128xf32>
    %75 = arith.truncf %74 : vector<32x128xf32> to vector<32x128xbf16>
    %76 = vector.shape_cast %75 : vector<32x128xbf16> to vector<4x8x128xbf16>
    %c0_90 = arith.constant 0 : index
    %c0_91 = arith.constant 0 : index
    %c0_92 = arith.constant 0 : index
    %c0_93 = arith.constant 0 : index
    %77 = vector.load %arg3[%c0_90, %c0_91, %c0_92, %c0_93] : memref<1x4x16x128xbf16, #tpu.memory_space<vmem>>, vector<1x4x16x128xbf16>
    %78 = vector.shape_cast %77 : vector<1x4x16x128xbf16> to vector<4x16x128xbf16>
    %cst_94 = arith.constant 0.000000e+00 : bf16
    %79 = vector.broadcast %cst_94 : bf16 to vector<6x18x256xbf16>
    %c0_95 = arith.constant 0 : index
    %c0_96 = arith.constant 0 : index
    %c0_97 = arith.constant 0 : index
    %80 = vector.load %arg12[%c0_95, %c0_96, %c0_97] : memref<6x18x256xbf16, #tpu.memory_space<vmem>>, vector<6x18x256xbf16>
    tpu.vector_store %arg12[%c0_95, %c0_96, %c0_97], %79 {strides = array<i32>} : memref<6x18x256xbf16, #tpu.memory_space<vmem>>, vector<6x18x256xbf16>,
    %81 = vector.shape_cast %76 : vector<4x8x128xbf16> to vector<4x8x1x128xbf16>
    %82 = vector.shape_cast %81 : vector<4x8x1x128xbf16> to vector<4x8x1x128xbf16>
    %83 = vector.broadcast %82 : vector<4x8x1x128xbf16> to vector<4x8x2x128xbf16>
    %84 = vector.shape_cast %83 : vector<4x8x2x128xbf16> to vector<4x16x128xbf16>
    %c1_98 = arith.constant 1 : index
    %c1_99 = arith.constant 1 : index
    %c0_100 = arith.constant 0 : index
    %85 = vector.load %arg12[%c1_98, %c1_99, %c0_100] : memref<6x18x256xbf16, #tpu.memory_space<vmem>>, vector<4x16x128xbf16>
    tpu.vector_store %arg12[%c1_98, %c1_99, %c0_100], %84 {strides = array<i32>} : memref<6x18x256xbf16, #tpu.memory_space<vmem>>, vector<4x16x128xbf16>,
    %c1_101 = arith.constant 1 : index
    %c1_102 = arith.constant 1 : index
    %c128_103 = arith.constant 128 : index
    %86 = vector.load %arg12[%c1_101, %c1_102, %c128_103] : memref<6x18x256xbf16, #tpu.memory_space<vmem>>, vector<4x16x128xbf16>
    tpu.vector_store %arg12[%c1_101, %c1_102, %c128_103], %78 {strides = array<i32>} : memref<6x18x256xbf16, #tpu.memory_space<vmem>>, vector<4x16x128xbf16>,
    %cst_104 = arith.constant 0.000000e+00 : f32
    %87 = vector.broadcast %cst_104 : f32 to vector<64x128xf32>
    %c0_105 = arith.constant 0 : index
    %c0_106 = arith.constant 0 : index
    %c0_107 = arith.constant 0 : index
    %88 = vector.load %arg12[%c0_105, %c0_106, %c0_107] : memref<6x18x256xbf16, #tpu.memory_space<vmem>>, vector<4x16x256xbf16>
    %89 = vector.shape_cast %88 : vector<4x16x256xbf16> to vector<64x256xbf16>
    %c0_108 = arith.constant 0 : index
    %c0_109 = arith.constant 0 : index
    %c0_110 = arith.constant 0 : index
    %c0_111 = arith.constant 0 : index
    %90 = vector.load %arg6[%c0_108, %c0_109, %c0_110, %c0_111] : memref<3x3x256x128xbf16, #tpu.memory_space<vmem>>, vector<1x1x256x128xbf16>
    %91 = vector.shape_cast %90 : vector<1x1x256x128xbf16> to vector<256x128xbf16>
    %cst_112 = arith.constant dense<0.000000e+00> : vector<64x128xf32>
    %92 = tpu.matmul %89, %91, %cst_112 {dimension_numbers = #tpu.dot_dimension_numbers<[1], [0], [0], [1], [0, 0, 1, 1], [], []>} : vector<64x256xbf16>, vector<256x128xbf16>, vector<64x128xf32> -> vector<64x128xf32>
    %93 = arith.addf %87, %92 : vector<64x128xf32>
    %c0_113 = arith.constant 0 : index
    %c1_114 = arith.constant 1 : index
    %c0_115 = arith.constant 0 : index
    %94 = vector.load %arg12[%c0_113, %c1_114, %c0_115] : memref<6x18x256xbf16, #tpu.memory_space<vmem>>, vector<4x16x256xbf16>
    %95 = vector.shape_cast %94 : vector<4x16x256xbf16> to vector<64x256xbf16>
    %c0_116 = arith.constant 0 : index
    %c1_117 = arith.constant 1 : index
    %c0_118 = arith.constant 0 : index
    %c0_119 = arith.constant 0 : index
    %96 = vector.load %arg6[%c0_116, %c1_117, %c0_118, %c0_119] : memref<3x3x256x128xbf16, #tpu.memory_space<vmem>>, vector<1x1x256x128xbf16>
    %97 = vector.shape_cast %96 : vector<1x1x256x128xbf16> to vector<256x128xbf16>
    %cst_120 = arith.constant dense<0.000000e+00> : vector<64x128xf32>
    %98 = tpu.matmul %95, %97, %cst_120 {dimension_numbers = #tpu.dot_dimension_numbers<[1], [0], [0], [1], [0, 0, 1, 1], [], []>} : vector<64x256xbf16>, vector<256x128xbf16>, vector<64x128xf32> -> vector<64x128xf32>
    %99 = arith.addf %93, %98 : vector<64x128xf32>
    %c0_121 = arith.constant 0 : index
    %c2_122 = arith.constant 2 : index
    %c0_123 = arith.constant 0 : index
    %100 = vector.load %arg12[%c0_121, %c2_122, %c0_123] : memref<6x18x256xbf16, #tpu.memory_space<vmem>>, vector<4x16x256xbf16>
    %101 = vector.shape_cast %100 : vector<4x16x256xbf16> to vector<64x256xbf16>
    %c0_124 = arith.constant 0 : index
    %c2_125 = arith.constant 2 : index
    %c0_126 = arith.constant 0 : index
    %c0_127 = arith.constant 0 : index
    %102 = vector.load %arg6[%c0_124, %c2_125, %c0_126, %c0_127] : memref<3x3x256x128xbf16, #tpu.memory_space<vmem>>, vector<1x1x256x128xbf16>
    %103 = vector.shape_cast %102 : vector<1x1x256x128xbf16> to vector<256x128xbf16>
    %cst_128 = arith.constant dense<0.000000e+00> : vector<64x128xf32>
    %104 = tpu.matmul %101, %103, %cst_128 {dimension_numbers = #tpu.dot_dimension_numbers<[1], [0], [0], [1], [0, 0, 1, 1], [], []>} : vector<64x256xbf16>, vector<256x128xbf16>, vector<64x128xf32> -> vector<64x128xf32>
    %105 = arith.addf %99, %104 : vector<64x128xf32>
    %c1_129 = arith.constant 1 : index
    %c0_130 = arith.constant 0 : index
    %c0_131 = arith.constant 0 : index
    %106 = vector.load %arg12[%c1_129, %c0_130, %c0_131] : memref<6x18x256xbf16, #tpu.memory_space<vmem>>, vector<4x16x256xbf16>
    %107 = vector.shape_cast %106 : vector<4x16x256xbf16> to vector<64x256xbf16>
    %c1_132 = arith.constant 1 : index
    %c0_133 = arith.constant 0 : index
    %c0_134 = arith.constant 0 : index
    %c0_135 = arith.constant 0 : index
    %108 = vector.load %arg6[%c1_132, %c0_133, %c0_134, %c0_135] : memref<3x3x256x128xbf16, #tpu.memory_space<vmem>>, vector<1x1x256x128xbf16>
    %109 = vector.shape_cast %108 : vector<1x1x256x128xbf16> to vector<256x128xbf16>
    %cst_136 = arith.constant dense<0.000000e+00> : vector<64x128xf32>
    %110 = tpu.matmul %107, %109, %cst_136 {dimension_numbers = #tpu.dot_dimension_numbers<[1], [0], [0], [1], [0, 0, 1, 1], [], []>} : vector<64x256xbf16>, vector<256x128xbf16>, vector<64x128xf32> -> vector<64x128xf32>
    %111 = arith.addf %105, %110 : vector<64x128xf32>
    %c1_137 = arith.constant 1 : index
    %c1_138 = arith.constant 1 : index
    %c0_139 = arith.constant 0 : index
    %112 = vector.load %arg12[%c1_137, %c1_138, %c0_139] : memref<6x18x256xbf16, #tpu.memory_space<vmem>>, vector<4x16x256xbf16>
    %113 = vector.shape_cast %112 : vector<4x16x256xbf16> to vector<64x256xbf16>
    %c1_140 = arith.constant 1 : index
    %c1_141 = arith.constant 1 : index
    %c0_142 = arith.constant 0 : index
    %c0_143 = arith.constant 0 : index
    %114 = vector.load %arg6[%c1_140, %c1_141, %c0_142, %c0_143] : memref<3x3x256x128xbf16, #tpu.memory_space<vmem>>, vector<1x1x256x128xbf16>
    %115 = vector.shape_cast %114 : vector<1x1x256x128xbf16> to vector<256x128xbf16>
    %cst_144 = arith.constant dense<0.000000e+00> : vector<64x128xf32>
    %116 = tpu.matmul %113, %115, %cst_144 {dimension_numbers = #tpu.dot_dimension_numbers<[1], [0], [0], [1], [0, 0, 1, 1], [], []>} : vector<64x256xbf16>, vector<256x128xbf16>, vector<64x128xf32> -> vector<64x128xf32>
    %117 = arith.addf %111, %116 : vector<64x128xf32>
    %c1_145 = arith.constant 1 : index
    %c2_146 = arith.constant 2 : index
    %c0_147 = arith.constant 0 : index
    %118 = vector.load %arg12[%c1_145, %c2_146, %c0_147] : memref<6x18x256xbf16, #tpu.memory_space<vmem>>, vector<4x16x256xbf16>
    %119 = vector.shape_cast %118 : vector<4x16x256xbf16> to vector<64x256xbf16>
    %c1_148 = arith.constant 1 : index
    %c2_149 = arith.constant 2 : index
    %c0_150 = arith.constant 0 : index
    %c0_151 = arith.constant 0 : index
    %120 = vector.load %arg6[%c1_148, %c2_149, %c0_150, %c0_151] : memref<3x3x256x128xbf16, #tpu.memory_space<vmem>>, vector<1x1x256x128xbf16>
    %121 = vector.shape_cast %120 : vector<1x1x256x128xbf16> to vector<256x128xbf16>
    %cst_152 = arith.constant dense<0.000000e+00> : vector<64x128xf32>
    %122 = tpu.matmul %119, %121, %cst_152 {dimension_numbers = #tpu.dot_dimension_numbers<[1], [0], [0], [1], [0, 0, 1, 1], [], []>} : vector<64x256xbf16>, vector<256x128xbf16>, vector<64x128xf32> -> vector<64x128xf32>
    %123 = arith.addf %117, %122 : vector<64x128xf32>
    %c2_153 = arith.constant 2 : index
    %c0_154 = arith.constant 0 : index
    %c0_155 = arith.constant 0 : index
    %124 = vector.load %arg12[%c2_153, %c0_154, %c0_155] : memref<6x18x256xbf16, #tpu.memory_space<vmem>>, vector<4x16x256xbf16>
    %125 = vector.shape_cast %124 : vector<4x16x256xbf16> to vector<64x256xbf16>
    %c2_156 = arith.constant 2 : index
    %c0_157 = arith.constant 0 : index
    %c0_158 = arith.constant 0 : index
    %c0_159 = arith.constant 0 : index
    %126 = vector.load %arg6[%c2_156, %c0_157, %c0_158, %c0_159] : memref<3x3x256x128xbf16, #tpu.memory_space<vmem>>, vector<1x1x256x128xbf16>
    %127 = vector.shape_cast %126 : vector<1x1x256x128xbf16> to vector<256x128xbf16>
    %cst_160 = arith.constant dense<0.000000e+00> : vector<64x128xf32>
    %128 = tpu.matmul %125, %127, %cst_160 {dimension_numbers = #tpu.dot_dimension_numbers<[1], [0], [0], [1], [0, 0, 1, 1], [], []>} : vector<64x256xbf16>, vector<256x128xbf16>, vector<64x128xf32> -> vector<64x128xf32>
    %129 = arith.addf %123, %128 : vector<64x128xf32>
    %c2_161 = arith.constant 2 : index
    %c1_162 = arith.constant 1 : index
    %c0_163 = arith.constant 0 : index
    %130 = vector.load %arg12[%c2_161, %c1_162, %c0_163] : memref<6x18x256xbf16, #tpu.memory_space<vmem>>, vector<4x16x256xbf16>
    %131 = vector.shape_cast %130 : vector<4x16x256xbf16> to vector<64x256xbf16>
    %c2_164 = arith.constant 2 : index
    %c1_165 = arith.constant 1 : index
    %c0_166 = arith.constant 0 : index
    %c0_167 = arith.constant 0 : index
    %132 = vector.load %arg6[%c2_164, %c1_165, %c0_166, %c0_167] : memref<3x3x256x128xbf16, #tpu.memory_space<vmem>>, vector<1x1x256x128xbf16>
    %133 = vector.shape_cast %132 : vector<1x1x256x128xbf16> to vector<256x128xbf16>
    %cst_168 = arith.constant dense<0.000000e+00> : vector<64x128xf32>
    %134 = tpu.matmul %131, %133, %cst_168 {dimension_numbers = #tpu.dot_dimension_numbers<[1], [0], [0], [1], [0, 0, 1, 1], [], []>} : vector<64x256xbf16>, vector<256x128xbf16>, vector<64x128xf32> -> vector<64x128xf32>
    %135 = arith.addf %129, %134 : vector<64x128xf32>
    %c2_169 = arith.constant 2 : index
    %c2_170 = arith.constant 2 : index
    %c0_171 = arith.constant 0 : index
    %136 = vector.load %arg12[%c2_169, %c2_170, %c0_171] : memref<6x18x256xbf16, #tpu.memory_space<vmem>>, vector<4x16x256xbf16>
    %137 = vector.shape_cast %136 : vector<4x16x256xbf16> to vector<64x256xbf16>
    %c2_172 = arith.constant 2 : index
    %c2_173 = arith.constant 2 : index
    %c0_174 = arith.constant 0 : index
    %c0_175 = arith.constant 0 : index
    %138 = vector.load %arg6[%c2_172, %c2_173, %c0_174, %c0_175] : memref<3x3x256x128xbf16, #tpu.memory_space<vmem>>, vector<1x1x256x128xbf16>
    %139 = vector.shape_cast %138 : vector<1x1x256x128xbf16> to vector<256x128xbf16>
    %cst_176 = arith.constant dense<0.000000e+00> : vector<64x128xf32>
    %140 = tpu.matmul %137, %139, %cst_176 {dimension_numbers = #tpu.dot_dimension_numbers<[1], [0], [0], [1], [0, 0, 1, 1], [], []>} : vector<64x256xbf16>, vector<256x128xbf16>, vector<64x128xf32> -> vector<64x128xf32>
    %141 = arith.addf %135, %140 : vector<64x128xf32>
    %c0_177 = arith.constant 0 : index
    %c0_178 = arith.constant 0 : index
    %142 = vector.load %arg7[%c0_177, %c0_178] : memref<1x128xf32, #tpu.memory_space<vmem>>, vector<1x128xf32>
    %143 = vector.broadcast %142 : vector<1x128xf32> to vector<64x128xf32>
    %144 = arith.addf %141, %143 : vector<64x128xf32>
    %cst_179 = arith.constant 0.000000e+00 : f32
    %145 = vector.broadcast %cst_179 : f32 to vector<64x128xf32>
    %146 = arith.cmpf oge, %144, %145 : vector<64x128xf32>
    %cst_180 = arith.constant 2.000000e-01 : f32
    %147 = vector.broadcast %cst_180 : f32 to vector<64x128xf32>
    %148 = arith.mulf %147, %144 : vector<64x128xf32>
    %149 = arith.select %146, %144, %148 : vector<64x128xi1>, vector<64x128xf32>
    %150 = arith.truncf %149 : vector<64x128xf32> to vector<64x128xbf16>
    %151 = vector.shape_cast %150 : vector<64x128xbf16> to vector<4x16x128xbf16>
    %cst_181 = arith.constant 0.000000e+00 : bf16
    %152 = vector.broadcast %cst_181 : bf16 to vector<6x18x128xbf16>
    %c0_182 = arith.constant 0 : index
    %c0_183 = arith.constant 0 : index
    %c0_184 = arith.constant 0 : index
    %153 = vector.load %arg13[%c0_182, %c0_183, %c0_184] : memref<6x18x128xbf16, #tpu.memory_space<vmem>>, vector<6x18x128xbf16>
    tpu.vector_store %arg13[%c0_182, %c0_183, %c0_184], %152 {strides = array<i32>} : memref<6x18x128xbf16, #tpu.memory_space<vmem>>, vector<6x18x128xbf16>,
    %c1_185 = arith.constant 1 : index
    %c1_186 = arith.constant 1 : index
    %c0_187 = arith.constant 0 : index
    %154 = vector.load %arg13[%c1_185, %c1_186, %c0_187] : memref<6x18x128xbf16, #tpu.memory_space<vmem>>, vector<4x16x128xbf16>
    tpu.vector_store %arg13[%c1_185, %c1_186, %c0_187], %151 {strides = array<i32>} : memref<6x18x128xbf16, #tpu.memory_space<vmem>>, vector<4x16x128xbf16>,
    %cst_188 = arith.constant 0.000000e+00 : f32
    %155 = vector.broadcast %cst_188 : f32 to vector<64x128xf32>
    %c0_189 = arith.constant 0 : index
    %c0_190 = arith.constant 0 : index
    %c0_191 = arith.constant 0 : index
    %156 = vector.load %arg13[%c0_189, %c0_190, %c0_191] : memref<6x18x128xbf16, #tpu.memory_space<vmem>>, vector<4x16x128xbf16>
    %157 = vector.shape_cast %156 : vector<4x16x128xbf16> to vector<64x128xbf16>
    %c0_192 = arith.constant 0 : index
    %c0_193 = arith.constant 0 : index
    %c0_194 = arith.constant 0 : index
    %c0_195 = arith.constant 0 : index
    %158 = vector.load %arg8[%c0_192, %c0_193, %c0_194, %c0_195] : memref<3x3x128x128xbf16, #tpu.memory_space<vmem>>, vector<1x1x128x128xbf16>
    %159 = vector.shape_cast %158 : vector<1x1x128x128xbf16> to vector<128x128xbf16>
    %cst_196 = arith.constant dense<0.000000e+00> : vector<64x128xf32>
    %160 = tpu.matmul %157, %159, %cst_196 {dimension_numbers = #tpu.dot_dimension_numbers<[1], [0], [0], [1], [0, 0, 1, 1], [], []>} : vector<64x128xbf16>, vector<128x128xbf16>, vector<64x128xf32> -> vector<64x128xf32>
    %161 = arith.addf %155, %160 : vector<64x128xf32>
    %c0_197 = arith.constant 0 : index
    %c1_198 = arith.constant 1 : index
    %c0_199 = arith.constant 0 : index
    %162 = vector.load %arg13[%c0_197, %c1_198, %c0_199] : memref<6x18x128xbf16, #tpu.memory_space<vmem>>, vector<4x16x128xbf16>
    %163 = vector.shape_cast %162 : vector<4x16x128xbf16> to vector<64x128xbf16>
    %c0_200 = arith.constant 0 : index
    %c1_201 = arith.constant 1 : index
    %c0_202 = arith.constant 0 : index
    %c0_203 = arith.constant 0 : index
    %164 = vector.load %arg8[%c0_200, %c1_201, %c0_202, %c0_203] : memref<3x3x128x128xbf16, #tpu.memory_space<vmem>>, vector<1x1x128x128xbf16>
    %165 = vector.shape_cast %164 : vector<1x1x128x128xbf16> to vector<128x128xbf16>
    %cst_204 = arith.constant dense<0.000000e+00> : vector<64x128xf32>
    %166 = tpu.matmul %163, %165, %cst_204 {dimension_numbers = #tpu.dot_dimension_numbers<[1], [0], [0], [1], [0, 0, 1, 1], [], []>} : vector<64x128xbf16>, vector<128x128xbf16>, vector<64x128xf32> -> vector<64x128xf32>
    %167 = arith.addf %161, %166 : vector<64x128xf32>
    %c0_205 = arith.constant 0 : index
    %c2_206 = arith.constant 2 : index
    %c0_207 = arith.constant 0 : index
    %168 = vector.load %arg13[%c0_205, %c2_206, %c0_207] : memref<6x18x128xbf16, #tpu.memory_space<vmem>>, vector<4x16x128xbf16>
    %169 = vector.shape_cast %168 : vector<4x16x128xbf16> to vector<64x128xbf16>
    %c0_208 = arith.constant 0 : index
    %c2_209 = arith.constant 2 : index
    %c0_210 = arith.constant 0 : index
    %c0_211 = arith.constant 0 : index
    %170 = vector.load %arg8[%c0_208, %c2_209, %c0_210, %c0_211] : memref<3x3x128x128xbf16, #tpu.memory_space<vmem>>, vector<1x1x128x128xbf16>
    %171 = vector.shape_cast %170 : vector<1x1x128x128xbf16> to vector<128x128xbf16>
    %cst_212 = arith.constant dense<0.000000e+00> : vector<64x128xf32>
    %172 = tpu.matmul %169, %171, %cst_212 {dimension_numbers = #tpu.dot_dimension_numbers<[1], [0], [0], [1], [0, 0, 1, 1], [], []>} : vector<64x128xbf16>, vector<128x128xbf16>, vector<64x128xf32> -> vector<64x128xf32>
    %173 = arith.addf %167, %172 : vector<64x128xf32>
    %c1_213 = arith.constant 1 : index
    %c0_214 = arith.constant 0 : index
    %c0_215 = arith.constant 0 : index
    %174 = vector.load %arg13[%c1_213, %c0_214, %c0_215] : memref<6x18x128xbf16, #tpu.memory_space<vmem>>, vector<4x16x128xbf16>
    %175 = vector.shape_cast %174 : vector<4x16x128xbf16> to vector<64x128xbf16>
    %c1_216 = arith.constant 1 : index
    %c0_217 = arith.constant 0 : index
    %c0_218 = arith.constant 0 : index
    %c0_219 = arith.constant 0 : index
    %176 = vector.load %arg8[%c1_216, %c0_217, %c0_218, %c0_219] : memref<3x3x128x128xbf16, #tpu.memory_space<vmem>>, vector<1x1x128x128xbf16>
    %177 = vector.shape_cast %176 : vector<1x1x128x128xbf16> to vector<128x128xbf16>
    %cst_220 = arith.constant dense<0.000000e+00> : vector<64x128xf32>
    %178 = tpu.matmul %175, %177, %cst_220 {dimension_numbers = #tpu.dot_dimension_numbers<[1], [0], [0], [1], [0, 0, 1, 1], [], []>} : vector<64x128xbf16>, vector<128x128xbf16>, vector<64x128xf32> -> vector<64x128xf32>
    %179 = arith.addf %173, %178 : vector<64x128xf32>
    %c1_221 = arith.constant 1 : index
    %c1_222 = arith.constant 1 : index
    %c0_223 = arith.constant 0 : index
    %180 = vector.load %arg13[%c1_221, %c1_222, %c0_223] : memref<6x18x128xbf16, #tpu.memory_space<vmem>>, vector<4x16x128xbf16>
    %181 = vector.shape_cast %180 : vector<4x16x128xbf16> to vector<64x128xbf16>
    %c1_224 = arith.constant 1 : index
    %c1_225 = arith.constant 1 : index
    %c0_226 = arith.constant 0 : index
    %c0_227 = arith.constant 0 : index
    %182 = vector.load %arg8[%c1_224, %c1_225, %c0_226, %c0_227] : memref<3x3x128x128xbf16, #tpu.memory_space<vmem>>, vector<1x1x128x128xbf16>
    %183 = vector.shape_cast %182 : vector<1x1x128x128xbf16> to vector<128x128xbf16>
    %cst_228 = arith.constant dense<0.000000e+00> : vector<64x128xf32>
    %184 = tpu.matmul %181, %183, %cst_228 {dimension_numbers = #tpu.dot_dimension_numbers<[1], [0], [0], [1], [0, 0, 1, 1], [], []>} : vector<64x128xbf16>, vector<128x128xbf16>, vector<64x128xf32> -> vector<64x128xf32>
    %185 = arith.addf %179, %184 : vector<64x128xf32>
    %c1_229 = arith.constant 1 : index
    %c2_230 = arith.constant 2 : index
    %c0_231 = arith.constant 0 : index
    %186 = vector.load %arg13[%c1_229, %c2_230, %c0_231] : memref<6x18x128xbf16, #tpu.memory_space<vmem>>, vector<4x16x128xbf16>
    %187 = vector.shape_cast %186 : vector<4x16x128xbf16> to vector<64x128xbf16>
    %c1_232 = arith.constant 1 : index
    %c2_233 = arith.constant 2 : index
    %c0_234 = arith.constant 0 : index
    %c0_235 = arith.constant 0 : index
    %188 = vector.load %arg8[%c1_232, %c2_233, %c0_234, %c0_235] : memref<3x3x128x128xbf16, #tpu.memory_space<vmem>>, vector<1x1x128x128xbf16>
    %189 = vector.shape_cast %188 : vector<1x1x128x128xbf16> to vector<128x128xbf16>
    %cst_236 = arith.constant dense<0.000000e+00> : vector<64x128xf32>
    %190 = tpu.matmul %187, %189, %cst_236 {dimension_numbers = #tpu.dot_dimension_numbers<[1], [0], [0], [1], [0, 0, 1, 1], [], []>} : vector<64x128xbf16>, vector<128x128xbf16>, vector<64x128xf32> -> vector<64x128xf32>
    %191 = arith.addf %185, %190 : vector<64x128xf32>
    %c2_237 = arith.constant 2 : index
    %c0_238 = arith.constant 0 : index
    %c0_239 = arith.constant 0 : index
    %192 = vector.load %arg13[%c2_237, %c0_238, %c0_239] : memref<6x18x128xbf16, #tpu.memory_space<vmem>>, vector<4x16x128xbf16>
    %193 = vector.shape_cast %192 : vector<4x16x128xbf16> to vector<64x128xbf16>
    %c2_240 = arith.constant 2 : index
    %c0_241 = arith.constant 0 : index
    %c0_242 = arith.constant 0 : index
    %c0_243 = arith.constant 0 : index
    %194 = vector.load %arg8[%c2_240, %c0_241, %c0_242, %c0_243] : memref<3x3x128x128xbf16, #tpu.memory_space<vmem>>, vector<1x1x128x128xbf16>
    %195 = vector.shape_cast %194 : vector<1x1x128x128xbf16> to vector<128x128xbf16>
    %cst_244 = arith.constant dense<0.000000e+00> : vector<64x128xf32>
    %196 = tpu.matmul %193, %195, %cst_244 {dimension_numbers = #tpu.dot_dimension_numbers<[1], [0], [0], [1], [0, 0, 1, 1], [], []>} : vector<64x128xbf16>, vector<128x128xbf16>, vector<64x128xf32> -> vector<64x128xf32>
    %197 = arith.addf %191, %196 : vector<64x128xf32>
    %c2_245 = arith.constant 2 : index
    %c1_246 = arith.constant 1 : index
    %c0_247 = arith.constant 0 : index
    %198 = vector.load %arg13[%c2_245, %c1_246, %c0_247] : memref<6x18x128xbf16, #tpu.memory_space<vmem>>, vector<4x16x128xbf16>
    %199 = vector.shape_cast %198 : vector<4x16x128xbf16> to vector<64x128xbf16>
    %c2_248 = arith.constant 2 : index
    %c1_249 = arith.constant 1 : index
    %c0_250 = arith.constant 0 : index
    %c0_251 = arith.constant 0 : index
    %200 = vector.load %arg8[%c2_248, %c1_249, %c0_250, %c0_251] : memref<3x3x128x128xbf16, #tpu.memory_space<vmem>>, vector<1x1x128x128xbf16>
    %201 = vector.shape_cast %200 : vector<1x1x128x128xbf16> to vector<128x128xbf16>
    %cst_252 = arith.constant dense<0.000000e+00> : vector<64x128xf32>
    %202 = tpu.matmul %199, %201, %cst_252 {dimension_numbers = #tpu.dot_dimension_numbers<[1], [0], [0], [1], [0, 0, 1, 1], [], []>} : vector<64x128xbf16>, vector<128x128xbf16>, vector<64x128xf32> -> vector<64x128xf32>
    %203 = arith.addf %197, %202 : vector<64x128xf32>
    %c2_253 = arith.constant 2 : index
    %c2_254 = arith.constant 2 : index
    %c0_255 = arith.constant 0 : index
    %204 = vector.load %arg13[%c2_253, %c2_254, %c0_255] : memref<6x18x128xbf16, #tpu.memory_space<vmem>>, vector<4x16x128xbf16>
    %205 = vector.shape_cast %204 : vector<4x16x128xbf16> to vector<64x128xbf16>
    %c2_256 = arith.constant 2 : index
    %c2_257 = arith.constant 2 : index
    %c0_258 = arith.constant 0 : index
    %c0_259 = arith.constant 0 : index
    %206 = vector.load %arg8[%c2_256, %c2_257, %c0_258, %c0_259] : memref<3x3x128x128xbf16, #tpu.memory_space<vmem>>, vector<1x1x128x128xbf16>
    %207 = vector.shape_cast %206 : vector<1x1x128x128xbf16> to vector<128x128xbf16>
    %cst_260 = arith.constant dense<0.000000e+00> : vector<64x128xf32>
    %208 = tpu.matmul %205, %207, %cst_260 {dimension_numbers = #tpu.dot_dimension_numbers<[1], [0], [0], [1], [0, 0, 1, 1], [], []>} : vector<64x128xbf16>, vector<128x128xbf16>, vector<64x128xf32> -> vector<64x128xf32>
    %209 = arith.addf %203, %208 : vector<64x128xf32>
    %c0_261 = arith.constant 0 : index
    %c0_262 = arith.constant 0 : index
    %210 = vector.load %arg9[%c0_261, %c0_262] : memref<1x128xf32, #tpu.memory_space<vmem>>, vector<1x128xf32>
    %211 = vector.broadcast %210 : vector<1x128xf32> to vector<64x128xf32>
    %212 = arith.addf %209, %211 : vector<64x128xf32>
    %213 = vector.shape_cast %212 : vector<64x128xf32> to vector<1x4x16x128xf32>
    %c0_263 = arith.constant 0 : index
    %c0_264 = arith.constant 0 : index
    %c0_265 = arith.constant 0 : index
    %c0_266 = arith.constant 0 : index
    %214 = vector.load %arg10[%c0_263, %c0_264, %c0_265, %c0_266] : memref<1x4x16x128xf32, #tpu.memory_space<vmem>>, vector<1x4x16x128xf32>
    tpu.vector_store %arg10[%c0_263, %c0_264, %c0_265, %c0_266], %213 {strides = array<i32>} : memref<1x4x16x128xf32, #tpu.memory_space<vmem>>, vector<1x4x16x128xf32>,
    return
  }
  func.func @transform_0(%arg0: i32) -> (i32, i32, i32, i32) {
    %c0_i32 = arith.constant 0 : i32
    %c0_i32_0 = arith.constant 0 : i32
    %c0_i32_1 = arith.constant 0 : i32
    %c0_i32_2 = arith.constant 0 : i32
    return %arg0, %c0_i32, %c0_i32_0, %c0_i32_1 : i32, i32, i32, i32
  }
  func.func @transform_1(%arg0: i32) -> (i32, i32, i32, i32) {
    %c0_i32 = arith.constant 0 : i32
    %c0_i32_0 = arith.constant 0 : i32
    %c0_i32_1 = arith.constant 0 : i32
    %c0_i32_2 = arith.constant 0 : i32
    return %arg0, %c0_i32, %c0_i32_0, %c0_i32_1 : i32, i32, i32, i32
  }
  func.func @transform_2(%arg0: i32) -> (i32, i32, i32, i32) {
    %c0_i32 = arith.constant 0 : i32
    %c0_i32_0 = arith.constant 0 : i32
    %c0_i32_1 = arith.constant 0 : i32
    %c0_i32_2 = arith.constant 0 : i32
    return %arg0, %c0_i32, %c0_i32_0, %c0_i32_1 : i32, i32, i32, i32
  }
  func.func @transform_3(%arg0: i32) -> (i32, i32, i32, i32) {
    %c0_i32 = arith.constant 0 : i32
    %c0_i32_0 = arith.constant 0 : i32
    %c0_i32_1 = arith.constant 0 : i32
    %c0_i32_2 = arith.constant 0 : i32
    %c0_i32_3 = arith.constant 0 : i32
    return %c0_i32, %c0_i32_0, %c0_i32_1, %c0_i32_2 : i32, i32, i32, i32
  }
  func.func @transform_4(%arg0: i32) -> (i32, i32) {
    %c0_i32 = arith.constant 0 : i32
    %c0_i32_0 = arith.constant 0 : i32
    %c0_i32_1 = arith.constant 0 : i32
    return %c0_i32, %c0_i32_0 : i32, i32
  }
  func.func @transform_5(%arg0: i32) -> (i32, i32, i32, i32) {
    %c0_i32 = arith.constant 0 : i32
    %c0_i32_0 = arith.constant 0 : i32
    %c0_i32_1 = arith.constant 0 : i32
    %c0_i32_2 = arith.constant 0 : i32
    %c0_i32_3 = arith.constant 0 : i32
    return %c0_i32, %c0_i32_0, %c0_i32_1, %c0_i32_2 : i32, i32, i32, i32
  }
  func.func @transform_6(%arg0: i32) -> (i32, i32) {
    %c0_i32 = arith.constant 0 : i32
    %c0_i32_0 = arith.constant 0 : i32
    %c0_i32_1 = arith.constant 0 : i32
    return %c0_i32, %c0_i32_0 : i32, i32
  }
  func.func @transform_7(%arg0: i32) -> (i32, i32, i32, i32) {
    %c0_i32 = arith.constant 0 : i32
    %c0_i32_0 = arith.constant 0 : i32
    %c0_i32_1 = arith.constant 0 : i32
    %c0_i32_2 = arith.constant 0 : i32
    %c0_i32_3 = arith.constant 0 : i32
    return %c0_i32, %c0_i32_0, %c0_i32_1, %c0_i32_2 : i32, i32, i32, i32
  }
  func.func @transform_8(%arg0: i32) -> (i32, i32) {
    %c0_i32 = arith.constant 0 : i32
    %c0_i32_0 = arith.constant 0 : i32
    %c0_i32_1 = arith.constant 0 : i32
    return %c0_i32, %c0_i32_0 : i32, i32
  }
  func.func @transform_9(%arg0: i32) -> (i32, i32, i32, i32) {
    %c0_i32 = arith.constant 0 : i32
    %c0_i32_0 = arith.constant 0 : i32
    %c0_i32_1 = arith.constant 0 : i32
    %c0_i32_2 = arith.constant 0 : i32
    return %arg0, %c0_i32, %c0_i32_0, %c0_i32_1 : i32, i32, i32, i32
  }
}

</mosaic_0001>

<llo_original>
// kernel: tile.28
$region0: #{tile.28}
  #allocation0 [shape = 's32[1]{0}', space=sflag, size = 0x4, scoped, tag = 'scoped memory for tile.28']
  %s0 = inlined_call_operand.vmem [shape: f32[8], index: 0, kind: input, shape index: {}]
  %s1 = inlined_call_operand.vmem [shape: f32[16,8], index: 1, kind: output, shape index: {}]
  // Predicated region
  $region2: #{tile.28} parent=0 // pred_check
    _
  $region3: #{tile.28} parent=0 // pred_check_branch
    %3 = sbr.rel (0) target = $region5
  $region4: #{tile.28} parent=0 // pred_region
    _
  $region5: #{tile.28} parent=0 // pred_fallthru
    _
  %v4 = vld [vmem:[%s0] ss:$0 sm:$0xff]
  %5 = vst [vmem:[%s1] sm:$0xff] %v4
  %s6 = scalar_lea.vmem %s1, 8
  %7 = vst [vmem:[%s6] sm:$0xff] %v4

// kernel: tile.29
$region0: #{tile.29}
  %s0 = inlined_call_operand.vmem [shape: f32[16,8], index: 0, kind: input, shape index: {}]
  %s1 = inlined_call_operand.vmem [shape: f32[1,128], index: 1, kind: output, shape index: {}]
  $region1: #{tile.29} parent=0
    #allocation0 [shape = 'u8[4096]{0}', space=vmem, size = 0x1000, scoped, tag = 'scoped mem for output reshape']
    %v2 = vld [vmem:[%s0] sm:$0x1]
    %vm3 = vcmask 64512
    %4 = vst.msk [vmem:[#allocation0] sm:$0x1] %vm3, %v2
    %s5 = scalar_lea.vmem %s0, 15
    %v6 = vld [vmem:[%s5] sm:$0x1]
    %7 = vrot.lane.b32.xlu0 %v6, 120
    %v8 = vpop.permute.xlu0 %7
    %vm9 = vcmask 1048512
    %10 = vst.msk [vmem:[#allocation0] sm:$0x1] %vm9, %v8
    %s11 = scalar_lea.vmem %s0, 14
    %v12 = vld [vmem:[%s11] sm:$0x1]
    %13 = vrot.lane.b32.xlu0 %v12, 112
    %v14 = vpop.permute.xlu0 %13
    %vm15 = vcmask 982912
    %16 = vst.msk [vmem:[#allocation0] sm:$0x1] %vm15, %v14
    %s17 = scalar_lea.vmem %s0, 13
    %v18 = vld [vmem:[%s17] sm:$0x1]
    %19 = vrot.lane.b32.xlu0 %v18, 104
    %v20 = vpop.permute.xlu0 %19
    %vm21 = vcmask 917312
    %22 = vst.msk [vmem:[#allocation0] sm:$0x1] %vm21, %v20
    %s23 = scalar_lea.vmem %s0, 12
    %v24 = vld [vmem:[%s23] sm:$0x1]
    %25 = vrot.lane.b32.xlu0 %v24, 96
    %v26 = vpop.permute.xlu0 %25
    %vm27 = vcmask 851712
    %28 = vst.msk [vmem:[#allocation0] sm:$0x1] %vm27, %v26
    %s29 = scalar_lea.vmem %s0, 11
    %v30 = vld [vmem:[%s29] sm:$0x1]
    %31 = vrot.lane.b32.xlu0 %v30, 88
    %v32 = vpop.permute.xlu0 %31
    %vm33 = vcmask 786112
    %34 = vst.msk [vmem:[#allocation0] sm:$0x1] %vm33, %v32
    %s35 = scalar_lea.vmem %s0, 10
    %v36 = vld [vmem:[%s35] sm:$0x1]
    %37 = vrot.lane.b32.xlu0 %v36, 80
    %v38 = vpop.permute.xlu0 %37
    %vm39 = vcmask 720512
    %40 = vst.msk [vmem:[#allocation0] sm:$0x1] %vm39, %v38
    %s41 = scalar_lea.vmem %s0, 9
    %v42 = vld [vmem:[%s41] sm:$0x1]
    %43 = vrot.lane.b32.xlu0 %v42, 72
    %v44 = vpop.permute.xlu0 %43
    %vm45 = vcmask 654912
    %46 = vst.msk [vmem:[#allocation0] sm:$0x1] %vm45, %v44
    %s47 = scalar_lea.vmem %s0, 8
    %v48 = vld [vmem:[%s47] sm:$0x1]
    %49 = vrot.lane.b32.xlu0 %v48, 64
    %v50 = vpop.permute.xlu0 %49
    %vm51 = vcmask 589312
    %52 = vst.msk [vmem:[#allocation0] sm:$0x1] %vm51, %v50
    %s53 = scalar_lea.vmem %s0, 7
    %v54 = vld [vmem:[%s53] sm:$0x1]
    %55 = vrot.lane.b32.xlu0 %v54, 56
    %v56 = vpop.permute.xlu0 %55
    %vm57 = vcmask 523712
    %58 = vst.msk [vmem:[#allocation0] sm:$0x1] %vm57, %v56
    %s59 = scalar_lea.vmem %s0, 6
    %v60 = vld [vmem:[%s59] sm:$0x1]
    %61 = vrot.lane.b32.xlu0 %v60, 48
    %v62 = vpop.permute.xlu0 %61
    %vm63 = vcmask 458112
    %64 = vst.msk [vmem:[#allocation0] sm:$0x1] %vm63, %v62
    %s65 = scalar_lea.vmem %s0, 5
    %v66 = vld [vmem:[%s65] sm:$0x1]
    %67 = vrot.lane.b32.xlu0 %v66, 40
    %v68 = vpop.permute.xlu0 %67
    %vm69 = vcmask 392512
    %70 = vst.msk [vmem:[#allocation0] sm:$0x1] %vm69, %v68
    %s71 = scalar_lea.vmem %s0, 4
    %v72 = vld [vmem:[%s71] sm:$0x1]
    %73 = vrot.lane.b32.xlu0 %v72, 32
    %v74 = vpop.permute.xlu0 %73
    %vm75 = vcmask 326912
    %76 = vst.msk [vmem:[#allocation0] sm:$0x1] %vm75, %v74
    %s77 = scalar_lea.vmem %s0, 3
    %v78 = vld [vmem:[%s77] sm:$0x1]
    %79 = vrot.lane.b32.xlu0 %v78, 24
    %v80 = vpop.permute.xlu0 %79
    %vm81 = vcmask 261312
    %82 = vst.msk [vmem:[#allocation0] sm:$0x1] %vm81, %v80
    %s83 = scalar_lea.vmem %s0, 2
    %v84 = vld [vmem:[%s83] sm:$0x1]
    %85 = vrot.lane.b32.xlu0 %v84, 16
    %v86 = vpop.permute.xlu0 %85
    %vm87 = vcmask 195712
    %88 = vst.msk [vmem:[#allocation0] sm:$0x1] %vm87, %v86
    %s89 = scalar_lea.vmem %s0, 1
    %v90 = vld [vmem:[%s89] sm:$0x1]
    %91 = vrot.lane.b32.xlu0 %v90, 8
    %v92 = vpop.permute.xlu0 %91
    %vm93 = vcmask 130112
    %94 = vst.msk [vmem:[#allocation0] sm:$0x1] %vm93, %v92
    %s96 = sshllo.u32 0, 1
    %v98 = vld [vmem:[#allocation0] sm:%s96]
    %s99 = sshllo.u32 0, 1
    %100 = vst [vmem:[%s1] sm:%s99] %v98

// kernel: tile.18
$region0: #{tile.18}
  #allocation0 [shape = 's32[1]{0}', space=sflag, size = 0x4, scoped, tag = 'scoped memory for tile.18']
  %s0 = inlined_call_operand.vmem [shape: f32[16], index: 0, kind: input, shape index: {}]
  %s1 = inlined_call_operand.vmem [shape: f32[8,16], index: 1, kind: output, shape index: {}]
  // Predicated region
  $region2: #{tile.18} parent=0 // pred_check
    _
  $region3: #{tile.18} parent=0 // pred_check_branch
    %3 = sbr.rel (0) target = $region5
  $region4: #{tile.18} parent=0 // pred_region
    _
  $region5: #{tile.18} parent=0 // pred_fallthru
    _
  %v4 = vld [vmem:[%s0] ss:$0 sm:$0xff]
  %5 = vst [vmem:[%s1] sm:$0xff] %v4

// kernel: tile.19
$region0: #{tile.19}
  %s0 = inlined_call_operand.vmem [shape: f32[8,16], index: 0, kind: input, shape index: {}]
  %s1 = inlined_call_operand.vmem [shape: f32[1,128], index: 1, kind: output, shape index: {}]
  $region1: #{tile.19} parent=0
    #allocation0 [shape = 'u8[4096]{0}', space=vmem, size = 0x1000, scoped, tag = 'scoped mem for output reshape']
    %v2 = vld [vmem:[%s0] sm:$0x1]
    %vm3 = vcmask 130048
    %4 = vst.msk [vmem:[#allocation0] sm:$0x1] %vm3, %v2
    %s5 = scalar_lea.vmem %s0, 7
    %v6 = vld [vmem:[%s5] sm:$0x1]
    %7 = vrot.lane.b32.xlu0 %v6, 112
    %v8 = vpop.permute.xlu0 %7
    %vm9 = vcmask 1048448
    %10 = vst.msk [vmem:[#allocation0] sm:$0x1] %vm9, %v8
    %s11 = scalar_lea.vmem %s0, 6
    %v12 = vld [vmem:[%s11] sm:$0x1]
    %13 = vrot.lane.b32.xlu0 %v12, 96
    %v14 = vpop.permute.xlu0 %13
    %vm15 = vcmask 917248
    %16 = vst.msk [vmem:[#allocation0] sm:$0x1] %vm15, %v14
    %s17 = scalar_lea.vmem %s0, 5
    %v18 = vld [vmem:[%s17] sm:$0x1]
    %19 = vrot.lane.b32.xlu0 %v18, 80
    %v20 = vpop.permute.xlu0 %19
    %vm21 = vcmask 786048
    %22 = vst.msk [vmem:[#allocation0] sm:$0x1] %vm21, %v20
    %s23 = scalar_lea.vmem %s0, 4
    %v24 = vld [vmem:[%s23] sm:$0x1]
    %25 = vrot.lane.b32.xlu0 %v24, 64
    %v26 = vpop.permute.xlu0 %25
    %vm27 = vcmask 654848
    %28 = vst.msk [vmem:[#allocation0] sm:$0x1] %vm27, %v26
    %s29 = scalar_lea.vmem %s0, 3
    %v30 = vld [vmem:[%s29] sm:$0x1]
    %31 = vrot.lane.b32.xlu0 %v30, 48
    %v32 = vpop.permute.xlu0 %31
    %vm33 = vcmask 523648
    %34 = vst.msk [vmem:[#allocation0] sm:$0x1] %vm33, %v32
    %s35 = scalar_lea.vmem %s0, 2
    %v36 = vld [vmem:[%s35] sm:$0x1]
    %37 = vrot.lane.b32.xlu0 %v36, 32
    %v38 = vpop.permute.xlu0 %37
    %vm39 = vcmask 392448
    %40 = vst.msk [vmem:[#allocation0] sm:$0x1] %vm39, %v38
    %s41 = scalar_lea.vmem %s0, 1
    %v42 = vld [vmem:[%s41] sm:$0x1]
    %43 = vrot.lane.b32.xlu0 %v42, 16
    %v44 = vpop.permute.xlu0 %43
    %vm45 = vcmask 261248
    %46 = vst.msk [vmem:[#allocation0] sm:$0x1] %vm45, %v44
    %s48 = sshllo.u32 0, 1
    %v50 = vld [vmem:[#allocation0] sm:%s48]
    %s51 = sshllo.u32 0, 1
    %52 = vst [vmem:[%s1] sm:%s51] %v50

// kernel: unet3d_decoder_forward.1
$region0: #{unet3d_decoder_forward.1}
  #allocation0 [shape = 'u32[]', space=smem, size = 0x4, offset = 0x4, fixed_abs, tag = 'smem constant byte address 0x4 - core index']
  #allocation1 [shape = 'u32[144,128]{1,0:T(1,128)}', space=vmem, size = 0x12000, scoped, tag = 'internal scratch']
  #allocation2 [shape = 'bf16[6,10,256]{2,1,0:T(8,128)(2,1)}', space=vmem, size = 0xc000, scoped, tag = 'scratch operand']
  #allocation3 [shape = 'bf16[6,18,256]{2,1,0:T(8,128)(2,1)}', space=vmem, size = 0x12000, scoped, tag = 'scratch operand']
  #allocation4 [shape = 'bf16[6,18,128]{2,1,0:T(8,128)(2,1)}', space=vmem, size = 0x9000, scoped, tag = 'scratch operand']
  %s0 = inlined_call_operand.vmem [shape: bf16[2,4,4,128], index: 0, kind: input, shape index: {}]
  %s1 = inlined_call_operand.vmem [shape: bf16[2,4,8,128], index: 1, kind: input, shape index: {}]
  %s2 = inlined_call_operand.vmem [shape: bf16[2,4,16,128], index: 2, kind: input, shape index: {}]
  %s3 = inlined_call_operand.vmem [shape: bf16[3,3,256,128], index: 3, kind: input, shape index: {}]
  %s4 = inlined_call_operand.vmem [shape: f32[1,128], index: 4, kind: input, shape index: {}]
  %s5 = inlined_call_operand.vmem [shape: bf16[3,3,256,128], index: 5, kind: input, shape index: {}]
  %s6 = inlined_call_operand.vmem [shape: f32[1,128], index: 6, kind: input, shape index: {}]
  %s7 = inlined_call_operand.vmem [shape: bf16[3,3,128,128], index: 7, kind: input, shape index: {}]
  %s8 = inlined_call_operand.vmem [shape: f32[1,128], index: 8, kind: input, shape index: {}]
  %s9 = inlined_call_operand.vmem [shape: f32[2,4,16,128], index: 9, kind: output, shape index: {}]
  %s10 = sld [smem:[#allocation0]]
  $region69: #{unet3d_decoder_forward.1} parent=0
    _
  %s12 = ssub.s32 1, %s10
  %s13 = scalar_select 0, %s12, %s10
  loop: start=0, step=1, limit=4
  $region2: #{unet3d_decoder_forward.1} parent=0 // loop_pre_header
    _
  $region3: #{unet3d_decoder_forward.1} parent=0 // loop_header
    %s15 = sphi 0, %s19
    %p16 = scmp.ge.s32.totalorder %s15, 4
    %s25 = sphi 0, %s27
    %s28 = sphi 0, %s25
    %s29 = sphi 0, %s28
    %s45 = sphi 0, %s29
    %s51 = sphi 0, %s53
    %s54 = sphi 0, %s51
    %s55 = sphi 0, %s54
    %s71 = sphi 0, %s55
    %s77 = sphi 0, %s79
    %s80 = sphi 0, %s77
    %s81 = sphi 0, %s80
    %s97 = sphi 0, %s81
    %s101 = sphi 0, %s101
    %s103 = sphi 0, %s101
    %s104 = sphi 0, %s103
    %s118 = sphi 0, %s104
    %s122 = sphi 0, %s122
    %s124 = sphi 0, %s122
    %s125 = sphi 0, %s124
    %s139 = sphi 0, %s125
    %s143 = sphi 0, %s143
    %s145 = sphi 0, %s143
    %s146 = sphi 0, %s145
    %s160 = sphi 0, %s146
    %s164 = sphi 0, %s164
    %s166 = sphi 0, %s164
    %s167 = sphi 0, %s166
    %s181 = sphi 0, %s167
    %s185 = sphi 0, %s185
    %s187 = sphi 0, %s185
    %s188 = sphi 0, %s187
    %s202 = sphi 0, %s188
    %s206 = sphi 0, %s206
    %s208 = sphi 0, %s206
    %s209 = sphi 0, %s208
    %s223 = sphi 0, %s209
    %s229 = sphi 0, %s231
    %s232 = sphi 0, %s229
    %s233 = sphi 0, %s232
    %s249 = sphi 0, %s233
  $region4: #{unet3d_decoder_forward.1} parent=0 // loop_header_branch
    %18 = sbr.rel (%p16) target = $region8
  $region5: #{unet3d_decoder_forward.1} parent=0 // loop_body
    %s20 = ssub.s32 %s15, 1
    %s21 = ssub.s32 %s15, 2
    %s22 = sadd.s32 %s15, 1
    %s23 = ssub.s32 %s15, %s22
    %p24 = scmp.eq.s32.totalorder %s23, 0
    %s26 = sadd.s32 %s25, 1
    %s27 = scalar_select %p24, %s25, %s26
    %p30 = pneg %p24
    %p31 = scmp.eq.s32.totalorder %s15, 1
    %p32 = por %p30, %p31
    %p33 = scmp.ne.s32.totalorder %s25, %s28
    %p34 = scmp.eq.s32.totalorder %s15, 0
    %p35 = por %p33, %p34
    %p36 = scmp.ne.s32.totalorder %s25, %s28
    %p37 = scmp.eq.s32.totalorder %s20, 1
    %p38 = por %p36, %p37
    %p39 = scmp.ne.s32.totalorder %s28, %s29
    %p40 = scmp.eq.s32.totalorder %s20, 0
    %p41 = por %p39, %p40
    %p42 = scmp.ne.s32.totalorder %s28, %s29
    %p43 = scmp.eq.s32.totalorder %s21, 1
    %p44 = por %p42, %p43
    %p46 = scmp.ne.s32.totalorder %s29, %s45
    %p47 = scmp.eq.s32.totalorder %s21, 0
    %p48 = por %p46, %p47
    %s49 = ssub.s32 %s15, %s22
    %p50 = scmp.eq.s32.totalorder %s49, 0
    %s52 = sadd.s32 %s51, 1
    %s53 = scalar_select %p50, %s51, %s52
    %p56 = pneg %p50
    %p57 = scmp.eq.s32.totalorder %s15, 1
    %p58 = por %p56, %p57
    %p59 = scmp.ne.s32.totalorder %s51, %s54
    %p60 = scmp.eq.s32.totalorder %s15, 0
    %p61 = por %p59, %p60
    %p62 = scmp.ne.s32.totalorder %s51, %s54
    %p63 = scmp.eq.s32.totalorder %s20, 1
    %p64 = por %p62, %p63
    %p65 = scmp.ne.s32.totalorder %s54, %s55
    %p66 = scmp.eq.s32.totalorder %s20, 0
    %p67 = por %p65, %p66
    %p68 = scmp.ne.s32.totalorder %s54, %s55
    %p69 = scmp.eq.s32.totalorder %s21, 1
    %p70 = por %p68, %p69
    %p72 = scmp.ne.s32.totalorder %s55, %s71
    %p73 = scmp.eq.s32.totalorder %s21, 0
    %p74 = por %p72, %p73
    %s75 = ssub.s32 %s15, %s22
    %p76 = scmp.eq.s32.totalorder %s75, 0
    %s78 = sadd.s32 %s77, 1
    %s79 = scalar_select %p76, %s77, %s78
    %p82 = pneg %p76
    %p83 = scmp.eq.s32.totalorder %s15, 1
    %p84 = por %p82, %p83
    %p85 = scmp.ne.s32.totalorder %s77, %s80
    %p86 = scmp.eq.s32.totalorder %s15, 0
    %p87 = por %p85, %p86
    %p88 = scmp.ne.s32.totalorder %s77, %s80
    %p89 = scmp.eq.s32.totalorder %s20, 1
    %p90 = por %p88, %p89
    %p91 = scmp.ne.s32.totalorder %s80, %s81
    %p92 = scmp.eq.s32.totalorder %s20, 0
    %p93 = por %p91, %p92
    %p94 = scmp.ne.s32.totalorder %s80, %s81
    %p95 = scmp.eq.s32.totalorder %s21, 1
    %p96 = por %p94, %p95
    %p98 = scmp.ne.s32.totalorder %s81, %s97
    %p99 = scmp.eq.s32.totalorder %s21, 0
    %p100 = por %p98, %p99
    %s102 = sadd.s32 %s101, 1
    %p105 = scmp.eq.s32.totalorder %s15, 1
    %p106 = scmp.ne.s32.totalorder %s101, %s103
    %p107 = scmp.eq.s32.totalorder %s15, 0
    %p108 = por %p106, %p107
    %p109 = scmp.ne.s32.totalorder %s101, %s103
    %p110 = scmp.eq.s32.totalorder %s20, 1
    %p111 = por %p109, %p110
    %p112 = scmp.ne.s32.totalorder %s103, %s104
    %p113 = scmp.eq.s32.totalorder %s20, 0
    %p114 = por %p112, %p113
    %p115 = scmp.ne.s32.totalorder %s103, %s104
    %p116 = scmp.eq.s32.totalorder %s21, 1
    %p117 = por %p115, %p116
    %p119 = scmp.ne.s32.totalorder %s104, %s118
    %p120 = scmp.eq.s32.totalorder %s21, 0
    %p121 = por %p119, %p120
    %s123 = sadd.s32 %s122, 1
    %p126 = scmp.eq.s32.totalorder %s15, 1
    %p127 = scmp.ne.s32.totalorder %s122, %s124
    %p128 = scmp.eq.s32.totalorder %s15, 0
    %p129 = por %p127, %p128
    %p130 = scmp.ne.s32.totalorder %s122, %s124
    %p131 = scmp.eq.s32.totalorder %s20, 1
    %p132 = por %p130, %p131
    %p133 = scmp.ne.s32.totalorder %s124, %s125
    %p134 = scmp.eq.s32.totalorder %s20, 0
    %p135 = por %p133, %p134
    %p136 = scmp.ne.s32.totalorder %s124, %s125
    %p137 = scmp.eq.s32.totalorder %s21, 1
    %p138 = por %p136, %p137
    %p140 = scmp.ne.s32.totalorder %s125, %s139
    %p141 = scmp.eq.s32.totalorder %s21, 0
    %p142 = por %p140, %p141
    %s144 = sadd.s32 %s143, 1
    %p147 = scmp.eq.s32.totalorder %s15, 1
    %p148 = scmp.ne.s32.totalorder %s143, %s145
    %p149 = scmp.eq.s32.totalorder %s15, 0
    %p150 = por %p148, %p149
    %p151 = scmp.ne.s32.totalorder %s143, %s145
    %p152 = scmp.eq.s32.totalorder %s20, 1
    %p153 = por %p151, %p152
    %p154 = scmp.ne.s32.totalorder %s145, %s146
    %p155 = scmp.eq.s32.totalorder %s20, 0
    %p156 = por %p154, %p155
    %p157 = scmp.ne.s32.totalorder %s145, %s146
    %p158 = scmp.eq.s32.totalorder %s21, 1
    %p159 = por %p157, %p158
    %p161 = scmp.ne.s32.totalorder %s146, %s160
    %p162 = scmp.eq.s32.totalorder %s21, 0
    %p163 = por %p161, %p162
    %s165 = sadd.s32 %s164, 1
    %p168 = scmp.eq.s32.totalorder %s15, 1
    %p169 = scmp.ne.s32.totalorder %s164, %s166
    %p170 = scmp.eq.s32.totalorder %s15, 0
    %p171 = por %p169, %p170
    %p172 = scmp.ne.s32.totalorder %s164, %s166
    %p173 = scmp.eq.s32.totalorder %s20, 1
    %p174 = por %p172, %p173
    %p175 = scmp.ne.s32.totalorder %s166, %s167
    %p176 = scmp.eq.s32.totalorder %s20, 0
    %p177 = por %p175, %p176
    %p178 = scmp.ne.s32.totalorder %s166, %s167
    %p179 = scmp.eq.s32.totalorder %s21, 1
    %p180 = por %p178, %p179
    %p182 = scmp.ne.s32.totalorder %s167, %s181
    %p183 = scmp.eq.s32.totalorder %s21, 0
    %p184 = por %p182, %p183
    %s186 = sadd.s32 %s185, 1
    %p189 = scmp.eq.s32.totalorder %s15, 1
    %p190 = scmp.ne.s32.totalorder %s185, %s187
    %p191 = scmp.eq.s32.totalorder %s15, 0
    %p192 = por %p190, %p191
    %p193 = scmp.ne.s32.totalorder %s185, %s187
    %p194 = scmp.eq.s32.totalorder %s20, 1
    %p195 = por %p193, %p194
    %p196 = scmp.ne.s32.totalorder %s187, %s188
    %p197 = scmp.eq.s32.totalorder %s20, 0
    %p198 = por %p196, %p197
    %p199 = scmp.ne.s32.totalorder %s187, %s188
    %p200 = scmp.eq.s32.totalorder %s21, 1
    %p201 = por %p199, %p200
    %p203 = scmp.ne.s32.totalorder %s188, %s202
    %p204 = scmp.eq.s32.totalorder %s21, 0
    %p205 = por %p203, %p204
    %s207 = sadd.s32 %s206, 1
    %p210 = scmp.eq.s32.totalorder %s15, 1
    %p211 = scmp.ne.s32.totalorder %s206, %s208
    %p212 = scmp.eq.s32.totalorder %s15, 0
    %p213 = por %p211, %p212
    %p214 = scmp.ne.s32.totalorder %s206, %s208
    %p215 = scmp.eq.s32.totalorder %s20, 1
    %p216 = por %p214, %p215
    %p217 = scmp.ne.s32.totalorder %s208, %s209
    %p218 = scmp.eq.s32.totalorder %s20, 0
    %p219 = por %p217, %p218
    %p220 = scmp.ne.s32.totalorder %s208, %s209
    %p221 = scmp.eq.s32.totalorder %s21, 1
    %p222 = por %p220, %p221
    %p224 = scmp.ne.s32.totalorder %s209, %s223
    %p225 = scmp.eq.s32.totalorder %s21, 0
    %p226 = por %p224, %p225
    %s227 = ssub.s32 %s15, %s22
    %p228 = scmp.eq.s32.totalorder %s227, 0
    %s230 = sadd.s32 %s229, 1
    %s231 = scalar_select %p228, %s229, %s230
    %p234 = pneg %p228
    %p235 = scmp.eq.s32.totalorder %s15, 1
    %p236 = por %p234, %p235
    %p237 = scmp.ne.s32.totalorder %s229, %s232
    %p238 = scmp.eq.s32.totalorder %s15, 0
    %p239 = por %p237, %p238
    %p240 = scmp.ne.s32.totalorder %s229, %s232
    %p241 = scmp.eq.s32.totalorder %s20, 1
    %p242 = por %p240, %p241
    %p243 = scmp.ne.s32.totalorder %s232, %s233
    %p244 = scmp.eq.s32.totalorder %s20, 0
    %p245 = por %p243, %p244
    %p246 = scmp.ne.s32.totalorder %s232, %s233
    %p247 = scmp.eq.s32.totalorder %s21, 1
    %p248 = por %p246, %p247
    %p250 = scmp.ne.s32.totalorder %s233, %s249
    %p251 = scmp.eq.s32.totalorder %s21, 0
    %p252 = por %p250, %p251
    %p253 = scmp.le.s32.totalorder 1, %s15
    %p254 = scmp.lt.s32.totalorder %s15, 3
    %p255 = pnand %p253, %p254
    %p256 = pneg %p255
    // Predicated region
    $region9: #{unet3d_decoder_forward.1} parent=5 // pred_check
      _
    $region10: #{unet3d_decoder_forward.1} parent=5 // pred_check_branch
      %258 = sbr.rel (%p255) target = $region12
    $region11: #{unet3d_decoder_forward.1} parent=5 // pred_region
      %s259 = ssub.s32 %s15, 1
      // Predicated region
      $region13: #{unet3d_decoder_forward.1} parent=11 // pred_check
        %p260 = pneg %p114
      $region14: #{unet3d_decoder_forward.1} parent=11 // pred_check_branch
        %262 = sbr.rel (%p260) target = $region16
      $region15: #{unet3d_decoder_forward.1} parent=11 // pred_region
        _
      $region16: #{unet3d_decoder_forward.1} parent=11 // pred_fallthru
        _
      // Predicated region
      $region17: #{unet3d_decoder_forward.1} parent=11 // pred_check
        %p263 = pneg %p135
      $region18: #{unet3d_decoder_forward.1} parent=11 // pred_check_branch
        %265 = sbr.rel (%p263) target = $region20
      $region19: #{unet3d_decoder_forward.1} parent=11 // pred_region
        _
      $region20: #{unet3d_decoder_forward.1} parent=11 // pred_fallthru
        _
      // Predicated region
      $region21: #{unet3d_decoder_forward.1} parent=11 // pred_check
        %p266 = pneg %p156
      $region22: #{unet3d_decoder_forward.1} parent=11 // pred_check_branch
        %268 = sbr.rel (%p266) target = $region24
      $region23: #{unet3d_decoder_forward.1} parent=11 // pred_region
        _
      $region24: #{unet3d_decoder_forward.1} parent=11 // pred_fallthru
        _
      // Predicated region
      $region25: #{unet3d_decoder_forward.1} parent=11 // pred_check
        %p269 = pneg %p177
      $region26: #{unet3d_decoder_forward.1} parent=11 // pred_check_branch
        %271 = sbr.rel (%p269) target = $region28
      $region27: #{unet3d_decoder_forward.1} parent=11 // pred_region
        _
      $region28: #{unet3d_decoder_forward.1} parent=11 // pred_fallthru
        _
      // Predicated region
      $region29: #{unet3d_decoder_forward.1} parent=11 // pred_check
        %p272 = pneg %p198
      $region30: #{unet3d_decoder_forward.1} parent=11 // pred_check_branch
        %274 = sbr.rel (%p272) target = $region32
      $region31: #{unet3d_decoder_forward.1} parent=11 // pred_region
        _
      $region32: #{unet3d_decoder_forward.1} parent=11 // pred_fallthru
        _
      // Predicated region
      $region33: #{unet3d_decoder_forward.1} parent=11 // pred_check
        %p275 = pneg %p219
      $region34: #{unet3d_decoder_forward.1} parent=11 // pred_check_branch
        %277 = sbr.rel (%p275) target = $region36
      $region35: #{unet3d_decoder_forward.1} parent=11 // pred_region
        _
      $region36: #{unet3d_decoder_forward.1} parent=11 // pred_fallthru
        _
    $region12: #{unet3d_decoder_forward.1} parent=5 // pred_fallthru
      _
    %p278 = scmp.lt.s32.totalorder %s15, 2
    // Predicated region
    $region37: #{unet3d_decoder_forward.1} parent=5 // pred_check
      %p279 = pneg %p278
    $region38: #{unet3d_decoder_forward.1} parent=5 // pred_check_branch
      %281 = sbr.rel (%p279) target = $region40
    $region39: #{unet3d_decoder_forward.1} parent=5 // pred_region
      // Predicated region
      $region41: #{unet3d_decoder_forward.1} parent=39 // pred_check
        %p282 = pneg %p35
      $region42: #{unet3d_decoder_forward.1} parent=39 // pred_check_branch
        %284 = sbr.rel (%p282) target = $region44
      $region43: #{unet3d_decoder_forward.1} parent=39 // pred_region
        %p285 = scmp.lt.s32.totalorder %s15, 1
        %s286 = scalar_select %p285, %s15, 1
        %s287 = smul.addr %s286, 4
        %s288 = smul.addr %s287, 2
        %s289 = scalar_lea.vmem %s0, %s288
      $region44: #{unet3d_decoder_forward.1} parent=39 // pred_fallthru
        _
      // Predicated region
      $region45: #{unet3d_decoder_forward.1} parent=39 // pred_check
        %p290 = pneg %p61
      $region46: #{unet3d_decoder_forward.1} parent=39 // pred_check_branch
        %292 = sbr.rel (%p290) target = $region48
      $region47: #{unet3d_decoder_forward.1} parent=39 // pred_region
        %p293 = scmp.lt.s32.totalorder %s15, 1
        %s294 = scalar_select %p293, %s15, 1
        %s295 = smul.addr %s294, 4
        %s296 = smul.addr %s295, 4
        %s297 = scalar_lea.vmem %s1, %s296
      $region48: #{unet3d_decoder_forward.1} parent=39 // pred_fallthru
        _
      // Predicated region
      $region49: #{unet3d_decoder_forward.1} parent=39 // pred_check
        %p298 = pneg %p87
      $region50: #{unet3d_decoder_forward.1} parent=39 // pred_check_branch
        %300 = sbr.rel (%p298) target = $region52
      $region51: #{unet3d_decoder_forward.1} parent=39 // pred_region
        %p301 = scmp.lt.s32.totalorder %s15, 1
        %s302 = scalar_select %p301, %s15, 1
        %s303 = smul.addr %s302, 8
        %s304 = smul.addr %s303, 4
        %s305 = scalar_lea.vmem %s2, %s304
      $region52: #{unet3d_decoder_forward.1} parent=39 // pred_fallthru
        _
    $region40: #{unet3d_decoder_forward.1} parent=5 // pred_fallthru
      _
    %p306 = scmp.le.s32.totalorder 1, %s15
    %p307 = scmp.lt.s32.totalorder %s15, 3
    %p308 = pnand %p306, %p307
    %p309 = pneg %p308
    // Predicated region
    $region53: #{unet3d_decoder_forward.1} parent=5 // pred_check
      _
    $region54: #{unet3d_decoder_forward.1} parent=5 // pred_check_branch
      %311 = sbr.rel (%p308) target = $region56
    $region55: #{unet3d_decoder_forward.1} parent=5 // pred_region
      %s312 = ssub.s32 %s15, 1
      %p313 = scmp.lt.s32.totalorder %s20, 1
      %s314 = scalar_select %p313, %s20, 1
      %s315 = smul.addr %s314, 4
      %s316 = smul.addr %s315, 2
      %s317 = scalar_lea.vmem %s0, %s316
      %p318 = pneg %p41
      %p319 = pneg %p38
      %p320 = scmp.lt.s32.totalorder %s20, 1
      %s321 = scalar_select %p320, %s20, 1
      %s322 = smul.addr %s321, 4
      %s323 = smul.addr %s322, 4
      %s324 = scalar_lea.vmem %s1, %s323
      %p325 = pneg %p67
      %p326 = pneg %p64
      %p327 = scmp.lt.s32.totalorder %s20, 1
      %s328 = scalar_select %p327, %s20, 1
      %s329 = smul.addr %s328, 8
      %s330 = smul.addr %s329, 4
      %s331 = scalar_lea.vmem %s2, %s330
      %p332 = pneg %p93
      %p333 = pneg %p90
      %p334 = pneg %p114
      %p335 = pneg %p111
      %p336 = pneg %p135
      %p337 = pneg %p132
      %p338 = pneg %p156
      %p339 = pneg %p153
      %p340 = pneg %p177
      %p341 = pneg %p174
      %p342 = pneg %p198
      %p343 = pneg %p195
      %p344 = pneg %p219
      %p345 = pneg %p216
      %p346 = pneg %p245
      %p347 = pneg %p242
      %p348 = scmp.lt.s32.totalorder %s20, 1
      %s349 = scalar_select %p348, %s20, 1
      %s350 = smul.addr %s349, 8
      %s351 = smul.addr %s350, 8
      %s352 = scalar_lea.vmem %s9, %s351
      %p353 = scmp.lt.s32.totalorder %s20, 1
      %s354 = scalar_select %p353, %s20, 1
      %s355 = smul.addr %s354, 4
      %s356 = smul.addr %s355, 2
      %s357 = scalar_lea.vmem %s0, %s356
      %p358 = scmp.lt.s32.totalorder %s20, 1
      %s359 = scalar_select %p358, %s20, 1
      %s360 = smul.addr %s359, 4
      %s361 = smul.addr %s360, 4
      %s362 = scalar_lea.vmem %s1, %s361
      %p363 = scmp.lt.s32.totalorder %s20, 1
      %s364 = scalar_select %p363, %s20, 1
      %s365 = smul.addr %s364, 8
      %s366 = smul.addr %s365, 4
      %s367 = scalar_lea.vmem %s2, %s366
      %p368 = scmp.lt.s32.totalorder %s20, 1
      %s369 = scalar_select %p368, %s20, 1
      %s370 = smul.addr %s369, 8
      %s371 = smul.addr %s370, 8
      %s372 = scalar_lea.vmem %s9, %s371
      %v374 = vld [vmem:[%s357] sm:$0x3]
      %v375 = vld [vmem:[%s357 + $0x2] sm:$0x3]
      %v376 = vld [vmem:[%s357 + $0x4] sm:$0x3]
      %v377 = vld [vmem:[%s357 + $0x6] sm:$0x3]
      %v378 = vld [vmem:[%s362] sm:$0xf]
      %v379 = vld [vmem:[%s362 + $0x4] sm:$0xf]
      %v380 = vld [vmem:[%s362 + $0x8] sm:$0xf]
      %v381 = vld [vmem:[%s362 + $0xc] sm:$0xf]
      %382 = vst [vmem:[#allocation2] sm:$0xff] 0
      %383 = vst [vmem:[#allocation2 + $0x8] sm:$0x11] 0
      %384 = vst [vmem:[#allocation2 + $0x10] sm:$0xff] 0
      %385 = vst [vmem:[#allocation2 + $0x18] sm:$0x11] 0
      %386 = vst [vmem:[#allocation2 + $0x20] sm:$0xff] 0
      %387 = vst [vmem:[#allocation2 + $0x28] sm:$0x11] 0
      %388 = vst [vmem:[#allocation2 + $0x30] sm:$0xff] 0
      %389 = vst [vmem:[#allocation2 + $0x38] sm:$0x11] 0
      %390 = vst [vmem:[#allocation2 + $0x40] sm:$0xff] 0
      %391 = vst [vmem:[#allocation2 + $0x48] sm:$0x11] 0
      %392 = vst [vmem:[#allocation2 + $0x50] sm:$0xff] 0
      %393 = vst [vmem:[#allocation2 + $0x58] sm:$0x11] 0
      %v399 = vunpack.c.l.s4 1966171168
      %v400 = vunpack.c.0.s8 %v399
      %v401 = vlaneseq
      %v402 = vshrl.u32 %v401, 7
      %v403 = vsub.s32 %v400, %v402
      %v404 = vrot.slane %v374, %v403
      %v405 = vcombine.high %v404, %v404
      %v407 = vunpack.c.l.s4 1966171168
      %v408 = vunpack.c.0.s8 %v407
      %v409 = vlaneseq
      %v410 = vshrl.u32 %v409, 7
      %v411 = vsub.s32 %v408, %v410
      %v412 = vrot.slane %v375, %v411
      %v413 = vcombine.high %v412, %v412
      %v415 = vunpack.c.l.s4 1966171168
      %v416 = vunpack.c.0.s8 %v415
      %v417 = vlaneseq
      %v418 = vshrl.u32 %v417, 7
      %v419 = vsub.s32 %v416, %v418
      %v420 = vrot.slane %v376, %v419
      %v421 = vcombine.high %v420, %v420
      %v423 = vunpack.c.l.s4 1966171168
      %v424 = vunpack.c.0.s8 %v423
      %v425 = vlaneseq
      %v426 = vshrl.u32 %v425, 7
      %v427 = vsub.s32 %v424, %v426
      %v428 = vrot.slane %v377, %v427
      %v429 = vcombine.high %v428, %v428
      %v430 = vunpack.i.l.s16 %v404
      %v431 = vunpack.i.h.s16 %v404
      %v432 = vunpack.i.l.s16 %v405
      %v433 = vunpack.i.h.s16 %v405
      %v434 = vunpack.i.l.s16 %v412
      %v435 = vunpack.i.h.s16 %v412
      %v436 = vunpack.i.l.s16 %v413
      %v437 = vunpack.i.h.s16 %v413
      %v438 = vunpack.i.l.s16 %v420
      %v439 = vunpack.i.h.s16 %v420
      %v440 = vunpack.i.l.s16 %v421
      %v441 = vunpack.i.h.s16 %v421
      %v442 = vunpack.i.l.s16 %v428
      %v443 = vunpack.i.h.s16 %v428
      %v444 = vunpack.i.l.s16 %v429
      %v445 = vunpack.i.h.s16 %v429
      %v446 = vpack.i.b16 %v430, %v430
      %v447 = vpack.i.b16 %v431, %v431
      %v448 = vpack.i.b16 %v432, %v432
      %v449 = vpack.i.b16 %v433, %v433
      %v450 = vpack.i.b16 %v434, %v434
      %v451 = vpack.i.b16 %v435, %v435
      %v452 = vpack.i.b16 %v436, %v436
      %v453 = vpack.i.b16 %v437, %v437
      %v454 = vpack.i.b16 %v438, %v438
      %v455 = vpack.i.b16 %v439, %v439
      %v456 = vpack.i.b16 %v440, %v440
      %v457 = vpack.i.b16 %v441, %v441
      %v458 = vpack.i.b16 %v442, %v442
      %v459 = vpack.i.b16 %v443, %v443
      %v460 = vpack.i.b16 %v444, %v444
      %v461 = vpack.i.b16 %v445, %v445
      %v462 = vlaneseq
      %v463 = vshrl.u32 %v462, 7
      %v464 = vsub.s32 0, %v463
      %v465 = vrot.slane %v446, %v464
      %v466 = vlaneseq
      %v467 = vshrl.u32 %v466, 7
      %v468 = vsub.s32 0, %v467
      %v469 = vrot.slane %v447, %v468
      %v470 = vlaneseq
      %v471 = vshrl.u32 %v470, 7
      %v472 = vsub.s32 0, %v471
      %v473 = vrot.slane %v448, %v472
      %v474 = vlaneseq
      %v475 = vshrl.u32 %v474, 7
      %v476 = vsub.s32 0, %v475
      %v477 = vrot.slane %v449, %v476
      %v478 = vlaneseq
      %v479 = vshrl.u32 %v478, 7
      %v480 = vsub.s32 0, %v479
      %v481 = vrot.slane %v450, %v480
      %v482 = vlaneseq
      %v483 = vshrl.u32 %v482, 7
      %v484 = vsub.s32 0, %v483
      %v485 = vrot.slane %v451, %v484
      %v486 = vlaneseq
      %v487 = vshrl.u32 %v486, 7
      %v488 = vsub.s32 0, %v487
      %v489 = vrot.slane %v452, %v488
      %v490 = vlaneseq
      %v491 = vshrl.u32 %v490, 7
      %v492 = vsub.s32 0, %v491
      %v493 = vrot.slane %v453, %v492
      %v494 = vlaneseq
      %v495 = vshrl.u32 %v494, 7
      %v496 = vsub.s32 0, %v495
      %v497 = vrot.slane %v454, %v496
      %v498 = vlaneseq
      %v499 = vshrl.u32 %v498, 7
      %v500 = vsub.s32 0, %v499
      %v501 = vrot.slane %v455, %v500
      %v502 = vlaneseq
      %v503 = vshrl.u32 %v502, 7
      %v504 = vsub.s32 0, %v503
      %v505 = vrot.slane %v456, %v504
      %v506 = vlaneseq
      %v507 = vshrl.u32 %v506, 7
      %v508 = vsub.s32 0, %v507
      %v509 = vrot.slane %v457, %v508
      %v510 = vlaneseq
      %v511 = vshrl.u32 %v510, 7
      %v512 = vsub.s32 0, %v511
      %v513 = vrot.slane %v458, %v512
      %v514 = vlaneseq
      %v515 = vshrl.u32 %v514, 7
      %v516 = vsub.s32 0, %v515
      %v517 = vrot.slane %v459, %v516
      %v518 = vlaneseq
      %v519 = vshrl.u32 %v518, 7
      %v520 = vsub.s32 0, %v519
      %v521 = vrot.slane %v460, %v520
      %v522 = vlaneseq
      %v523 = vshrl.u32 %v522, 7
      %v524 = vsub.s32 0, %v523
      %v525 = vrot.slane %v461, %v524
      %v527 = vpack.i.b16 %v465, %v465
      %v529 = vlaneseq
      %v530 = vshrl.u32 %v529, 7
      %v531 = vsub.s32 0, %v530
      %v532 = vrot.slane %v527, %v531
      %v534 = vpack.i.b16 %v469, %v469
      %v536 = vlaneseq
      %v537 = vshrl.u32 %v536, 7
      %v538 = vsub.s32 0, %v537
      %v539 = vrot.slane %v534, %v538
      %v541 = vpack.i.b16 %v473, %v473
      %v543 = vlaneseq
      %v544 = vshrl.u32 %v543, 7
      %v545 = vsub.s32 0, %v544
      %v546 = vrot.slane %v541, %v545
      %v548 = vpack.i.b16 %v477, %v477
      %v550 = vlaneseq
      %v551 = vshrl.u32 %v550, 7
      %v552 = vsub.s32 0, %v551
      %v553 = vrot.slane %v548, %v552
      %v555 = vpack.i.b16 %v481, %v481
      %v557 = vlaneseq
      %v558 = vshrl.u32 %v557, 7
      %v559 = vsub.s32 0, %v558
      %v560 = vrot.slane %v555, %v559
      %v562 = vpack.i.b16 %v485, %v485
      %v564 = vlaneseq
      %v565 = vshrl.u32 %v564, 7
      %v566 = vsub.s32 0, %v565
      %v567 = vrot.slane %v562, %v566
      %v569 = vpack.i.b16 %v489, %v489
      %v571 = vlaneseq
      %v572 = vshrl.u32 %v571, 7
      %v573 = vsub.s32 0, %v572
      %v574 = vrot.slane %v569, %v573
      %v576 = vpack.i.b16 %v493, %v493
      %v578 = vlaneseq
      %v579 = vshrl.u32 %v578, 7
      %v580 = vsub.s32 0, %v579
      %v581 = vrot.slane %v576, %v580
      %v583 = vpack.i.b16 %v497, %v497
      %v585 = vlaneseq
      %v586 = vshrl.u32 %v585, 7
      %v587 = vsub.s32 0, %v586
      %v588 = vrot.slane %v583, %v587
      %v590 = vpack.i.b16 %v501, %v501
      %v592 = vlaneseq
      %v593 = vshrl.u32 %v592, 7
      %v594 = vsub.s32 0, %v593
      %v595 = vrot.slane %v590, %v594
      %v597 = vpack.i.b16 %v505, %v505
      %v599 = vlaneseq
      %v600 = vshrl.u32 %v599, 7
      %v601 = vsub.s32 0, %v600
      %v602 = vrot.slane %v597, %v601
      %v604 = vpack.i.b16 %v509, %v509
      %v606 = vlaneseq
      %v607 = vshrl.u32 %v606, 7
      %v608 = vsub.s32 0, %v607
      %v609 = vrot.slane %v604, %v608
      %v611 = vpack.i.b16 %v513, %v513
      %v613 = vlaneseq
      %v614 = vshrl.u32 %v613, 7
      %v615 = vsub.s32 0, %v614
      %v616 = vrot.slane %v611, %v615
      %v618 = vpack.i.b16 %v517, %v517
      %v620 = vlaneseq
      %v621 = vshrl.u32 %v620, 7
      %v622 = vsub.s32 0, %v621
      %v623 = vrot.slane %v618, %v622
      %v625 = vpack.i.b16 %v521, %v521
      %v627 = vlaneseq
      %v628 = vshrl.u32 %v627, 7
      %v629 = vsub.s32 0, %v628
      %v630 = vrot.slane %v625, %v629
      %v632 = vpack.i.b16 %v525, %v525
      %v634 = vlaneseq
      %v635 = vshrl.u32 %v634, 7
      %v636 = vsub.s32 0, %v635
      %v637 = vrot.slane %v632, %v636
      %v654 = vcombine.low %v532, %v546
      %v655 = vcombine.low %v539, %v553
      %v657 = vunpack.c.l.s4 1935823168
      %v658 = vunpack.c.0.s8 %v657
      %v659 = vlaneseq
      %v660 = vshrl.u32 %v659, 7
      %v661 = vsub.s32 %v658, %v660
      %v662 = vrot.slane %v654, %v661
      %v664 = vunpack.c.l.s4 1935823168
      %v665 = vunpack.c.0.s8 %v664
      %v666 = vlaneseq
      %v667 = vshrl.u32 %v666, 7
      %v668 = vsub.s32 %v665, %v667
      %v669 = vrot.slane %v655, %v668
      %v670 = vcombine.low %v662, %v669
      %v672 = vunpack.c.l.s4 1935823168
      %v673 = vunpack.c.0.s8 %v672
      %v674 = vlaneseq
      %v675 = vshrl.u32 %v674, 7
      %v676 = vsub.s32 %v673, %v675
      %v677 = vrot.slane %v670, %v676
      %v678 = vcombine.low %v560, %v574
      %v679 = vcombine.low %v567, %v581
      %v681 = vunpack.c.l.s4 1935823168
      %v682 = vunpack.c.0.s8 %v681
      %v683 = vlaneseq
      %v684 = vshrl.u32 %v683, 7
      %v685 = vsub.s32 %v682, %v684
      %v686 = vrot.slane %v678, %v685
      %v688 = vunpack.c.l.s4 1935823168
      %v689 = vunpack.c.0.s8 %v688
      %v690 = vlaneseq
      %v691 = vshrl.u32 %v690, 7
      %v692 = vsub.s32 %v689, %v691
      %v693 = vrot.slane %v679, %v692
      %v694 = vcombine.low %v686, %v693
      %v696 = vunpack.c.l.s4 1935823168
      %v697 = vunpack.c.0.s8 %v696
      %v698 = vlaneseq
      %v699 = vshrl.u32 %v698, 7
      %v700 = vsub.s32 %v697, %v699
      %v701 = vrot.slane %v694, %v700
      %v702 = vcombine.low %v588, %v602
      %v703 = vcombine.low %v595, %v609
      %v705 = vunpack.c.l.s4 1935823168
      %v706 = vunpack.c.0.s8 %v705
      %v707 = vlaneseq
      %v708 = vshrl.u32 %v707, 7
      %v709 = vsub.s32 %v706, %v708
      %v710 = vrot.slane %v702, %v709
      %v712 = vunpack.c.l.s4 1935823168
      %v713 = vunpack.c.0.s8 %v712
      %v714 = vlaneseq
      %v715 = vshrl.u32 %v714, 7
      %v716 = vsub.s32 %v713, %v715
      %v717 = vrot.slane %v703, %v716
      %v718 = vcombine.low %v710, %v717
      %v720 = vunpack.c.l.s4 1935823168
      %v721 = vunpack.c.0.s8 %v720
      %v722 = vlaneseq
      %v723 = vshrl.u32 %v722, 7
      %v724 = vsub.s32 %v721, %v723
      %v725 = vrot.slane %v718, %v724
      %v726 = vcombine.low %v616, %v630
      %v727 = vcombine.low %v623, %v637
      %v729 = vunpack.c.l.s4 1935823168
      %v730 = vunpack.c.0.s8 %v729
      %v731 = vlaneseq
      %v732 = vshrl.u32 %v731, 7
      %v733 = vsub.s32 %v730, %v732
      %v734 = vrot.slane %v726, %v733
      %v736 = vunpack.c.l.s4 1935823168
      %v737 = vunpack.c.0.s8 %v736
      %v738 = vlaneseq
      %v739 = vshrl.u32 %v738, 7
      %v740 = vsub.s32 %v737, %v739
      %v741 = vrot.slane %v727, %v740
      %v742 = vcombine.low %v734, %v741
      %v744 = vunpack.c.l.s4 1935823168
      %v745 = vunpack.c.0.s8 %v744
      %v746 = vlaneseq
      %v747 = vshrl.u32 %v746, 7
      %v748 = vsub.s32 %v745, %v747
      %v749 = vrot.slane %v742, %v748
      %v751 = vshrl.u32 %v677, 16
      %v753 = vrot.slane %v751, 7
      %v754 = vshll.u32 %v677, 16
      %v756 = vor.u32 %v753, %v754
      %v757 = vrot.slane %v753, 4
      %v759 = vshrl.u32 %v701, 16
      %v761 = vrot.slane %v759, 7
      %v762 = vshll.u32 %v701, 16
      %v764 = vor.u32 %v761, %v762
      %v765 = vrot.slane %v761, 4
      %v767 = vshrl.u32 %v725, 16
      %v769 = vrot.slane %v767, 7
      %v770 = vshll.u32 %v725, 16
      %v772 = vor.u32 %v769, %v770
      %v773 = vrot.slane %v769, 4
      %v775 = vshrl.u32 %v749, 16
      %v777 = vrot.slane %v775, 7
      %v778 = vshll.u32 %v749, 16
      %v780 = vor.u32 %v777, %v778
      %v781 = vrot.slane %v777, 4
      %s790 = scalar_lea.vmem [#allocation2], 16
      %vm791 = vcmask 1043456
      %vm792 = vsmask.f32 7938
      %vm793 = vmand %vm791, %vm792
      %v794 = vld [vmem:[%s790] sm:$0xf]
      %v795 = vsel %vm793, %v756, %v794
      %796 = vst [vmem:[%s790] sm:$0xf] %v795
      %vm797 = vcmask 1040384
      %vm798 = vsmask.f32 256
      %vm799 = vmand %vm797, %vm798
      %v800 = vld [vmem:[%s790 + $0x8] sm:$0x1]
      %v801 = vsel %vm799, %v757, %v800
      %802 = vst [vmem:[%s790 + $0x8] sm:$0x1] %v801
      %v803 = vld [vmem:[%s790 + $0x10] sm:$0xf]
      %v804 = vsel %vm793, %v764, %v803
      %805 = vst [vmem:[%s790 + $0x10] sm:$0xf] %v804
      %v806 = vld [vmem:[%s790 + $0x18] sm:$0x1]
      %v807 = vsel %vm799, %v765, %v806
      %808 = vst [vmem:[%s790 + $0x18] sm:$0x1] %v807
      %v809 = vld [vmem:[%s790 + $0x20] sm:$0xf]
      %v810 = vsel %vm793, %v772, %v809
      %811 = vst [vmem:[%s790 + $0x20] sm:$0xf] %v810
      %v812 = vld [vmem:[%s790 + $0x28] sm:$0x1]
      %v813 = vsel %vm799, %v773, %v812
      %814 = vst [vmem:[%s790 + $0x28] sm:$0x1] %v813
      %v815 = vld [vmem:[%s790 + $0x30] sm:$0xf]
      %v816 = vsel %vm793, %v780, %v815
      %817 = vst [vmem:[%s790 + $0x30] sm:$0xf] %v816
      %v818 = vld [vmem:[%s790 + $0x38] sm:$0x1]
      %v819 = vsel %vm799, %v781, %v818
      %820 = vst [vmem:[%s790 + $0x38] sm:$0x1] %v819
      %v822 = vshrl.u32 %v378, 16
      %v824 = vrot.slane %v822, 7
      %v825 = vshll.u32 %v378, 16
      %v827 = vor.u32 %v824, %v825
      %v828 = vrot.slane %v824, 4
      %v830 = vshrl.u32 %v379, 16
      %v832 = vrot.slane %v830, 7
      %v833 = vshll.u32 %v379, 16
      %v835 = vor.u32 %v832, %v833
      %v836 = vrot.slane %v832, 4
      %v838 = vshrl.u32 %v380, 16
      %v840 = vrot.slane %v838, 7
      %v841 = vshll.u32 %v380, 16
      %v843 = vor.u32 %v840, %v841
      %v844 = vrot.slane %v840, 4
      %v846 = vshrl.u32 %v381, 16
      %v848 = vrot.slane %v846, 7
      %v849 = vshll.u32 %v381, 16
      %v851 = vor.u32 %v848, %v849
      %v852 = vrot.slane %v848, 4
      %v861 = vld [vmem:[%s790 + $0x4] sm:$0xf]
      %v862 = vsel %vm793, %v827, %v861
      %863 = vst [vmem:[%s790 + $0x4] sm:$0xf] %v862
      %v864 = vld [vmem:[%s790 + $0xc] sm:$0x1]
      %v865 = vsel %vm799, %v828, %v864
      %866 = vst [vmem:[%s790 + $0xc] sm:$0x1] %v865
      %v867 = vld [vmem:[%s790 + $0x14] sm:$0xf]
      %v868 = vsel %vm793, %v835, %v867
      %869 = vst [vmem:[%s790 + $0x14] sm:$0xf] %v868
      %v870 = vld [vmem:[%s790 + $0x1c] sm:$0x1]
      %v871 = vsel %vm799, %v836, %v870
      %872 = vst [vmem:[%s790 + $0x1c] sm:$0x1] %v871
      %v873 = vld [vmem:[%s790 + $0x24] sm:$0xf]
      %v874 = vsel %vm793, %v843, %v873
      %875 = vst [vmem:[%s790 + $0x24] sm:$0xf] %v874
      %v876 = vld [vmem:[%s790 + $0x2c] sm:$0x1]
      %v877 = vsel %vm799, %v844, %v876
      %878 = vst [vmem:[%s790 + $0x2c] sm:$0x1] %v877
      %v879 = vld [vmem:[%s790 + $0x34] sm:$0xf]
      %v880 = vsel %vm793, %v851, %v879
      %881 = vst [vmem:[%s790 + $0x34] sm:$0xf] %v880
      %v882 = vld [vmem:[%s790 + $0x3c] sm:$0x1]
      %v883 = vsel %vm799, %v852, %v882
      %884 = vst [vmem:[%s790 + $0x3c] sm:$0x1] %v883
      %v885 = vld [vmem:[#allocation2] sm:$0xff]
      %v886 = vld [vmem:[#allocation2 + $0x10] sm:$0xff]
      %v887 = vld [vmem:[#allocation2 + $0x20] sm:$0xff]
      %v888 = vld [vmem:[#allocation2 + $0x30] sm:$0xff]
      %v889 = vld [vmem:[%s3] sm:$0xf]
      %v890 = vld [vmem:[%s3 + $0x4] sm:$0xf]
      %v891 = vld [vmem:[%s3 + $0x8] sm:$0xf]
      %v892 = vld [vmem:[%s3 + $0xc] sm:$0xf]
      %v893 = vld [vmem:[%s3 + $0x10] sm:$0xf]
      %v894 = vld [vmem:[%s3 + $0x14] sm:$0xf]
      %v895 = vld [vmem:[%s3 + $0x18] sm:$0xf]
      %v896 = vld [vmem:[%s3 + $0x1c] sm:$0xf]
      %v897 = vld [vmem:[%s3 + $0x20] sm:$0xf]
      %v898 = vld [vmem:[%s3 + $0x24] sm:$0xf]
      %v899 = vld [vmem:[%s3 + $0x28] sm:$0xf]
      %v900 = vld [vmem:[%s3 + $0x2c] sm:$0xf]
      %v901 = vld [vmem:[%s3 + $0x30] sm:$0xf]
      %v902 = vld [vmem:[%s3 + $0x34] sm:$0xf]
      %v903 = vld [vmem:[%s3 + $0x38] sm:$0xf]
      %v904 = vld [vmem:[%s3 + $0x3c] sm:$0xf]
      %v905 = vld [vmem:[%s3 + $0x40] sm:$0xf]
      %v906 = vld [vmem:[%s3 + $0x44] sm:$0xf]
      %v907 = vld [vmem:[%s3 + $0x48] sm:$0xf]
      %v908 = vld [vmem:[%s3 + $0x4c] sm:$0xf]
      %v909 = vld [vmem:[%s3 + $0x50] sm:$0xf]
      %v910 = vld [vmem:[%s3 + $0x54] sm:$0xf]
      %v911 = vld [vmem:[%s3 + $0x58] sm:$0xf]
      %v912 = vld [vmem:[%s3 + $0x5c] sm:$0xf]
      %v913 = vld [vmem:[%s3 + $0x60] sm:$0xf]
      %v914 = vld [vmem:[%s3 + $0x64] sm:$0xf]
      %v915 = vld [vmem:[%s3 + $0x68] sm:$0xf]
      %v916 = vld [vmem:[%s3 + $0x6c] sm:$0xf]
      %v917 = vld [vmem:[%s3 + $0x70] sm:$0xf]
      %v918 = vld [vmem:[%s3 + $0x74] sm:$0xf]
      %v919 = vld [vmem:[%s3 + $0x78] sm:$0xf]
      %v920 = vld [vmem:[%s3 + $0x7c] sm:$0xf]
      %v921 = vld [vmem:[#allocation2 + $0x8] sm:$0x11]
      %v922 = vld [vmem:[#allocation2 + $0x18] sm:$0x11]
      %v923 = vld [vmem:[#allocation2 + $0x28] sm:$0x11]
      %v924 = vld [vmem:[#allocation2 + $0x38] sm:$0x11]
      %vm925 = vsmask.f32 3328
      %vm926 = vsmask.f32 7440
      %vm927 = vmor %vm925, %vm926
      %v929 = vshrl.u32 %v885, 16
      %v931 = vrot.slane %v929, 4
      %v932 = vshll.u32 %v885, 16
      %v934 = vrot.slane %v932, 5
      %v935 = vor.u32 %v931, %v934
      %v936 = vrot.slane %v935, 4
      %v938 = vshll.u32 %v921, 16
      %v940 = vrot.slane %v938, 5
      %v941 = vsel %vm927, %v936, %v940
      %v943 = vshrl.u32 %v886, 16
      %v945 = vrot.slane %v943, 4
      %v946 = vshll.u32 %v886, 16
      %v948 = vrot.slane %v946, 5
      %v949 = vor.u32 %v945, %v948
      %v950 = vrot.slane %v949, 4
      %v952 = vshll.u32 %v922, 16
      %v954 = vrot.slane %v952, 5
      %v955 = vsel %vm927, %v950, %v954
      %v957 = vshrl.u32 %v887, 16
      %v959 = vrot.slane %v957, 4
      %v960 = vshll.u32 %v887, 16
      %v962 = vrot.slane %v960, 5
      %v963 = vor.u32 %v959, %v962
      %v964 = vrot.slane %v963, 4
      %v966 = vshll.u32 %v923, 16
      %v968 = vrot.slane %v966, 5
      %v969 = vsel %vm927, %v964, %v968
      %v971 = vshrl.u32 %v888, 16
      %v973 = vrot.slane %v971, 4
      %v974 = vshll.u32 %v888, 16
      %v976 = vrot.slane %v974, 5
      %v977 = vor.u32 %v973, %v976
      %v978 = vrot.slane %v977, 4
      %v980 = vshll.u32 %v924, 16
      %v982 = vrot.slane %v980, 5
      %v983 = vsel %vm927, %v978, %v982
      %s984 = scalar_lea.vmem %s3, 128
      %v985 = vld [vmem:[%s984] sm:$0xf]
      %v986 = vld [vmem:[%s984 + $0x4] sm:$0xf]
      %v987 = vld [vmem:[%s984 + $0x8] sm:$0xf]
      %v988 = vld [vmem:[%s984 + $0xc] sm:$0xf]
      %v989 = vld [vmem:[%s984 + $0x10] sm:$0xf]
      %v990 = vld [vmem:[%s984 + $0x14] sm:$0xf]
      %v991 = vld [vmem:[%s984 + $0x18] sm:$0xf]
      %v992 = vld [vmem:[%s984 + $0x1c] sm:$0xf]
      %v993 = vld [vmem:[%s984 + $0x20] sm:$0xf]
      %v994 = vld [vmem:[%s984 + $0x24] sm:$0xf]
      %v995 = vld [vmem:[%s984 + $0x28] sm:$0xf]
      %v996 = vld [vmem:[%s984 + $0x2c] sm:$0xf]
      %v997 = vld [vmem:[%s984 + $0x30] sm:$0xf]
      %v998 = vld [vmem:[%s984 + $0x34] sm:$0xf]
      %v999 = vld [vmem:[%s984 + $0x38] sm:$0xf]
      %v1000 = vld [vmem:[%s984 + $0x3c] sm:$0xf]
      %v1001 = vld [vmem:[%s984 + $0x40] sm:$0xf]
      %v1002 = vld [vmem:[%s984 + $0x44] sm:$0xf]
      %v1003 = vld [vmem:[%s984 + $0x48] sm:$0xf]
      %v1004 = vld [vmem:[%s984 + $0x4c] sm:$0xf]
      %v1005 = vld [vmem:[%s984 + $0x50] sm:$0xf]
      %v1006 = vld [vmem:[%s984 + $0x54] sm:$0xf]
      %v1007 = vld [vmem:[%s984 + $0x58] sm:$0xf]
      %v1008 = vld [vmem:[%s984 + $0x5c] sm:$0xf]
      %v1009 = vld [vmem:[%s984 + $0x60] sm:$0xf]
      %v1010 = vld [vmem:[%s984 + $0x64] sm:$0xf]
      %v1011 = vld [vmem:[%s984 + $0x68] sm:$0xf]
      %v1012 = vld [vmem:[%s984 + $0x6c] sm:$0xf]
      %v1013 = vld [vmem:[%s984 + $0x70] sm:$0xf]
      %v1014 = vld [vmem:[%s984 + $0x74] sm:$0xf]
      %v1015 = vld [vmem:[%s984 + $0x78] sm:$0xf]
      %v1016 = vld [vmem:[%s984 + $0x7c] sm:$0xf]
      %v1017 = vunpack.c.l.b16 %v941
      %v1018 = vunpack.c.h.b16 %v941
      %v1019 = vunpack.c.l.b16 %v955
      %v1020 = vunpack.c.h.b16 %v955
      %v1021 = vunpack.c.l.b16 %v969
      %v1022 = vunpack.c.h.b16 %v969
      %v1023 = vunpack.c.l.b16 %v983
      %v1024 = vunpack.c.h.b16 %v983
      %v1025 = vpack.c.b16 %v1019, %v1017
      %v1026 = vpack.c.b16 %v1020, %v1018
      %v1027 = vpack.c.b16 %v1023, %v1021
      %v1028 = vpack.c.b16 %v1024, %v1022
      %v1065 = vunpack.c.l.b16 %v985
      %v1066 = vunpack.c.l.b16 %v986
      %v1067 = vunpack.c.l.b16 %v987
      %v1068 = vunpack.c.l.b16 %v988
      %v1069 = vunpack.c.l.b16 %v989
      %v1070 = vunpack.c.l.b16 %v990
      %v1071 = vunpack.c.l.b16 %v991
      %v1072 = vunpack.c.l.b16 %v992
      %v1073 = vunpack.c.l.b16 %v993
      %v1074 = vunpack.c.l.b16 %v994
      %v1075 = vunpack.c.l.b16 %v995
      %v1076 = vunpack.c.l.b16 %v996
      %v1077 = vunpack.c.l.b16 %v997
      %v1078 = vunpack.c.l.b16 %v998
      %v1079 = vunpack.c.l.b16 %v999
      %v1080 = vunpack.c.l.b16 %v1000
      %v1081 = vunpack.c.l.b16 %v1001
      %v1082 = vunpack.c.l.b16 %v1002
      %v1083 = vunpack.c.l.b16 %v1003
      %v1084 = vunpack.c.l.b16 %v1004
      %v1085 = vunpack.c.l.b16 %v1005
      %v1086 = vunpack.c.l.b16 %v1006
      %v1087 = vunpack.c.l.b16 %v1007
      %v1088 = vunpack.c.l.b16 %v1008
      %v1089 = vunpack.c.l.b16 %v1009
      %v1090 = vunpack.c.l.b16 %v1010
      %v1091 = vunpack.c.l.b16 %v1011
      %v1092 = vunpack.c.l.b16 %v1012
      %v1093 = vunpack.c.l.b16 %v1013
      %v1094 = vunpack.c.l.b16 %v1014
      %v1095 = vunpack.c.l.b16 %v1015
      %v1096 = vunpack.c.l.b16 %v1016
      %v1097 = vpack.c.b16 %v1066, %v1065
      %v1098 = vpack.c.b16 %v1068, %v1067
      %v1099 = vpack.c.b16 %v1070, %v1069
      %v1100 = vpack.c.b16 %v1072, %v1071
      %v1101 = vpack.c.b16 %v1074, %v1073
      %v1102 = vpack.c.b16 %v1076, %v1075
      %v1103 = vpack.c.b16 %v1078, %v1077
      %v1104 = vpack.c.b16 %v1080, %v1079
      %v1105 = vpack.c.b16 %v1082, %v1081
      %v1106 = vpack.c.b16 %v1084, %v1083
      %v1107 = vpack.c.b16 %v1086, %v1085
      %v1108 = vpack.c.b16 %v1088, %v1087
      %v1109 = vpack.c.b16 %v1090, %v1089
      %v1110 = vpack.c.b16 %v1092, %v1091
      %v1111 = vpack.c.b16 %v1094, %v1093
      %v1112 = vpack.c.b16 %v1096, %v1095
      %1129 = vmatprep.subr.bf16.mxu0 0
      %1130 = vmatpush1.bf16.msra.mxu0 %v1097
      %1131 = vmatprep.subr.bf16.mxu0 0
      %1132 = vmatpush1.bf16.msra.mxu0 %v1098
      %1133 = vmatprep.subr.bf16.mxu0 0
      %1134 = vmatpush1.bf16.msra.mxu0 %v1099
      %1135 = vmatprep.subr.bf16.mxu0 0
      %1136 = vmatpush1.bf16.msra.mxu0 %v1100
      %1137 = vmatprep.subr.bf16.mxu0 0
      %1138 = vmatpush1.bf16.msra.mxu0 %v1101
      %1139 = vmatprep.subr.bf16.mxu0 0
      %1140 = vmatpush1.bf16.msra.mxu0 %v1102
      %1141 = vmatprep.subr.bf16.mxu0 0
      %1142 = vmatpush1.bf16.msra.mxu0 %v1103
      %1143 = vmatprep.subr.bf16.mxu0 0
      %1144 = vmatpush1.bf16.msra.mxu0 %v1104
      %1145 = vmatprep.subr.bf16.mxu0 0
      %1146 = vmatpush1.bf16.msra.mxu0 %v1105
      %1147 = vmatprep.subr.bf16.mxu0 0
      %1148 = vmatpush1.bf16.msra.mxu0 %v1106
      %1149 = vmatprep.subr.bf16.mxu0 0
      %1150 = vmatpush1.bf16.msra.mxu0 %v1107
      %1151 = vmatprep.subr.bf16.mxu0 0
      %1152 = vmatpush1.bf16.msra.mxu0 %v1108
      %1153 = vmatprep.subr.bf16.mxu0 0
      %1154 = vmatpush1.bf16.msra.mxu0 %v1109
      %1155 = vmatprep.subr.bf16.mxu0 0
      %1156 = vmatpush1.bf16.msra.mxu0 %v1110
      %1157 = vmatprep.subr.bf16.mxu0 0
      %1158 = vmatpush1.bf16.msra.mxu0 %v1111
      %1159 = vmatprep.subr.bf16.mxu0 0
      %1160 = vmatpush1.bf16.msra.mxu0 %v1112
      %1161 = vmatprep.mubr.bf16.mxu0 %v1026
      %1162 = vmatmul.mubr.bf16.gmra.mrb[0].mxu0 %v1025
      %v1163 = vpop.f32.mrb[0].mxu0
      %v1164 = vadd.f32 0.0, %v1163
      %v1165 = vpop.f32.mrb[0].mxu0
      %v1166 = vpop.f32.mrb[0].mxu0
      %v1167 = vadd.f32 0.0, %v1166
      %v1168 = vpop.f32.mrb[0].mxu0
      %1169 = vmatprep.mubr.bf16.mxu0 %v1028
      %1170 = vmatmul.mubr.bf16.gmra.mrb[0].mxu0 %v1027
      %v1171 = vpop.f32.mrb[0].mxu0
      %v1172 = vadd.f32 0.0, %v1171
      %v1173 = vpop.f32.mrb[0].mxu0
      %v1174 = vpop.f32.mrb[0].mxu0
      %v1175 = vadd.f32 0.0, %v1174
      %v1176 = vpop.f32.mrb[0].mxu0
      %1177 = vdwg.mxu0
      %v1182 = vunpack.c.l.b16 %v885
      %v1183 = vunpack.c.h.b16 %v885
      %v1184 = vunpack.c.l.b16 %v886
      %v1185 = vunpack.c.h.b16 %v886
      %v1186 = vunpack.c.l.b16 %v887
      %v1187 = vunpack.c.h.b16 %v887
      %v1188 = vunpack.c.l.b16 %v888
      %v1189 = vunpack.c.h.b16 %v888
      %v1190 = vpack.c.b16 %v1184, %v1182
      %v1191 = vpack.c.b16 %v1185, %v1183
      %v1192 = vpack.c.b16 %v1188, %v1186
      %v1193 = vpack.c.b16 %v1189, %v1187
      %v1230 = vunpack.c.l.b16 %v889
      %v1231 = vunpack.c.l.b16 %v890
      %v1232 = vunpack.c.l.b16 %v891
      %v1233 = vunpack.c.l.b16 %v892
      %v1234 = vunpack.c.l.b16 %v893
      %v1235 = vunpack.c.l.b16 %v894
      %v1236 = vunpack.c.l.b16 %v895
      %v1237 = vunpack.c.l.b16 %v896
      %v1238 = vunpack.c.l.b16 %v897
      %v1239 = vunpack.c.l.b16 %v898
      %v1240 = vunpack.c.l.b16 %v899
      %v1241 = vunpack.c.l.b16 %v900
      %v1242 = vunpack.c.l.b16 %v901
      %v1243 = vunpack.c.l.b16 %v902
      %v1244 = vunpack.c.l.b16 %v903
      %v1245 = vunpack.c.l.b16 %v904
      %v1246 = vunpack.c.l.b16 %v905
      %v1247 = vunpack.c.l.b16 %v906
      %v1248 = vunpack.c.l.b16 %v907
      %v1249 = vunpack.c.l.b16 %v908
      %v1250 = vunpack.c.l.b16 %v909
      %v1251 = vunpack.c.l.b16 %v910
      %v1252 = vunpack.c.l.b16 %v911
      %v1253 = vunpack.c.l.b16 %v912
      %v1254 = vunpack.c.l.b16 %v913
      %v1255 = vunpack.c.l.b16 %v914
      %v1256 = vunpack.c.l.b16 %v915
      %v1257 = vunpack.c.l.b16 %v916
      %v1258 = vunpack.c.l.b16 %v917
      %v1259 = vunpack.c.l.b16 %v918
      %v1260 = vunpack.c.l.b16 %v919
      %v1261 = vunpack.c.l.b16 %v920
      %v1262 = vpack.c.b16 %v1231, %v1230
      %v1263 = vpack.c.b16 %v1233, %v1232
      %v1264 = vpack.c.b16 %v1235, %v1234
      %v1265 = vpack.c.b16 %v1237, %v1236
      %v1266 = vpack.c.b16 %v1239, %v1238
      %v1267 = vpack.c.b16 %v1241, %v1240
      %v1268 = vpack.c.b16 %v1243, %v1242
      %v1269 = vpack.c.b16 %v1245, %v1244
      %v1270 = vpack.c.b16 %v1247, %v1246
      %v1271 = vpack.c.b16 %v1249, %v1248
      %v1272 = vpack.c.b16 %v1251, %v1250
      %v1273 = vpack.c.b16 %v1253, %v1252
      %v1274 = vpack.c.b16 %v1255, %v1254
      %v1275 = vpack.c.b16 %v1257, %v1256
      %v1276 = vpack.c.b16 %v1259, %v1258
      %v1277 = vpack.c.b16 %v1261, %v1260
      %1294 = vmatprep.subr.bf16.mxu0 0
      %1295 = vmatpush1.bf16.msra.mxu0 %v1262
      %1296 = vmatprep.subr.bf16.mxu0 0
      %1297 = vmatpush1.bf16.msra.mxu0 %v1263
      %1298 = vmatprep.subr.bf16.mxu0 0
      %1299 = vmatpush1.bf16.msra.mxu0 %v1264
      %1300 = vmatprep.subr.bf16.mxu0 0
      %1301 = vmatpush1.bf16.msra.mxu0 %v1265
      %1302 = vmatprep.subr.bf16.mxu0 0
      %1303 = vmatpush1.bf16.msra.mxu0 %v1266
      %1304 = vmatprep.subr.bf16.mxu0 0
      %1305 = vmatpush1.bf16.msra.mxu0 %v1267
      %1306 = vmatprep.subr.bf16.mxu0 0
      %1307 = vmatpush1.bf16.msra.mxu0 %v1268
      %1308 = vmatprep.subr.bf16.mxu0 0
      %1309 = vmatpush1.bf16.msra.mxu0 %v1269
      %1310 = vmatprep.subr.bf16.mxu0 0
      %1311 = vmatpush1.bf16.msra.mxu0 %v1270
      %1312 = vmatprep.subr.bf16.mxu0 0
      %1313 = vmatpush1.bf16.msra.mxu0 %v1271
      %1314 = vmatprep.subr.bf16.mxu0 0
      %1315 = vmatpush1.bf16.msra.mxu0 %v1272
      %1316 = vmatprep.subr.bf16.mxu0 0
      %1317 = vmatpush1.bf16.msra.mxu0 %v1273
      %1318 = vmatprep.subr.bf16.mxu0 0
      %1319 = vmatpush1.bf16.msra.mxu0 %v1274
      %1320 = vmatprep.subr.bf16.mxu0 0
      %1321 = vmatpush1.bf16.msra.mxu0 %v1275
      %1322 = vmatprep.subr.bf16.mxu0 0
      %1323 = vmatpush1.bf16.msra.mxu0 %v1276
      %1324 = vmatprep.subr.bf16.mxu0 0
      %1325 = vmatpush1.bf16.msra.mxu0 %v1277
      %1326 = vmatprep.mubr.bf16.mxu0 %v1191
      %1327 = vmatmul.mubr.bf16.gmra.mrb[0].mxu0 %v1190
      %v1328 = vpop.f32.mrb[0].mxu0
      %v1329 = vadd.f32 %v1164, %v1328
      %v1330 = vpop.f32.mrb[0].mxu0
      %v1331 = vpop.f32.mrb[0].mxu0
      %v1332 = vadd.f32 %v1167, %v1331
      %v1333 = vpop.f32.mrb[0].mxu0
      %1334 = vmatprep.mubr.bf16.mxu0 %v1193
      %1335 = vmatmul.mubr.bf16.gmra.mrb[0].mxu0 %v1192
      %v1336 = vpop.f32.mrb[0].mxu0
      %v1337 = vadd.f32 %v1172, %v1336
      %v1338 = vpop.f32.mrb[0].mxu0
      %v1339 = vpop.f32.mrb[0].mxu0
      %v1340 = vadd.f32 %v1175, %v1339
      %v1341 = vpop.f32.mrb[0].mxu0
      %1342 = vdwg.mxu0
      %v1343 = vld [vmem:[#allocation2] sm:$0xee]
      %v1344 = vld [vmem:[#allocation2 + $0x10] sm:$0xee]
      %v1345 = vld [vmem:[#allocation2 + $0x20] sm:$0xee]
      %v1346 = vld [vmem:[#allocation2 + $0x30] sm:$0xee]
      %vm1355 = vcmask 1042432
      %vm1356 = vcmask 1046532
      %vm1357 = vmor %vm1355, %vm1356
      %v1358 = vrot.slane %v1343, 5
      %v1359 = vrot.slane %v1358, 4
      %v1360 = vrot.slane %v921, 5
      %v1361 = vsel %vm1357, %v1359, %v1360
      %v1362 = vrot.slane %v1344, 5
      %v1363 = vrot.slane %v1362, 4
      %v1364 = vrot.slane %v922, 5
      %v1365 = vsel %vm1357, %v1363, %v1364
      %v1366 = vrot.slane %v1345, 5
      %v1367 = vrot.slane %v1366, 4
      %v1368 = vrot.slane %v923, 5
      %v1369 = vsel %vm1357, %v1367, %v1368
      %v1370 = vrot.slane %v1346, 5
      %v1371 = vrot.slane %v1370, 4
      %v1372 = vrot.slane %v924, 5
      %v1373 = vsel %vm1357, %v1371, %v1372
      %s1374 = scalar_lea.vmem %s3, 256
      %v1375 = vld [vmem:[%s1374] sm:$0xf]
      %v1376 = vld [vmem:[%s1374 + $0x4] sm:$0xf]
      %v1377 = vld [vmem:[%s1374 + $0x8] sm:$0xf]
      %v1378 = vld [vmem:[%s1374 + $0xc] sm:$0xf]
      %v1379 = vld [vmem:[%s1374 + $0x10] sm:$0xf]
      %v1380 = vld [vmem:[%s1374 + $0x14] sm:$0xf]
      %v1381 = vld [vmem:[%s1374 + $0x18] sm:$0xf]
      %v1382 = vld [vmem:[%s1374 + $0x1c] sm:$0xf]
      %v1383 = vld [vmem:[%s1374 + $0x20] sm:$0xf]
      %v1384 = vld [vmem:[%s1374 + $0x24] sm:$0xf]
      %v1385 = vld [vmem:[%s1374 + $0x28] sm:$0xf]
      %v1386 = vld [vmem:[%s1374 + $0x2c] sm:$0xf]
      %v1387 = vld [vmem:[%s1374 + $0x30] sm:$0xf]
      %v1388 = vld [vmem:[%s1374 + $0x34] sm:$0xf]
      %v1389 = vld [vmem:[%s1374 + $0x38] sm:$0xf]
      %v1390 = vld [vmem:[%s1374 + $0x3c] sm:$0xf]
      %v1391 = vld [vmem:[%s1374 + $0x40] sm:$0xf]
      %v1392 = vld [vmem:[%s1374 + $0x44] sm:$0xf]
      %v1393 = vld [vmem:[%s1374 + $0x48] sm:$0xf]
      %v1394 = vld [vmem:[%s1374 + $0x4c] sm:$0xf]
      %v1395 = vld [vmem:[%s1374 + $0x50] sm:$0xf]
      %v1396 = vld [vmem:[%s1374 + $0x54] sm:$0xf]
      %v1397 = vld [vmem:[%s1374 + $0x58] sm:$0xf]
      %v1398 = vld [vmem:[%s1374 + $0x5c] sm:$0xf]
      %v1399 = vld [vmem:[%s1374 + $0x60] sm:$0xf]
      %v1400 = vld [vmem:[%s1374 + $0x64] sm:$0xf]
      %v1401 = vld [vmem:[%s1374 + $0x68] sm:$0xf]
      %v1402 = vld [vmem:[%s1374 + $0x6c] sm:$0xf]
      %v1403 = vld [vmem:[%s1374 + $0x70] sm:$0xf]
      %v1404 = vld [vmem:[%s1374 + $0x74] sm:$0xf]
      %v1405 = vld [vmem:[%s1374 + $0x78] sm:$0xf]
      %v1406 = vld [vmem:[%s1374 + $0x7c] sm:$0xf]
      %v1407 = vunpack.c.l.b16 %v1361
      %v1408 = vunpack.c.h.b16 %v1361
      %v1409 = vunpack.c.l.b16 %v1365
      %v1410 = vunpack.c.h.b16 %v1365
      %v1411 = vunpack.c.l.b16 %v1369
      %v1412 = vunpack.c.h.b16 %v1369
      %v1413 = vunpack.c.l.b16 %v1373
      %v1414 = vunpack.c.h.b16 %v1373
      %v1415 = vpack.c.b16 %v1409, %v1407
      %v1416 = vpack.c.b16 %v1410, %v1408
      %v1417 = vpack.c.b16 %v1413, %v1411
      %v1418 = vpack.c.b16 %v1414, %v1412
      %v1455 = vunpack.c.l.b16 %v1375
      %v1456 = vunpack.c.l.b16 %v1376
      %v1457 = vunpack.c.l.b16 %v1377
      %v1458 = vunpack.c.l.b16 %v1378
      %v1459 = vunpack.c.l.b16 %v1379
      %v1460 = vunpack.c.l.b16 %v1380
      %v1461 = vunpack.c.l.b16 %v1381
      %v1462 = vunpack.c.l.b16 %v1382
      %v1463 = vunpack.c.l.b16 %v1383
      %v1464 = vunpack.c.l.b16 %v1384
      %v1465 = vunpack.c.l.b16 %v1385
      %v1466 = vunpack.c.l.b16 %v1386
      %v1467 = vunpack.c.l.b16 %v1387
      %v1468 = vunpack.c.l.b16 %v1388
      %v1469 = vunpack.c.l.b16 %v1389
      %v1470 = vunpack.c.l.b16 %v1390
      %v1471 = vunpack.c.l.b16 %v1391
      %v1472 = vunpack.c.l.b16 %v1392
      %v1473 = vunpack.c.l.b16 %v1393
      %v1474 = vunpack.c.l.b16 %v1394
      %v1475 = vunpack.c.l.b16 %v1395
      %v1476 = vunpack.c.l.b16 %v1396
      %v1477 = vunpack.c.l.b16 %v1397
      %v1478 = vunpack.c.l.b16 %v1398
      %v1479 = vunpack.c.l.b16 %v1399
      %v1480 = vunpack.c.l.b16 %v1400
      %v1481 = vunpack.c.l.b16 %v1401
      %v1482 = vunpack.c.l.b16 %v1402
      %v1483 = vunpack.c.l.b16 %v1403
      %v1484 = vunpack.c.l.b16 %v1404
      %v1485 = vunpack.c.l.b16 %v1405
      %v1486 = vunpack.c.l.b16 %v1406
      %v1487 = vpack.c.b16 %v1456, %v1455
      %v1488 = vpack.c.b16 %v1458, %v1457
      %v1489 = vpack.c.b16 %v1460, %v1459
      %v1490 = vpack.c.b16 %v1462, %v1461
      %v1491 = vpack.c.b16 %v1464, %v1463
      %v1492 = vpack.c.b16 %v1466, %v1465
      %v1493 = vpack.c.b16 %v1468, %v1467
      %v1494 = vpack.c.b16 %v1470, %v1469
      %v1495 = vpack.c.b16 %v1472, %v1471
      %v1496 = vpack.c.b16 %v1474, %v1473
      %v1497 = vpack.c.b16 %v1476, %v1475
      %v1498 = vpack.c.b16 %v1478, %v1477
      %v1499 = vpack.c.b16 %v1480, %v1479
      %v1500 = vpack.c.b16 %v1482, %v1481
      %v1501 = vpack.c.b16 %v1484, %v1483
      %v1502 = vpack.c.b16 %v1486, %v1485
      %1519 = vmatprep.subr.bf16.mxu0 0
      %1520 = vmatpush1.bf16.msra.mxu0 %v1487
      %1521 = vmatprep.subr.bf16.mxu0 0
      %1522 = vmatpush1.bf16.msra.mxu0 %v1488
      %1523 = vmatprep.subr.bf16.mxu0 0
      %1524 = vmatpush1.bf16.msra.mxu0 %v1489
      %1525 = vmatprep.subr.bf16.mxu0 0
      %1526 = vmatpush1.bf16.msra.mxu0 %v1490
      %1527 = vmatprep.subr.bf16.mxu0 0
      %1528 = vmatpush1.bf16.msra.mxu0 %v1491
      %1529 = vmatprep.subr.bf16.mxu0 0
      %1530 = vmatpush1.bf16.msra.mxu0 %v1492
      %1531 = vmatprep.subr.bf16.mxu0 0
      %1532 = vmatpush1.bf16.msra.mxu0 %v1493
      %1533 = vmatprep.subr.bf16.mxu0 0
      %1534 = vmatpush1.bf16.msra.mxu0 %v1494
      %1535 = vmatprep.subr.bf16.mxu0 0
      %1536 = vmatpush1.bf16.msra.mxu0 %v1495
      %1537 = vmatprep.subr.bf16.mxu0 0
      %1538 = vmatpush1.bf16.msra.mxu0 %v1496
      %1539 = vmatprep.subr.bf16.mxu0 0
      %1540 = vmatpush1.bf16.msra.mxu0 %v1497
      %1541 = vmatprep.subr.bf16.mxu0 0
      %1542 = vmatpush1.bf16.msra.mxu0 %v1498
      %1543 = vmatprep.subr.bf16.mxu0 0
      %1544 = vmatpush1.bf16.msra.mxu0 %v1499
      %1545 = vmatprep.subr.bf16.mxu0 0
      %1546 = vmatpush1.bf16.msra.mxu0 %v1500
      %1547 = vmatprep.subr.bf16.mxu0 0
      %1548 = vmatpush1.bf16.msra.mxu0 %v1501
      %1549 = vmatprep.subr.bf16.mxu0 0
      %1550 = vmatpush1.bf16.msra.mxu0 %v1502
      %1551 = vmatprep.mubr.bf16.mxu0 %v1416
      %1552 = vmatmul.mubr.bf16.gmra.mrb[0].mxu0 %v1415
      %v1553 = vpop.f32.mrb[0].mxu0
      %v1554 = vadd.f32 0.0, %v1553
      %v1555 = vpop.f32.mrb[0].mxu0
      %v1556 = vpop.f32.mrb[0].mxu0
      %v1557 = vadd.f32 0.0, %v1556
      %v1558 = vpop.f32.mrb[0].mxu0
      %1559 = vmatprep.mubr.bf16.mxu0 %v1418
      %1560 = vmatmul.mubr.bf16.gmra.mrb[0].mxu0 %v1417
      %v1561 = vpop.f32.mrb[0].mxu0
      %v1562 = vadd.f32 0.0, %v1561
      %v1563 = vpop.f32.mrb[0].mxu0
      %v1564 = vpop.f32.mrb[0].mxu0
      %v1565 = vadd.f32 0.0, %v1564
      %v1566 = vpop.f32.mrb[0].mxu0
      %1567 = vdwg.mxu0
      %v1568 = vadd.f32 %v1329, %v1554
      %v1569 = vadd.f32 %v1332, %v1557
      %v1570 = vadd.f32 %v1337, %v1562
      %v1571 = vadd.f32 %v1340, %v1565
      %v1572 = vld [vmem:[%s790] sm:$0xff]
      %v1573 = vld [vmem:[%s790 + $0x10] sm:$0xff]
      %v1574 = vld [vmem:[%s790 + $0x20] sm:$0xff]
      %v1575 = vld [vmem:[%s790 + $0x30] sm:$0xff]
      %s1576 = scalar_lea.vmem %s3, 384
      %v1577 = vld [vmem:[%s1576] sm:$0xf]
      %v1578 = vld [vmem:[%s1576 + $0x4] sm:$0xf]
      %v1579 = vld [vmem:[%s1576 + $0x8] sm:$0xf]
      %v1580 = vld [vmem:[%s1576 + $0xc] sm:$0xf]
      %v1581 = vld [vmem:[%s1576 + $0x10] sm:$0xf]
      %v1582 = vld [vmem:[%s1576 + $0x14] sm:$0xf]
      %v1583 = vld [vmem:[%s1576 + $0x18] sm:$0xf]
      %v1584 = vld [vmem:[%s1576 + $0x1c] sm:$0xf]
      %v1585 = vld [vmem:[%s1576 + $0x20] sm:$0xf]
      %v1586 = vld [vmem:[%s1576 + $0x24] sm:$0xf]
      %v1587 = vld [vmem:[%s1576 + $0x28] sm:$0xf]
      %v1588 = vld [vmem:[%s1576 + $0x2c] sm:$0xf]
      %v1589 = vld [vmem:[%s1576 + $0x30] sm:$0xf]
      %v1590 = vld [vmem:[%s1576 + $0x34] sm:$0xf]
      %v1591 = vld [vmem:[%s1576 + $0x38] sm:$0xf]
      %v1592 = vld [vmem:[%s1576 + $0x3c] sm:$0xf]
      %v1593 = vld [vmem:[%s1576 + $0x40] sm:$0xf]
      %v1594 = vld [vmem:[%s1576 + $0x44] sm:$0xf]
      %v1595 = vld [vmem:[%s1576 + $0x48] sm:$0xf]
      %v1596 = vld [vmem:[%s1576 + $0x4c] sm:$0xf]
      %v1597 = vld [vmem:[%s1576 + $0x50] sm:$0xf]
      %v1598 = vld [vmem:[%s1576 + $0x54] sm:$0xf]
      %v1599 = vld [vmem:[%s1576 + $0x58] sm:$0xf]
      %v1600 = vld [vmem:[%s1576 + $0x5c] sm:$0xf]
      %v1601 = vld [vmem:[%s1576 + $0x60] sm:$0xf]
      %v1602 = vld [vmem:[%s1576 + $0x64] sm:$0xf]
      %v1603 = vld [vmem:[%s1576 + $0x68] sm:$0xf]
      %v1604 = vld [vmem:[%s1576 + $0x6c] sm:$0xf]
      %v1605 = vld [vmem:[%s1576 + $0x70] sm:$0xf]
      %v1606 = vld [vmem:[%s1576 + $0x74] sm:$0xf]
      %v1607 = vld [vmem:[%s1576 + $0x78] sm:$0xf]
      %v1608 = vld [vmem:[%s1576 + $0x7c] sm:$0xf]
      %v1613 = vunpack.c.l.b16 %v1572
      %v1614 = vunpack.c.h.b16 %v1572
      %v1615 = vunpack.c.l.b16 %v1573
      %v1616 = vunpack.c.h.b16 %v1573
      %v1617 = vunpack.c.l.b16 %v1574
      %v1618 = vunpack.c.h.b16 %v1574
      %v1619 = vunpack.c.l.b16 %v1575
      %v1620 = vunpack.c.h.b16 %v1575
      %v1621 = vpack.c.b16 %v1615, %v1613
      %v1622 = vpack.c.b16 %v1616, %v1614
      %v1623 = vpack.c.b16 %v1619, %v1617
      %v1624 = vpack.c.b16 %v1620, %v1618
      %v1661 = vunpack.c.l.b16 %v1577
      %v1662 = vunpack.c.l.b16 %v1578
      %v1663 = vunpack.c.l.b16 %v1579
      %v1664 = vunpack.c.l.b16 %v1580
      %v1665 = vunpack.c.l.b16 %v1581
      %v1666 = vunpack.c.l.b16 %v1582
      %v1667 = vunpack.c.l.b16 %v1583
      %v1668 = vunpack.c.l.b16 %v1584
      %v1669 = vunpack.c.l.b16 %v1585
      %v1670 = vunpack.c.l.b16 %v1586
      %v1671 = vunpack.c.l.b16 %v1587
      %v1672 = vunpack.c.l.b16 %v1588
      %v1673 = vunpack.c.l.b16 %v1589
      %v1674 = vunpack.c.l.b16 %v1590
      %v1675 = vunpack.c.l.b16 %v1591
      %v1676 = vunpack.c.l.b16 %v1592
      %v1677 = vunpack.c.l.b16 %v1593
      %v1678 = vunpack.c.l.b16 %v1594
      %v1679 = vunpack.c.l.b16 %v1595
      %v1680 = vunpack.c.l.b16 %v1596
      %v1681 = vunpack.c.l.b16 %v1597
      %v1682 = vunpack.c.l.b16 %v1598
      %v1683 = vunpack.c.l.b16 %v1599
      %v1684 = vunpack.c.l.b16 %v1600
      %v1685 = vunpack.c.l.b16 %v1601
      %v1686 = vunpack.c.l.b16 %v1602
      %v1687 = vunpack.c.l.b16 %v1603
      %v1688 = vunpack.c.l.b16 %v1604
      %v1689 = vunpack.c.l.b16 %v1605
      %v1690 = vunpack.c.l.b16 %v1606
      %v1691 = vunpack.c.l.b16 %v1607
      %v1692 = vunpack.c.l.b16 %v1608
      %v1693 = vpack.c.b16 %v1662, %v1661
      %v1694 = vpack.c.b16 %v1664, %v1663
      %v1695 = vpack.c.b16 %v1666, %v1665
      %v1696 = vpack.c.b16 %v1668, %v1667
      %v1697 = vpack.c.b16 %v1670, %v1669
      %v1698 = vpack.c.b16 %v1672, %v1671
      %v1699 = vpack.c.b16 %v1674, %v1673
      %v1700 = vpack.c.b16 %v1676, %v1675
      %v1701 = vpack.c.b16 %v1678, %v1677
      %v1702 = vpack.c.b16 %v1680, %v1679
      %v1703 = vpack.c.b16 %v1682, %v1681
      %v1704 = vpack.c.b16 %v1684, %v1683
      %v1705 = vpack.c.b16 %v1686, %v1685
      %v1706 = vpack.c.b16 %v1688, %v1687
      %v1707 = vpack.c.b16 %v1690, %v1689
      %v1708 = vpack.c.b16 %v1692, %v1691
      %1725 = vmatprep.subr.bf16.mxu0 0
      %1726 = vmatpush1.bf16.msra.mxu0 %v1693
      %1727 = vmatprep.subr.bf16.mxu0 0
      %1728 = vmatpush1.bf16.msra.mxu0 %v1694
      %1729 = vmatprep.subr.bf16.mxu0 0
      %1730 = vmatpush1.bf16.msra.mxu0 %v1695
      %1731 = vmatprep.subr.bf16.mxu0 0
      %1732 = vmatpush1.bf16.msra.mxu0 %v1696
      %1733 = vmatprep.subr.bf16.mxu0 0
      %1734 = vmatpush1.bf16.msra.mxu0 %v1697
      %1735 = vmatprep.subr.bf16.mxu0 0
      %1736 = vmatpush1.bf16.msra.mxu0 %v1698
      %1737 = vmatprep.subr.bf16.mxu0 0
      %1738 = vmatpush1.bf16.msra.mxu0 %v1699
      %1739 = vmatprep.subr.bf16.mxu0 0
      %1740 = vmatpush1.bf16.msra.mxu0 %v1700
      %1741 = vmatprep.subr.bf16.mxu0 0
      %1742 = vmatpush1.bf16.msra.mxu0 %v1701
      %1743 = vmatprep.subr.bf16.mxu0 0
      %1744 = vmatpush1.bf16.msra.mxu0 %v1702
      %1745 = vmatprep.subr.bf16.mxu0 0
      %1746 = vmatpush1.bf16.msra.mxu0 %v1703
      %1747 = vmatprep.subr.bf16.mxu0 0
      %1748 = vmatpush1.bf16.msra.mxu0 %v1704
      %1749 = vmatprep.subr.bf16.mxu0 0
      %1750 = vmatpush1.bf16.msra.mxu0 %v1705
      %1751 = vmatprep.subr.bf16.mxu0 0
      %1752 = vmatpush1.bf16.msra.mxu0 %v1706
      %1753 = vmatprep.subr.bf16.mxu0 0
      %1754 = vmatpush1.bf16.msra.mxu0 %v1707
      %1755 = vmatprep.subr.bf16.mxu0 0
      %1756 = vmatpush1.bf16.msra.mxu0 %v1708
      %1757 = vmatprep.mubr.bf16.mxu0 %v1622
      %1758 = vmatmul.mubr.bf16.gmra.mrb[0].mxu0 %v1621
      %v1759 = vpop.f32.mrb[0].mxu0
      %v1760 = vadd.f32 0.0, %v1759
      %v1761 = vpop.f32.mrb[0].mxu0
      %v1762 = vpop.f32.mrb[0].mxu0
      %v1763 = vadd.f32 0.0, %v1762
      %v1764 = vpop.f32.mrb[0].mxu0
      %1765 = vmatprep.mubr.bf16.mxu0 %v1624
      %1766 = vmatmul.mubr.bf16.gmra.mrb[0].mxu0 %v1623
      %v1767 = vpop.f32.mrb[0].mxu0
      %v1768 = vadd.f32 0.0, %v1767
      %v1769 = vpop.f32.mrb[0].mxu0
      %v1770 = vpop.f32.mrb[0].mxu0
      %v1771 = vadd.f32 0.0, %v1770
      %v1772 = vpop.f32.mrb[0].mxu0
      %1773 = vdwg.mxu0
      %v1774 = vadd.f32 %v1568, %v1760
      %v1775 = vadd.f32 %v1569, %v1763
      %v1776 = vadd.f32 %v1570, %v1768
      %v1777 = vadd.f32 %v1571, %v1771
      %v1778 = vld [vmem:[%s790] sm:$0xff]
      %v1779 = vld [vmem:[%s790 + $0x8] sm:$0x11]
      %v1780 = vld [vmem:[%s790 + $0x10] sm:$0xff]
      %v1781 = vld [vmem:[%s790 + $0x18] sm:$0x11]
      %v1782 = vld [vmem:[%s790 + $0x20] sm:$0xff]
      %v1783 = vld [vmem:[%s790 + $0x28] sm:$0x11]
      %v1784 = vld [vmem:[%s790 + $0x30] sm:$0xff]
      %v1785 = vld [vmem:[%s790 + $0x38] sm:$0x11]
      %v1787 = vshrl.u32 %v1778, 16
      %v1789 = vrot.slane %v1787, 4
      %v1790 = vshll.u32 %v1778, 16
      %v1792 = vrot.slane %v1790, 5
      %v1793 = vor.u32 %v1789, %v1792
      %v1794 = vrot.slane %v1793, 4
      %v1796 = vshll.u32 %v1779, 16
      %v1798 = vrot.slane %v1796, 5
      %v1799 = vsel %vm927, %v1794, %v1798
      %v1801 = vshrl.u32 %v1780, 16
      %v1803 = vrot.slane %v1801, 4
      %v1804 = vshll.u32 %v1780, 16
      %v1806 = vrot.slane %v1804, 5
      %v1807 = vor.u32 %v1803, %v1806
      %v1808 = vrot.slane %v1807, 4
      %v1810 = vshll.u32 %v1781, 16
      %v1812 = vrot.slane %v1810, 5
      %v1813 = vsel %vm927, %v1808, %v1812
      %v1815 = vshrl.u32 %v1782, 16
      %v1817 = vrot.slane %v1815, 4
      %v1818 = vshll.u32 %v1782, 16
      %v1820 = vrot.slane %v1818, 5
      %v1821 = vor.u32 %v1817, %v1820
      %v1822 = vrot.slane %v1821, 4
      %v1824 = vshll.u32 %v1783, 16
      %v1826 = vrot.slane %v1824, 5
      %v1827 = vsel %vm927, %v1822, %v1826
      %v1829 = vshrl.u32 %v1784, 16
      %v1831 = vrot.slane %v1829, 4
      %v1832 = vshll.u32 %v1784, 16
      %v1834 = vrot.slane %v1832, 5
      %v1835 = vor.u32 %v1831, %v1834
      %v1836 = vrot.slane %v1835, 4
      %v1838 = vshll.u32 %v1785, 16
      %v1840 = vrot.slane %v1838, 5
      %v1841 = vsel %vm927, %v1836, %v1840
      %s1842 = scalar_lea.vmem %s3, 512
      %v1843 = vld [vmem:[%s1842] sm:$0xf]
      %v1844 = vld [vmem:[%s1842 + $0x4] sm:$0xf]
      %v1845 = vld [vmem:[%s1842 + $0x8] sm:$0xf]
      %v1846 = vld [vmem:[%s1842 + $0xc] sm:$0xf]
      %v1847 = vld [vmem:[%s1842 + $0x10] sm:$0xf]
      %v1848 = vld [vmem:[%s1842 + $0x14] sm:$0xf]
      %v1849 = vld [vmem:[%s1842 + $0x18] sm:$0xf]
      %v1850 = vld [vmem:[%s1842 + $0x1c] sm:$0xf]
      %v1851 = vld [vmem:[%s1842 + $0x20] sm:$0xf]
      %v1852 = vld [vmem:[%s1842 + $0x24] sm:$0xf]
      %v1853 = vld [vmem:[%s1842 + $0x28] sm:$0xf]
      %v1854 = vld [vmem:[%s1842 + $0x2c] sm:$0xf]
      %v1855 = vld [vmem:[%s1842 + $0x30] sm:$0xf]
      %v1856 = vld [vmem:[%s1842 + $0x34] sm:$0xf]
      %v1857 = vld [vmem:[%s1842 + $0x38] sm:$0xf]
      %v1858 = vld [vmem:[%s1842 + $0x3c] sm:$0xf]
      %v1859 = vld [vmem:[%s1842 + $0x40] sm:$0xf]
      %v1860 = vld [vmem:[%s1842 + $0x44] sm:$0xf]
      %v1861 = vld [vmem:[%s1842 + $0x48] sm:$0xf]
      %v1862 = vld [vmem:[%s1842 + $0x4c] sm:$0xf]
      %v1863 = vld [vmem:[%s1842 + $0x50] sm:$0xf]
      %v1864 = vld [vmem:[%s1842 + $0x54] sm:$0xf]
      %v1865 = vld [vmem:[%s1842 + $0x58] sm:$0xf]
      %v1866 = vld [vmem:[%s1842 + $0x5c] sm:$0xf]
      %v1867 = vld [vmem:[%s1842 + $0x60] sm:$0xf]
      %v1868 = vld [vmem:[%s1842 + $0x64] sm:$0xf]
      %v1869 = vld [vmem:[%s1842 + $0x68] sm:$0xf]
      %v1870 = vld [vmem:[%s1842 + $0x6c] sm:$0xf]
      %v1871 = vld [vmem:[%s1842 + $0x70] sm:$0xf]
      %v1872 = vld [vmem:[%s1842 + $0x74] sm:$0xf]
      %v1873 = vld [vmem:[%s1842 + $0x78] sm:$0xf]
      %v1874 = vld [vmem:[%s1842 + $0x7c] sm:$0xf]
      %v1875 = vunpack.c.l.b16 %v1799
      %v1876 = vunpack.c.h.b16 %v1799
      %v1877 = vunpack.c.l.b16 %v1813
      %v1878 = vunpack.c.h.b16 %v1813
      %v1879 = vunpack.c.l.b16 %v1827
      %v1880 = vunpack.c.h.b16 %v1827
      %v1881 = vunpack.c.l.b16 %v1841
      %v1882 = vunpack.c.h.b16 %v1841
      %v1883 = vpack.c.b16 %v1877, %v1875
      %v1884 = vpack.c.b16 %v1878, %v1876
      %v1885 = vpack.c.b16 %v1881, %v1879
      %v1886 = vpack.c.b16 %v1882, %v1880
      %v1923 = vunpack.c.l.b16 %v1843
      %v1924 = vunpack.c.l.b16 %v1844
      %v1925 = vunpack.c.l.b16 %v1845
      %v1926 = vunpack.c.l.b16 %v1846
      %v1927 = vunpack.c.l.b16 %v1847
      %v1928 = vunpack.c.l.b16 %v1848
      %v1929 = vunpack.c.l.b16 %v1849
      %v1930 = vunpack.c.l.b16 %v1850
      %v1931 = vunpack.c.l.b16 %v1851
      %v1932 = vunpack.c.l.b16 %v1852
      %v1933 = vunpack.c.l.b16 %v1853
      %v1934 = vunpack.c.l.b16 %v1854
      %v1935 = vunpack.c.l.b16 %v1855
      %v1936 = vunpack.c.l.b16 %v1856
      %v1937 = vunpack.c.l.b16 %v1857
      %v1938 = vunpack.c.l.b16 %v1858
      %v1939 = vunpack.c.l.b16 %v1859
      %v1940 = vunpack.c.l.b16 %v1860
      %v1941 = vunpack.c.l.b16 %v1861
      %v1942 = vunpack.c.l.b16 %v1862
      %v1943 = vunpack.c.l.b16 %v1863
      %v1944 = vunpack.c.l.b16 %v1864
      %v1945 = vunpack.c.l.b16 %v1865
      %v1946 = vunpack.c.l.b16 %v1866
      %v1947 = vunpack.c.l.b16 %v1867
      %v1948 = vunpack.c.l.b16 %v1868
      %v1949 = vunpack.c.l.b16 %v1869
      %v1950 = vunpack.c.l.b16 %v1870
      %v1951 = vunpack.c.l.b16 %v1871
      %v1952 = vunpack.c.l.b16 %v1872
      %v1953 = vunpack.c.l.b16 %v1873
      %v1954 = vunpack.c.l.b16 %v1874
      %v1955 = vpack.c.b16 %v1924, %v1923
      %v1956 = vpack.c.b16 %v1926, %v1925
      %v1957 = vpack.c.b16 %v1928, %v1927
      %v1958 = vpack.c.b16 %v1930, %v1929
      %v1959 = vpack.c.b16 %v1932, %v1931
      %v1960 = vpack.c.b16 %v1934, %v1933
      %v1961 = vpack.c.b16 %v1936, %v1935
      %v1962 = vpack.c.b16 %v1938, %v1937
      %v1963 = vpack.c.b16 %v1940, %v1939
      %v1964 = vpack.c.b16 %v1942, %v1941
      %v1965 = vpack.c.b16 %v1944, %v1943
      %v1966 = vpack.c.b16 %v1946, %v1945
      %v1967 = vpack.c.b16 %v1948, %v1947
      %v1968 = vpack.c.b16 %v1950, %v1949
      %v1969 = vpack.c.b16 %v1952, %v1951
      %v1970 = vpack.c.b16 %v1954, %v1953
      %1987 = vmatprep.subr.bf16.mxu0 0
      %1988 = vmatpush1.bf16.msra.mxu0 %v1955
      %1989 = vmatprep.subr.bf16.mxu0 0
      %1990 = vmatpush1.bf16.msra.mxu0 %v1956
      %1991 = vmatprep.subr.bf16.mxu0 0
      %1992 = vmatpush1.bf16.msra.mxu0 %v1957
      %1993 = vmatprep.subr.bf16.mxu0 0
      %1994 = vmatpush1.bf16.msra.mxu0 %v1958
      %1995 = vmatprep.subr.bf16.mxu0 0
      %1996 = vmatpush1.bf16.msra.mxu0 %v1959
      %1997 = vmatprep.subr.bf16.mxu0 0
      %1998 = vmatpush1.bf16.msra.mxu0 %v1960
      %1999 = vmatprep.subr.bf16.mxu0 0
      %2000 = vmatpush1.bf16.msra.mxu0 %v1961
      %2001 = vmatprep.subr.bf16.mxu0 0
      %2002 = vmatpush1.bf16.msra.mxu0 %v1962
      %2003 = vmatprep.subr.bf16.mxu0 0
      %2004 = vmatpush1.bf16.msra.mxu0 %v1963
      %2005 = vmatprep.subr.bf16.mxu0 0
      %2006 = vmatpush1.bf16.msra.mxu0 %v1964
      %2007 = vmatprep.subr.bf16.mxu0 0
      %2008 = vmatpush1.bf16.msra.mxu0 %v1965
      %2009 = vmatprep.subr.bf16.mxu0 0
      %2010 = vmatpush1.bf16.msra.mxu0 %v1966
      %2011 = vmatprep.subr.bf16.mxu0 0
      %2012 = vmatpush1.bf16.msra.mxu0 %v1967
      %2013 = vmatprep.subr.bf16.mxu0 0
      %2014 = vmatpush1.bf16.msra.mxu0 %v1968
      %2015 = vmatprep.subr.bf16.mxu0 0
      %2016 = vmatpush1.bf16.msra.mxu0 %v1969
      %2017 = vmatprep.subr.bf16.mxu0 0
      %2018 = vmatpush1.bf16.msra.mxu0 %v1970
      %2019 = vmatprep.mubr.bf16.mxu0 %v1884
      %2020 = vmatmul.mubr.bf16.gmra.mrb[0].mxu0 %v1883
      %v2021 = vpop.f32.mrb[0].mxu0
      %v2022 = vadd.f32 0.0, %v2021
      %v2023 = vpop.f32.mrb[0].mxu0
      %v2024 = vpop.f32.mrb[0].mxu0
      %v2025 = vadd.f32 0.0, %v2024
      %v2026 = vpop.f32.mrb[0].mxu0
      %2027 = vmatprep.mubr.bf16.mxu0 %v1886
      %2028 = vmatmul.mubr.bf16.gmra.mrb[0].mxu0 %v1885
      %v2029 = vpop.f32.mrb[0].mxu0
      %v2030 = vadd.f32 0.0, %v2029
      %v2031 = vpop.f32.mrb[0].mxu0
      %v2032 = vpop.f32.mrb[0].mxu0
      %v2033 = vadd.f32 0.0, %v2032
      %v2034 = vpop.f32.mrb[0].mxu0
      %2035 = vdwg.mxu0
      %v2036 = vadd.f32 %v1774, %v2022
      %v2037 = vadd.f32 %v1775, %v2025
      %v2038 = vadd.f32 %v1776, %v2030
      %v2039 = vadd.f32 %v1777, %v2033
      %v2040 = vld [vmem:[%s790] sm:$0xee]
      %v2041 = vld [vmem:[%s790 + $0x10] sm:$0xee]
      %v2042 = vld [vmem:[%s790 + $0x20] sm:$0xee]
      %v2043 = vld [vmem:[%s790 + $0x30] sm:$0xee]
      %v2052 = vrot.slane %v2040, 5
      %v2053 = vrot.slane %v2052, 4
      %v2054 = vrot.slane %v1779, 5
      %v2055 = vsel %vm1357, %v2053, %v2054
      %v2056 = vrot.slane %v2041, 5
      %v2057 = vrot.slane %v2056, 4
      %v2058 = vrot.slane %v1781, 5
      %v2059 = vsel %vm1357, %v2057, %v2058
      %v2060 = vrot.slane %v2042, 5
      %v2061 = vrot.slane %v2060, 4
      %v2062 = vrot.slane %v1783, 5
      %v2063 = vsel %vm1357, %v2061, %v2062
      %v2064 = vrot.slane %v2043, 5
      %v2065 = vrot.slane %v2064, 4
      %v2066 = vrot.slane %v1785, 5
      %v2067 = vsel %vm1357, %v2065, %v2066
      %s2068 = scalar_lea.vmem %s3, 640
      %v2069 = vld [vmem:[%s2068] sm:$0xf]
      %v2070 = vld [vmem:[%s2068 + $0x4] sm:$0xf]
      %v2071 = vld [vmem:[%s2068 + $0x8] sm:$0xf]
      %v2072 = vld [vmem:[%s2068 + $0xc] sm:$0xf]
      %v2073 = vld [vmem:[%s2068 + $0x10] sm:$0xf]
      %v2074 = vld [vmem:[%s2068 + $0x14] sm:$0xf]
      %v2075 = vld [vmem:[%s2068 + $0x18] sm:$0xf]
      %v2076 = vld [vmem:[%s2068 + $0x1c] sm:$0xf]
      %v2077 = vld [vmem:[%s2068 + $0x20] sm:$0xf]
      %v2078 = vld [vmem:[%s2068 + $0x24] sm:$0xf]
      %v2079 = vld [vmem:[%s2068 + $0x28] sm:$0xf]
      %v2080 = vld [vmem:[%s2068 + $0x2c] sm:$0xf]
      %v2081 = vld [vmem:[%s2068 + $0x30] sm:$0xf]
      %v2082 = vld [vmem:[%s2068 + $0x34] sm:$0xf]
      %v2083 = vld [vmem:[%s2068 + $0x38] sm:$0xf]
      %v2084 = vld [vmem:[%s2068 + $0x3c] sm:$0xf]
      %v2085 = vld [vmem:[%s2068 + $0x40] sm:$0xf]
      %v2086 = vld [vmem:[%s2068 + $0x44] sm:$0xf]
      %v2087 = vld [vmem:[%s2068 + $0x48] sm:$0xf]
      %v2088 = vld [vmem:[%s2068 + $0x4c] sm:$0xf]
      %v2089 = vld [vmem:[%s2068 + $0x50] sm:$0xf]
      %v2090 = vld [vmem:[%s2068 + $0x54] sm:$0xf]
      %v2091 = vld [vmem:[%s2068 + $0x58] sm:$0xf]
      %v2092 = vld [vmem:[%s2068 + $0x5c] sm:$0xf]
      %v2093 = vld [vmem:[%s2068 + $0x60] sm:$0xf]
      %v2094 = vld [vmem:[%s2068 + $0x64] sm:$0xf]
      %v2095 = vld [vmem:[%s2068 + $0x68] sm:$0xf]
      %v2096 = vld [vmem:[%s2068 + $0x6c] sm:$0xf]
      %v2097 = vld [vmem:[%s2068 + $0x70] sm:$0xf]
      %v2098 = vld [vmem:[%s2068 + $0x74] sm:$0xf]
      %v2099 = vld [vmem:[%s2068 + $0x78] sm:$0xf]
      %v2100 = vld [vmem:[%s2068 + $0x7c] sm:$0xf]
      %v2101 = vunpack.c.l.b16 %v2055
      %v2102 = vunpack.c.h.b16 %v2055
      %v2103 = vunpack.c.l.b16 %v2059
      %v2104 = vunpack.c.h.b16 %v2059
      %v2105 = vunpack.c.l.b16 %v2063
      %v2106 = vunpack.c.h.b16 %v2063
      %v2107 = vunpack.c.l.b16 %v2067
      %v2108 = vunpack.c.h.b16 %v2067
      %v2109 = vpack.c.b16 %v2103, %v2101
      %v2110 = vpack.c.b16 %v2104, %v2102
      %v2111 = vpack.c.b16 %v2107, %v2105
      %v2112 = vpack.c.b16 %v2108, %v2106
      %v2149 = vunpack.c.l.b16 %v2069
      %v2150 = vunpack.c.l.b16 %v2070
      %v2151 = vunpack.c.l.b16 %v2071
      %v2152 = vunpack.c.l.b16 %v2072
      %v2153 = vunpack.c.l.b16 %v2073
      %v2154 = vunpack.c.l.b16 %v2074
      %v2155 = vunpack.c.l.b16 %v2075
      %v2156 = vunpack.c.l.b16 %v2076
      %v2157 = vunpack.c.l.b16 %v2077
      %v2158 = vunpack.c.l.b16 %v2078
      %v2159 = vunpack.c.l.b16 %v2079
      %v2160 = vunpack.c.l.b16 %v2080
      %v2161 = vunpack.c.l.b16 %v2081
      %v2162 = vunpack.c.l.b16 %v2082
      %v2163 = vunpack.c.l.b16 %v2083
      %v2164 = vunpack.c.l.b16 %v2084
      %v2165 = vunpack.c.l.b16 %v2085
      %v2166 = vunpack.c.l.b16 %v2086
      %v2167 = vunpack.c.l.b16 %v2087
      %v2168 = vunpack.c.l.b16 %v2088
      %v2169 = vunpack.c.l.b16 %v2089
      %v2170 = vunpack.c.l.b16 %v2090
      %v2171 = vunpack.c.l.b16 %v2091
      %v2172 = vunpack.c.l.b16 %v2092
      %v2173 = vunpack.c.l.b16 %v2093
      %v2174 = vunpack.c.l.b16 %v2094
      %v2175 = vunpack.c.l.b16 %v2095
      %v2176 = vunpack.c.l.b16 %v2096
      %v2177 = vunpack.c.l.b16 %v2097
      %v2178 = vunpack.c.l.b16 %v2098
      %v2179 = vunpack.c.l.b16 %v2099
      %v2180 = vunpack.c.l.b16 %v2100
      %v2181 = vpack.c.b16 %v2150, %v2149
      %v2182 = vpack.c.b16 %v2152, %v2151
      %v2183 = vpack.c.b16 %v2154, %v2153
      %v2184 = vpack.c.b16 %v2156, %v2155
      %v2185 = vpack.c.b16 %v2158, %v2157
      %v2186 = vpack.c.b16 %v2160, %v2159
      %v2187 = vpack.c.b16 %v2162, %v2161
      %v2188 = vpack.c.b16 %v2164, %v2163
      %v2189 = vpack.c.b16 %v2166, %v2165
      %v2190 = vpack.c.b16 %v2168, %v2167
      %v2191 = vpack.c.b16 %v2170, %v2169
      %v2192 = vpack.c.b16 %v2172, %v2171
      %v2193 = vpack.c.b16 %v2174, %v2173
      %v2194 = vpack.c.b16 %v2176, %v2175
      %v2195 = vpack.c.b16 %v2178, %v2177
      %v2196 = vpack.c.b16 %v2180, %v2179
      %2213 = vmatprep.subr.bf16.mxu0 0
      %2214 = vmatpush1.bf16.msra.mxu0 %v2181
      %2215 = vmatprep.subr.bf16.mxu0 0
      %2216 = vmatpush1.bf16.msra.mxu0 %v2182
      %2217 = vmatprep.subr.bf16.mxu0 0
      %2218 = vmatpush1.bf16.msra.mxu0 %v2183
      %2219 = vmatprep.subr.bf16.mxu0 0
      %2220 = vmatpush1.bf16.msra.mxu0 %v2184
      %2221 = vmatprep.subr.bf16.mxu0 0
      %2222 = vmatpush1.bf16.msra.mxu0 %v2185
      %2223 = vmatprep.subr.bf16.mxu0 0
      %2224 = vmatpush1.bf16.msra.mxu0 %v2186
      %2225 = vmatprep.subr.bf16.mxu0 0
      %2226 = vmatpush1.bf16.msra.mxu0 %v2187
      %2227 = vmatprep.subr.bf16.mxu0 0
      %2228 = vmatpush1.bf16.msra.mxu0 %v2188
      %2229 = vmatprep.subr.bf16.mxu0 0
      %2230 = vmatpush1.bf16.msra.mxu0 %v2189
      %2231 = vmatprep.subr.bf16.mxu0 0
      %2232 = vmatpush1.bf16.msra.mxu0 %v2190
      %2233 = vmatprep.subr.bf16.mxu0 0
      %2234 = vmatpush1.bf16.msra.mxu0 %v2191
      %2235 = vmatprep.subr.bf16.mxu0 0
      %2236 = vmatpush1.bf16.msra.mxu0 %v2192
      %2237 = vmatprep.subr.bf16.mxu0 0
      %2238 = vmatpush1.bf16.msra.mxu0 %v2193
      %2239 = vmatprep.subr.bf16.mxu0 0
      %2240 = vmatpush1.bf16.msra.mxu0 %v2194
      %2241 = vmatprep.subr.bf16.mxu0 0
      %2242 = vmatpush1.bf16.msra.mxu0 %v2195
      %2243 = vmatprep.subr.bf16.mxu0 0
      %2244 = vmatpush1.bf16.msra.mxu0 %v2196
      %2245 = vmatprep.mubr.bf16.mxu0 %v2110
      %2246 = vmatmul.mubr.bf16.gmra.mrb[0].mxu0 %v2109
      %v2247 = vpop.f32.mrb[0].mxu0
      %v2248 = vadd.f32 0.0, %v2247
      %v2249 = vpop.f32.mrb[0].mxu0
      %v2250 = vpop.f32.mrb[0].mxu0
      %v2251 = vadd.f32 0.0, %v2250
      %v2252 = vpop.f32.mrb[0].mxu0
      %2253 = vmatprep.mubr.bf16.mxu0 %v2112
      %2254 = vmatmul.mubr.bf16.gmra.mrb[0].mxu0 %v2111
      %v2255 = vpop.f32.mrb[0].mxu0
      %v2256 = vadd.f32 0.0, %v2255
      %v2257 = vpop.f32.mrb[0].mxu0
      %v2258 = vpop.f32.mrb[0].mxu0
      %v2259 = vadd.f32 0.0, %v2258
      %v2260 = vpop.f32.mrb[0].mxu0
      %2261 = vdwg.mxu0
      %v2262 = vadd.f32 %v2036, %v2248
      %v2263 = vadd.f32 %v2037, %v2251
      %v2264 = vadd.f32 %v2038, %v2256
      %v2265 = vadd.f32 %v2039, %v2259
      %s2266 = scalar_lea.vmem [#allocation2], 32
      %v2267 = vld [vmem:[%s2266] sm:$0xff]
      %v2268 = vld [vmem:[%s2266 + $0x10] sm:$0xff]
      %v2269 = vld [vmem:[%s2266 + $0x20] sm:$0xff]
      %v2270 = vld [vmem:[%s2266 + $0x30] sm:$0xff]
      %s2271 = scalar_lea.vmem %s3, 768
      %v2272 = vld [vmem:[%s2271] sm:$0xf]
      %v2273 = vld [vmem:[%s2271 + $0x4] sm:$0xf]
      %v2274 = vld [vmem:[%s2271 + $0x8] sm:$0xf]
      %v2275 = vld [vmem:[%s2271 + $0xc] sm:$0xf]
      %v2276 = vld [vmem:[%s2271 + $0x10] sm:$0xf]
      %v2277 = vld [vmem:[%s2271 + $0x14] sm:$0xf]
      %v2278 = vld [vmem:[%s2271 + $0x18] sm:$0xf]
      %v2279 = vld [vmem:[%s2271 + $0x1c] sm:$0xf]
      %v2280 = vld [vmem:[%s2271 + $0x20] sm:$0xf]
      %v2281 = vld [vmem:[%s2271 + $0x24] sm:$0xf]
      %v2282 = vld [vmem:[%s2271 + $0x28] sm:$0xf]
      %v2283 = vld [vmem:[%s2271 + $0x2c] sm:$0xf]
      %v2284 = vld [vmem:[%s2271 + $0x30] sm:$0xf]
      %v2285 = vld [vmem:[%s2271 + $0x34] sm:$0xf]
      %v2286 = vld [vmem:[%s2271 + $0x38] sm:$0xf]
      %v2287 = vld [vmem:[%s2271 + $0x3c] sm:$0xf]
      %v2288 = vld [vmem:[%s2271 + $0x40] sm:$0xf]
      %v2289 = vld [vmem:[%s2271 + $0x44] sm:$0xf]
      %v2290 = vld [vmem:[%s2271 + $0x48] sm:$0xf]
      %v2291 = vld [vmem:[%s2271 + $0x4c] sm:$0xf]
      %v2292 = vld [vmem:[%s2271 + $0x50] sm:$0xf]
      %v2293 = vld [vmem:[%s2271 + $0x54] sm:$0xf]
      %v2294 = vld [vmem:[%s2271 + $0x58] sm:$0xf]
      %v2295 = vld [vmem:[%s2271 + $0x5c] sm:$0xf]
      %v2296 = vld [vmem:[%s2271 + $0x60] sm:$0xf]
      %v2297 = vld [vmem:[%s2271 + $0x64] sm:$0xf]
      %v2298 = vld [vmem:[%s2271 + $0x68] sm:$0xf]
      %v2299 = vld [vmem:[%s2271 + $0x6c] sm:$0xf]
      %v2300 = vld [vmem:[%s2271 + $0x70] sm:$0xf]
      %v2301 = vld [vmem:[%s2271 + $0x74] sm:$0xf]
      %v2302 = vld [vmem:[%s2271 + $0x78] sm:$0xf]
      %v2303 = vld [vmem:[%s2271 + $0x7c] sm:$0xf]
      %v2308 = vunpack.c.l.b16 %v2267
      %v2309 = vunpack.c.h.b16 %v2267
      %v2310 = vunpack.c.l.b16 %v2268
      %v2311 = vunpack.c.h.b16 %v2268
      %v2312 = vunpack.c.l.b16 %v2269
      %v2313 = vunpack.c.h.b16 %v2269
      %v2314 = vunpack.c.l.b16 %v2270
      %v2315 = vunpack.c.h.b16 %v2270
      %v2316 = vpack.c.b16 %v2310, %v2308
      %v2317 = vpack.c.b16 %v2311, %v2309
      %v2318 = vpack.c.b16 %v2314, %v2312
      %v2319 = vpack.c.b16 %v2315, %v2313
      %v2356 = vunpack.c.l.b16 %v2272
      %v2357 = vunpack.c.l.b16 %v2273
      %v2358 = vunpack.c.l.b16 %v2274
      %v2359 = vunpack.c.l.b16 %v2275
      %v2360 = vunpack.c.l.b16 %v2276
      %v2361 = vunpack.c.l.b16 %v2277
      %v2362 = vunpack.c.l.b16 %v2278
      %v2363 = vunpack.c.l.b16 %v2279
      %v2364 = vunpack.c.l.b16 %v2280
      %v2365 = vunpack.c.l.b16 %v2281
      %v2366 = vunpack.c.l.b16 %v2282
      %v2367 = vunpack.c.l.b16 %v2283
      %v2368 = vunpack.c.l.b16 %v2284
      %v2369 = vunpack.c.l.b16 %v2285
      %v2370 = vunpack.c.l.b16 %v2286
      %v2371 = vunpack.c.l.b16 %v2287
      %v2372 = vunpack.c.l.b16 %v2288
      %v2373 = vunpack.c.l.b16 %v2289
      %v2374 = vunpack.c.l.b16 %v2290
      %v2375 = vunpack.c.l.b16 %v2291
      %v2376 = vunpack.c.l.b16 %v2292
      %v2377 = vunpack.c.l.b16 %v2293
      %v2378 = vunpack.c.l.b16 %v2294
      %v2379 = vunpack.c.l.b16 %v2295
      %v2380 = vunpack.c.l.b16 %v2296
      %v2381 = vunpack.c.l.b16 %v2297
      %v2382 = vunpack.c.l.b16 %v2298
      %v2383 = vunpack.c.l.b16 %v2299
      %v2384 = vunpack.c.l.b16 %v2300
      %v2385 = vunpack.c.l.b16 %v2301
      %v2386 = vunpack.c.l.b16 %v2302
      %v2387 = vunpack.c.l.b16 %v2303
      %v2388 = vpack.c.b16 %v2357, %v2356
      %v2389 = vpack.c.b16 %v2359, %v2358
      %v2390 = vpack.c.b16 %v2361, %v2360
      %v2391 = vpack.c.b16 %v2363, %v2362
      %v2392 = vpack.c.b16 %v2365, %v2364
      %v2393 = vpack.c.b16 %v2367, %v2366
      %v2394 = vpack.c.b16 %v2369, %v2368
      %v2395 = vpack.c.b16 %v2371, %v2370
      %v2396 = vpack.c.b16 %v2373, %v2372
      %v2397 = vpack.c.b16 %v2375, %v2374
      %v2398 = vpack.c.b16 %v2377, %v2376
      %v2399 = vpack.c.b16 %v2379, %v2378
      %v2400 = vpack.c.b16 %v2381, %v2380
      %v2401 = vpack.c.b16 %v2383, %v2382
      %v2402 = vpack.c.b16 %v2385, %v2384
      %v2403 = vpack.c.b16 %v2387, %v2386
      %2420 = vmatprep.subr.bf16.mxu0 0
      %2421 = vmatpush1.bf16.msra.mxu0 %v2388
      %2422 = vmatprep.subr.bf16.mxu0 0
      %2423 = vmatpush1.bf16.msra.mxu0 %v2389
      %2424 = vmatprep.subr.bf16.mxu0 0
      %2425 = vmatpush1.bf16.msra.mxu0 %v2390
      %2426 = vmatprep.subr.bf16.mxu0 0
      %2427 = vmatpush1.bf16.msra.mxu0 %v2391
      %2428 = vmatprep.subr.bf16.mxu0 0
      %2429 = vmatpush1.bf16.msra.mxu0 %v2392
      %2430 = vmatprep.subr.bf16.mxu0 0
      %2431 = vmatpush1.bf16.msra.mxu0 %v2393
      %2432 = vmatprep.subr.bf16.mxu0 0
      %2433 = vmatpush1.bf16.msra.mxu0 %v2394
      %2434 = vmatprep.subr.bf16.mxu0 0
      %2435 = vmatpush1.bf16.msra.mxu0 %v2395
      %2436 = vmatprep.subr.bf16.mxu0 0
      %2437 = vmatpush1.bf16.msra.mxu0 %v2396
      %2438 = vmatprep.subr.bf16.mxu0 0
      %2439 = vmatpush1.bf16.msra.mxu0 %v2397
      %2440 = vmatprep.subr.bf16.mxu0 0
      %2441 = vmatpush1.bf16.msra.mxu0 %v2398
      %2442 = vmatprep.subr.bf16.mxu0 0
      %2443 = vmatpush1.bf16.msra.mxu0 %v2399
      %2444 = vmatprep.subr.bf16.mxu0 0
      %2445 = vmatpush1.bf16.msra.mxu0 %v2400
      %2446 = vmatprep.subr.bf16.mxu0 0
      %2447 = vmatpush1.bf16.msra.mxu0 %v2401
      %2448 = vmatprep.subr.bf16.mxu0 0
      %2449 = vmatpush1.bf16.msra.mxu0 %v2402
      %2450 = vmatprep.subr.bf16.mxu0 0
      %2451 = vmatpush1.bf16.msra.mxu0 %v2403
      %2452 = vmatprep.mubr.bf16.mxu0 %v2317
      %2453 = vmatmul.mubr.bf16.gmra.mrb[0].mxu0 %v2316
      %v2454 = vpop.f32.mrb[0].mxu0
      %v2455 = vadd.f32 0.0, %v2454
      %v2456 = vpop.f32.mrb[0].mxu0
      %v2457 = vpop.f32.mrb[0].mxu0
      %v2458 = vadd.f32 0.0, %v2457
      %v2459 = vpop.f32.mrb[0].mxu0
      %2460 = vmatprep.mubr.bf16.mxu0 %v2319
      %2461 = vmatmul.mubr.bf16.gmra.mrb[0].mxu0 %v2318
      %v2462 = vpop.f32.mrb[0].mxu0
      %v2463 = vadd.f32 0.0, %v2462
      %v2464 = vpop.f32.mrb[0].mxu0
      %v2465 = vpop.f32.mrb[0].mxu0
      %v2466 = vadd.f32 0.0, %v2465
      %v2467 = vpop.f32.mrb[0].mxu0
      %2468 = vdwg.mxu0
      %v2469 = vadd.f32 %v2262, %v2455
      %v2470 = vadd.f32 %v2263, %v2458
      %v2471 = vadd.f32 %v2264, %v2463
      %v2472 = vadd.f32 %v2265, %v2466
      %v2473 = vld [vmem:[%s2266] sm:$0xff]
      %v2474 = vld [vmem:[%s2266 + $0x8] sm:$0x11]
      %v2475 = vld [vmem:[%s2266 + $0x10] sm:$0xff]
      %v2476 = vld [vmem:[%s2266 + $0x18] sm:$0x11]
      %v2477 = vld [vmem:[%s2266 + $0x20] sm:$0xff]
      %v2478 = vld [vmem:[%s2266 + $0x28] sm:$0x11]
      %v2479 = vld [vmem:[%s2266 + $0x30] sm:$0xff]
      %v2480 = vld [vmem:[%s2266 + $0x38] sm:$0x11]
      %v2482 = vshrl.u32 %v2473, 16
      %v2484 = vrot.slane %v2482, 4
      %v2485 = vshll.u32 %v2473, 16
      %v2487 = vrot.slane %v2485, 5
      %v2488 = vor.u32 %v2484, %v2487
      %v2489 = vrot.slane %v2488, 4
      %v2491 = vshll.u32 %v2474, 16
      %v2493 = vrot.slane %v2491, 5
      %v2494 = vsel %vm927, %v2489, %v2493
      %v2496 = vshrl.u32 %v2475, 16
      %v2498 = vrot.slane %v2496, 4
      %v2499 = vshll.u32 %v2475, 16
      %v2501 = vrot.slane %v2499, 5
      %v2502 = vor.u32 %v2498, %v2501
      %v2503 = vrot.slane %v2502, 4
      %v2505 = vshll.u32 %v2476, 16
      %v2507 = vrot.slane %v2505, 5
      %v2508 = vsel %vm927, %v2503, %v2507
      %v2510 = vshrl.u32 %v2477, 16
      %v2512 = vrot.slane %v2510, 4
      %v2513 = vshll.u32 %v2477, 16
      %v2515 = vrot.slane %v2513, 5
      %v2516 = vor.u32 %v2512, %v2515
      %v2517 = vrot.slane %v2516, 4
      %v2519 = vshll.u32 %v2478, 16
      %v2521 = vrot.slane %v2519, 5
      %v2522 = vsel %vm927, %v2517, %v2521
      %v2524 = vshrl.u32 %v2479, 16
      %v2526 = vrot.slane %v2524, 4
      %v2527 = vshll.u32 %v2479, 16
      %v2529 = vrot.slane %v2527, 5
      %v2530 = vor.u32 %v2526, %v2529
      %v2531 = vrot.slane %v2530, 4
      %v2533 = vshll.u32 %v2480, 16
      %v2535 = vrot.slane %v2533, 5
      %v2536 = vsel %vm927, %v2531, %v2535
      %s2537 = scalar_lea.vmem %s3, 896
      %v2538 = vld [vmem:[%s2537] sm:$0xf]
      %v2539 = vld [vmem:[%s2537 + $0x4] sm:$0xf]
      %v2540 = vld [vmem:[%s2537 + $0x8] sm:$0xf]
      %v2541 = vld [vmem:[%s2537 + $0xc] sm:$0xf]
      %v2542 = vld [vmem:[%s2537 + $0x10] sm:$0xf]
      %v2543 = vld [vmem:[%s2537 + $0x14] sm:$0xf]
      %v2544 = vld [vmem:[%s2537 + $0x18] sm:$0xf]
      %v2545 = vld [vmem:[%s2537 + $0x1c] sm:$0xf]
      %v2546 = vld [vmem:[%s2537 + $0x20] sm:$0xf]
      %v2547 = vld [vmem:[%s2537 + $0x24] sm:$0xf]
      %v2548 = vld [vmem:[%s2537 + $0x28] sm:$0xf]
      %v2549 = vld [vmem:[%s2537 + $0x2c] sm:$0xf]
      %v2550 = vld [vmem:[%s2537 + $0x30] sm:$0xf]
      %v2551 = vld [vmem:[%s2537 + $0x34] sm:$0xf]
      %v2552 = vld [vmem:[%s2537 + $0x38] sm:$0xf]
      %v2553 = vld [vmem:[%s2537 + $0x3c] sm:$0xf]
      %v2554 = vld [vmem:[%s2537 + $0x40] sm:$0xf]
      %v2555 = vld [vmem:[%s2537 + $0x44] sm:$0xf]
      %v2556 = vld [vmem:[%s2537 + $0x48] sm:$0xf]
      %v2557 = vld [vmem:[%s2537 + $0x4c] sm:$0xf]
      %v2558 = vld [vmem:[%s2537 + $0x50] sm:$0xf]
      %v2559 = vld [vmem:[%s2537 + $0x54] sm:$0xf]
      %v2560 = vld [vmem:[%s2537 + $0x58] sm:$0xf]
      %v2561 = vld [vmem:[%s2537 + $0x5c] sm:$0xf]
      %v2562 = vld [vmem:[%s2537 + $0x60] sm:$0xf]
      %v2563 = vld [vmem:[%s2537 + $0x64] sm:$0xf]
      %v2564 = vld [vmem:[%s2537 + $0x68] sm:$0xf]
      %v2565 = vld [vmem:[%s2537 + $0x6c] sm:$0xf]
      %v2566 = vld [vmem:[%s2537 + $0x70] sm:$0xf]
      %v2567 = vld [vmem:[%s2537 + $0x74] sm:$0xf]
      %v2568 = vld [vmem:[%s2537 + $0x78] sm:$0xf]
      %v2569 = vld [vmem:[%s2537 + $0x7c] sm:$0xf]
      %v2570 = vunpack.c.l.b16 %v2494
      %v2571 = vunpack.c.h.b16 %v2494
      %v2572 = vunpack.c.l.b16 %v2508
      %v2573 = vunpack.c.h.b16 %v2508
      %v2574 = vunpack.c.l.b16 %v2522
      %v2575 = vunpack.c.h.b16 %v2522
      %v2576 = vunpack.c.l.b16 %v2536
      %v2577 = vunpack.c.h.b16 %v2536
      %v2578 = vpack.c.b16 %v2572, %v2570
      %v2579 = vpack.c.b16 %v2573, %v2571
      %v2580 = vpack.c.b16 %v2576, %v2574
      %v2581 = vpack.c.b16 %v2577, %v2575
      %v2618 = vunpack.c.l.b16 %v2538
      %v2619 = vunpack.c.l.b16 %v2539
      %v2620 = vunpack.c.l.b16 %v2540
      %v2621 = vunpack.c.l.b16 %v2541
      %v2622 = vunpack.c.l.b16 %v2542
      %v2623 = vunpack.c.l.b16 %v2543
      %v2624 = vunpack.c.l.b16 %v2544
      %v2625 = vunpack.c.l.b16 %v2545
      %v2626 = vunpack.c.l.b16 %v2546
      %v2627 = vunpack.c.l.b16 %v2547
      %v2628 = vunpack.c.l.b16 %v2548
      %v2629 = vunpack.c.l.b16 %v2549
      %v2630 = vunpack.c.l.b16 %v2550
      %v2631 = vunpack.c.l.b16 %v2551
      %v2632 = vunpack.c.l.b16 %v2552
      %v2633 = vunpack.c.l.b16 %v2553
      %v2634 = vunpack.c.l.b16 %v2554
      %v2635 = vunpack.c.l.b16 %v2555
      %v2636 = vunpack.c.l.b16 %v2556
      %v2637 = vunpack.c.l.b16 %v2557
      %v2638 = vunpack.c.l.b16 %v2558
      %v2639 = vunpack.c.l.b16 %v2559
      %v2640 = vunpack.c.l.b16 %v2560
      %v2641 = vunpack.c.l.b16 %v2561
      %v2642 = vunpack.c.l.b16 %v2562
      %v2643 = vunpack.c.l.b16 %v2563
      %v2644 = vunpack.c.l.b16 %v2564
      %v2645 = vunpack.c.l.b16 %v2565
      %v2646 = vunpack.c.l.b16 %v2566
      %v2647 = vunpack.c.l.b16 %v2567
      %v2648 = vunpack.c.l.b16 %v2568
      %v2649 = vunpack.c.l.b16 %v2569
      %v2650 = vpack.c.b16 %v2619, %v2618
      %v2651 = vpack.c.b16 %v2621, %v2620
      %v2652 = vpack.c.b16 %v2623, %v2622
      %v2653 = vpack.c.b16 %v2625, %v2624
      %v2654 = vpack.c.b16 %v2627, %v2626
      %v2655 = vpack.c.b16 %v2629, %v2628
      %v2656 = vpack.c.b16 %v2631, %v2630
      %v2657 = vpack.c.b16 %v2633, %v2632
      %v2658 = vpack.c.b16 %v2635, %v2634
      %v2659 = vpack.c.b16 %v2637, %v2636
      %v2660 = vpack.c.b16 %v2639, %v2638
      %v2661 = vpack.c.b16 %v2641, %v2640
      %v2662 = vpack.c.b16 %v2643, %v2642
      %v2663 = vpack.c.b16 %v2645, %v2644
      %v2664 = vpack.c.b16 %v2647, %v2646
      %v2665 = vpack.c.b16 %v2649, %v2648
      %2682 = vmatprep.subr.bf16.mxu0 0
      %2683 = vmatpush1.bf16.msra.mxu0 %v2650
      %2684 = vmatprep.subr.bf16.mxu0 0
      %2685 = vmatpush1.bf16.msra.mxu0 %v2651
      %2686 = vmatprep.subr.bf16.mxu0 0
      %2687 = vmatpush1.bf16.msra.mxu0 %v2652
      %2688 = vmatprep.subr.bf16.mxu0 0
      %2689 = vmatpush1.bf16.msra.mxu0 %v2653
      %2690 = vmatprep.subr.bf16.mxu0 0
      %2691 = vmatpush1.bf16.msra.mxu0 %v2654
      %2692 = vmatprep.subr.bf16.mxu0 0
      %2693 = vmatpush1.bf16.msra.mxu0 %v2655
      %2694 = vmatprep.subr.bf16.mxu0 0
      %2695 = vmatpush1.bf16.msra.mxu0 %v2656
      %2696 = vmatprep.subr.bf16.mxu0 0
      %2697 = vmatpush1.bf16.msra.mxu0 %v2657
      %2698 = vmatprep.subr.bf16.mxu0 0
      %2699 = vmatpush1.bf16.msra.mxu0 %v2658
      %2700 = vmatprep.subr.bf16.mxu0 0
      %2701 = vmatpush1.bf16.msra.mxu0 %v2659
      %2702 = vmatprep.subr.bf16.mxu0 0
      %2703 = vmatpush1.bf16.msra.mxu0 %v2660
      %2704 = vmatprep.subr.bf16.mxu0 0
      %2705 = vmatpush1.bf16.msra.mxu0 %v2661
      %2706 = vmatprep.subr.bf16.mxu0 0
      %2707 = vmatpush1.bf16.msra.mxu0 %v2662
      %2708 = vmatprep.subr.bf16.mxu0 0
      %2709 = vmatpush1.bf16.msra.mxu0 %v2663
      %2710 = vmatprep.subr.bf16.mxu0 0
      %2711 = vmatpush1.bf16.msra.mxu0 %v2664
      %2712 = vmatprep.subr.bf16.mxu0 0
      %2713 = vmatpush1.bf16.msra.mxu0 %v2665
      %2714 = vmatprep.mubr.bf16.mxu0 %v2579
      %2715 = vmatmul.mubr.bf16.gmra.mrb[0].mxu0 %v2578
      %v2716 = vpop.f32.mrb[0].mxu0
      %v2717 = vadd.f32 0.0, %v2716
      %v2718 = vpop.f32.mrb[0].mxu0
      %v2719 = vpop.f32.mrb[0].mxu0
      %v2720 = vadd.f32 0.0, %v2719
      %v2721 = vpop.f32.mrb[0].mxu0
      %2722 = vmatprep.mubr.bf16.mxu0 %v2581
      %2723 = vmatmul.mubr.bf16.gmra.mrb[0].mxu0 %v2580
      %v2724 = vpop.f32.mrb[0].mxu0
      %v2725 = vadd.f32 0.0, %v2724
      %v2726 = vpop.f32.mrb[0].mxu0
      %v2727 = vpop.f32.mrb[0].mxu0
      %v2728 = vadd.f32 0.0, %v2727
      %v2729 = vpop.f32.mrb[0].mxu0
      %2730 = vdwg.mxu0
      %v2731 = vadd.f32 %v2469, %v2717
      %v2732 = vadd.f32 %v2470, %v2720
      %v2733 = vadd.f32 %v2471, %v2725
      %v2734 = vadd.f32 %v2472, %v2728
      %v2735 = vld [vmem:[%s2266] sm:$0xee]
      %v2736 = vld [vmem:[%s2266 + $0x10] sm:$0xee]
      %v2737 = vld [vmem:[%s2266 + $0x20] sm:$0xee]
      %v2738 = vld [vmem:[%s2266 + $0x30] sm:$0xee]
      %v2747 = vrot.slane %v2735, 5
      %v2748 = vrot.slane %v2747, 4
      %v2749 = vrot.slane %v2474, 5
      %v2750 = vsel %vm1357, %v2748, %v2749
      %v2751 = vrot.slane %v2736, 5
      %v2752 = vrot.slane %v2751, 4
      %v2753 = vrot.slane %v2476, 5
      %v2754 = vsel %vm1357, %v2752, %v2753
      %v2755 = vrot.slane %v2737, 5
      %v2756 = vrot.slane %v2755, 4
      %v2757 = vrot.slane %v2478, 5
      %v2758 = vsel %vm1357, %v2756, %v2757
      %v2759 = vrot.slane %v2738, 5
      %v2760 = vrot.slane %v2759, 4
      %v2761 = vrot.slane %v2480, 5
      %v2762 = vsel %vm1357, %v2760, %v2761
      %s2763 = scalar_lea.vmem %s3, 1024
      %v2764 = vld [vmem:[%s2763] sm:$0xf]
      %v2765 = vld [vmem:[%s2763 + $0x4] sm:$0xf]
      %v2766 = vld [vmem:[%s2763 + $0x8] sm:$0xf]
      %v2767 = vld [vmem:[%s2763 + $0xc] sm:$0xf]
      %v2768 = vld [vmem:[%s2763 + $0x10] sm:$0xf]
      %v2769 = vld [vmem:[%s2763 + $0x14] sm:$0xf]
      %v2770 = vld [vmem:[%s2763 + $0x18] sm:$0xf]
      %v2771 = vld [vmem:[%s2763 + $0x1c] sm:$0xf]
      %v2772 = vld [vmem:[%s2763 + $0x20] sm:$0xf]
      %v2773 = vld [vmem:[%s2763 + $0x24] sm:$0xf]
      %v2774 = vld [vmem:[%s2763 + $0x28] sm:$0xf]
      %v2775 = vld [vmem:[%s2763 + $0x2c] sm:$0xf]
      %v2776 = vld [vmem:[%s2763 + $0x30] sm:$0xf]
      %v2777 = vld [vmem:[%s2763 + $0x34] sm:$0xf]
      %v2778 = vld [vmem:[%s2763 + $0x38] sm:$0xf]
      %v2779 = vld [vmem:[%s2763 + $0x3c] sm:$0xf]
      %v2780 = vld [vmem:[%s2763 + $0x40] sm:$0xf]
      %v2781 = vld [vmem:[%s2763 + $0x44] sm:$0xf]
      %v2782 = vld [vmem:[%s2763 + $0x48] sm:$0xf]
      %v2783 = vld [vmem:[%s2763 + $0x4c] sm:$0xf]
      %v2784 = vld [vmem:[%s2763 + $0x50] sm:$0xf]
      %v2785 = vld [vmem:[%s2763 + $0x54] sm:$0xf]
      %v2786 = vld [vmem:[%s2763 + $0x58] sm:$0xf]
      %v2787 = vld [vmem:[%s2763 + $0x5c] sm:$0xf]
      %v2788 = vld [vmem:[%s2763 + $0x60] sm:$0xf]
      %v2789 = vld [vmem:[%s2763 + $0x64] sm:$0xf]
      %v2790 = vld [vmem:[%s2763 + $0x68] sm:$0xf]
      %v2791 = vld [vmem:[%s2763 + $0x6c] sm:$0xf]
      %v2792 = vld [vmem:[%s2763 + $0x70] sm:$0xf]
      %v2793 = vld [vmem:[%s2763 + $0x74] sm:$0xf]
      %v2794 = vld [vmem:[%s2763 + $0x78] sm:$0xf]
      %v2795 = vld [vmem:[%s2763 + $0x7c] sm:$0xf]
      %v2796 = vunpack.c.l.b16 %v2750
      %v2797 = vunpack.c.h.b16 %v2750
      %v2798 = vunpack.c.l.b16 %v2754
      %v2799 = vunpack.c.h.b16 %v2754
      %v2800 = vunpack.c.l.b16 %v2758
      %v2801 = vunpack.c.h.b16 %v2758
      %v2802 = vunpack.c.l.b16 %v2762
      %v2803 = vunpack.c.h.b16 %v2762
      %v2804 = vpack.c.b16 %v2798, %v2796
      %v2805 = vpack.c.b16 %v2799, %v2797
      %v2806 = vpack.c.b16 %v2802, %v2800
      %v2807 = vpack.c.b16 %v2803, %v2801
      %v2844 = vunpack.c.l.b16 %v2764
      %v2845 = vunpack.c.l.b16 %v2765
      %v2846 = vunpack.c.l.b16 %v2766
      %v2847 = vunpack.c.l.b16 %v2767
      %v2848 = vunpack.c.l.b16 %v2768
      %v2849 = vunpack.c.l.b16 %v2769
      %v2850 = vunpack.c.l.b16 %v2770
      %v2851 = vunpack.c.l.b16 %v2771
      %v2852 = vunpack.c.l.b16 %v2772
      %v2853 = vunpack.c.l.b16 %v2773
      %v2854 = vunpack.c.l.b16 %v2774
      %v2855 = vunpack.c.l.b16 %v2775
      %v2856 = vunpack.c.l.b16 %v2776
      %v2857 = vunpack.c.l.b16 %v2777
      %v2858 = vunpack.c.l.b16 %v2778
      %v2859 = vunpack.c.l.b16 %v2779
      %v2860 = vunpack.c.l.b16 %v2780
      %v2861 = vunpack.c.l.b16 %v2781
      %v2862 = vunpack.c.l.b16 %v2782
      %v2863 = vunpack.c.l.b16 %v2783
      %v2864 = vunpack.c.l.b16 %v2784
      %v2865 = vunpack.c.l.b16 %v2785
      %v2866 = vunpack.c.l.b16 %v2786
      %v2867 = vunpack.c.l.b16 %v2787
      %v2868 = vunpack.c.l.b16 %v2788
      %v2869 = vunpack.c.l.b16 %v2789
      %v2870 = vunpack.c.l.b16 %v2790
      %v2871 = vunpack.c.l.b16 %v2791
      %v2872 = vunpack.c.l.b16 %v2792
      %v2873 = vunpack.c.l.b16 %v2793
      %v2874 = vunpack.c.l.b16 %v2794
      %v2875 = vunpack.c.l.b16 %v2795
      %v2876 = vpack.c.b16 %v2845, %v2844
      %v2877 = vpack.c.b16 %v2847, %v2846
      %v2878 = vpack.c.b16 %v2849, %v2848
      %v2879 = vpack.c.b16 %v2851, %v2850
      %v2880 = vpack.c.b16 %v2853, %v2852
      %v2881 = vpack.c.b16 %v2855, %v2854
      %v2882 = vpack.c.b16 %v2857, %v2856
      %v2883 = vpack.c.b16 %v2859, %v2858
      %v2884 = vpack.c.b16 %v2861, %v2860
      %v2885 = vpack.c.b16 %v2863, %v2862
      %v2886 = vpack.c.b16 %v2865, %v2864
      %v2887 = vpack.c.b16 %v2867, %v2866
      %v2888 = vpack.c.b16 %v2869, %v2868
      %v2889 = vpack.c.b16 %v2871, %v2870
      %v2890 = vpack.c.b16 %v2873, %v2872
      %v2891 = vpack.c.b16 %v2875, %v2874
      %2908 = vmatprep.subr.bf16.mxu0 0
      %2909 = vmatpush1.bf16.msra.mxu0 %v2876
      %2910 = vmatprep.subr.bf16.mxu0 0
      %2911 = vmatpush1.bf16.msra.mxu0 %v2877
      %2912 = vmatprep.subr.bf16.mxu0 0
      %2913 = vmatpush1.bf16.msra.mxu0 %v2878
      %2914 = vmatprep.subr.bf16.mxu0 0
      %2915 = vmatpush1.bf16.msra.mxu0 %v2879
      %2916 = vmatprep.subr.bf16.mxu0 0
      %2917 = vmatpush1.bf16.msra.mxu0 %v2880
      %2918 = vmatprep.subr.bf16.mxu0 0
      %2919 = vmatpush1.bf16.msra.mxu0 %v2881
      %2920 = vmatprep.subr.bf16.mxu0 0
      %2921 = vmatpush1.bf16.msra.mxu0 %v2882
      %2922 = vmatprep.subr.bf16.mxu0 0
      %2923 = vmatpush1.bf16.msra.mxu0 %v2883
      %2924 = vmatprep.subr.bf16.mxu0 0
      %2925 = vmatpush1.bf16.msra.mxu0 %v2884
      %2926 = vmatprep.subr.bf16.mxu0 0
      %2927 = vmatpush1.bf16.msra.mxu0 %v2885
      %2928 = vmatprep.subr.bf16.mxu0 0
      %2929 = vmatpush1.bf16.msra.mxu0 %v2886
      %2930 = vmatprep.subr.bf16.mxu0 0
      %2931 = vmatpush1.bf16.msra.mxu0 %v2887
      %2932 = vmatprep.subr.bf16.mxu0 0
      %2933 = vmatpush1.bf16.msra.mxu0 %v2888
      %2934 = vmatprep.subr.bf16.mxu0 0
      %2935 = vmatpush1.bf16.msra.mxu0 %v2889
      %2936 = vmatprep.subr.bf16.mxu0 0
      %2937 = vmatpush1.bf16.msra.mxu0 %v2890
      %2938 = vmatprep.subr.bf16.mxu0 0
      %2939 = vmatpush1.bf16.msra.mxu0 %v2891
      %2940 = vmatprep.mubr.bf16.mxu0 %v2805
      %2941 = vmatmul.mubr.bf16.gmra.mrb[0].mxu0 %v2804
      %v2942 = vpop.f32.mrb[0].mxu0
      %v2943 = vadd.f32 0.0, %v2942
      %v2944 = vpop.f32.mrb[0].mxu0
      %v2945 = vpop.f32.mrb[0].mxu0
      %v2946 = vadd.f32 0.0, %v2945
      %v2947 = vpop.f32.mrb[0].mxu0
      %2948 = vmatprep.mubr.bf16.mxu0 %v2807
      %2949 = vmatmul.mubr.bf16.gmra.mrb[0].mxu0 %v2806
      %v2950 = vpop.f32.mrb[0].mxu0
      %v2951 = vadd.f32 0.0, %v2950
      %v2952 = vpop.f32.mrb[0].mxu0
      %v2953 = vpop.f32.mrb[0].mxu0
      %v2954 = vadd.f32 0.0, %v2953
      %v2955 = vpop.f32.mrb[0].mxu0
      %2956 = vdwg.mxu0
      %v2957 = vadd.f32 %v2731, %v2943
      %v2958 = vadd.f32 %v2732, %v2946
      %v2959 = vadd.f32 %v2733, %v2951
      %v2960 = vadd.f32 %v2734, %v2954
      %v2961 = vld [vmem:[%s4] sm:$0x1]
      %v2963 = vlaneseq
      %v2964 = vshrl.u32 %v2963, 7
      %v2965 = vsub.s32 0, %v2964
      %v2966 = vrot.slane %v2961, %v2965
      %v2968 = vadd.f32 %v2957, %v2966
      %v2969 = vadd.f32 %v2958, %v2966
      %v2970 = vadd.f32 %v2959, %v2966
      %v2971 = vadd.f32 %v2960, %v2966
      %vm2972 = vcmp.ge.f32.partialorder %v2968, 0.0
      %vm2973 = vcmp.ge.f32.partialorder %v2969, 0.0
      %vm2974 = vcmp.ge.f32.partialorder %v2970, 0.0
      %vm2975 = vcmp.ge.f32.partialorder %v2971, 0.0
      %v2976 = vmul.f32 %v2968, 0.2
      %v2977 = vmul.f32 %v2969, 0.2
      %v2978 = vmul.f32 %v2970, 0.2
      %v2979 = vmul.f32 %v2971, 0.2
      %v2980 = vsel %vm2972, %v2968, %v2976
      %v2981 = vsel %vm2973, %v2969, %v2977
      %v2982 = vsel %vm2974, %v2970, %v2978
      %v2983 = vsel %vm2975, %v2971, %v2979
      %v2984 = vpack.c.bf16 %v2981, %v2980
      %v2985 = vpack.c.bf16 %v2983, %v2982
      %v2986 = vld [vmem:[%s367] sm:$0xf]
      %v2987 = vld [vmem:[%s367 + $0x4] sm:$0xf]
      %v2988 = vld [vmem:[%s367 + $0x8] sm:$0xf]
      %v2989 = vld [vmem:[%s367 + $0xc] sm:$0xf]
      %v2990 = vld [vmem:[%s367 + $0x10] sm:$0xf]
      %v2991 = vld [vmem:[%s367 + $0x14] sm:$0xf]
      %v2992 = vld [vmem:[%s367 + $0x18] sm:$0xf]
      %v2993 = vld [vmem:[%s367 + $0x1c] sm:$0xf]
      %2994 = vst [vmem:[#allocation3] sm:$0xff] 0
      %2995 = vst [vmem:[#allocation3 + $0x8] sm:$0xff] 0
      %2996 = vst [vmem:[#allocation3 + $0x10] sm:$0x11] 0
      %2997 = vst [vmem:[#allocation3 + $0x18] sm:$0xff] 0
      %2998 = vst [vmem:[#allocation3 + $0x20] sm:$0xff] 0
      %2999 = vst [vmem:[#allocation3 + $0x28] sm:$0x11] 0
      %3000 = vst [vmem:[#allocation3 + $0x30] sm:$0xff] 0
      %3001 = vst [vmem:[#allocation3 + $0x38] sm:$0xff] 0
      %3002 = vst [vmem:[#allocation3 + $0x40] sm:$0x11] 0
      %3003 = vst [vmem:[#allocation3 + $0x48] sm:$0xff] 0
      %3004 = vst [vmem:[#allocation3 + $0x50] sm:$0xff] 0
      %3005 = vst [vmem:[#allocation3 + $0x58] sm:$0x11] 0
      %3006 = vst [vmem:[#allocation3 + $0x60] sm:$0xff] 0
      %3007 = vst [vmem:[#allocation3 + $0x68] sm:$0xff] 0
      %3008 = vst [vmem:[#allocation3 + $0x70] sm:$0x11] 0
      %3009 = vst [vmem:[#allocation3 + $0x78] sm:$0xff] 0
      %3010 = vst [vmem:[#allocation3 + $0x80] sm:$0xff] 0
      %3011 = vst [vmem:[#allocation3 + $0x88] sm:$0x11] 0
      %v3014 = vcombine.high %v2984, %v2984
      %v3016 = vunpack.c.l.s4 1966171168
      %v3017 = vunpack.c.0.s8 %v3016
      %v3018 = vlaneseq
      %v3019 = vshrl.u32 %v3018, 7
      %v3020 = vsub.s32 %v3017, %v3019
      %v3021 = vrot.slane %v2984, %v3020
      %v3023 = vunpack.c.l.s4 1966171168
      %v3024 = vunpack.c.0.s8 %v3023
      %v3025 = vlaneseq
      %v3026 = vshrl.u32 %v3025, 7
      %v3027 = vsub.s32 %v3024, %v3026
      %v3028 = vrot.slane %v3014, %v3027
      %v3029 = vcombine.high %v3021, %v3021
      %v3030 = vcombine.high %v3028, %v3028
      %v3032 = vunpack.c.l.s4 1966171168
      %v3033 = vunpack.c.0.s8 %v3032
      %v3034 = vlaneseq
      %v3035 = vshrl.u32 %v3034, 7
      %v3036 = vsub.s32 %v3033, %v3035
      %v3037 = vrot.slane %v3021, %v3036
      %v3039 = vunpack.c.l.s4 1966171168
      %v3040 = vunpack.c.0.s8 %v3039
      %v3041 = vlaneseq
      %v3042 = vshrl.u32 %v3041, 7
      %v3043 = vsub.s32 %v3040, %v3042
      %v3044 = vrot.slane %v3028, %v3043
      %v3046 = vunpack.c.l.s4 1966171168
      %v3047 = vunpack.c.0.s8 %v3046
      %v3048 = vlaneseq
      %v3049 = vshrl.u32 %v3048, 7
      %v3050 = vsub.s32 %v3047, %v3049
      %v3051 = vrot.slane %v3029, %v3050
      %v3053 = vunpack.c.l.s4 1966171168
      %v3054 = vunpack.c.0.s8 %v3053
      %v3055 = vlaneseq
      %v3056 = vshrl.u32 %v3055, 7
      %v3057 = vsub.s32 %v3054, %v3056
      %v3058 = vrot.slane %v3030, %v3057
      %v3059 = vcombine.high %v3037, %v3037
      %v3060 = vcombine.high %v3044, %v3044
      %v3061 = vcombine.high %v3051, %v3051
      %v3062 = vcombine.high %v3058, %v3058
      %v3063 = vcombine.high %v2985, %v2985
      %v3065 = vunpack.c.l.s4 1966171168
      %v3066 = vunpack.c.0.s8 %v3065
      %v3067 = vlaneseq
      %v3068 = vshrl.u32 %v3067, 7
      %v3069 = vsub.s32 %v3066, %v3068
      %v3070 = vrot.slane %v2985, %v3069
      %v3072 = vunpack.c.l.s4 1966171168
      %v3073 = vunpack.c.0.s8 %v3072
      %v3074 = vlaneseq
      %v3075 = vshrl.u32 %v3074, 7
      %v3076 = vsub.s32 %v3073, %v3075
      %v3077 = vrot.slane %v3063, %v3076
      %v3078 = vcombine.high %v3070, %v3070
      %v3079 = vcombine.high %v3077, %v3077
      %v3081 = vunpack.c.l.s4 1966171168
      %v3082 = vunpack.c.0.s8 %v3081
      %v3083 = vlaneseq
      %v3084 = vshrl.u32 %v3083, 7
      %v3085 = vsub.s32 %v3082, %v3084
      %v3086 = vrot.slane %v3070, %v3085
      %v3088 = vunpack.c.l.s4 1966171168
      %v3089 = vunpack.c.0.s8 %v3088
      %v3090 = vlaneseq
      %v3091 = vshrl.u32 %v3090, 7
      %v3092 = vsub.s32 %v3089, %v3091
      %v3093 = vrot.slane %v3077, %v3092
      %v3095 = vunpack.c.l.s4 1966171168
      %v3096 = vunpack.c.0.s8 %v3095
      %v3097 = vlaneseq
      %v3098 = vshrl.u32 %v3097, 7
      %v3099 = vsub.s32 %v3096, %v3098
      %v3100 = vrot.slane %v3078, %v3099
      %v3102 = vunpack.c.l.s4 1966171168
      %v3103 = vunpack.c.0.s8 %v3102
      %v3104 = vlaneseq
      %v3105 = vshrl.u32 %v3104, 7
      %v3106 = vsub.s32 %v3103, %v3105
      %v3107 = vrot.slane %v3079, %v3106
      %v3108 = vcombine.high %v3086, %v3086
      %v3109 = vcombine.high %v3093, %v3093
      %v3110 = vcombine.high %v3100, %v3100
      %v3111 = vcombine.high %v3107, %v3107
      %v3112 = vunpack.i.l.s16 %v3037
      %v3113 = vunpack.i.h.s16 %v3037
      %v3114 = vunpack.i.l.s16 %v3051
      %v3115 = vunpack.i.h.s16 %v3051
      %v3116 = vunpack.i.l.s16 %v3059
      %v3117 = vunpack.i.h.s16 %v3059
      %v3118 = vunpack.i.l.s16 %v3061
      %v3119 = vunpack.i.h.s16 %v3061
      %v3120 = vunpack.i.l.s16 %v3044
      %v3121 = vunpack.i.h.s16 %v3044
      %v3122 = vunpack.i.l.s16 %v3058
      %v3123 = vunpack.i.h.s16 %v3058
      %v3124 = vunpack.i.l.s16 %v3060
      %v3125 = vunpack.i.h.s16 %v3060
      %v3126 = vunpack.i.l.s16 %v3062
      %v3127 = vunpack.i.h.s16 %v3062
      %v3128 = vunpack.i.l.s16 %v3086
      %v3129 = vunpack.i.h.s16 %v3086
      %v3130 = vunpack.i.l.s16 %v3100
      %v3131 = vunpack.i.h.s16 %v3100
      %v3132 = vunpack.i.l.s16 %v3108
      %v3133 = vunpack.i.h.s16 %v3108
      %v3134 = vunpack.i.l.s16 %v3110
      %v3135 = vunpack.i.h.s16 %v3110
      %v3136 = vunpack.i.l.s16 %v3093
      %v3137 = vunpack.i.h.s16 %v3093
      %v3138 = vunpack.i.l.s16 %v3107
      %v3139 = vunpack.i.h.s16 %v3107
      %v3140 = vunpack.i.l.s16 %v3109
      %v3141 = vunpack.i.h.s16 %v3109
      %v3142 = vunpack.i.l.s16 %v3111
      %v3143 = vunpack.i.h.s16 %v3111
      %v3144 = vpack.i.b16 %v3112, %v3112
      %v3145 = vpack.i.b16 %v3113, %v3113
      %v3146 = vpack.i.b16 %v3114, %v3114
      %v3147 = vpack.i.b16 %v3115, %v3115
      %v3148 = vpack.i.b16 %v3116, %v3116
      %v3149 = vpack.i.b16 %v3117, %v3117
      %v3150 = vpack.i.b16 %v3118, %v3118
      %v3151 = vpack.i.b16 %v3119, %v3119
      %v3152 = vpack.i.b16 %v3120, %v3120
      %v3153 = vpack.i.b16 %v3121, %v3121
      %v3154 = vpack.i.b16 %v3122, %v3122
      %v3155 = vpack.i.b16 %v3123, %v3123
      %v3156 = vpack.i.b16 %v3124, %v3124
      %v3157 = vpack.i.b16 %v3125, %v3125
      %v3158 = vpack.i.b16 %v3126, %v3126
      %v3159 = vpack.i.b16 %v3127, %v3127
      %v3160 = vpack.i.b16 %v3128, %v3128
      %v3161 = vpack.i.b16 %v3129, %v3129
      %v3162 = vpack.i.b16 %v3130, %v3130
      %v3163 = vpack.i.b16 %v3131, %v3131
      %v3164 = vpack.i.b16 %v3132, %v3132
      %v3165 = vpack.i.b16 %v3133, %v3133
      %v3166 = vpack.i.b16 %v3134, %v3134
      %v3167 = vpack.i.b16 %v3135, %v3135
      %v3168 = vpack.i.b16 %v3136, %v3136
      %v3169 = vpack.i.b16 %v3137, %v3137
      %v3170 = vpack.i.b16 %v3138, %v3138
      %v3171 = vpack.i.b16 %v3139, %v3139
      %v3172 = vpack.i.b16 %v3140, %v3140
      %v3173 = vpack.i.b16 %v3141, %v3141
      %v3174 = vpack.i.b16 %v3142, %v3142
      %v3175 = vpack.i.b16 %v3143, %v3143
      %v3176 = vlaneseq
      %v3177 = vshrl.u32 %v3176, 7
      %v3178 = vsub.s32 0, %v3177
      %v3179 = vrot.slane %v3144, %v3178
      %v3180 = vlaneseq
      %v3181 = vshrl.u32 %v3180, 7
      %v3182 = vsub.s32 0, %v3181
      %v3183 = vrot.slane %v3145, %v3182
      %v3184 = vlaneseq
      %v3185 = vshrl.u32 %v3184, 7
      %v3186 = vsub.s32 0, %v3185
      %v3187 = vrot.slane %v3146, %v3186
      %v3188 = vlaneseq
      %v3189 = vshrl.u32 %v3188, 7
      %v3190 = vsub.s32 0, %v3189
      %v3191 = vrot.slane %v3147, %v3190
      %v3192 = vlaneseq
      %v3193 = vshrl.u32 %v3192, 7
      %v3194 = vsub.s32 0, %v3193
      %v3195 = vrot.slane %v3148, %v3194
      %v3196 = vlaneseq
      %v3197 = vshrl.u32 %v3196, 7
      %v3198 = vsub.s32 0, %v3197
      %v3199 = vrot.slane %v3149, %v3198
      %v3200 = vlaneseq
      %v3201 = vshrl.u32 %v3200, 7
      %v3202 = vsub.s32 0, %v3201
      %v3203 = vrot.slane %v3150, %v3202
      %v3204 = vlaneseq
      %v3205 = vshrl.u32 %v3204, 7
      %v3206 = vsub.s32 0, %v3205
      %v3207 = vrot.slane %v3151, %v3206
      %v3208 = vlaneseq
      %v3209 = vshrl.u32 %v3208, 7
      %v3210 = vsub.s32 0, %v3209
      %v3211 = vrot.slane %v3152, %v3210
      %v3212 = vlaneseq
      %v3213 = vshrl.u32 %v3212, 7
      %v3214 = vsub.s32 0, %v3213
      %v3215 = vrot.slane %v3153, %v3214
      %v3216 = vlaneseq
      %v3217 = vshrl.u32 %v3216, 7
      %v3218 = vsub.s32 0, %v3217
      %v3219 = vrot.slane %v3154, %v3218
      %v3220 = vlaneseq
      %v3221 = vshrl.u32 %v3220, 7
      %v3222 = vsub.s32 0, %v3221
      %v3223 = vrot.slane %v3155, %v3222
      %v3224 = vlaneseq
      %v3225 = vshrl.u32 %v3224, 7
      %v3226 = vsub.s32 0, %v3225
      %v3227 = vrot.slane %v3156, %v3226
      %v3228 = vlaneseq
      %v3229 = vshrl.u32 %v3228, 7
      %v3230 = vsub.s32 0, %v3229
      %v3231 = vrot.slane %v3157, %v3230
      %v3232 = vlaneseq
      %v3233 = vshrl.u32 %v3232, 7
      %v3234 = vsub.s32 0, %v3233
      %v3235 = vrot.slane %v3158, %v3234
      %v3236 = vlaneseq
      %v3237 = vshrl.u32 %v3236, 7
      %v3238 = vsub.s32 0, %v3237
      %v3239 = vrot.slane %v3159, %v3238
      %v3240 = vlaneseq
      %v3241 = vshrl.u32 %v3240, 7
      %v3242 = vsub.s32 0, %v3241
      %v3243 = vrot.slane %v3160, %v3242
      %v3244 = vlaneseq
      %v3245 = vshrl.u32 %v3244, 7
      %v3246 = vsub.s32 0, %v3245
      %v3247 = vrot.slane %v3161, %v3246
      %v3248 = vlaneseq
      %v3249 = vshrl.u32 %v3248, 7
      %v3250 = vsub.s32 0, %v3249
      %v3251 = vrot.slane %v3162, %v3250
      %v3252 = vlaneseq
      %v3253 = vshrl.u32 %v3252, 7
      %v3254 = vsub.s32 0, %v3253
      %v3255 = vrot.slane %v3163, %v3254
      %v3256 = vlaneseq
      %v3257 = vshrl.u32 %v3256, 7
      %v3258 = vsub.s32 0, %v3257
      %v3259 = vrot.slane %v3164, %v3258
      %v3260 = vlaneseq
      %v3261 = vshrl.u32 %v3260, 7
      %v3262 = vsub.s32 0, %v3261
      %v3263 = vrot.slane %v3165, %v3262
      %v3264 = vlaneseq
      %v3265 = vshrl.u32 %v3264, 7
      %v3266 = vsub.s32 0, %v3265
      %v3267 = vrot.slane %v3166, %v3266
      %v3268 = vlaneseq
      %v3269 = vshrl.u32 %v3268, 7
      %v3270 = vsub.s32 0, %v3269
      %v3271 = vrot.slane %v3167, %v3270
      %v3272 = vlaneseq
      %v3273 = vshrl.u32 %v3272, 7
      %v3274 = vsub.s32 0, %v3273
      %v3275 = vrot.slane %v3168, %v3274
      %v3276 = vlaneseq
      %v3277 = vshrl.u32 %v3276, 7
      %v3278 = vsub.s32 0, %v3277
      %v3279 = vrot.slane %v3169, %v3278
      %v3280 = vlaneseq
      %v3281 = vshrl.u32 %v3280, 7
      %v3282 = vsub.s32 0, %v3281
      %v3283 = vrot.slane %v3170, %v3282
      %v3284 = vlaneseq
      %v3285 = vshrl.u32 %v3284, 7
      %v3286 = vsub.s32 0, %v3285
      %v3287 = vrot.slane %v3171, %v3286
      %v3288 = vlaneseq
      %v3289 = vshrl.u32 %v3288, 7
      %v3290 = vsub.s32 0, %v3289
      %v3291 = vrot.slane %v3172, %v3290
      %v3292 = vlaneseq
      %v3293 = vshrl.u32 %v3292, 7
      %v3294 = vsub.s32 0, %v3293
      %v3295 = vrot.slane %v3173, %v3294
      %v3296 = vlaneseq
      %v3297 = vshrl.u32 %v3296, 7
      %v3298 = vsub.s32 0, %v3297
      %v3299 = vrot.slane %v3174, %v3298
      %v3300 = vlaneseq
      %v3301 = vshrl.u32 %v3300, 7
      %v3302 = vsub.s32 0, %v3301
      %v3303 = vrot.slane %v3175, %v3302
      %v3305 = vpack.i.b16 %v3179, %v3179
      %v3307 = vlaneseq
      %v3308 = vshrl.u32 %v3307, 7
      %v3309 = vsub.s32 0, %v3308
      %v3310 = vrot.slane %v3305, %v3309
      %v3312 = vpack.i.b16 %v3183, %v3183
      %v3314 = vlaneseq
      %v3315 = vshrl.u32 %v3314, 7
      %v3316 = vsub.s32 0, %v3315
      %v3317 = vrot.slane %v3312, %v3316
      %v3319 = vpack.i.b16 %v3187, %v3187
      %v3321 = vlaneseq
      %v3322 = vshrl.u32 %v3321, 7
      %v3323 = vsub.s32 0, %v3322
      %v3324 = vrot.slane %v3319, %v3323
      %v3326 = vpack.i.b16 %v3191, %v3191
      %v3328 = vlaneseq
      %v3329 = vshrl.u32 %v3328, 7
      %v3330 = vsub.s32 0, %v3329
      %v3331 = vrot.slane %v3326, %v3330
      %v3333 = vpack.i.b16 %v3195, %v3195
      %v3335 = vlaneseq
      %v3336 = vshrl.u32 %v3335, 7
      %v3337 = vsub.s32 0, %v3336
      %v3338 = vrot.slane %v3333, %v3337
      %v3340 = vpack.i.b16 %v3199, %v3199
      %v3342 = vlaneseq
      %v3343 = vshrl.u32 %v3342, 7
      %v3344 = vsub.s32 0, %v3343
      %v3345 = vrot.slane %v3340, %v3344
      %v3347 = vpack.i.b16 %v3203, %v3203
      %v3349 = vlaneseq
      %v3350 = vshrl.u32 %v3349, 7
      %v3351 = vsub.s32 0, %v3350
      %v3352 = vrot.slane %v3347, %v3351
      %v3354 = vpack.i.b16 %v3207, %v3207
      %v3356 = vlaneseq
      %v3357 = vshrl.u32 %v3356, 7
      %v3358 = vsub.s32 0, %v3357
      %v3359 = vrot.slane %v3354, %v3358
      %v3361 = vpack.i.b16 %v3211, %v3211
      %v3363 = vlaneseq
      %v3364 = vshrl.u32 %v3363, 7
      %v3365 = vsub.s32 0, %v3364
      %v3366 = vrot.slane %v3361, %v3365
      %v3368 = vpack.i.b16 %v3215, %v3215
      %v3370 = vlaneseq
      %v3371 = vshrl.u32 %v3370, 7
      %v3372 = vsub.s32 0, %v3371
      %v3373 = vrot.slane %v3368, %v3372
      %v3375 = vpack.i.b16 %v3219, %v3219
      %v3377 = vlaneseq
      %v3378 = vshrl.u32 %v3377, 7
      %v3379 = vsub.s32 0, %v3378
      %v3380 = vrot.slane %v3375, %v3379
      %v3382 = vpack.i.b16 %v3223, %v3223
      %v3384 = vlaneseq
      %v3385 = vshrl.u32 %v3384, 7
      %v3386 = vsub.s32 0, %v3385
      %v3387 = vrot.slane %v3382, %v3386
      %v3389 = vpack.i.b16 %v3227, %v3227
      %v3391 = vlaneseq
      %v3392 = vshrl.u32 %v3391, 7
      %v3393 = vsub.s32 0, %v3392
      %v3394 = vrot.slane %v3389, %v3393
      %v3396 = vpack.i.b16 %v3231, %v3231
      %v3398 = vlaneseq
      %v3399 = vshrl.u32 %v3398, 7
      %v3400 = vsub.s32 0, %v3399
      %v3401 = vrot.slane %v3396, %v3400
      %v3403 = vpack.i.b16 %v3235, %v3235
      %v3405 = vlaneseq
      %v3406 = vshrl.u32 %v3405, 7
      %v3407 = vsub.s32 0, %v3406
      %v3408 = vrot.slane %v3403, %v3407
      %v3410 = vpack.i.b16 %v3239, %v3239
      %v3412 = vlaneseq
      %v3413 = vshrl.u32 %v3412, 7
      %v3414 = vsub.s32 0, %v3413
      %v3415 = vrot.slane %v3410, %v3414
      %v3417 = vpack.i.b16 %v3243, %v3243
      %v3419 = vlaneseq
      %v3420 = vshrl.u32 %v3419, 7
      %v3421 = vsub.s32 0, %v3420
      %v3422 = vrot.slane %v3417, %v3421
      %v3424 = vpack.i.b16 %v3247, %v3247
      %v3426 = vlaneseq
      %v3427 = vshrl.u32 %v3426, 7
      %v3428 = vsub.s32 0, %v3427
      %v3429 = vrot.slane %v3424, %v3428
      %v3431 = vpack.i.b16 %v3251, %v3251
      %v3433 = vlaneseq
      %v3434 = vshrl.u32 %v3433, 7
      %v3435 = vsub.s32 0, %v3434
      %v3436 = vrot.slane %v3431, %v3435
      %v3438 = vpack.i.b16 %v3255, %v3255
      %v3440 = vlaneseq
      %v3441 = vshrl.u32 %v3440, 7
      %v3442 = vsub.s32 0, %v3441
      %v3443 = vrot.slane %v3438, %v3442
      %v3445 = vpack.i.b16 %v3259, %v3259
      %v3447 = vlaneseq
      %v3448 = vshrl.u32 %v3447, 7
      %v3449 = vsub.s32 0, %v3448
      %v3450 = vrot.slane %v3445, %v3449
      %v3452 = vpack.i.b16 %v3263, %v3263
      %v3454 = vlaneseq
      %v3455 = vshrl.u32 %v3454, 7
      %v3456 = vsub.s32 0, %v3455
      %v3457 = vrot.slane %v3452, %v3456
      %v3459 = vpack.i.b16 %v3267, %v3267
      %v3461 = vlaneseq
      %v3462 = vshrl.u32 %v3461, 7
      %v3463 = vsub.s32 0, %v3462
      %v3464 = vrot.slane %v3459, %v3463
      %v3466 = vpack.i.b16 %v3271, %v3271
      %v3468 = vlaneseq
      %v3469 = vshrl.u32 %v3468, 7
      %v3470 = vsub.s32 0, %v3469
      %v3471 = vrot.slane %v3466, %v3470
      %v3473 = vpack.i.b16 %v3275, %v3275
      %v3475 = vlaneseq
      %v3476 = vshrl.u32 %v3475, 7
      %v3477 = vsub.s32 0, %v3476
      %v3478 = vrot.slane %v3473, %v3477
      %v3480 = vpack.i.b16 %v3279, %v3279
      %v3482 = vlaneseq
      %v3483 = vshrl.u32 %v3482, 7
      %v3484 = vsub.s32 0, %v3483
      %v3485 = vrot.slane %v3480, %v3484
      %v3487 = vpack.i.b16 %v3283, %v3283
      %v3489 = vlaneseq
      %v3490 = vshrl.u32 %v3489, 7
      %v3491 = vsub.s32 0, %v3490
      %v3492 = vrot.slane %v3487, %v3491
      %v3494 = vpack.i.b16 %v3287, %v3287
      %v3496 = vlaneseq
      %v3497 = vshrl.u32 %v3496, 7
      %v3498 = vsub.s32 0, %v3497
      %v3499 = vrot.slane %v3494, %v3498
      %v3501 = vpack.i.b16 %v3291, %v3291
      %v3503 = vlaneseq
      %v3504 = vshrl.u32 %v3503, 7
      %v3505 = vsub.s32 0, %v3504
      %v3506 = vrot.slane %v3501, %v3505
      %v3508 = vpack.i.b16 %v3295, %v3295
      %v3510 = vlaneseq
      %v3511 = vshrl.u32 %v3510, 7
      %v3512 = vsub.s32 0, %v3511
      %v3513 = vrot.slane %v3508, %v3512
      %v3515 = vpack.i.b16 %v3299, %v3299
      %v3517 = vlaneseq
      %v3518 = vshrl.u32 %v3517, 7
      %v3519 = vsub.s32 0, %v3518
      %v3520 = vrot.slane %v3515, %v3519
      %v3522 = vpack.i.b16 %v3303, %v3303
      %v3524 = vlaneseq
      %v3525 = vshrl.u32 %v3524, 7
      %v3526 = vsub.s32 0, %v3525
      %v3527 = vrot.slane %v3522, %v3526
      %v3560 = vcombine.low %v3310, %v3324
      %v3561 = vcombine.low %v3317, %v3331
      %v3563 = vunpack.c.l.s4 1935823168
      %v3564 = vunpack.c.0.s8 %v3563
      %v3565 = vlaneseq
      %v3566 = vshrl.u32 %v3565, 7
      %v3567 = vsub.s32 %v3564, %v3566
      %v3568 = vrot.slane %v3560, %v3567
      %v3570 = vunpack.c.l.s4 1935823168
      %v3571 = vunpack.c.0.s8 %v3570
      %v3572 = vlaneseq
      %v3573 = vshrl.u32 %v3572, 7
      %v3574 = vsub.s32 %v3571, %v3573
      %v3575 = vrot.slane %v3561, %v3574
      %v3576 = vcombine.low %v3568, %v3575
      %v3578 = vunpack.c.l.s4 1935823168
      %v3579 = vunpack.c.0.s8 %v3578
      %v3580 = vlaneseq
      %v3581 = vshrl.u32 %v3580, 7
      %v3582 = vsub.s32 %v3579, %v3581
      %v3583 = vrot.slane %v3576, %v3582
      %v3584 = vcombine.low %v3338, %v3352
      %v3585 = vcombine.low %v3345, %v3359
      %v3587 = vunpack.c.l.s4 1935823168
      %v3588 = vunpack.c.0.s8 %v3587
      %v3589 = vlaneseq
      %v3590 = vshrl.u32 %v3589, 7
      %v3591 = vsub.s32 %v3588, %v3590
      %v3592 = vrot.slane %v3584, %v3591
      %v3594 = vunpack.c.l.s4 1935823168
      %v3595 = vunpack.c.0.s8 %v3594
      %v3596 = vlaneseq
      %v3597 = vshrl.u32 %v3596, 7
      %v3598 = vsub.s32 %v3595, %v3597
      %v3599 = vrot.slane %v3585, %v3598
      %v3600 = vcombine.low %v3592, %v3599
      %v3602 = vunpack.c.l.s4 1935823168
      %v3603 = vunpack.c.0.s8 %v3602
      %v3604 = vlaneseq
      %v3605 = vshrl.u32 %v3604, 7
      %v3606 = vsub.s32 %v3603, %v3605
      %v3607 = vrot.slane %v3600, %v3606
      %v3608 = vcombine.low %v3366, %v3380
      %v3609 = vcombine.low %v3373, %v3387
      %v3611 = vunpack.c.l.s4 1935823168
      %v3612 = vunpack.c.0.s8 %v3611
      %v3613 = vlaneseq
      %v3614 = vshrl.u32 %v3613, 7
      %v3615 = vsub.s32 %v3612, %v3614
      %v3616 = vrot.slane %v3608, %v3615
      %v3618 = vunpack.c.l.s4 1935823168
      %v3619 = vunpack.c.0.s8 %v3618
      %v3620 = vlaneseq
      %v3621 = vshrl.u32 %v3620, 7
      %v3622 = vsub.s32 %v3619, %v3621
      %v3623 = vrot.slane %v3609, %v3622
      %v3624 = vcombine.low %v3616, %v3623
      %v3626 = vunpack.c.l.s4 1935823168
      %v3627 = vunpack.c.0.s8 %v3626
      %v3628 = vlaneseq
      %v3629 = vshrl.u32 %v3628, 7
      %v3630 = vsub.s32 %v3627, %v3629
      %v3631 = vrot.slane %v3624, %v3630
      %v3632 = vcombine.low %v3394, %v3408
      %v3633 = vcombine.low %v3401, %v3415
      %v3635 = vunpack.c.l.s4 1935823168
      %v3636 = vunpack.c.0.s8 %v3635
      %v3637 = vlaneseq
      %v3638 = vshrl.u32 %v3637, 7
      %v3639 = vsub.s32 %v3636, %v3638
      %v3640 = vrot.slane %v3632, %v3639
      %v3642 = vunpack.c.l.s4 1935823168
      %v3643 = vunpack.c.0.s8 %v3642
      %v3644 = vlaneseq
      %v3645 = vshrl.u32 %v3644, 7
      %v3646 = vsub.s32 %v3643, %v3645
      %v3647 = vrot.slane %v3633, %v3646
      %v3648 = vcombine.low %v3640, %v3647
      %v3650 = vunpack.c.l.s4 1935823168
      %v3651 = vunpack.c.0.s8 %v3650
      %v3652 = vlaneseq
      %v3653 = vshrl.u32 %v3652, 7
      %v3654 = vsub.s32 %v3651, %v3653
      %v3655 = vrot.slane %v3648, %v3654
      %v3656 = vcombine.low %v3422, %v3436
      %v3657 = vcombine.low %v3429, %v3443
      %v3659 = vunpack.c.l.s4 1935823168
      %v3660 = vunpack.c.0.s8 %v3659
      %v3661 = vlaneseq
      %v3662 = vshrl.u32 %v3661, 7
      %v3663 = vsub.s32 %v3660, %v3662
      %v3664 = vrot.slane %v3656, %v3663
      %v3666 = vunpack.c.l.s4 1935823168
      %v3667 = vunpack.c.0.s8 %v3666
      %v3668 = vlaneseq
      %v3669 = vshrl.u32 %v3668, 7
      %v3670 = vsub.s32 %v3667, %v3669
      %v3671 = vrot.slane %v3657, %v3670
      %v3672 = vcombine.low %v3664, %v3671
      %v3674 = vunpack.c.l.s4 1935823168
      %v3675 = vunpack.c.0.s8 %v3674
      %v3676 = vlaneseq
      %v3677 = vshrl.u32 %v3676, 7
      %v3678 = vsub.s32 %v3675, %v3677
      %v3679 = vrot.slane %v3672, %v3678
      %v3680 = vcombine.low %v3450, %v3464
      %v3681 = vcombine.low %v3457, %v3471
      %v3683 = vunpack.c.l.s4 1935823168
      %v3684 = vunpack.c.0.s8 %v3683
      %v3685 = vlaneseq
      %v3686 = vshrl.u32 %v3685, 7
      %v3687 = vsub.s32 %v3684, %v3686
      %v3688 = vrot.slane %v3680, %v3687
      %v3690 = vunpack.c.l.s4 1935823168
      %v3691 = vunpack.c.0.s8 %v3690
      %v3692 = vlaneseq
      %v3693 = vshrl.u32 %v3692, 7
      %v3694 = vsub.s32 %v3691, %v3693
      %v3695 = vrot.slane %v3681, %v3694
      %v3696 = vcombine.low %v3688, %v3695
      %v3698 = vunpack.c.l.s4 1935823168
      %v3699 = vunpack.c.0.s8 %v3698
      %v3700 = vlaneseq
      %v3701 = vshrl.u32 %v3700, 7
      %v3702 = vsub.s32 %v3699, %v3701
      %v3703 = vrot.slane %v3696, %v3702
      %v3704 = vcombine.low %v3478, %v3492
      %v3705 = vcombine.low %v3485, %v3499
      %v3707 = vunpack.c.l.s4 1935823168
      %v3708 = vunpack.c.0.s8 %v3707
      %v3709 = vlaneseq
      %v3710 = vshrl.u32 %v3709, 7
      %v3711 = vsub.s32 %v3708, %v3710
      %v3712 = vrot.slane %v3704, %v3711
      %v3714 = vunpack.c.l.s4 1935823168
      %v3715 = vunpack.c.0.s8 %v3714
      %v3716 = vlaneseq
      %v3717 = vshrl.u32 %v3716, 7
      %v3718 = vsub.s32 %v3715, %v3717
      %v3719 = vrot.slane %v3705, %v3718
      %v3720 = vcombine.low %v3712, %v3719
      %v3722 = vunpack.c.l.s4 1935823168
      %v3723 = vunpack.c.0.s8 %v3722
      %v3724 = vlaneseq
      %v3725 = vshrl.u32 %v3724, 7
      %v3726 = vsub.s32 %v3723, %v3725
      %v3727 = vrot.slane %v3720, %v3726
      %v3728 = vcombine.low %v3506, %v3520
      %v3729 = vcombine.low %v3513, %v3527
      %v3731 = vunpack.c.l.s4 1935823168
      %v3732 = vunpack.c.0.s8 %v3731
      %v3733 = vlaneseq
      %v3734 = vshrl.u32 %v3733, 7
      %v3735 = vsub.s32 %v3732, %v3734
      %v3736 = vrot.slane %v3728, %v3735
      %v3738 = vunpack.c.l.s4 1935823168
      %v3739 = vunpack.c.0.s8 %v3738
      %v3740 = vlaneseq
      %v3741 = vshrl.u32 %v3740, 7
      %v3742 = vsub.s32 %v3739, %v3741
      %v3743 = vrot.slane %v3729, %v3742
      %v3744 = vcombine.low %v3736, %v3743
      %v3746 = vunpack.c.l.s4 1935823168
      %v3747 = vunpack.c.0.s8 %v3746
      %v3748 = vlaneseq
      %v3749 = vshrl.u32 %v3748, 7
      %v3750 = vsub.s32 %v3747, %v3749
      %v3751 = vrot.slane %v3744, %v3750
      %vm3752 = vsmask.f32 4368
      %vm3753 = vmor %vm798, %vm3752
      %v3755 = vshrl.u32 %v3583, 16
      %v3757 = vrot.slane %v3755, 7
      %v3758 = vshll.u32 %v3583, 16
      %v3760 = vor.u32 %v3757, %v3758
      %v3761 = vrot.slane %v3757, 4
      %v3763 = vshrl.u32 %v3607, 16
      %v3765 = vrot.slane %v3763, 7
      %v3766 = vshll.u32 %v3607, 16
      %v3768 = vor.u32 %v3765, %v3766
      %v3769 = vsel %vm3753, %v3761, %v3768
      %v3770 = vrot.slane %v3765, 4
      %v3772 = vshrl.u32 %v3631, 16
      %v3774 = vrot.slane %v3772, 7
      %v3775 = vshll.u32 %v3631, 16
      %v3777 = vor.u32 %v3774, %v3775
      %v3778 = vrot.slane %v3774, 4
      %v3780 = vshrl.u32 %v3655, 16
      %v3782 = vrot.slane %v3780, 7
      %v3783 = vshll.u32 %v3655, 16
      %v3785 = vor.u32 %v3782, %v3783
      %v3786 = vsel %vm3753, %v3778, %v3785
      %v3787 = vrot.slane %v3782, 4
      %v3789 = vshrl.u32 %v3679, 16
      %v3791 = vrot.slane %v3789, 7
      %v3792 = vshll.u32 %v3679, 16
      %v3794 = vor.u32 %v3791, %v3792
      %v3795 = vrot.slane %v3791, 4
      %v3797 = vshrl.u32 %v3703, 16
      %v3799 = vrot.slane %v3797, 7
      %v3800 = vshll.u32 %v3703, 16
      %v3802 = vor.u32 %v3799, %v3800
      %v3803 = vsel %vm3753, %v3795, %v3802
      %v3804 = vrot.slane %v3799, 4
      %v3806 = vshrl.u32 %v3727, 16
      %v3808 = vrot.slane %v3806, 7
      %v3809 = vshll.u32 %v3727, 16
      %v3811 = vor.u32 %v3808, %v3809
      %v3812 = vrot.slane %v3808, 4
      %v3814 = vshrl.u32 %v3751, 16
      %v3816 = vrot.slane %v3814, 7
      %v3817 = vshll.u32 %v3751, 16
      %v3819 = vor.u32 %v3816, %v3817
      %v3820 = vsel %vm3753, %v3812, %v3819
      %v3821 = vrot.slane %v3816, 4
      %s3834 = scalar_lea.vmem [#allocation3], 24
      %v3835 = vld [vmem:[%s3834] sm:$0xf]
      %v3836 = vsel %vm793, %v3760, %v3835
      %3837 = vst [vmem:[%s3834] sm:$0xf] %v3836
      %3838 = vst [vmem:[%s3834 + $0x8] sm:$0xf] %v3769
      %v3839 = vld [vmem:[%s3834 + $0x10] sm:$0x1]
      %v3840 = vsel %vm799, %v3770, %v3839
      %3841 = vst [vmem:[%s3834 + $0x10] sm:$0x1] %v3840
      %v3842 = vld [vmem:[%s3834 + $0x18] sm:$0xf]
      %v3843 = vsel %vm793, %v3777, %v3842
      %3844 = vst [vmem:[%s3834 + $0x18] sm:$0xf] %v3843
      %3845 = vst [vmem:[%s3834 + $0x20] sm:$0xf] %v3786
      %v3846 = vld [vmem:[%s3834 + $0x28] sm:$0x1]
      %v3847 = vsel %vm799, %v3787, %v3846
      %3848 = vst [vmem:[%s3834 + $0x28] sm:$0x1] %v3847
      %v3849 = vld [vmem:[%s3834 + $0x30] sm:$0xf]
      %v3850 = vsel %vm793, %v3794, %v3849
      %3851 = vst [vmem:[%s3834 + $0x30] sm:$0xf] %v3850
      %3852 = vst [vmem:[%s3834 + $0x38] sm:$0xf] %v3803
      %v3853 = vld [vmem:[%s3834 + $0x40] sm:$0x1]
      %v3854 = vsel %vm799, %v3804, %v3853
      %3855 = vst [vmem:[%s3834 + $0x40] sm:$0x1] %v3854
      %v3856 = vld [vmem:[%s3834 + $0x48] sm:$0xf]
      %v3857 = vsel %vm793, %v3811, %v3856
      %3858 = vst [vmem:[%s3834 + $0x48] sm:$0xf] %v3857
      %3859 = vst [vmem:[%s3834 + $0x50] sm:$0xf] %v3820
      %v3860 = vld [vmem:[%s3834 + $0x58] sm:$0x1]
      %v3861 = vsel %vm799, %v3821, %v3860
      %3862 = vst [vmem:[%s3834 + $0x58] sm:$0x1] %v3861
      %v3864 = vshrl.u32 %v2986, 16
      %v3866 = vrot.slane %v3864, 7
      %v3867 = vshll.u32 %v2986, 16
      %v3869 = vor.u32 %v3866, %v3867
      %v3870 = vrot.slane %v3866, 4
      %v3872 = vshrl.u32 %v2987, 16
      %v3874 = vrot.slane %v3872, 7
      %v3875 = vshll.u32 %v2987, 16
      %v3877 = vor.u32 %v3874, %v3875
      %v3878 = vsel %vm3753, %v3870, %v3877
      %v3879 = vrot.slane %v3874, 4
      %v3881 = vshrl.u32 %v2988, 16
      %v3883 = vrot.slane %v3881, 7
      %v3884 = vshll.u32 %v2988, 16
      %v3886 = vor.u32 %v3883, %v3884
      %v3887 = vrot.slane %v3883, 4
      %v3889 = vshrl.u32 %v2989, 16
      %v3891 = vrot.slane %v3889, 7
      %v3892 = vshll.u32 %v2989, 16
      %v3894 = vor.u32 %v3891, %v3892
      %v3895 = vsel %vm3753, %v3887, %v3894
      %v3896 = vrot.slane %v3891, 4
      %v3898 = vshrl.u32 %v2990, 16
      %v3900 = vrot.slane %v3898, 7
      %v3901 = vshll.u32 %v2990, 16
      %v3903 = vor.u32 %v3900, %v3901
      %v3904 = vrot.slane %v3900, 4
      %v3906 = vshrl.u32 %v2991, 16
      %v3908 = vrot.slane %v3906, 7
      %v3909 = vshll.u32 %v2991, 16
      %v3911 = vor.u32 %v3908, %v3909
      %v3912 = vsel %vm3753, %v3904, %v3911
      %v3913 = vrot.slane %v3908, 4
      %v3915 = vshrl.u32 %v2992, 16
      %v3917 = vrot.slane %v3915, 7
      %v3918 = vshll.u32 %v2992, 16
      %v3920 = vor.u32 %v3917, %v3918
      %v3921 = vrot.slane %v3917, 4
      %v3923 = vshrl.u32 %v2993, 16
      %v3925 = vrot.slane %v3923, 7
      %v3926 = vshll.u32 %v2993, 16
      %v3928 = vor.u32 %v3925, %v3926
      %v3929 = vsel %vm3753, %v3921, %v3928
      %v3930 = vrot.slane %v3925, 4
      %v3943 = vld [vmem:[%s3834 + $0x4] sm:$0xf]
      %v3944 = vsel %vm793, %v3869, %v3943
      %3945 = vst [vmem:[%s3834 + $0x4] sm:$0xf] %v3944
      %3946 = vst [vmem:[%s3834 + $0xc] sm:$0xf] %v3878
      %v3947 = vld [vmem:[%s3834 + $0x14] sm:$0x1]
      %v3948 = vsel %vm799, %v3879, %v3947
      %3949 = vst [vmem:[%s3834 + $0x14] sm:$0x1] %v3948
      %v3950 = vld [vmem:[%s3834 + $0x1c] sm:$0xf]
      %v3951 = vsel %vm793, %v3886, %v3950
      %3952 = vst [vmem:[%s3834 + $0x1c] sm:$0xf] %v3951
      %3953 = vst [vmem:[%s3834 + $0x24] sm:$0xf] %v3895
      %v3954 = vld [vmem:[%s3834 + $0x2c] sm:$0x1]
      %v3955 = vsel %vm799, %v3896, %v3954
      %3956 = vst [vmem:[%s3834 + $0x2c] sm:$0x1] %v3955
      %v3957 = vld [vmem:[%s3834 + $0x34] sm:$0xf]
      %v3958 = vsel %vm793, %v3903, %v3957
      %3959 = vst [vmem:[%s3834 + $0x34] sm:$0xf] %v3958
      %3960 = vst [vmem:[%s3834 + $0x3c] sm:$0xf] %v3912
      %v3961 = vld [vmem:[%s3834 + $0x44] sm:$0x1]
      %v3962 = vsel %vm799, %v3913, %v3961
      %3963 = vst [vmem:[%s3834 + $0x44] sm:$0x1] %v3962
      %v3964 = vld [vmem:[%s3834 + $0x4c] sm:$0xf]
      %v3965 = vsel %vm793, %v3920, %v3964
      %3966 = vst [vmem:[%s3834 + $0x4c] sm:$0xf] %v3965
      %3967 = vst [vmem:[%s3834 + $0x54] sm:$0xf] %v3929
      %v3968 = vld [vmem:[%s3834 + $0x5c] sm:$0x1]
      %v3969 = vsel %vm799, %v3930, %v3968
      %3970 = vst [vmem:[%s3834 + $0x5c] sm:$0x1] %v3969
      %v3971 = vld [vmem:[#allocation3] sm:$0xff]
      %v3972 = vld [vmem:[#allocation3 + $0x8] sm:$0xff]
      %v3973 = vld [vmem:[#allocation3 + $0x18] sm:$0xff]
      %v3974 = vld [vmem:[#allocation3 + $0x20] sm:$0xff]
      %v3975 = vld [vmem:[#allocation3 + $0x30] sm:$0xff]
      %v3976 = vld [vmem:[#allocation3 + $0x38] sm:$0xff]
      %v3977 = vld [vmem:[#allocation3 + $0x48] sm:$0xff]
      %v3978 = vld [vmem:[#allocation3 + $0x50] sm:$0xff]
      %v3979 = vld [vmem:[%s5] sm:$0xf]
      %v3980 = vld [vmem:[%s5 + $0x4] sm:$0xf]
      %v3981 = vld [vmem:[%s5 + $0x8] sm:$0xf]
      %v3982 = vld [vmem:[%s5 + $0xc] sm:$0xf]
      %v3983 = vld [vmem:[%s5 + $0x10] sm:$0xf]
      %v3984 = vld [vmem:[%s5 + $0x14] sm:$0xf]
      %v3985 = vld [vmem:[%s5 + $0x18] sm:$0xf]
      %v3986 = vld [vmem:[%s5 + $0x1c] sm:$0xf]
      %v3987 = vld [vmem:[%s5 + $0x20] sm:$0xf]
      %v3988 = vld [vmem:[%s5 + $0x24] sm:$0xf]
      %v3989 = vld [vmem:[%s5 + $0x28] sm:$0xf]
      %v3990 = vld [vmem:[%s5 + $0x2c] sm:$0xf]
      %v3991 = vld [vmem:[%s5 + $0x30] sm:$0xf]
      %v3992 = vld [vmem:[%s5 + $0x34] sm:$0xf]
      %v3993 = vld [vmem:[%s5 + $0x38] sm:$0xf]
      %v3994 = vld [vmem:[%s5 + $0x3c] sm:$0xf]
      %v3995 = vld [vmem:[%s5 + $0x40] sm:$0xf]
      %v3996 = vld [vmem:[%s5 + $0x44] sm:$0xf]
      %v3997 = vld [vmem:[%s5 + $0x48] sm:$0xf]
      %v3998 = vld [vmem:[%s5 + $0x4c] sm:$0xf]
      %v3999 = vld [vmem:[%s5 + $0x50] sm:$0xf]
      %v4000 = vld [vmem:[%s5 + $0x54] sm:$0xf]
      %v4001 = vld [vmem:[%s5 + $0x58] sm:$0xf]
      %v4002 = vld [vmem:[%s5 + $0x5c] sm:$0xf]
      %v4003 = vld [vmem:[%s5 + $0x60] sm:$0xf]
      %v4004 = vld [vmem:[%s5 + $0x64] sm:$0xf]
      %v4005 = vld [vmem:[%s5 + $0x68] sm:$0xf]
      %v4006 = vld [vmem:[%s5 + $0x6c] sm:$0xf]
      %v4007 = vld [vmem:[%s5 + $0x70] sm:$0xf]
      %v4008 = vld [vmem:[%s5 + $0x74] sm:$0xf]
      %v4009 = vld [vmem:[%s5 + $0x78] sm:$0xf]
      %v4010 = vld [vmem:[%s5 + $0x7c] sm:$0xf]
      %v4011 = vld [vmem:[#allocation3 + $0x10] sm:$0x11]
      %v4012 = vld [vmem:[#allocation3 + $0x28] sm:$0x11]
      %v4013 = vld [vmem:[#allocation3 + $0x40] sm:$0x11]
      %v4014 = vld [vmem:[#allocation3 + $0x58] sm:$0x11]
      %v4016 = vshrl.u32 %v3971, 16
      %v4018 = vrot.slane %v4016, 4
      %v4019 = vshll.u32 %v3971, 16
      %v4021 = vrot.slane %v4019, 5
      %v4022 = vor.u32 %v4018, %v4021
      %v4023 = vrot.slane %v4022, 4
      %v4025 = vshll.u32 %v3972, 16
      %v4027 = vrot.slane %v4025, 5
      %v4028 = vsel %vm927, %v4023, %v4027
      %v4029 = vshrl.u32 %v3972, 16
      %v4031 = vrot.slane %v4029, 4
      %v4032 = vor.u32 %v4031, %v4027
      %v4033 = vrot.slane %v4032, 4
      %v4035 = vshll.u32 %v4011, 16
      %v4037 = vrot.slane %v4035, 5
      %v4038 = vsel %vm927, %v4033, %v4037
      %v4040 = vshrl.u32 %v3973, 16
      %v4042 = vrot.slane %v4040, 4
      %v4043 = vshll.u32 %v3973, 16
      %v4045 = vrot.slane %v4043, 5
      %v4046 = vor.u32 %v4042, %v4045
      %v4047 = vrot.slane %v4046, 4
      %v4049 = vshll.u32 %v3974, 16
      %v4051 = vrot.slane %v4049, 5
      %v4052 = vsel %vm927, %v4047, %v4051
      %v4053 = vshrl.u32 %v3974, 16
      %v4055 = vrot.slane %v4053, 4
      %v4056 = vor.u32 %v4055, %v4051
      %v4057 = vrot.slane %v4056, 4
      %v4059 = vshll.u32 %v4012, 16
      %v4061 = vrot.slane %v4059, 5
      %v4062 = vsel %vm927, %v4057, %v4061
      %v4064 = vshrl.u32 %v3975, 16
      %v4066 = vrot.slane %v4064, 4
      %v4067 = vshll.u32 %v3975, 16
      %v4069 = vrot.slane %v4067, 5
      %v4070 = vor.u32 %v4066, %v4069
      %v4071 = vrot.slane %v4070, 4
      %v4073 = vshll.u32 %v3976, 16
      %v4075 = vrot.slane %v4073, 5
      %v4076 = vsel %vm927, %v4071, %v4075
      %v4077 = vshrl.u32 %v3976, 16
      %v4079 = vrot.slane %v4077, 4
      %v4080 = vor.u32 %v4079, %v4075
      %v4081 = vrot.slane %v4080, 4
      %v4083 = vshll.u32 %v4013, 16
      %v4085 = vrot.slane %v4083, 5
      %v4086 = vsel %vm927, %v4081, %v4085
      %v4088 = vshrl.u32 %v3977, 16
      %v4090 = vrot.slane %v4088, 4
      %v4091 = vshll.u32 %v3977, 16
      %v4093 = vrot.slane %v4091, 5
      %v4094 = vor.u32 %v4090, %v4093
      %v4095 = vrot.slane %v4094, 4
      %v4097 = vshll.u32 %v3978, 16
      %v4099 = vrot.slane %v4097, 5
      %v4100 = vsel %vm927, %v4095, %v4099
      %v4101 = vshrl.u32 %v3978, 16
      %v4103 = vrot.slane %v4101, 4
      %v4104 = vor.u32 %v4103, %v4099
      %v4105 = vrot.slane %v4104, 4
      %v4107 = vshll.u32 %v4014, 16
      %v4109 = vrot.slane %v4107, 5
      %v4110 = vsel %vm927, %v4105, %v4109
      %s4111 = scalar_lea.vmem %s5, 128
      %v4112 = vld [vmem:[%s4111] sm:$0xf]
      %v4113 = vld [vmem:[%s4111 + $0x4] sm:$0xf]
      %v4114 = vld [vmem:[%s4111 + $0x8] sm:$0xf]
      %v4115 = vld [vmem:[%s4111 + $0xc] sm:$0xf]
      %v4116 = vld [vmem:[%s4111 + $0x10] sm:$0xf]
      %v4117 = vld [vmem:[%s4111 + $0x14] sm:$0xf]
      %v4118 = vld [vmem:[%s4111 + $0x18] sm:$0xf]
      %v4119 = vld [vmem:[%s4111 + $0x1c] sm:$0xf]
      %v4120 = vld [vmem:[%s4111 + $0x20] sm:$0xf]
      %v4121 = vld [vmem:[%s4111 + $0x24] sm:$0xf]
      %v4122 = vld [vmem:[%s4111 + $0x28] sm:$0xf]
      %v4123 = vld [vmem:[%s4111 + $0x2c] sm:$0xf]
      %v4124 = vld [vmem:[%s4111 + $0x30] sm:$0xf]
      %v4125 = vld [vmem:[%s4111 + $0x34] sm:$0xf]
      %v4126 = vld [vmem:[%s4111 + $0x38] sm:$0xf]
      %v4127 = vld [vmem:[%s4111 + $0x3c] sm:$0xf]
      %v4128 = vld [vmem:[%s4111 + $0x40] sm:$0xf]
      %v4129 = vld [vmem:[%s4111 + $0x44] sm:$0xf]
      %v4130 = vld [vmem:[%s4111 + $0x48] sm:$0xf]
      %v4131 = vld [vmem:[%s4111 + $0x4c] sm:$0xf]
      %v4132 = vld [vmem:[%s4111 + $0x50] sm:$0xf]
      %v4133 = vld [vmem:[%s4111 + $0x54] sm:$0xf]
      %v4134 = vld [vmem:[%s4111 + $0x58] sm:$0xf]
      %v4135 = vld [vmem:[%s4111 + $0x5c] sm:$0xf]
      %v4136 = vld [vmem:[%s4111 + $0x60] sm:$0xf]
      %v4137 = vld [vmem:[%s4111 + $0x64] sm:$0xf]
      %v4138 = vld [vmem:[%s4111 + $0x68] sm:$0xf]
      %v4139 = vld [vmem:[%s4111 + $0x6c] sm:$0xf]
      %v4140 = vld [vmem:[%s4111 + $0x70] sm:$0xf]
      %v4141 = vld [vmem:[%s4111 + $0x74] sm:$0xf]
      %v4142 = vld [vmem:[%s4111 + $0x78] sm:$0xf]
      %v4143 = vld [vmem:[%s4111 + $0x7c] sm:$0xf]
      %v4144 = vunpack.c.l.b16 %v4028
      %v4145 = vunpack.c.h.b16 %v4028
      %v4146 = vunpack.c.l.b16 %v4038
      %v4147 = vunpack.c.h.b16 %v4038
      %v4148 = vunpack.c.l.b16 %v4052
      %v4149 = vunpack.c.h.b16 %v4052
      %v4150 = vunpack.c.l.b16 %v4062
      %v4151 = vunpack.c.h.b16 %v4062
      %v4152 = vunpack.c.l.b16 %v4076
      %v4153 = vunpack.c.h.b16 %v4076
      %v4154 = vunpack.c.l.b16 %v4086
      %v4155 = vunpack.c.h.b16 %v4086
      %v4156 = vunpack.c.l.b16 %v4100
      %v4157 = vunpack.c.h.b16 %v4100
      %v4158 = vunpack.c.l.b16 %v4110
      %v4159 = vunpack.c.h.b16 %v4110
      %v4160 = vpack.c.b16 %v4146, %v4144
      %v4161 = vpack.c.b16 %v4147, %v4145
      %v4162 = vpack.c.b16 %v4150, %v4148
      %v4163 = vpack.c.b16 %v4151, %v4149
      %v4164 = vpack.c.b16 %v4154, %v4152
      %v4165 = vpack.c.b16 %v4155, %v4153
      %v4166 = vpack.c.b16 %v4158, %v4156
      %v4167 = vpack.c.b16 %v4159, %v4157
      %v4208 = vunpack.c.l.b16 %v4112
      %v4209 = vunpack.c.l.b16 %v4113
      %v4210 = vunpack.c.l.b16 %v4114
      %v4211 = vunpack.c.l.b16 %v4115
      %v4212 = vunpack.c.l.b16 %v4116
      %v4213 = vunpack.c.l.b16 %v4117
      %v4214 = vunpack.c.l.b16 %v4118
      %v4215 = vunpack.c.l.b16 %v4119
      %v4216 = vunpack.c.l.b16 %v4120
      %v4217 = vunpack.c.l.b16 %v4121
      %v4218 = vunpack.c.l.b16 %v4122
      %v4219 = vunpack.c.l.b16 %v4123
      %v4220 = vunpack.c.l.b16 %v4124
      %v4221 = vunpack.c.l.b16 %v4125
      %v4222 = vunpack.c.l.b16 %v4126
      %v4223 = vunpack.c.l.b16 %v4127
      %v4224 = vunpack.c.l.b16 %v4128
      %v4225 = vunpack.c.l.b16 %v4129
      %v4226 = vunpack.c.l.b16 %v4130
      %v4227 = vunpack.c.l.b16 %v4131
      %v4228 = vunpack.c.l.b16 %v4132
      %v4229 = vunpack.c.l.b16 %v4133
      %v4230 = vunpack.c.l.b16 %v4134
      %v4231 = vunpack.c.l.b16 %v4135
      %v4232 = vunpack.c.l.b16 %v4136
      %v4233 = vunpack.c.l.b16 %v4137
      %v4234 = vunpack.c.l.b16 %v4138
      %v4235 = vunpack.c.l.b16 %v4139
      %v4236 = vunpack.c.l.b16 %v4140
      %v4237 = vunpack.c.l.b16 %v4141
      %v4238 = vunpack.c.l.b16 %v4142
      %v4239 = vunpack.c.l.b16 %v4143
      %v4240 = vpack.c.b16 %v4209, %v4208
      %v4241 = vpack.c.b16 %v4211, %v4210
      %v4242 = vpack.c.b16 %v4213, %v4212
      %v4243 = vpack.c.b16 %v4215, %v4214
      %v4244 = vpack.c.b16 %v4217, %v4216
      %v4245 = vpack.c.b16 %v4219, %v4218
      %v4246 = vpack.c.b16 %v4221, %v4220
      %v4247 = vpack.c.b16 %v4223, %v4222
      %v4248 = vpack.c.b16 %v4225, %v4224
      %v4249 = vpack.c.b16 %v4227, %v4226
      %v4250 = vpack.c.b16 %v4229, %v4228
      %v4251 = vpack.c.b16 %v4231, %v4230
      %v4252 = vpack.c.b16 %v4233, %v4232
      %v4253 = vpack.c.b16 %v4235, %v4234
      %v4254 = vpack.c.b16 %v4237, %v4236
      %v4255 = vpack.c.b16 %v4239, %v4238
      %4272 = vmatprep.subr.bf16.mxu0 0
      %4273 = vmatpush1.bf16.msra.mxu0 %v4240
      %4274 = vmatprep.subr.bf16.mxu0 0
      %4275 = vmatpush1.bf16.msra.mxu0 %v4241
      %4276 = vmatprep.subr.bf16.mxu0 0
      %4277 = vmatpush1.bf16.msra.mxu0 %v4242
      %4278 = vmatprep.subr.bf16.mxu0 0
      %4279 = vmatpush1.bf16.msra.mxu0 %v4243
      %4280 = vmatprep.subr.bf16.mxu0 0
      %4281 = vmatpush1.bf16.msra.mxu0 %v4244
      %4282 = vmatprep.subr.bf16.mxu0 0
      %4283 = vmatpush1.bf16.msra.mxu0 %v4245
      %4284 = vmatprep.subr.bf16.mxu0 0
      %4285 = vmatpush1.bf16.msra.mxu0 %v4246
      %4286 = vmatprep.subr.bf16.mxu0 0
      %4287 = vmatpush1.bf16.msra.mxu0 %v4247
      %4288 = vmatprep.subr.bf16.mxu0 0
      %4289 = vmatpush1.bf16.msra.mxu0 %v4248
      %4290 = vmatprep.subr.bf16.mxu0 0
      %4291 = vmatpush1.bf16.msra.mxu0 %v4249
      %4292 = vmatprep.subr.bf16.mxu0 0
      %4293 = vmatpush1.bf16.msra.mxu0 %v4250
      %4294 = vmatprep.subr.bf16.mxu0 0
      %4295 = vmatpush1.bf16.msra.mxu0 %v4251
      %4296 = vmatprep.subr.bf16.mxu0 0
      %4297 = vmatpush1.bf16.msra.mxu0 %v4252
      %4298 = vmatprep.subr.bf16.mxu0 0
      %4299 = vmatpush1.bf16.msra.mxu0 %v4253
      %4300 = vmatprep.subr.bf16.mxu0 0
      %4301 = vmatpush1.bf16.msra.mxu0 %v4254
      %4302 = vmatprep.subr.bf16.mxu0 0
      %4303 = vmatpush1.bf16.msra.mxu0 %v4255
      %4304 = vmatprep.mubr.bf16.mxu0 %v4161
      %4305 = vmatmul.mubr.bf16.gmra.mrb[0].mxu0 %v4160
      %v4306 = vpop.f32.mrb[0].mxu0
      %v4307 = vadd.f32 0.0, %v4306
      %v4308 = vpop.f32.mrb[0].mxu0
      %v4309 = vpop.f32.mrb[0].mxu0
      %v4310 = vadd.f32 0.0, %v4309
      %v4311 = vpop.f32.mrb[0].mxu0
      %4312 = vmatprep.mubr.bf16.mxu0 %v4163
      %4313 = vmatmul.mubr.bf16.gmra.mrb[0].mxu0 %v4162
      %v4314 = vpop.f32.mrb[0].mxu0
      %v4315 = vadd.f32 0.0, %v4314
      %v4316 = vpop.f32.mrb[0].mxu0
      %v4317 = vpop.f32.mrb[0].mxu0
      %v4318 = vadd.f32 0.0, %v4317
      %v4319 = vpop.f32.mrb[0].mxu0
      %4320 = vmatprep.mubr.bf16.mxu0 %v4165
      %4321 = vmatmul.mubr.bf16.gmra.mrb[0].mxu0 %v4164
      %v4322 = vpop.f32.mrb[0].mxu0
      %v4323 = vadd.f32 0.0, %v4322
      %v4324 = vpop.f32.mrb[0].mxu0
      %v4325 = vpop.f32.mrb[0].mxu0
      %v4326 = vadd.f32 0.0, %v4325
      %v4327 = vpop.f32.mrb[0].mxu0
      %4328 = vmatprep.mubr.bf16.mxu0 %v4167
      %4329 = vmatmul.mubr.bf16.gmra.mrb[0].mxu0 %v4166
      %v4330 = vpop.f32.mrb[0].mxu0
      %v4331 = vadd.f32 0.0, %v4330
      %v4332 = vpop.f32.mrb[0].mxu0
      %v4333 = vpop.f32.mrb[0].mxu0
      %v4334 = vadd.f32 0.0, %v4333
      %v4335 = vpop.f32.mrb[0].mxu0
      %4336 = vdwg.mxu0
      %v4345 = vunpack.c.l.b16 %v3971
      %v4346 = vunpack.c.h.b16 %v3971
      %v4347 = vunpack.c.l.b16 %v3972
      %v4348 = vunpack.c.h.b16 %v3972
      %v4349 = vunpack.c.l.b16 %v3973
      %v4350 = vunpack.c.h.b16 %v3973
      %v4351 = vunpack.c.l.b16 %v3974
      %v4352 = vunpack.c.h.b16 %v3974
      %v4353 = vunpack.c.l.b16 %v3975
      %v4354 = vunpack.c.h.b16 %v3975
      %v4355 = vunpack.c.l.b16 %v3976
      %v4356 = vunpack.c.h.b16 %v3976
      %v4357 = vunpack.c.l.b16 %v3977
      %v4358 = vunpack.c.h.b16 %v3977
      %v4359 = vunpack.c.l.b16 %v3978
      %v4360 = vunpack.c.h.b16 %v3978
      %v4361 = vpack.c.b16 %v4347, %v4345
      %v4362 = vpack.c.b16 %v4348, %v4346
      %v4363 = vpack.c.b16 %v4351, %v4349
      %v4364 = vpack.c.b16 %v4352, %v4350
      %v4365 = vpack.c.b16 %v4355, %v4353
      %v4366 = vpack.c.b16 %v4356, %v4354
      %v4367 = vpack.c.b16 %v4359, %v4357
      %v4368 = vpack.c.b16 %v4360, %v4358
      %v4409 = vunpack.c.l.b16 %v3979
      %v4410 = vunpack.c.l.b16 %v3980
      %v4411 = vunpack.c.l.b16 %v3981
      %v4412 = vunpack.c.l.b16 %v3982
      %v4413 = vunpack.c.l.b16 %v3983
      %v4414 = vunpack.c.l.b16 %v3984
      %v4415 = vunpack.c.l.b16 %v3985
      %v4416 = vunpack.c.l.b16 %v3986
      %v4417 = vunpack.c.l.b16 %v3987
      %v4418 = vunpack.c.l.b16 %v3988
      %v4419 = vunpack.c.l.b16 %v3989
      %v4420 = vunpack.c.l.b16 %v3990
      %v4421 = vunpack.c.l.b16 %v3991
      %v4422 = vunpack.c.l.b16 %v3992
      %v4423 = vunpack.c.l.b16 %v3993
      %v4424 = vunpack.c.l.b16 %v3994
      %v4425 = vunpack.c.l.b16 %v3995
      %v4426 = vunpack.c.l.b16 %v3996
      %v4427 = vunpack.c.l.b16 %v3997
      %v4428 = vunpack.c.l.b16 %v3998
      %v4429 = vunpack.c.l.b16 %v3999
      %v4430 = vunpack.c.l.b16 %v4000
      %v4431 = vunpack.c.l.b16 %v4001
      %v4432 = vunpack.c.l.b16 %v4002
      %v4433 = vunpack.c.l.b16 %v4003
      %v4434 = vunpack.c.l.b16 %v4004
      %v4435 = vunpack.c.l.b16 %v4005
      %v4436 = vunpack.c.l.b16 %v4006
      %v4437 = vunpack.c.l.b16 %v4007
      %v4438 = vunpack.c.l.b16 %v4008
      %v4439 = vunpack.c.l.b16 %v4009
      %v4440 = vunpack.c.l.b16 %v4010
      %v4441 = vpack.c.b16 %v4410, %v4409
      %v4442 = vpack.c.b16 %v4412, %v4411
      %v4443 = vpack.c.b16 %v4414, %v4413
      %v4444 = vpack.c.b16 %v4416, %v4415
      %v4445 = vpack.c.b16 %v4418, %v4417
      %v4446 = vpack.c.b16 %v4420, %v4419
      %v4447 = vpack.c.b16 %v4422, %v4421
      %v4448 = vpack.c.b16 %v4424, %v4423
      %v4449 = vpack.c.b16 %v4426, %v4425
      %v4450 = vpack.c.b16 %v4428, %v4427
      %v4451 = vpack.c.b16 %v4430, %v4429
      %v4452 = vpack.c.b16 %v4432, %v4431
      %v4453 = vpack.c.b16 %v4434, %v4433
      %v4454 = vpack.c.b16 %v4436, %v4435
      %v4455 = vpack.c.b16 %v4438, %v4437
      %v4456 = vpack.c.b16 %v4440, %v4439
      %4473 = vmatprep.subr.bf16.mxu0 0
      %4474 = vmatpush1.bf16.msra.mxu0 %v4441
      %4475 = vmatprep.subr.bf16.mxu0 0
      %4476 = vmatpush1.bf16.msra.mxu0 %v4442
      %4477 = vmatprep.subr.bf16.mxu0 0
      %4478 = vmatpush1.bf16.msra.mxu0 %v4443
      %4479 = vmatprep.subr.bf16.mxu0 0
      %4480 = vmatpush1.bf16.msra.mxu0 %v4444
      %4481 = vmatprep.subr.bf16.mxu0 0
      %4482 = vmatpush1.bf16.msra.mxu0 %v4445
      %4483 = vmatprep.subr.bf16.mxu0 0
      %4484 = vmatpush1.bf16.msra.mxu0 %v4446
      %4485 = vmatprep.subr.bf16.mxu0 0
      %4486 = vmatpush1.bf16.msra.mxu0 %v4447
      %4487 = vmatprep.subr.bf16.mxu0 0
      %4488 = vmatpush1.bf16.msra.mxu0 %v4448
      %4489 = vmatprep.subr.bf16.mxu0 0
      %4490 = vmatpush1.bf16.msra.mxu0 %v4449
      %4491 = vmatprep.subr.bf16.mxu0 0
      %4492 = vmatpush1.bf16.msra.mxu0 %v4450
      %4493 = vmatprep.subr.bf16.mxu0 0
      %4494 = vmatpush1.bf16.msra.mxu0 %v4451
      %4495 = vmatprep.subr.bf16.mxu0 0
      %4496 = vmatpush1.bf16.msra.mxu0 %v4452
      %4497 = vmatprep.subr.bf16.mxu0 0
      %4498 = vmatpush1.bf16.msra.mxu0 %v4453
      %4499 = vmatprep.subr.bf16.mxu0 0
      %4500 = vmatpush1.bf16.msra.mxu0 %v4454
      %4501 = vmatprep.subr.bf16.mxu0 0
      %4502 = vmatpush1.bf16.msra.mxu0 %v4455
      %4503 = vmatprep.subr.bf16.mxu0 0
      %4504 = vmatpush1.bf16.msra.mxu0 %v4456
      %4505 = vmatprep.mubr.bf16.mxu0 %v4362
      %4506 = vmatmul.mubr.bf16.gmra.mrb[0].mxu0 %v4361
      %v4507 = vpop.f32.mrb[0].mxu0
      %v4508 = vadd.f32 %v4307, %v4507
      %v4509 = vpop.f32.mrb[0].mxu0
      %v4510 = vpop.f32.mrb[0].mxu0
      %v4511 = vadd.f32 %v4310, %v4510
      %v4512 = vpop.f32.mrb[0].mxu0
      %4513 = vmatprep.mubr.bf16.mxu0 %v4364
      %4514 = vmatmul.mubr.bf16.gmra.mrb[0].mxu0 %v4363
      %v4515 = vpop.f32.mrb[0].mxu0
      %v4516 = vadd.f32 %v4315, %v4515
      %v4517 = vpop.f32.mrb[0].mxu0
      %v4518 = vpop.f32.mrb[0].mxu0
      %v4519 = vadd.f32 %v4318, %v4518
      %v4520 = vpop.f32.mrb[0].mxu0
      %4521 = vmatprep.mubr.bf16.mxu0 %v4366
      %4522 = vmatmul.mubr.bf16.gmra.mrb[0].mxu0 %v4365
      %v4523 = vpop.f32.mrb[0].mxu0
      %v4524 = vadd.f32 %v4323, %v4523
      %v4525 = vpop.f32.mrb[0].mxu0
      %v4526 = vpop.f32.mrb[0].mxu0
      %v4527 = vadd.f32 %v4326, %v4526
      %v4528 = vpop.f32.mrb[0].mxu0
      %4529 = vmatprep.mubr.bf16.mxu0 %v4368
      %4530 = vmatmul.mubr.bf16.gmra.mrb[0].mxu0 %v4367
      %v4531 = vpop.f32.mrb[0].mxu0
      %v4532 = vadd.f32 %v4331, %v4531
      %v4533 = vpop.f32.mrb[0].mxu0
      %v4534 = vpop.f32.mrb[0].mxu0
      %v4535 = vadd.f32 %v4334, %v4534
      %v4536 = vpop.f32.mrb[0].mxu0
      %4537 = vdwg.mxu0
      %v4538 = vld [vmem:[#allocation3] sm:$0xee]
      %v4539 = vld [vmem:[#allocation3 + $0x18] sm:$0xee]
      %v4540 = vld [vmem:[#allocation3 + $0x30] sm:$0xee]
      %v4541 = vld [vmem:[#allocation3 + $0x48] sm:$0xee]
      %v4550 = vrot.slane %v4538, 5
      %v4551 = vrot.slane %v4550, 4
      %v4552 = vrot.slane %v3972, 5
      %v4553 = vsel %vm1357, %v4551, %v4552
      %v4554 = vrot.slane %v4552, 4
      %v4555 = vrot.slane %v4011, 5
      %v4556 = vsel %vm1357, %v4554, %v4555
      %v4557 = vrot.slane %v4539, 5
      %v4558 = vrot.slane %v4557, 4
      %v4559 = vrot.slane %v3974, 5
      %v4560 = vsel %vm1357, %v4558, %v4559
      %v4561 = vrot.slane %v4559, 4
      %v4562 = vrot.slane %v4012, 5
      %v4563 = vsel %vm1357, %v4561, %v4562
      %v4564 = vrot.slane %v4540, 5
      %v4565 = vrot.slane %v4564, 4
      %v4566 = vrot.slane %v3976, 5
      %v4567 = vsel %vm1357, %v4565, %v4566
      %v4568 = vrot.slane %v4566, 4
      %v4569 = vrot.slane %v4013, 5
      %v4570 = vsel %vm1357, %v4568, %v4569
      %v4571 = vrot.slane %v4541, 5
      %v4572 = vrot.slane %v4571, 4
      %v4573 = vrot.slane %v3978, 5
      %v4574 = vsel %vm1357, %v4572, %v4573
      %v4575 = vrot.slane %v4573, 4
      %v4576 = vrot.slane %v4014, 5
      %v4577 = vsel %vm1357, %v4575, %v4576
      %s4578 = scalar_lea.vmem %s5, 256
      %v4579 = vld [vmem:[%s4578] sm:$0xf]
      %v4580 = vld [vmem:[%s4578 + $0x4] sm:$0xf]
      %v4581 = vld [vmem:[%s4578 + $0x8] sm:$0xf]
      %v4582 = vld [vmem:[%s4578 + $0xc] sm:$0xf]
      %v4583 = vld [vmem:[%s4578 + $0x10] sm:$0xf]
      %v4584 = vld [vmem:[%s4578 + $0x14] sm:$0xf]
      %v4585 = vld [vmem:[%s4578 + $0x18] sm:$0xf]
      %v4586 = vld [vmem:[%s4578 + $0x1c] sm:$0xf]
      %v4587 = vld [vmem:[%s4578 + $0x20] sm:$0xf]
      %v4588 = vld [vmem:[%s4578 + $0x24] sm:$0xf]
      %v4589 = vld [vmem:[%s4578 + $0x28] sm:$0xf]
      %v4590 = vld [vmem:[%s4578 + $0x2c] sm:$0xf]
      %v4591 = vld [vmem:[%s4578 + $0x30] sm:$0xf]
      %v4592 = vld [vmem:[%s4578 + $0x34] sm:$0xf]
      %v4593 = vld [vmem:[%s4578 + $0x38] sm:$0xf]
      %v4594 = vld [vmem:[%s4578 + $0x3c] sm:$0xf]
      %v4595 = vld [vmem:[%s4578 + $0x40] sm:$0xf]
      %v4596 = vld [vmem:[%s4578 + $0x44] sm:$0xf]
      %v4597 = vld [vmem:[%s4578 + $0x48] sm:$0xf]
      %v4598 = vld [vmem:[%s4578 + $0x4c] sm:$0xf]
      %v4599 = vld [vmem:[%s4578 + $0x50] sm:$0xf]
      %v4600 = vld [vmem:[%s4578 + $0x54] sm:$0xf]
      %v4601 = vld [vmem:[%s4578 + $0x58] sm:$0xf]
      %v4602 = vld [vmem:[%s4578 + $0x5c] sm:$0xf]
      %v4603 = vld [vmem:[%s4578 + $0x60] sm:$0xf]
      %v4604 = vld [vmem:[%s4578 + $0x64] sm:$0xf]
      %v4605 = vld [vmem:[%s4578 + $0x68] sm:$0xf]
      %v4606 = vld [vmem:[%s4578 + $0x6c] sm:$0xf]
      %v4607 = vld [vmem:[%s4578 + $0x70] sm:$0xf]
      %v4608 = vld [vmem:[%s4578 + $0x74] sm:$0xf]
      %v4609 = vld [vmem:[%s4578 + $0x78] sm:$0xf]
      %v4610 = vld [vmem:[%s4578 + $0x7c] sm:$0xf]
      %v4611 = vunpack.c.l.b16 %v4553
      %v4612 = vunpack.c.h.b16 %v4553
      %v4613 = vunpack.c.l.b16 %v4556
      %v4614 = vunpack.c.h.b16 %v4556
      %v4615 = vunpack.c.l.b16 %v4560
      %v4616 = vunpack.c.h.b16 %v4560
      %v4617 = vunpack.c.l.b16 %v4563
      %v4618 = vunpack.c.h.b16 %v4563
      %v4619 = vunpack.c.l.b16 %v4567
      %v4620 = vunpack.c.h.b16 %v4567
      %v4621 = vunpack.c.l.b16 %v4570
      %v4622 = vunpack.c.h.b16 %v4570
      %v4623 = vunpack.c.l.b16 %v4574
      %v4624 = vunpack.c.h.b16 %v4574
      %v4625 = vunpack.c.l.b16 %v4577
      %v4626 = vunpack.c.h.b16 %v4577
      %v4627 = vpack.c.b16 %v4613, %v4611
      %v4628 = vpack.c.b16 %v4614, %v4612
      %v4629 = vpack.c.b16 %v4617, %v4615
      %v4630 = vpack.c.b16 %v4618, %v4616
      %v4631 = vpack.c.b16 %v4621, %v4619
      %v4632 = vpack.c.b16 %v4622, %v4620
      %v4633 = vpack.c.b16 %v4625, %v4623
      %v4634 = vpack.c.b16 %v4626, %v4624
      %v4675 = vunpack.c.l.b16 %v4579
      %v4676 = vunpack.c.l.b16 %v4580
      %v4677 = vunpack.c.l.b16 %v4581
      %v4678 = vunpack.c.l.b16 %v4582
      %v4679 = vunpack.c.l.b16 %v4583
      %v4680 = vunpack.c.l.b16 %v4584
      %v4681 = vunpack.c.l.b16 %v4585
      %v4682 = vunpack.c.l.b16 %v4586
      %v4683 = vunpack.c.l.b16 %v4587
      %v4684 = vunpack.c.l.b16 %v4588
      %v4685 = vunpack.c.l.b16 %v4589
      %v4686 = vunpack.c.l.b16 %v4590
      %v4687 = vunpack.c.l.b16 %v4591
      %v4688 = vunpack.c.l.b16 %v4592
      %v4689 = vunpack.c.l.b16 %v4593
      %v4690 = vunpack.c.l.b16 %v4594
      %v4691 = vunpack.c.l.b16 %v4595
      %v4692 = vunpack.c.l.b16 %v4596
      %v4693 = vunpack.c.l.b16 %v4597
      %v4694 = vunpack.c.l.b16 %v4598
      %v4695 = vunpack.c.l.b16 %v4599
      %v4696 = vunpack.c.l.b16 %v4600
      %v4697 = vunpack.c.l.b16 %v4601
      %v4698 = vunpack.c.l.b16 %v4602
      %v4699 = vunpack.c.l.b16 %v4603
      %v4700 = vunpack.c.l.b16 %v4604
      %v4701 = vunpack.c.l.b16 %v4605
      %v4702 = vunpack.c.l.b16 %v4606
      %v4703 = vunpack.c.l.b16 %v4607
      %v4704 = vunpack.c.l.b16 %v4608
      %v4705 = vunpack.c.l.b16 %v4609
      %v4706 = vunpack.c.l.b16 %v4610
      %v4707 = vpack.c.b16 %v4676, %v4675
      %v4708 = vpack.c.b16 %v4678, %v4677
      %v4709 = vpack.c.b16 %v4680, %v4679
      %v4710 = vpack.c.b16 %v4682, %v4681
      %v4711 = vpack.c.b16 %v4684, %v4683
      %v4712 = vpack.c.b16 %v4686, %v4685
      %v4713 = vpack.c.b16 %v4688, %v4687
      %v4714 = vpack.c.b16 %v4690, %v4689
      %v4715 = vpack.c.b16 %v4692, %v4691
      %v4716 = vpack.c.b16 %v4694, %v4693
      %v4717 = vpack.c.b16 %v4696, %v4695
      %v4718 = vpack.c.b16 %v4698, %v4697
      %v4719 = vpack.c.b16 %v4700, %v4699
      %v4720 = vpack.c.b16 %v4702, %v4701
      %v4721 = vpack.c.b16 %v4704, %v4703
      %v4722 = vpack.c.b16 %v4706, %v4705
      %4739 = vmatprep.subr.bf16.mxu0 0
      %4740 = vmatpush1.bf16.msra.mxu0 %v4707
      %4741 = vmatprep.subr.bf16.mxu0 0
      %4742 = vmatpush1.bf16.msra.mxu0 %v4708
      %4743 = vmatprep.subr.bf16.mxu0 0
      %4744 = vmatpush1.bf16.msra.mxu0 %v4709
      %4745 = vmatprep.subr.bf16.mxu0 0
      %4746 = vmatpush1.bf16.msra.mxu0 %v4710
      %4747 = vmatprep.subr.bf16.mxu0 0
      %4748 = vmatpush1.bf16.msra.mxu0 %v4711
      %4749 = vmatprep.subr.bf16.mxu0 0
      %4750 = vmatpush1.bf16.msra.mxu0 %v4712
      %4751 = vmatprep.subr.bf16.mxu0 0
      %4752 = vmatpush1.bf16.msra.mxu0 %v4713
      %4753 = vmatprep.subr.bf16.mxu0 0
      %4754 = vmatpush1.bf16.msra.mxu0 %v4714
      %4755 = vmatprep.subr.bf16.mxu0 0
      %4756 = vmatpush1.bf16.msra.mxu0 %v4715
      %4757 = vmatprep.subr.bf16.mxu0 0
      %4758 = vmatpush1.bf16.msra.mxu0 %v4716
      %4759 = vmatprep.subr.bf16.mxu0 0
      %4760 = vmatpush1.bf16.msra.mxu0 %v4717
      %4761 = vmatprep.subr.bf16.mxu0 0
      %4762 = vmatpush1.bf16.msra.mxu0 %v4718
      %4763 = vmatprep.subr.bf16.mxu0 0
      %4764 = vmatpush1.bf16.msra.mxu0 %v4719
      %4765 = vmatprep.subr.bf16.mxu0 0
      %4766 = vmatpush1.bf16.msra.mxu0 %v4720
      %4767 = vmatprep.subr.bf16.mxu0 0
      %4768 = vmatpush1.bf16.msra.mxu0 %v4721
      %4769 = vmatprep.subr.bf16.mxu0 0
      %4770 = vmatpush1.bf16.msra.mxu0 %v4722
      %4771 = vmatprep.mubr.bf16.mxu0 %v4628
      %4772 = vmatmul.mubr.bf16.gmra.mrb[0].mxu0 %v4627
      %v4773 = vpop.f32.mrb[0].mxu0
      %v4774 = vadd.f32 0.0, %v4773
      %v4775 = vpop.f32.mrb[0].mxu0
      %v4776 = vpop.f32.mrb[0].mxu0
      %v4777 = vadd.f32 0.0, %v4776
      %v4778 = vpop.f32.mrb[0].mxu0
      %4779 = vmatprep.mubr.bf16.mxu0 %v4630
      %4780 = vmatmul.mubr.bf16.gmra.mrb[0].mxu0 %v4629
      %v4781 = vpop.f32.mrb[0].mxu0
      %v4782 = vadd.f32 0.0, %v4781
      %v4783 = vpop.f32.mrb[0].mxu0
      %v4784 = vpop.f32.mrb[0].mxu0
      %v4785 = vadd.f32 0.0, %v4784
      %v4786 = vpop.f32.mrb[0].mxu0
      %4787 = vmatprep.mubr.bf16.mxu0 %v4632
      %4788 = vmatmul.mubr.bf16.gmra.mrb[0].mxu0 %v4631
      %v4789 = vpop.f32.mrb[0].mxu0
      %v4790 = vadd.f32 0.0, %v4789
      %v4791 = vpop.f32.mrb[0].mxu0
      %v4792 = vpop.f32.mrb[0].mxu0
      %v4793 = vadd.f32 0.0, %v4792
      %v4794 = vpop.f32.mrb[0].mxu0
      %4795 = vmatprep.mubr.bf16.mxu0 %v4634
      %4796 = vmatmul.mubr.bf16.gmra.mrb[0].mxu0 %v4633
      %v4797 = vpop.f32.mrb[0].mxu0
      %v4798 = vadd.f32 0.0, %v4797
      %v4799 = vpop.f32.mrb[0].mxu0
      %v4800 = vpop.f32.mrb[0].mxu0
      %v4801 = vadd.f32 0.0, %v4800
      %v4802 = vpop.f32.mrb[0].mxu0
      %4803 = vdwg.mxu0
      %v4804 = vadd.f32 %v4508, %v4774
      %v4805 = vadd.f32 %v4511, %v4777
      %v4806 = vadd.f32 %v4516, %v4782
      %v4807 = vadd.f32 %v4519, %v4785
      %v4808 = vadd.f32 %v4524, %v4790
      %v4809 = vadd.f32 %v4527, %v4793
      %v4810 = vadd.f32 %v4532, %v4798
      %v4811 = vadd.f32 %v4535, %v4801
      %v4812 = vld [vmem:[%s3834] sm:$0xff]
      %v4813 = vld [vmem:[%s3834 + $0x8] sm:$0xff]
      %v4814 = vld [vmem:[%s3834 + $0x18] sm:$0xff]
      %v4815 = vld [vmem:[%s3834 + $0x20] sm:$0xff]
      %v4816 = vld [vmem:[%s3834 + $0x30] sm:$0xff]
      %v4817 = vld [vmem:[%s3834 + $0x38] sm:$0xff]
      %v4818 = vld [vmem:[%s3834 + $0x48] sm:$0xff]
      %v4819 = vld [vmem:[%s3834 + $0x50] sm:$0xff]
      %s4820 = scalar_lea.vmem %s5, 384
      %v4821 = vld [vmem:[%s4820] sm:$0xf]
      %v4822 = vld [vmem:[%s4820 + $0x4] sm:$0xf]
      %v4823 = vld [vmem:[%s4820 + $0x8] sm:$0xf]
      %v4824 = vld [vmem:[%s4820 + $0xc] sm:$0xf]
      %v4825 = vld [vmem:[%s4820 + $0x10] sm:$0xf]
      %v4826 = vld [vmem:[%s4820 + $0x14] sm:$0xf]
      %v4827 = vld [vmem:[%s4820 + $0x18] sm:$0xf]
      %v4828 = vld [vmem:[%s4820 + $0x1c] sm:$0xf]
      %v4829 = vld [vmem:[%s4820 + $0x20] sm:$0xf]
      %v4830 = vld [vmem:[%s4820 + $0x24] sm:$0xf]
      %v4831 = vld [vmem:[%s4820 + $0x28] sm:$0xf]
      %v4832 = vld [vmem:[%s4820 + $0x2c] sm:$0xf]
      %v4833 = vld [vmem:[%s4820 + $0x30] sm:$0xf]
      %v4834 = vld [vmem:[%s4820 + $0x34] sm:$0xf]
      %v4835 = vld [vmem:[%s4820 + $0x38] sm:$0xf]
      %v4836 = vld [vmem:[%s4820 + $0x3c] sm:$0xf]
      %v4837 = vld [vmem:[%s4820 + $0x40] sm:$0xf]
      %v4838 = vld [vmem:[%s4820 + $0x44] sm:$0xf]
      %v4839 = vld [vmem:[%s4820 + $0x48] sm:$0xf]
      %v4840 = vld [vmem:[%s4820 + $0x4c] sm:$0xf]
      %v4841 = vld [vmem:[%s4820 + $0x50] sm:$0xf]
      %v4842 = vld [vmem:[%s4820 + $0x54] sm:$0xf]
      %v4843 = vld [vmem:[%s4820 + $0x58] sm:$0xf]
      %v4844 = vld [vmem:[%s4820 + $0x5c] sm:$0xf]
      %v4845 = vld [vmem:[%s4820 + $0x60] sm:$0xf]
      %v4846 = vld [vmem:[%s4820 + $0x64] sm:$0xf]
      %v4847 = vld [vmem:[%s4820 + $0x68] sm:$0xf]
      %v4848 = vld [vmem:[%s4820 + $0x6c] sm:$0xf]
      %v4849 = vld [vmem:[%s4820 + $0x70] sm:$0xf]
      %v4850 = vld [vmem:[%s4820 + $0x74] sm:$0xf]
      %v4851 = vld [vmem:[%s4820 + $0x78] sm:$0xf]
      %v4852 = vld [vmem:[%s4820 + $0x7c] sm:$0xf]
      %v4861 = vunpack.c.l.b16 %v4812
      %v4862 = vunpack.c.h.b16 %v4812
      %v4863 = vunpack.c.l.b16 %v4813
      %v4864 = vunpack.c.h.b16 %v4813
      %v4865 = vunpack.c.l.b16 %v4814
      %v4866 = vunpack.c.h.b16 %v4814
      %v4867 = vunpack.c.l.b16 %v4815
      %v4868 = vunpack.c.h.b16 %v4815
      %v4869 = vunpack.c.l.b16 %v4816
      %v4870 = vunpack.c.h.b16 %v4816
      %v4871 = vunpack.c.l.b16 %v4817
      %v4872 = vunpack.c.h.b16 %v4817
      %v4873 = vunpack.c.l.b16 %v4818
      %v4874 = vunpack.c.h.b16 %v4818
      %v4875 = vunpack.c.l.b16 %v4819
      %v4876 = vunpack.c.h.b16 %v4819
      %v4877 = vpack.c.b16 %v4863, %v4861
      %v4878 = vpack.c.b16 %v4864, %v4862
      %v4879 = vpack.c.b16 %v4867, %v4865
      %v4880 = vpack.c.b16 %v4868, %v4866
      %v4881 = vpack.c.b16 %v4871, %v4869
      %v4882 = vpack.c.b16 %v4872, %v4870
      %v4883 = vpack.c.b16 %v4875, %v4873
      %v4884 = vpack.c.b16 %v4876, %v4874
      %v4925 = vunpack.c.l.b16 %v4821
      %v4926 = vunpack.c.l.b16 %v4822
      %v4927 = vunpack.c.l.b16 %v4823
      %v4928 = vunpack.c.l.b16 %v4824
      %v4929 = vunpack.c.l.b16 %v4825
      %v4930 = vunpack.c.l.b16 %v4826
      %v4931 = vunpack.c.l.b16 %v4827
      %v4932 = vunpack.c.l.b16 %v4828
      %v4933 = vunpack.c.l.b16 %v4829
      %v4934 = vunpack.c.l.b16 %v4830
      %v4935 = vunpack.c.l.b16 %v4831
      %v4936 = vunpack.c.l.b16 %v4832
      %v4937 = vunpack.c.l.b16 %v4833
      %v4938 = vunpack.c.l.b16 %v4834
      %v4939 = vunpack.c.l.b16 %v4835
      %v4940 = vunpack.c.l.b16 %v4836
      %v4941 = vunpack.c.l.b16 %v4837
      %v4942 = vunpack.c.l.b16 %v4838
      %v4943 = vunpack.c.l.b16 %v4839
      %v4944 = vunpack.c.l.b16 %v4840
      %v4945 = vunpack.c.l.b16 %v4841
      %v4946 = vunpack.c.l.b16 %v4842
      %v4947 = vunpack.c.l.b16 %v4843
      %v4948 = vunpack.c.l.b16 %v4844
      %v4949 = vunpack.c.l.b16 %v4845
      %v4950 = vunpack.c.l.b16 %v4846
      %v4951 = vunpack.c.l.b16 %v4847
      %v4952 = vunpack.c.l.b16 %v4848
      %v4953 = vunpack.c.l.b16 %v4849
      %v4954 = vunpack.c.l.b16 %v4850
      %v4955 = vunpack.c.l.b16 %v4851
      %v4956 = vunpack.c.l.b16 %v4852
      %v4957 = vpack.c.b16 %v4926, %v4925
      %v4958 = vpack.c.b16 %v4928, %v4927
      %v4959 = vpack.c.b16 %v4930, %v4929
      %v4960 = vpack.c.b16 %v4932, %v4931
      %v4961 = vpack.c.b16 %v4934, %v4933
      %v4962 = vpack.c.b16 %v4936, %v4935
      %v4963 = vpack.c.b16 %v4938, %v4937
      %v4964 = vpack.c.b16 %v4940, %v4939
      %v4965 = vpack.c.b16 %v4942, %v4941
      %v4966 = vpack.c.b16 %v4944, %v4943
      %v4967 = vpack.c.b16 %v4946, %v4945
      %v4968 = vpack.c.b16 %v4948, %v4947
      %v4969 = vpack.c.b16 %v4950, %v4949
      %v4970 = vpack.c.b16 %v4952, %v4951
      %v4971 = vpack.c.b16 %v4954, %v4953
      %v4972 = vpack.c.b16 %v4956, %v4955
      %4989 = vmatprep.subr.bf16.mxu0 0
      %4990 = vmatpush1.bf16.msra.mxu0 %v4957
      %4991 = vmatprep.subr.bf16.mxu0 0
      %4992 = vmatpush1.bf16.msra.mxu0 %v4958
      %4993 = vmatprep.subr.bf16.mxu0 0
      %4994 = vmatpush1.bf16.msra.mxu0 %v4959
      %4995 = vmatprep.subr.bf16.mxu0 0
      %4996 = vmatpush1.bf16.msra.mxu0 %v4960
      %4997 = vmatprep.subr.bf16.mxu0 0
      %4998 = vmatpush1.bf16.msra.mxu0 %v4961
      %4999 = vmatprep.subr.bf16.mxu0 0
      %5000 = vmatpush1.bf16.msra.mxu0 %v4962
      %5001 = vmatprep.subr.bf16.mxu0 0
      %5002 = vmatpush1.bf16.msra.mxu0 %v4963
      %5003 = vmatprep.subr.bf16.mxu0 0
      %5004 = vmatpush1.bf16.msra.mxu0 %v4964
      %5005 = vmatprep.subr.bf16.mxu0 0
      %5006 = vmatpush1.bf16.msra.mxu0 %v4965
      %5007 = vmatprep.subr.bf16.mxu0 0
      %5008 = vmatpush1.bf16.msra.mxu0 %v4966
      %5009 = vmatprep.subr.bf16.mxu0 0
      %5010 = vmatpush1.bf16.msra.mxu0 %v4967
      %5011 = vmatprep.subr.bf16.mxu0 0
      %5012 = vmatpush1.bf16.msra.mxu0 %v4968
      %5013 = vmatprep.subr.bf16.mxu0 0
      %5014 = vmatpush1.bf16.msra.mxu0 %v4969
      %5015 = vmatprep.subr.bf16.mxu0 0
      %5016 = vmatpush1.bf16.msra.mxu0 %v4970
      %5017 = vmatprep.subr.bf16.mxu0 0
      %5018 = vmatpush1.bf16.msra.mxu0 %v4971
      %5019 = vmatprep.subr.bf16.mxu0 0
      %5020 = vmatpush1.bf16.msra.mxu0 %v4972
      %5021 = vmatprep.mubr.bf16.mxu0 %v4878
      %5022 = vmatmul.mubr.bf16.gmra.mrb[0].mxu0 %v4877
      %v5023 = vpop.f32.mrb[0].mxu0
      %v5024 = vadd.f32 0.0, %v5023
      %v5025 = vpop.f32.mrb[0].mxu0
      %v5026 = vpop.f32.mrb[0].mxu0
      %v5027 = vadd.f32 0.0, %v5026
      %v5028 = vpop.f32.mrb[0].mxu0
      %5029 = vmatprep.mubr.bf16.mxu0 %v4880
      %5030 = vmatmul.mubr.bf16.gmra.mrb[0].mxu0 %v4879
      %v5031 = vpop.f32.mrb[0].mxu0
      %v5032 = vadd.f32 0.0, %v5031
      %v5033 = vpop.f32.mrb[0].mxu0
      %v5034 = vpop.f32.mrb[0].mxu0
      %v5035 = vadd.f32 0.0, %v5034
      %v5036 = vpop.f32.mrb[0].mxu0
      %5037 = vmatprep.mubr.bf16.mxu0 %v4882
      %5038 = vmatmul.mubr.bf16.gmra.mrb[0].mxu0 %v4881
      %v5039 = vpop.f32.mrb[0].mxu0
      %v5040 = vadd.f32 0.0, %v5039
      %v5041 = vpop.f32.mrb[0].mxu0
      %v5042 = vpop.f32.mrb[0].mxu0
      %v5043 = vadd.f32 0.0, %v5042
      %v5044 = vpop.f32.mrb[0].mxu0
      %5045 = vmatprep.mubr.bf16.mxu0 %v4884
      %5046 = vmatmul.mubr.bf16.gmra.mrb[0].mxu0 %v4883
      %v5047 = vpop.f32.mrb[0].mxu0
      %v5048 = vadd.f32 0.0, %v5047
      %v5049 = vpop.f32.mrb[0].mxu0
      %v5050 = vpop.f32.mrb[0].mxu0
      %v5051 = vadd.f32 0.0, %v5050
      %v5052 = vpop.f32.mrb[0].mxu0
      %5053 = vdwg.mxu0
      %v5054 = vadd.f32 %v4804, %v5024
      %v5055 = vadd.f32 %v4805, %v5027
      %v5056 = vadd.f32 %v4806, %v5032
      %v5057 = vadd.f32 %v4807, %v5035
      %v5058 = vadd.f32 %v4808, %v5040
      %v5059 = vadd.f32 %v4809, %v5043
      %v5060 = vadd.f32 %v4810, %v5048
      %v5061 = vadd.f32 %v4811, %v5051
      %v5062 = vld [vmem:[%s3834] sm:$0xff]
      %v5063 = vld [vmem:[%s3834 + $0x8] sm:$0xff]
      %v5064 = vld [vmem:[%s3834 + $0x10] sm:$0x11]
      %v5065 = vld [vmem:[%s3834 + $0x18] sm:$0xff]
      %v5066 = vld [vmem:[%s3834 + $0x20] sm:$0xff]
      %v5067 = vld [vmem:[%s3834 + $0x28] sm:$0x11]
      %v5068 = vld [vmem:[%s3834 + $0x30] sm:$0xff]
      %v5069 = vld [vmem:[%s3834 + $0x38] sm:$0xff]
      %v5070 = vld [vmem:[%s3834 + $0x40] sm:$0x11]
      %v5071 = vld [vmem:[%s3834 + $0x48] sm:$0xff]
      %v5072 = vld [vmem:[%s3834 + $0x50] sm:$0xff]
      %v5073 = vld [vmem:[%s3834 + $0x58] sm:$0x11]
      %v5075 = vshrl.u32 %v5062, 16
      %v5077 = vrot.slane %v5075, 4
      %v5078 = vshll.u32 %v5062, 16
      %v5080 = vrot.slane %v5078, 5
      %v5081 = vor.u32 %v5077, %v5080
      %v5082 = vrot.slane %v5081, 4
      %v5084 = vshll.u32 %v5063, 16
      %v5086 = vrot.slane %v5084, 5
      %v5087 = vsel %vm927, %v5082, %v5086
      %v5088 = vshrl.u32 %v5063, 16
      %v5090 = vrot.slane %v5088, 4
      %v5091 = vor.u32 %v5090, %v5086
      %v5092 = vrot.slane %v5091, 4
      %v5094 = vshll.u32 %v5064, 16
      %v5096 = vrot.slane %v5094, 5
      %v5097 = vsel %vm927, %v5092, %v5096
      %v5099 = vshrl.u32 %v5065, 16
      %v5101 = vrot.slane %v5099, 4
      %v5102 = vshll.u32 %v5065, 16
      %v5104 = vrot.slane %v5102, 5
      %v5105 = vor.u32 %v5101, %v5104
      %v5106 = vrot.slane %v5105, 4
      %v5108 = vshll.u32 %v5066, 16
      %v5110 = vrot.slane %v5108, 5
      %v5111 = vsel %vm927, %v5106, %v5110
      %v5112 = vshrl.u32 %v5066, 16
      %v5114 = vrot.slane %v5112, 4
      %v5115 = vor.u32 %v5114, %v5110
      %v5116 = vrot.slane %v5115, 4
      %v5118 = vshll.u32 %v5067, 16
      %v5120 = vrot.slane %v5118, 5
      %v5121 = vsel %vm927, %v5116, %v5120
      %v5123 = vshrl.u32 %v5068, 16
      %v5125 = vrot.slane %v5123, 4
      %v5126 = vshll.u32 %v5068, 16
      %v5128 = vrot.slane %v5126, 5
      %v5129 = vor.u32 %v5125, %v5128
      %v5130 = vrot.slane %v5129, 4
      %v5132 = vshll.u32 %v5069, 16
      %v5134 = vrot.slane %v5132, 5
      %v5135 = vsel %vm927, %v5130, %v5134
      %v5136 = vshrl.u32 %v5069, 16
      %v5138 = vrot.slane %v5136, 4
      %v5139 = vor.u32 %v5138, %v5134
      %v5140 = vrot.slane %v5139, 4
      %v5142 = vshll.u32 %v5070, 16
      %v5144 = vrot.slane %v5142, 5
      %v5145 = vsel %vm927, %v5140, %v5144
      %v5147 = vshrl.u32 %v5071, 16
      %v5149 = vrot.slane %v5147, 4
      %v5150 = vshll.u32 %v5071, 16
      %v5152 = vrot.slane %v5150, 5
      %v5153 = vor.u32 %v5149, %v5152
      %v5154 = vrot.slane %v5153, 4
      %v5156 = vshll.u32 %v5072, 16
      %v5158 = vrot.slane %v5156, 5
      %v5159 = vsel %vm927, %v5154, %v5158
      %v5160 = vshrl.u32 %v5072, 16
      %v5162 = vrot.slane %v5160, 4
      %v5163 = vor.u32 %v5162, %v5158
      %v5164 = vrot.slane %v5163, 4
      %v5166 = vshll.u32 %v5073, 16
      %v5168 = vrot.slane %v5166, 5
      %v5169 = vsel %vm927, %v5164, %v5168
      %s5170 = scalar_lea.vmem %s5, 512
      %v5171 = vld [vmem:[%s5170] sm:$0xf]
      %v5172 = vld [vmem:[%s5170 + $0x4] sm:$0xf]
      %v5173 = vld [vmem:[%s5170 + $0x8] sm:$0xf]
      %v5174 = vld [vmem:[%s5170 + $0xc] sm:$0xf]
      %v5175 = vld [vmem:[%s5170 + $0x10] sm:$0xf]
      %v5176 = vld [vmem:[%s5170 + $0x14] sm:$0xf]
      %v5177 = vld [vmem:[%s5170 + $0x18] sm:$0xf]
      %v5178 = vld [vmem:[%s5170 + $0x1c] sm:$0xf]
      %v5179 = vld [vmem:[%s5170 + $0x20] sm:$0xf]
      %v5180 = vld [vmem:[%s5170 + $0x24] sm:$0xf]
      %v5181 = vld [vmem:[%s5170 + $0x28] sm:$0xf]
      %v5182 = vld [vmem:[%s5170 + $0x2c] sm:$0xf]
      %v5183 = vld [vmem:[%s5170 + $0x30] sm:$0xf]
      %v5184 = vld [vmem:[%s5170 + $0x34] sm:$0xf]
      %v5185 = vld [vmem:[%s5170 + $0x38] sm:$0xf]
      %v5186 = vld [vmem:[%s5170 + $0x3c] sm:$0xf]
      %v5187 = vld [vmem:[%s5170 + $0x40] sm:$0xf]
      %v5188 = vld [vmem:[%s5170 + $0x44] sm:$0xf]
      %v5189 = vld [vmem:[%s5170 + $0x48] sm:$0xf]
      %v5190 = vld [vmem:[%s5170 + $0x4c] sm:$0xf]
      %v5191 = vld [vmem:[%s5170 + $0x50] sm:$0xf]
      %v5192 = vld [vmem:[%s5170 + $0x54] sm:$0xf]
      %v5193 = vld [vmem:[%s5170 + $0x58] sm:$0xf]
      %v5194 = vld [vmem:[%s5170 + $0x5c] sm:$0xf]
      %v5195 = vld [vmem:[%s5170 + $0x60] sm:$0xf]
      %v5196 = vld [vmem:[%s5170 + $0x64] sm:$0xf]
      %v5197 = vld [vmem:[%s5170 + $0x68] sm:$0xf]
      %v5198 = vld [vmem:[%s5170 + $0x6c] sm:$0xf]
      %v5199 = vld [vmem:[%s5170 + $0x70] sm:$0xf]
      %v5200 = vld [vmem:[%s5170 + $0x74] sm:$0xf]
      %v5201 = vld [vmem:[%s5170 + $0x78] sm:$0xf]
      %v5202 = vld [vmem:[%s5170 + $0x7c] sm:$0xf]
      %v5203 = vunpack.c.l.b16 %v5087
      %v5204 = vunpack.c.h.b16 %v5087
      %v5205 = vunpack.c.l.b16 %v5097
      %v5206 = vunpack.c.h.b16 %v5097
      %v5207 = vunpack.c.l.b16 %v5111
      %v5208 = vunpack.c.h.b16 %v5111
      %v5209 = vunpack.c.l.b16 %v5121
      %v5210 = vunpack.c.h.b16 %v5121
      %v5211 = vunpack.c.l.b16 %v5135
      %v5212 = vunpack.c.h.b16 %v5135
      %v5213 = vunpack.c.l.b16 %v5145
      %v5214 = vunpack.c.h.b16 %v5145
      %v5215 = vunpack.c.l.b16 %v5159
      %v5216 = vunpack.c.h.b16 %v5159
      %v5217 = vunpack.c.l.b16 %v5169
      %v5218 = vunpack.c.h.b16 %v5169
      %v5219 = vpack.c.b16 %v5205, %v5203
      %v5220 = vpack.c.b16 %v5206, %v5204
      %v5221 = vpack.c.b16 %v5209, %v5207
      %v5222 = vpack.c.b16 %v5210, %v5208
      %v5223 = vpack.c.b16 %v5213, %v5211
      %v5224 = vpack.c.b16 %v5214, %v5212
      %v5225 = vpack.c.b16 %v5217, %v5215
      %v5226 = vpack.c.b16 %v5218, %v5216
      %v5267 = vunpack.c.l.b16 %v5171
      %v5268 = vunpack.c.l.b16 %v5172
      %v5269 = vunpack.c.l.b16 %v5173
      %v5270 = vunpack.c.l.b16 %v5174
      %v5271 = vunpack.c.l.b16 %v5175
      %v5272 = vunpack.c.l.b16 %v5176
      %v5273 = vunpack.c.l.b16 %v5177
      %v5274 = vunpack.c.l.b16 %v5178
      %v5275 = vunpack.c.l.b16 %v5179
      %v5276 = vunpack.c.l.b16 %v5180
      %v5277 = vunpack.c.l.b16 %v5181
      %v5278 = vunpack.c.l.b16 %v5182
      %v5279 = vunpack.c.l.b16 %v5183
      %v5280 = vunpack.c.l.b16 %v5184
      %v5281 = vunpack.c.l.b16 %v5185
      %v5282 = vunpack.c.l.b16 %v5186
      %v5283 = vunpack.c.l.b16 %v5187
      %v5284 = vunpack.c.l.b16 %v5188
      %v5285 = vunpack.c.l.b16 %v5189
      %v5286 = vunpack.c.l.b16 %v5190
      %v5287 = vunpack.c.l.b16 %v5191
      %v5288 = vunpack.c.l.b16 %v5192
      %v5289 = vunpack.c.l.b16 %v5193
      %v5290 = vunpack.c.l.b16 %v5194
      %v5291 = vunpack.c.l.b16 %v5195
      %v5292 = vunpack.c.l.b16 %v5196
      %v5293 = vunpack.c.l.b16 %v5197
      %v5294 = vunpack.c.l.b16 %v5198
      %v5295 = vunpack.c.l.b16 %v5199
      %v5296 = vunpack.c.l.b16 %v5200
      %v5297 = vunpack.c.l.b16 %v5201
      %v5298 = vunpack.c.l.b16 %v5202
      %v5299 = vpack.c.b16 %v5268, %v5267
      %v5300 = vpack.c.b16 %v5270, %v5269
      %v5301 = vpack.c.b16 %v5272, %v5271
      %v5302 = vpack.c.b16 %v5274, %v5273
      %v5303 = vpack.c.b16 %v5276, %v5275
      %v5304 = vpack.c.b16 %v5278, %v5277
      %v5305 = vpack.c.b16 %v5280, %v5279
      %v5306 = vpack.c.b16 %v5282, %v5281
      %v5307 = vpack.c.b16 %v5284, %v5283
      %v5308 = vpack.c.b16 %v5286, %v5285
      %v5309 = vpack.c.b16 %v5288, %v5287
      %v5310 = vpack.c.b16 %v5290, %v5289
      %v5311 = vpack.c.b16 %v5292, %v5291
      %v5312 = vpack.c.b16 %v5294, %v5293
      %v5313 = vpack.c.b16 %v5296, %v5295
      %v5314 = vpack.c.b16 %v5298, %v5297
      %5331 = vmatprep.subr.bf16.mxu0 0
      %5332 = vmatpush1.bf16.msra.mxu0 %v5299
      %5333 = vmatprep.subr.bf16.mxu0 0
      %5334 = vmatpush1.bf16.msra.mxu0 %v5300
      %5335 = vmatprep.subr.bf16.mxu0 0
      %5336 = vmatpush1.bf16.msra.mxu0 %v5301
      %5337 = vmatprep.subr.bf16.mxu0 0
      %5338 = vmatpush1.bf16.msra.mxu0 %v5302
      %5339 = vmatprep.subr.bf16.mxu0 0
      %5340 = vmatpush1.bf16.msra.mxu0 %v5303
      %5341 = vmatprep.subr.bf16.mxu0 0
      %5342 = vmatpush1.bf16.msra.mxu0 %v5304
      %5343 = vmatprep.subr.bf16.mxu0 0
      %5344 = vmatpush1.bf16.msra.mxu0 %v5305
      %5345 = vmatprep.subr.bf16.mxu0 0
      %5346 = vmatpush1.bf16.msra.mxu0 %v5306
      %5347 = vmatprep.subr.bf16.mxu0 0
      %5348 = vmatpush1.bf16.msra.mxu0 %v5307
      %5349 = vmatprep.subr.bf16.mxu0 0
      %5350 = vmatpush1.bf16.msra.mxu0 %v5308
      %5351 = vmatprep.subr.bf16.mxu0 0
      %5352 = vmatpush1.bf16.msra.mxu0 %v5309
      %5353 = vmatprep.subr.bf16.mxu0 0
      %5354 = vmatpush1.bf16.msra.mxu0 %v5310
      %5355 = vmatprep.subr.bf16.mxu0 0
      %5356 = vmatpush1.bf16.msra.mxu0 %v5311
      %5357 = vmatprep.subr.bf16.mxu0 0
      %5358 = vmatpush1.bf16.msra.mxu0 %v5312
      %5359 = vmatprep.subr.bf16.mxu0 0
      %5360 = vmatpush1.bf16.msra.mxu0 %v5313
      %5361 = vmatprep.subr.bf16.mxu0 0
      %5362 = vmatpush1.bf16.msra.mxu0 %v5314
      %5363 = vmatprep.mubr.bf16.mxu0 %v5220
      %5364 = vmatmul.mubr.bf16.gmra.mrb[0].mxu0 %v5219
      %v5365 = vpop.f32.mrb[0].mxu0
      %v5366 = vadd.f32 0.0, %v5365
      %v5367 = vpop.f32.mrb[0].mxu0
      %v5368 = vpop.f32.mrb[0].mxu0
      %v5369 = vadd.f32 0.0, %v5368
      %v5370 = vpop.f32.mrb[0].mxu0
      %5371 = vmatprep.mubr.bf16.mxu0 %v5222
      %5372 = vmatmul.mubr.bf16.gmra.mrb[0].mxu0 %v5221
      %v5373 = vpop.f32.mrb[0].mxu0
      %v5374 = vadd.f32 0.0, %v5373
      %v5375 = vpop.f32.mrb[0].mxu0
      %v5376 = vpop.f32.mrb[0].mxu0
      %v5377 = vadd.f32 0.0, %v5376
      %v5378 = vpop.f32.mrb[0].mxu0
      %5379 = vmatprep.mubr.bf16.mxu0 %v5224
      %5380 = vmatmul.mubr.bf16.gmra.mrb[0].mxu0 %v5223
      %v5381 = vpop.f32.mrb[0].mxu0
      %v5382 = vadd.f32 0.0, %v5381
      %v5383 = vpop.f32.mrb[0].mxu0
      %v5384 = vpop.f32.mrb[0].mxu0
      %v5385 = vadd.f32 0.0, %v5384
      %v5386 = vpop.f32.mrb[0].mxu0
      %5387 = vmatprep.mubr.bf16.mxu0 %v5226
      %5388 = vmatmul.mubr.bf16.gmra.mrb[0].mxu0 %v5225
      %v5389 = vpop.f32.mrb[0].mxu0
      %v5390 = vadd.f32 0.0, %v5389
      %v5391 = vpop.f32.mrb[0].mxu0
      %v5392 = vpop.f32.mrb[0].mxu0
      %v5393 = vadd.f32 0.0, %v5392
      %v5394 = vpop.f32.mrb[0].mxu0
      %5395 = vdwg.mxu0
      %v5396 = vadd.f32 %v5054, %v5366
      %v5397 = vadd.f32 %v5055, %v5369
      %v5398 = vadd.f32 %v5056, %v5374
      %v5399 = vadd.f32 %v5057, %v5377
      %v5400 = vadd.f32 %v5058, %v5382
      %v5401 = vadd.f32 %v5059, %v5385
      %v5402 = vadd.f32 %v5060, %v5390
      %v5403 = vadd.f32 %v5061, %v5393
      %v5404 = vld [vmem:[%s3834] sm:$0xee]
      %v5405 = vld [vmem:[%s3834 + $0x18] sm:$0xee]
      %v5406 = vld [vmem:[%s3834 + $0x30] sm:$0xee]
      %v5407 = vld [vmem:[%s3834 + $0x48] sm:$0xee]
      %v5420 = vrot.slane %v5404, 5
      %v5421 = vrot.slane %v5420, 4
      %v5422 = vrot.slane %v5063, 5
      %v5423 = vsel %vm1357, %v5421, %v5422
      %v5424 = vrot.slane %v5422, 4
      %v5425 = vrot.slane %v5064, 5
      %v5426 = vsel %vm1357, %v5424, %v5425
      %v5427 = vrot.slane %v5405, 5
      %v5428 = vrot.slane %v5427, 4
      %v5429 = vrot.slane %v5066, 5
      %v5430 = vsel %vm1357, %v5428, %v5429
      %v5431 = vrot.slane %v5429, 4
      %v5432 = vrot.slane %v5067, 5
      %v5433 = vsel %vm1357, %v5431, %v5432
      %v5434 = vrot.slane %v5406, 5
      %v5435 = vrot.slane %v5434, 4
      %v5436 = vrot.slane %v5069, 5
      %v5437 = vsel %vm1357, %v5435, %v5436
      %v5438 = vrot.slane %v5436, 4
      %v5439 = vrot.slane %v5070, 5
      %v5440 = vsel %vm1357, %v5438, %v5439
      %v5441 = vrot.slane %v5407, 5
      %v5442 = vrot.slane %v5441, 4
      %v5443 = vrot.slane %v5072, 5
      %v5444 = vsel %vm1357, %v5442, %v5443
      %v5445 = vrot.slane %v5443, 4
      %v5446 = vrot.slane %v5073, 5
      %v5447 = vsel %vm1357, %v5445, %v5446
      %s5448 = scalar_lea.vmem %s5, 640
      %v5449 = vld [vmem:[%s5448] sm:$0xf]
      %v5450 = vld [vmem:[%s5448 + $0x4] sm:$0xf]
      %v5451 = vld [vmem:[%s5448 + $0x8] sm:$0xf]
      %v5452 = vld [vmem:[%s5448 + $0xc] sm:$0xf]
      %v5453 = vld [vmem:[%s5448 + $0x10] sm:$0xf]
      %v5454 = vld [vmem:[%s5448 + $0x14] sm:$0xf]
      %v5455 = vld [vmem:[%s5448 + $0x18] sm:$0xf]
      %v5456 = vld [vmem:[%s5448 + $0x1c] sm:$0xf]
      %v5457 = vld [vmem:[%s5448 + $0x20] sm:$0xf]
      %v5458 = vld [vmem:[%s5448 + $0x24] sm:$0xf]
      %v5459 = vld [vmem:[%s5448 + $0x28] sm:$0xf]
      %v5460 = vld [vmem:[%s5448 + $0x2c] sm:$0xf]
      %v5461 = vld [vmem:[%s5448 + $0x30] sm:$0xf]
      %v5462 = vld [vmem:[%s5448 + $0x34] sm:$0xf]
      %v5463 = vld [vmem:[%s5448 + $0x38] sm:$0xf]
      %v5464 = vld [vmem:[%s5448 + $0x3c] sm:$0xf]
      %v5465 = vld [vmem:[%s5448 + $0x40] sm:$0xf]
      %v5466 = vld [vmem:[%s5448 + $0x44] sm:$0xf]
      %v5467 = vld [vmem:[%s5448 + $0x48] sm:$0xf]
      %v5468 = vld [vmem:[%s5448 + $0x4c] sm:$0xf]
      %v5469 = vld [vmem:[%s5448 + $0x50] sm:$0xf]
      %v5470 = vld [vmem:[%s5448 + $0x54] sm:$0xf]
      %v5471 = vld [vmem:[%s5448 + $0x58] sm:$0xf]
      %v5472 = vld [vmem:[%s5448 + $0x5c] sm:$0xf]
      %v5473 = vld [vmem:[%s5448 + $0x60] sm:$0xf]
      %v5474 = vld [vmem:[%s5448 + $0x64] sm:$0xf]
      %v5475 = vld [vmem:[%s5448 + $0x68] sm:$0xf]
      %v5476 = vld [vmem:[%s5448 + $0x6c] sm:$0xf]
      %v5477 = vld [vmem:[%s5448 + $0x70] sm:$0xf]
      %v5478 = vld [vmem:[%s5448 + $0x74] sm:$0xf]
      %v5479 = vld [vmem:[%s5448 + $0x78] sm:$0xf]
      %v5480 = vld [vmem:[%s5448 + $0x7c] sm:$0xf]
      %v5481 = vunpack.c.l.b16 %v5423
      %v5482 = vunpack.c.h.b16 %v5423
      %v5483 = vunpack.c.l.b16 %v5426
      %v5484 = vunpack.c.h.b16 %v5426
      %v5485 = vunpack.c.l.b16 %v5430
      %v5486 = vunpack.c.h.b16 %v5430
      %v5487 = vunpack.c.l.b16 %v5433
      %v5488 = vunpack.c.h.b16 %v5433
      %v5489 = vunpack.c.l.b16 %v5437
      %v5490 = vunpack.c.h.b16 %v5437
      %v5491 = vunpack.c.l.b16 %v5440
      %v5492 = vunpack.c.h.b16 %v5440
      %v5493 = vunpack.c.l.b16 %v5444
      %v5494 = vunpack.c.h.b16 %v5444
      %v5495 = vunpack.c.l.b16 %v5447
      %v5496 = vunpack.c.h.b16 %v5447
      %v5497 = vpack.c.b16 %v5483, %v5481
      %v5498 = vpack.c.b16 %v5484, %v5482
      %v5499 = vpack.c.b16 %v5487, %v5485
      %v5500 = vpack.c.b16 %v5488, %v5486
      %v5501 = vpack.c.b16 %v5491, %v5489
      %v5502 = vpack.c.b16 %v5492, %v5490
      %v5503 = vpack.c.b16 %v5495, %v5493
      %v5504 = vpack.c.b16 %v5496, %v5494
      %v5545 = vunpack.c.l.b16 %v5449
      %v5546 = vunpack.c.l.b16 %v5450
      %v5547 = vunpack.c.l.b16 %v5451
      %v5548 = vunpack.c.l.b16 %v5452
      %v5549 = vunpack.c.l.b16 %v5453
      %v5550 = vunpack.c.l.b16 %v5454
      %v5551 = vunpack.c.l.b16 %v5455
      %v5552 = vunpack.c.l.b16 %v5456
      %v5553 = vunpack.c.l.b16 %v5457
      %v5554 = vunpack.c.l.b16 %v5458
      %v5555 = vunpack.c.l.b16 %v5459
      %v5556 = vunpack.c.l.b16 %v5460
      %v5557 = vunpack.c.l.b16 %v5461
      %v5558 = vunpack.c.l.b16 %v5462
      %v5559 = vunpack.c.l.b16 %v5463
      %v5560 = vunpack.c.l.b16 %v5464
      %v5561 = vunpack.c.l.b16 %v5465
      %v5562 = vunpack.c.l.b16 %v5466
      %v5563 = vunpack.c.l.b16 %v5467
      %v5564 = vunpack.c.l.b16 %v5468
      %v5565 = vunpack.c.l.b16 %v5469
      %v5566 = vunpack.c.l.b16 %v5470
      %v5567 = vunpack.c.l.b16 %v5471
      %v5568 = vunpack.c.l.b16 %v5472
      %v5569 = vunpack.c.l.b16 %v5473
      %v5570 = vunpack.c.l.b16 %v5474
      %v5571 = vunpack.c.l.b16 %v5475
      %v5572 = vunpack.c.l.b16 %v5476
      %v5573 = vunpack.c.l.b16 %v5477
      %v5574 = vunpack.c.l.b16 %v5478
      %v5575 = vunpack.c.l.b16 %v5479
      %v5576 = vunpack.c.l.b16 %v5480
      %v5577 = vpack.c.b16 %v5546, %v5545
      %v5578 = vpack.c.b16 %v5548, %v5547
      %v5579 = vpack.c.b16 %v5550, %v5549
      %v5580 = vpack.c.b16 %v5552, %v5551
      %v5581 = vpack.c.b16 %v5554, %v5553
      %v5582 = vpack.c.b16 %v5556, %v5555
      %v5583 = vpack.c.b16 %v5558, %v5557
      %v5584 = vpack.c.b16 %v5560, %v5559
      %v5585 = vpack.c.b16 %v5562, %v5561
      %v5586 = vpack.c.b16 %v5564, %v5563
      %v5587 = vpack.c.b16 %v5566, %v5565
      %v5588 = vpack.c.b16 %v5568, %v5567
      %v5589 = vpack.c.b16 %v5570, %v5569
      %v5590 = vpack.c.b16 %v5572, %v5571
      %v5591 = vpack.c.b16 %v5574, %v5573
      %v5592 = vpack.c.b16 %v5576, %v5575
      %5609 = vmatprep.subr.bf16.mxu0 0
      %5610 = vmatpush1.bf16.msra.mxu0 %v5577
      %5611 = vmatprep.subr.bf16.mxu0 0
      %5612 = vmatpush1.bf16.msra.mxu0 %v5578
      %5613 = vmatprep.subr.bf16.mxu0 0
      %5614 = vmatpush1.bf16.msra.mxu0 %v5579
      %5615 = vmatprep.subr.bf16.mxu0 0
      %5616 = vmatpush1.bf16.msra.mxu0 %v5580
      %5617 = vmatprep.subr.bf16.mxu0 0
      %5618 = vmatpush1.bf16.msra.mxu0 %v5581
      %5619 = vmatprep.subr.bf16.mxu0 0
      %5620 = vmatpush1.bf16.msra.mxu0 %v5582
      %5621 = vmatprep.subr.bf16.mxu0 0
      %5622 = vmatpush1.bf16.msra.mxu0 %v5583
      %5623 = vmatprep.subr.bf16.mxu0 0
      %5624 = vmatpush1.bf16.msra.mxu0 %v5584
      %5625 = vmatprep.subr.bf16.mxu0 0
      %5626 = vmatpush1.bf16.msra.mxu0 %v5585
      %5627 = vmatprep.subr.bf16.mxu0 0
      %5628 = vmatpush1.bf16.msra.mxu0 %v5586
      %5629 = vmatprep.subr.bf16.mxu0 0
      %5630 = vmatpush1.bf16.msra.mxu0 %v5587
      %5631 = vmatprep.subr.bf16.mxu0 0
      %5632 = vmatpush1.bf16.msra.mxu0 %v5588
      %5633 = vmatprep.subr.bf16.mxu0 0
      %5634 = vmatpush1.bf16.msra.mxu0 %v5589
      %5635 = vmatprep.subr.bf16.mxu0 0
      %5636 = vmatpush1.bf16.msra.mxu0 %v5590
      %5637 = vmatprep.subr.bf16.mxu0 0
      %5638 = vmatpush1.bf16.msra.mxu0 %v5591
      %5639 = vmatprep.subr.bf16.mxu0 0
      %5640 = vmatpush1.bf16.msra.mxu0 %v5592
      %5641 = vmatprep.mubr.bf16.mxu0 %v5498
      %5642 = vmatmul.mubr.bf16.gmra.mrb[0].mxu0 %v5497
      %v5643 = vpop.f32.mrb[0].mxu0
      %v5644 = vadd.f32 0.0, %v5643
      %v5645 = vpop.f32.mrb[0].mxu0
      %v5646 = vpop.f32.mrb[0].mxu0
      %v5647 = vadd.f32 0.0, %v5646
      %v5648 = vpop.f32.mrb[0].mxu0
      %5649 = vmatprep.mubr.bf16.mxu0 %v5500
      %5650 = vmatmul.mubr.bf16.gmra.mrb[0].mxu0 %v5499
      %v5651 = vpop.f32.mrb[0].mxu0
      %v5652 = vadd.f32 0.0, %v5651
      %v5653 = vpop.f32.mrb[0].mxu0
      %v5654 = vpop.f32.mrb[0].mxu0
      %v5655 = vadd.f32 0.0, %v5654
      %v5656 = vpop.f32.mrb[0].mxu0
      %5657 = vmatprep.mubr.bf16.mxu0 %v5502
      %5658 = vmatmul.mubr.bf16.gmra.mrb[0].mxu0 %v5501
      %v5659 = vpop.f32.mrb[0].mxu0
      %v5660 = vadd.f32 0.0, %v5659
      %v5661 = vpop.f32.mrb[0].mxu0
      %v5662 = vpop.f32.mrb[0].mxu0
      %v5663 = vadd.f32 0.0, %v5662
      %v5664 = vpop.f32.mrb[0].mxu0
      %5665 = vmatprep.mubr.bf16.mxu0 %v5504
      %5666 = vmatmul.mubr.bf16.gmra.mrb[0].mxu0 %v5503
      %v5667 = vpop.f32.mrb[0].mxu0
      %v5668 = vadd.f32 0.0, %v5667
      %v5669 = vpop.f32.mrb[0].mxu0
      %v5670 = vpop.f32.mrb[0].mxu0
      %v5671 = vadd.f32 0.0, %v5670
      %v5672 = vpop.f32.mrb[0].mxu0
      %5673 = vdwg.mxu0
      %v5674 = vadd.f32 %v5396, %v5644
      %v5675 = vadd.f32 %v5397, %v5647
      %v5676 = vadd.f32 %v5398, %v5652
      %v5677 = vadd.f32 %v5399, %v5655
      %v5678 = vadd.f32 %v5400, %v5660
      %v5679 = vadd.f32 %v5401, %v5663
      %v5680 = vadd.f32 %v5402, %v5668
      %v5681 = vadd.f32 %v5403, %v5671
      %s5682 = scalar_lea.vmem [#allocation3], 48
      %v5683 = vld [vmem:[%s5682] sm:$0xff]
      %v5684 = vld [vmem:[%s5682 + $0x8] sm:$0xff]
      %v5685 = vld [vmem:[%s5682 + $0x18] sm:$0xff]
      %v5686 = vld [vmem:[%s5682 + $0x20] sm:$0xff]
      %v5687 = vld [vmem:[%s5682 + $0x30] sm:$0xff]
      %v5688 = vld [vmem:[%s5682 + $0x38] sm:$0xff]
      %v5689 = vld [vmem:[%s5682 + $0x48] sm:$0xff]
      %v5690 = vld [vmem:[%s5682 + $0x50] sm:$0xff]
      %s5691 = scalar_lea.vmem %s5, 768
      %v5692 = vld [vmem:[%s5691] sm:$0xf]
      %v5693 = vld [vmem:[%s5691 + $0x4] sm:$0xf]
      %v5694 = vld [vmem:[%s5691 + $0x8] sm:$0xf]
      %v5695 = vld [vmem:[%s5691 + $0xc] sm:$0xf]
      %v5696 = vld [vmem:[%s5691 + $0x10] sm:$0xf]
      %v5697 = vld [vmem:[%s5691 + $0x14] sm:$0xf]
      %v5698 = vld [vmem:[%s5691 + $0x18] sm:$0xf]
      %v5699 = vld [vmem:[%s5691 + $0x1c] sm:$0xf]
      %v5700 = vld [vmem:[%s5691 + $0x20] sm:$0xf]
      %v5701 = vld [vmem:[%s5691 + $0x24] sm:$0xf]
      %v5702 = vld [vmem:[%s5691 + $0x28] sm:$0xf]
      %v5703 = vld [vmem:[%s5691 + $0x2c] sm:$0xf]
      %v5704 = vld [vmem:[%s5691 + $0x30] sm:$0xf]
      %v5705 = vld [vmem:[%s5691 + $0x34] sm:$0xf]
      %v5706 = vld [vmem:[%s5691 + $0x38] sm:$0xf]
      %v5707 = vld [vmem:[%s5691 + $0x3c] sm:$0xf]
      %v5708 = vld [vmem:[%s5691 + $0x40] sm:$0xf]
      %v5709 = vld [vmem:[%s5691 + $0x44] sm:$0xf]
      %v5710 = vld [vmem:[%s5691 + $0x48] sm:$0xf]
      %v5711 = vld [vmem:[%s5691 + $0x4c] sm:$0xf]
      %v5712 = vld [vmem:[%s5691 + $0x50] sm:$0xf]
      %v5713 = vld [vmem:[%s5691 + $0x54] sm:$0xf]
      %v5714 = vld [vmem:[%s5691 + $0x58] sm:$0xf]
      %v5715 = vld [vmem:[%s5691 + $0x5c] sm:$0xf]
      %v5716 = vld [vmem:[%s5691 + $0x60] sm:$0xf]
      %v5717 = vld [vmem:[%s5691 + $0x64] sm:$0xf]
      %v5718 = vld [vmem:[%s5691 + $0x68] sm:$0xf]
      %v5719 = vld [vmem:[%s5691 + $0x6c] sm:$0xf]
      %v5720 = vld [vmem:[%s5691 + $0x70] sm:$0xf]
      %v5721 = vld [vmem:[%s5691 + $0x74] sm:$0xf]
      %v5722 = vld [vmem:[%s5691 + $0x78] sm:$0xf]
      %v5723 = vld [vmem:[%s5691 + $0x7c] sm:$0xf]
      %v5732 = vunpack.c.l.b16 %v5683
      %v5733 = vunpack.c.h.b16 %v5683
      %v5734 = vunpack.c.l.b16 %v5684
      %v5735 = vunpack.c.h.b16 %v5684
      %v5736 = vunpack.c.l.b16 %v5685
      %v5737 = vunpack.c.h.b16 %v5685
      %v5738 = vunpack.c.l.b16 %v5686
      %v5739 = vunpack.c.h.b16 %v5686
      %v5740 = vunpack.c.l.b16 %v5687
      %v5741 = vunpack.c.h.b16 %v5687
      %v5742 = vunpack.c.l.b16 %v5688
      %v5743 = vunpack.c.h.b16 %v5688
      %v5744 = vunpack.c.l.b16 %v5689
      %v5745 = vunpack.c.h.b16 %v5689
      %v5746 = vunpack.c.l.b16 %v5690
      %v5747 = vunpack.c.h.b16 %v5690
      %v5748 = vpack.c.b16 %v5734, %v5732
      %v5749 = vpack.c.b16 %v5735, %v5733
      %v5750 = vpack.c.b16 %v5738, %v5736
      %v5751 = vpack.c.b16 %v5739, %v5737
      %v5752 = vpack.c.b16 %v5742, %v5740
      %v5753 = vpack.c.b16 %v5743, %v5741
      %v5754 = vpack.c.b16 %v5746, %v5744
      %v5755 = vpack.c.b16 %v5747, %v5745
      %v5796 = vunpack.c.l.b16 %v5692
      %v5797 = vunpack.c.l.b16 %v5693
      %v5798 = vunpack.c.l.b16 %v5694
      %v5799 = vunpack.c.l.b16 %v5695
      %v5800 = vunpack.c.l.b16 %v5696
      %v5801 = vunpack.c.l.b16 %v5697
      %v5802 = vunpack.c.l.b16 %v5698
      %v5803 = vunpack.c.l.b16 %v5699
      %v5804 = vunpack.c.l.b16 %v5700
      %v5805 = vunpack.c.l.b16 %v5701
      %v5806 = vunpack.c.l.b16 %v5702
      %v5807 = vunpack.c.l.b16 %v5703
      %v5808 = vunpack.c.l.b16 %v5704
      %v5809 = vunpack.c.l.b16 %v5705
      %v5810 = vunpack.c.l.b16 %v5706
      %v5811 = vunpack.c.l.b16 %v5707
      %v5812 = vunpack.c.l.b16 %v5708
      %v5813 = vunpack.c.l.b16 %v5709
      %v5814 = vunpack.c.l.b16 %v5710
      %v5815 = vunpack.c.l.b16 %v5711
      %v5816 = vunpack.c.l.b16 %v5712
      %v5817 = vunpack.c.l.b16 %v5713
      %v5818 = vunpack.c.l.b16 %v5714
      %v5819 = vunpack.c.l.b16 %v5715
      %v5820 = vunpack.c.l.b16 %v5716
      %v5821 = vunpack.c.l.b16 %v5717
      %v5822 = vunpack.c.l.b16 %v5718
      %v5823 = vunpack.c.l.b16 %v5719
      %v5824 = vunpack.c.l.b16 %v5720
      %v5825 = vunpack.c.l.b16 %v5721
      %v5826 = vunpack.c.l.b16 %v5722
      %v5827 = vunpack.c.l.b16 %v5723
      %v5828 = vpack.c.b16 %v5797, %v5796
      %v5829 = vpack.c.b16 %v5799, %v5798
      %v5830 = vpack.c.b16 %v5801, %v5800
      %v5831 = vpack.c.b16 %v5803, %v5802
      %v5832 = vpack.c.b16 %v5805, %v5804
      %v5833 = vpack.c.b16 %v5807, %v5806
      %v5834 = vpack.c.b16 %v5809, %v5808
      %v5835 = vpack.c.b16 %v5811, %v5810
      %v5836 = vpack.c.b16 %v5813, %v5812
      %v5837 = vpack.c.b16 %v5815, %v5814
      %v5838 = vpack.c.b16 %v5817, %v5816
      %v5839 = vpack.c.b16 %v5819, %v5818
      %v5840 = vpack.c.b16 %v5821, %v5820
      %v5841 = vpack.c.b16 %v5823, %v5822
      %v5842 = vpack.c.b16 %v5825, %v5824
      %v5843 = vpack.c.b16 %v5827, %v5826
      %5860 = vmatprep.subr.bf16.mxu0 0
      %5861 = vmatpush1.bf16.msra.mxu0 %v5828
      %5862 = vmatprep.subr.bf16.mxu0 0
      %5863 = vmatpush1.bf16.msra.mxu0 %v5829
      %5864 = vmatprep.subr.bf16.mxu0 0
      %5865 = vmatpush1.bf16.msra.mxu0 %v5830
      %5866 = vmatprep.subr.bf16.mxu0 0
      %5867 = vmatpush1.bf16.msra.mxu0 %v5831
      %5868 = vmatprep.subr.bf16.mxu0 0
      %5869 = vmatpush1.bf16.msra.mxu0 %v5832
      %5870 = vmatprep.subr.bf16.mxu0 0
      %5871 = vmatpush1.bf16.msra.mxu0 %v5833
      %5872 = vmatprep.subr.bf16.mxu0 0
      %5873 = vmatpush1.bf16.msra.mxu0 %v5834
      %5874 = vmatprep.subr.bf16.mxu0 0
      %5875 = vmatpush1.bf16.msra.mxu0 %v5835
      %5876 = vmatprep.subr.bf16.mxu0 0
      %5877 = vmatpush1.bf16.msra.mxu0 %v5836
      %5878 = vmatprep.subr.bf16.mxu0 0
      %5879 = vmatpush1.bf16.msra.mxu0 %v5837
      %5880 = vmatprep.subr.bf16.mxu0 0
      %5881 = vmatpush1.bf16.msra.mxu0 %v5838
      %5882 = vmatprep.subr.bf16.mxu0 0
      %5883 = vmatpush1.bf16.msra.mxu0 %v5839
      %5884 = vmatprep.subr.bf16.mxu0 0
      %5885 = vmatpush1.bf16.msra.mxu0 %v5840
      %5886 = vmatprep.subr.bf16.mxu0 0
      %5887 = vmatpush1.bf16.msra.mxu0 %v5841
      %5888 = vmatprep.subr.bf16.mxu0 0
      %5889 = vmatpush1.bf16.msra.mxu0 %v5842
      %5890 = vmatprep.subr.bf16.mxu0 0
      %5891 = vmatpush1.bf16.msra.mxu0 %v5843
      %5892 = vmatprep.mubr.bf16.mxu0 %v5749
      %5893 = vmatmul.mubr.bf16.gmra.mrb[0].mxu0 %v5748
      %v5894 = vpop.f32.mrb[0].mxu0
      %v5895 = vadd.f32 0.0, %v5894
      %v5896 = vpop.f32.mrb[0].mxu0
      %v5897 = vpop.f32.mrb[0].mxu0
      %v5898 = vadd.f32 0.0, %v5897
      %v5899 = vpop.f32.mrb[0].mxu0
      %5900 = vmatprep.mubr.bf16.mxu0 %v5751
      %5901 = vmatmul.mubr.bf16.gmra.mrb[0].mxu0 %v5750
      %v5902 = vpop.f32.mrb[0].mxu0
      %v5903 = vadd.f32 0.0, %v5902
      %v5904 = vpop.f32.mrb[0].mxu0
      %v5905 = vpop.f32.mrb[0].mxu0
      %v5906 = vadd.f32 0.0, %v5905
      %v5907 = vpop.f32.mrb[0].mxu0
      %5908 = vmatprep.mubr.bf16.mxu0 %v5753
      %5909 = vmatmul.mubr.bf16.gmra.mrb[0].mxu0 %v5752
      %v5910 = vpop.f32.mrb[0].mxu0
      %v5911 = vadd.f32 0.0, %v5910
      %v5912 = vpop.f32.mrb[0].mxu0
      %v5913 = vpop.f32.mrb[0].mxu0
      %v5914 = vadd.f32 0.0, %v5913
      %v5915 = vpop.f32.mrb[0].mxu0
      %5916 = vmatprep.mubr.bf16.mxu0 %v5755
      %5917 = vmatmul.mubr.bf16.gmra.mrb[0].mxu0 %v5754
      %v5918 = vpop.f32.mrb[0].mxu0
      %v5919 = vadd.f32 0.0, %v5918
      %v5920 = vpop.f32.mrb[0].mxu0
      %v5921 = vpop.f32.mrb[0].mxu0
      %v5922 = vadd.f32 0.0, %v5921
      %v5923 = vpop.f32.mrb[0].mxu0
      %5924 = vdwg.mxu0
      %v5925 = vadd.f32 %v5674, %v5895
      %v5926 = vadd.f32 %v5675, %v5898
      %v5927 = vadd.f32 %v5676, %v5903
      %v5928 = vadd.f32 %v5677, %v5906
      %v5929 = vadd.f32 %v5678, %v5911
      %v5930 = vadd.f32 %v5679, %v5914
      %v5931 = vadd.f32 %v5680, %v5919
      %v5932 = vadd.f32 %v5681, %v5922
      %v5933 = vld [vmem:[%s5682] sm:$0xff]
      %v5934 = vld [vmem:[%s5682 + $0x8] sm:$0xff]
      %v5935 = vld [vmem:[%s5682 + $0x10] sm:$0x11]
      %v5936 = vld [vmem:[%s5682 + $0x18] sm:$0xff]
      %v5937 = vld [vmem:[%s5682 + $0x20] sm:$0xff]
      %v5938 = vld [vmem:[%s5682 + $0x28] sm:$0x11]
      %v5939 = vld [vmem:[%s5682 + $0x30] sm:$0xff]
      %v5940 = vld [vmem:[%s5682 + $0x38] sm:$0xff]
      %v5941 = vld [vmem:[%s5682 + $0x40] sm:$0x11]
      %v5942 = vld [vmem:[%s5682 + $0x48] sm:$0xff]
      %v5943 = vld [vmem:[%s5682 + $0x50] sm:$0xff]
      %v5944 = vld [vmem:[%s5682 + $0x58] sm:$0x11]
      %v5946 = vshrl.u32 %v5933, 16
      %v5948 = vrot.slane %v5946, 4
      %v5949 = vshll.u32 %v5933, 16
      %v5951 = vrot.slane %v5949, 5
      %v5952 = vor.u32 %v5948, %v5951
      %v5953 = vrot.slane %v5952, 4
      %v5955 = vshll.u32 %v5934, 16
      %v5957 = vrot.slane %v5955, 5
      %v5958 = vsel %vm927, %v5953, %v5957
      %v5959 = vshrl.u32 %v5934, 16
      %v5961 = vrot.slane %v5959, 4
      %v5962 = vor.u32 %v5961, %v5957
      %v5963 = vrot.slane %v5962, 4
      %v5965 = vshll.u32 %v5935, 16
      %v5967 = vrot.slane %v5965, 5
      %v5968 = vsel %vm927, %v5963, %v5967
      %v5970 = vshrl.u32 %v5936, 16
      %v5972 = vrot.slane %v5970, 4
      %v5973 = vshll.u32 %v5936, 16
      %v5975 = vrot.slane %v5973, 5
      %v5976 = vor.u32 %v5972, %v5975
      %v5977 = vrot.slane %v5976, 4
      %v5979 = vshll.u32 %v5937, 16
      %v5981 = vrot.slane %v5979, 5
      %v5982 = vsel %vm927, %v5977, %v5981
      %v5983 = vshrl.u32 %v5937, 16
      %v5985 = vrot.slane %v5983, 4
      %v5986 = vor.u32 %v5985, %v5981
      %v5987 = vrot.slane %v5986, 4
      %v5989 = vshll.u32 %v5938, 16
      %v5991 = vrot.slane %v5989, 5
      %v5992 = vsel %vm927, %v5987, %v5991
      %v5994 = vshrl.u32 %v5939, 16
      %v5996 = vrot.slane %v5994, 4
      %v5997 = vshll.u32 %v5939, 16
      %v5999 = vrot.slane %v5997, 5
      %v6000 = vor.u32 %v5996, %v5999
      %v6001 = vrot.slane %v6000, 4
      %v6003 = vshll.u32 %v5940, 16
      %v6005 = vrot.slane %v6003, 5
      %v6006 = vsel %vm927, %v6001, %v6005
      %v6007 = vshrl.u32 %v5940, 16
      %v6009 = vrot.slane %v6007, 4
      %v6010 = vor.u32 %v6009, %v6005
      %v6011 = vrot.slane %v6010, 4
      %v6013 = vshll.u32 %v5941, 16
      %v6015 = vrot.slane %v6013, 5
      %v6016 = vsel %vm927, %v6011, %v6015
      %v6018 = vshrl.u32 %v5942, 16
      %v6020 = vrot.slane %v6018, 4
      %v6021 = vshll.u32 %v5942, 16
      %v6023 = vrot.slane %v6021, 5
      %v6024 = vor.u32 %v6020, %v6023
      %v6025 = vrot.slane %v6024, 4
      %v6027 = vshll.u32 %v5943, 16
      %v6029 = vrot.slane %v6027, 5
      %v6030 = vsel %vm927, %v6025, %v6029
      %v6031 = vshrl.u32 %v5943, 16
      %v6033 = vrot.slane %v6031, 4
      %v6034 = vor.u32 %v6033, %v6029
      %v6035 = vrot.slane %v6034, 4
      %v6037 = vshll.u32 %v5944, 16
      %v6039 = vrot.slane %v6037, 5
      %v6040 = vsel %vm927, %v6035, %v6039
      %s6041 = scalar_lea.vmem %s5, 896
      %v6042 = vld [vmem:[%s6041] sm:$0xf]
      %v6043 = vld [vmem:[%s6041 + $0x4] sm:$0xf]
      %v6044 = vld [vmem:[%s6041 + $0x8] sm:$0xf]
      %v6045 = vld [vmem:[%s6041 + $0xc] sm:$0xf]
      %v6046 = vld [vmem:[%s6041 + $0x10] sm:$0xf]
      %v6047 = vld [vmem:[%s6041 + $0x14] sm:$0xf]
      %v6048 = vld [vmem:[%s6041 + $0x18] sm:$0xf]
      %v6049 = vld [vmem:[%s6041 + $0x1c] sm:$0xf]
      %v6050 = vld [vmem:[%s6041 + $0x20] sm:$0xf]
      %v6051 = vld [vmem:[%s6041 + $0x24] sm:$0xf]
      %v6052 = vld [vmem:[%s6041 + $0x28] sm:$0xf]
      %v6053 = vld [vmem:[%s6041 + $0x2c] sm:$0xf]
      %v6054 = vld [vmem:[%s6041 + $0x30] sm:$0xf]
      %v6055 = vld [vmem:[%s6041 + $0x34] sm:$0xf]
      %v6056 = vld [vmem:[%s6041 + $0x38] sm:$0xf]
      %v6057 = vld [vmem:[%s6041 + $0x3c] sm:$0xf]
      %v6058 = vld [vmem:[%s6041 + $0x40] sm:$0xf]
      %v6059 = vld [vmem:[%s6041 + $0x44] sm:$0xf]
      %v6060 = vld [vmem:[%s6041 + $0x48] sm:$0xf]
      %v6061 = vld [vmem:[%s6041 + $0x4c] sm:$0xf]
      %v6062 = vld [vmem:[%s6041 + $0x50] sm:$0xf]
      %v6063 = vld [vmem:[%s6041 + $0x54] sm:$0xf]
      %v6064 = vld [vmem:[%s6041 + $0x58] sm:$0xf]
      %v6065 = vld [vmem:[%s6041 + $0x5c] sm:$0xf]
      %v6066 = vld [vmem:[%s6041 + $0x60] sm:$0xf]
      %v6067 = vld [vmem:[%s6041 + $0x64] sm:$0xf]
      %v6068 = vld [vmem:[%s6041 + $0x68] sm:$0xf]
      %v6069 = vld [vmem:[%s6041 + $0x6c] sm:$0xf]
      %v6070 = vld [vmem:[%s6041 + $0x70] sm:$0xf]
      %v6071 = vld [vmem:[%s6041 + $0x74] sm:$0xf]
      %v6072 = vld [vmem:[%s6041 + $0x78] sm:$0xf]
      %v6073 = vld [vmem:[%s6041 + $0x7c] sm:$0xf]
      %v6074 = vunpack.c.l.b16 %v5958
      %v6075 = vunpack.c.h.b16 %v5958
      %v6076 = vunpack.c.l.b16 %v5968
      %v6077 = vunpack.c.h.b16 %v5968
      %v6078 = vunpack.c.l.b16 %v5982
      %v6079 = vunpack.c.h.b16 %v5982
      %v6080 = vunpack.c.l.b16 %v5992
      %v6081 = vunpack.c.h.b16 %v5992
      %v6082 = vunpack.c.l.b16 %v6006
      %v6083 = vunpack.c.h.b16 %v6006
      %v6084 = vunpack.c.l.b16 %v6016
      %v6085 = vunpack.c.h.b16 %v6016
      %v6086 = vunpack.c.l.b16 %v6030
      %v6087 = vunpack.c.h.b16 %v6030
      %v6088 = vunpack.c.l.b16 %v6040
      %v6089 = vunpack.c.h.b16 %v6040
      %v6090 = vpack.c.b16 %v6076, %v6074
      %v6091 = vpack.c.b16 %v6077, %v6075
      %v6092 = vpack.c.b16 %v6080, %v6078
      %v6093 = vpack.c.b16 %v6081, %v6079
      %v6094 = vpack.c.b16 %v6084, %v6082
      %v6095 = vpack.c.b16 %v6085, %v6083
      %v6096 = vpack.c.b16 %v6088, %v6086
      %v6097 = vpack.c.b16 %v6089, %v6087
      %v6138 = vunpack.c.l.b16 %v6042
      %v6139 = vunpack.c.l.b16 %v6043
      %v6140 = vunpack.c.l.b16 %v6044
      %v6141 = vunpack.c.l.b16 %v6045
      %v6142 = vunpack.c.l.b16 %v6046
      %v6143 = vunpack.c.l.b16 %v6047
      %v6144 = vunpack.c.l.b16 %v6048
      %v6145 = vunpack.c.l.b16 %v6049
      %v6146 = vunpack.c.l.b16 %v6050
      %v6147 = vunpack.c.l.b16 %v6051
      %v6148 = vunpack.c.l.b16 %v6052
      %v6149 = vunpack.c.l.b16 %v6053
      %v6150 = vunpack.c.l.b16 %v6054
      %v6151 = vunpack.c.l.b16 %v6055
      %v6152 = vunpack.c.l.b16 %v6056
      %v6153 = vunpack.c.l.b16 %v6057
      %v6154 = vunpack.c.l.b16 %v6058
      %v6155 = vunpack.c.l.b16 %v6059
      %v6156 = vunpack.c.l.b16 %v6060
      %v6157 = vunpack.c.l.b16 %v6061
      %v6158 = vunpack.c.l.b16 %v6062
      %v6159 = vunpack.c.l.b16 %v6063
      %v6160 = vunpack.c.l.b16 %v6064
      %v6161 = vunpack.c.l.b16 %v6065
      %v6162 = vunpack.c.l.b16 %v6066
      %v6163 = vunpack.c.l.b16 %v6067
      %v6164 = vunpack.c.l.b16 %v6068
      %v6165 = vunpack.c.l.b16 %v6069
      %v6166 = vunpack.c.l.b16 %v6070
      %v6167 = vunpack.c.l.b16 %v6071
      %v6168 = vunpack.c.l.b16 %v6072
      %v6169 = vunpack.c.l.b16 %v6073
      %v6170 = vpack.c.b16 %v6139, %v6138
      %v6171 = vpack.c.b16 %v6141, %v6140
      %v6172 = vpack.c.b16 %v6143, %v6142
      %v6173 = vpack.c.b16 %v6145, %v6144
      %v6174 = vpack.c.b16 %v6147, %v6146
      %v6175 = vpack.c.b16 %v6149, %v6148
      %v6176 = vpack.c.b16 %v6151, %v6150
      %v6177 = vpack.c.b16 %v6153, %v6152
      %v6178 = vpack.c.b16 %v6155, %v6154
      %v6179 = vpack.c.b16 %v6157, %v6156
      %v6180 = vpack.c.b16 %v6159, %v6158
      %v6181 = vpack.c.b16 %v6161, %v6160
      %v6182 = vpack.c.b16 %v6163, %v6162
      %v6183 = vpack.c.b16 %v6165, %v6164
      %v6184 = vpack.c.b16 %v6167, %v6166
      %v6185 = vpack.c.b16 %v6169, %v6168
      %6202 = vmatprep.subr.bf16.mxu0 0
      %6203 = vmatpush1.bf16.msra.mxu0 %v6170
      %6204 = vmatprep.subr.bf16.mxu0 0
      %6205 = vmatpush1.bf16.msra.mxu0 %v6171
      %6206 = vmatprep.subr.bf16.mxu0 0
      %6207 = vmatpush1.bf16.msra.mxu0 %v6172
      %6208 = vmatprep.subr.bf16.mxu0 0
      %6209 = vmatpush1.bf16.msra.mxu0 %v6173
      %6210 = vmatprep.subr.bf16.mxu0 0
      %6211 = vmatpush1.bf16.msra.mxu0 %v6174
      %6212 = vmatprep.subr.bf16.mxu0 0
      %6213 = vmatpush1.bf16.msra.mxu0 %v6175
      %6214 = vmatprep.subr.bf16.mxu0 0
      %6215 = vmatpush1.bf16.msra.mxu0 %v6176
      %6216 = vmatprep.subr.bf16.mxu0 0
      %6217 = vmatpush1.bf16.msra.mxu0 %v6177
      %6218 = vmatprep.subr.bf16.mxu0 0
      %6219 = vmatpush1.bf16.msra.mxu0 %v6178
      %6220 = vmatprep.subr.bf16.mxu0 0
      %6221 = vmatpush1.bf16.msra.mxu0 %v6179
      %6222 = vmatprep.subr.bf16.mxu0 0
      %6223 = vmatpush1.bf16.msra.mxu0 %v6180
      %6224 = vmatprep.subr.bf16.mxu0 0
      %6225 = vmatpush1.bf16.msra.mxu0 %v6181
      %6226 = vmatprep.subr.bf16.mxu0 0
      %6227 = vmatpush1.bf16.msra.mxu0 %v6182
      %6228 = vmatprep.subr.bf16.mxu0 0
      %6229 = vmatpush1.bf16.msra.mxu0 %v6183
      %6230 = vmatprep.subr.bf16.mxu0 0
      %6231 = vmatpush1.bf16.msra.mxu0 %v6184
      %6232 = vmatprep.subr.bf16.mxu0 0
      %6233 = vmatpush1.bf16.msra.mxu0 %v6185
      %6234 = vmatprep.mubr.bf16.mxu0 %v6091
      %6235 = vmatmul.mubr.bf16.gmra.mrb[0].mxu0 %v6090
      %v6236 = vpop.f32.mrb[0].mxu0
      %v6237 = vadd.f32 0.0, %v6236
      %v6238 = vpop.f32.mrb[0].mxu0
      %v6239 = vpop.f32.mrb[0].mxu0
      %v6240 = vadd.f32 0.0, %v6239
      %v6241 = vpop.f32.mrb[0].mxu0
      %6242 = vmatprep.mubr.bf16.mxu0 %v6093
      %6243 = vmatmul.mubr.bf16.gmra.mrb[0].mxu0 %v6092
      %v6244 = vpop.f32.mrb[0].mxu0
      %v6245 = vadd.f32 0.0, %v6244
      %v6246 = vpop.f32.mrb[0].mxu0
      %v6247 = vpop.f32.mrb[0].mxu0
      %v6248 = vadd.f32 0.0, %v6247
      %v6249 = vpop.f32.mrb[0].mxu0
      %6250 = vmatprep.mubr.bf16.mxu0 %v6095
      %6251 = vmatmul.mubr.bf16.gmra.mrb[0].mxu0 %v6094
      %v6252 = vpop.f32.mrb[0].mxu0
      %v6253 = vadd.f32 0.0, %v6252
      %v6254 = vpop.f32.mrb[0].mxu0
      %v6255 = vpop.f32.mrb[0].mxu0
      %v6256 = vadd.f32 0.0, %v6255
      %v6257 = vpop.f32.mrb[0].mxu0
      %6258 = vmatprep.mubr.bf16.mxu0 %v6097
      %6259 = vmatmul.mubr.bf16.gmra.mrb[0].mxu0 %v6096
      %v6260 = vpop.f32.mrb[0].mxu0
      %v6261 = vadd.f32 0.0, %v6260
      %v6262 = vpop.f32.mrb[0].mxu0
      %v6263 = vpop.f32.mrb[0].mxu0
      %v6264 = vadd.f32 0.0, %v6263
      %v6265 = vpop.f32.mrb[0].mxu0
      %6266 = vdwg.mxu0
      %v6267 = vadd.f32 %v5925, %v6237
      %v6268 = vadd.f32 %v5926, %v6240
      %v6269 = vadd.f32 %v5927, %v6245
      %v6270 = vadd.f32 %v5928, %v6248
      %v6271 = vadd.f32 %v5929, %v6253
      %v6272 = vadd.f32 %v5930, %v6256
      %v6273 = vadd.f32 %v5931, %v6261
      %v6274 = vadd.f32 %v5932, %v6264
      %v6275 = vld [vmem:[%s5682] sm:$0xee]
      %v6276 = vld [vmem:[%s5682 + $0x18] sm:$0xee]
      %v6277 = vld [vmem:[%s5682 + $0x30] sm:$0xee]
      %v6278 = vld [vmem:[%s5682 + $0x48] sm:$0xee]
      %v6291 = vrot.slane %v6275, 5
      %v6292 = vrot.slane %v6291, 4
      %v6293 = vrot.slane %v5934, 5
      %v6294 = vsel %vm1357, %v6292, %v6293
      %v6295 = vrot.slane %v6293, 4
      %v6296 = vrot.slane %v5935, 5
      %v6297 = vsel %vm1357, %v6295, %v6296
      %v6298 = vrot.slane %v6276, 5
      %v6299 = vrot.slane %v6298, 4
      %v6300 = vrot.slane %v5937, 5
      %v6301 = vsel %vm1357, %v6299, %v6300
      %v6302 = vrot.slane %v6300, 4
      %v6303 = vrot.slane %v5938, 5
      %v6304 = vsel %vm1357, %v6302, %v6303
      %v6305 = vrot.slane %v6277, 5
      %v6306 = vrot.slane %v6305, 4
      %v6307 = vrot.slane %v5940, 5
      %v6308 = vsel %vm1357, %v6306, %v6307
      %v6309 = vrot.slane %v6307, 4
      %v6310 = vrot.slane %v5941, 5
      %v6311 = vsel %vm1357, %v6309, %v6310
      %v6312 = vrot.slane %v6278, 5
      %v6313 = vrot.slane %v6312, 4
      %v6314 = vrot.slane %v5943, 5
      %v6315 = vsel %vm1357, %v6313, %v6314
      %v6316 = vrot.slane %v6314, 4
      %v6317 = vrot.slane %v5944, 5
      %v6318 = vsel %vm1357, %v6316, %v6317
      %s6319 = scalar_lea.vmem %s5, 1024
      %v6320 = vld [vmem:[%s6319] sm:$0xf]
      %v6321 = vld [vmem:[%s6319 + $0x4] sm:$0xf]
      %v6322 = vld [vmem:[%s6319 + $0x8] sm:$0xf]
      %v6323 = vld [vmem:[%s6319 + $0xc] sm:$0xf]
      %v6324 = vld [vmem:[%s6319 + $0x10] sm:$0xf]
      %v6325 = vld [vmem:[%s6319 + $0x14] sm:$0xf]
      %v6326 = vld [vmem:[%s6319 + $0x18] sm:$0xf]
      %v6327 = vld [vmem:[%s6319 + $0x1c] sm:$0xf]
      %v6328 = vld [vmem:[%s6319 + $0x20] sm:$0xf]
      %v6329 = vld [vmem:[%s6319 + $0x24] sm:$0xf]
      %v6330 = vld [vmem:[%s6319 + $0x28] sm:$0xf]
      %v6331 = vld [vmem:[%s6319 + $0x2c] sm:$0xf]
      %v6332 = vld [vmem:[%s6319 + $0x30] sm:$0xf]
      %v6333 = vld [vmem:[%s6319 + $0x34] sm:$0xf]
      %v6334 = vld [vmem:[%s6319 + $0x38] sm:$0xf]
      %v6335 = vld [vmem:[%s6319 + $0x3c] sm:$0xf]
      %v6336 = vld [vmem:[%s6319 + $0x40] sm:$0xf]
      %v6337 = vld [vmem:[%s6319 + $0x44] sm:$0xf]
      %v6338 = vld [vmem:[%s6319 + $0x48] sm:$0xf]
      %v6339 = vld [vmem:[%s6319 + $0x4c] sm:$0xf]
      %v6340 = vld [vmem:[%s6319 + $0x50] sm:$0xf]
      %v6341 = vld [vmem:[%s6319 + $0x54] sm:$0xf]
      %v6342 = vld [vmem:[%s6319 + $0x58] sm:$0xf]
      %v6343 = vld [vmem:[%s6319 + $0x5c] sm:$0xf]
      %v6344 = vld [vmem:[%s6319 + $0x60] sm:$0xf]
      %v6345 = vld [vmem:[%s6319 + $0x64] sm:$0xf]
      %v6346 = vld [vmem:[%s6319 + $0x68] sm:$0xf]
      %v6347 = vld [vmem:[%s6319 + $0x6c] sm:$0xf]
      %v6348 = vld [vmem:[%s6319 + $0x70] sm:$0xf]
      %v6349 = vld [vmem:[%s6319 + $0x74] sm:$0xf]
      %v6350 = vld [vmem:[%s6319 + $0x78] sm:$0xf]
      %v6351 = vld [vmem:[%s6319 + $0x7c] sm:$0xf]
      %v6352 = vunpack.c.l.b16 %v6294
      %v6353 = vunpack.c.h.b16 %v6294
      %v6354 = vunpack.c.l.b16 %v6297
      %v6355 = vunpack.c.h.b16 %v6297
      %v6356 = vunpack.c.l.b16 %v6301
      %v6357 = vunpack.c.h.b16 %v6301
      %v6358 = vunpack.c.l.b16 %v6304
      %v6359 = vunpack.c.h.b16 %v6304
      %v6360 = vunpack.c.l.b16 %v6308
      %v6361 = vunpack.c.h.b16 %v6308
      %v6362 = vunpack.c.l.b16 %v6311
      %v6363 = vunpack.c.h.b16 %v6311
      %v6364 = vunpack.c.l.b16 %v6315
      %v6365 = vunpack.c.h.b16 %v6315
      %v6366 = vunpack.c.l.b16 %v6318
      %v6367 = vunpack.c.h.b16 %v6318
      %v6368 = vpack.c.b16 %v6354, %v6352
      %v6369 = vpack.c.b16 %v6355, %v6353
      %v6370 = vpack.c.b16 %v6358, %v6356
      %v6371 = vpack.c.b16 %v6359, %v6357
      %v6372 = vpack.c.b16 %v6362, %v6360
      %v6373 = vpack.c.b16 %v6363, %v6361
      %v6374 = vpack.c.b16 %v6366, %v6364
      %v6375 = vpack.c.b16 %v6367, %v6365
      %v6416 = vunpack.c.l.b16 %v6320
      %v6417 = vunpack.c.l.b16 %v6321
      %v6418 = vunpack.c.l.b16 %v6322
      %v6419 = vunpack.c.l.b16 %v6323
      %v6420 = vunpack.c.l.b16 %v6324
      %v6421 = vunpack.c.l.b16 %v6325
      %v6422 = vunpack.c.l.b16 %v6326
      %v6423 = vunpack.c.l.b16 %v6327
      %v6424 = vunpack.c.l.b16 %v6328
      %v6425 = vunpack.c.l.b16 %v6329
      %v6426 = vunpack.c.l.b16 %v6330
      %v6427 = vunpack.c.l.b16 %v6331
      %v6428 = vunpack.c.l.b16 %v6332
      %v6429 = vunpack.c.l.b16 %v6333
      %v6430 = vunpack.c.l.b16 %v6334
      %v6431 = vunpack.c.l.b16 %v6335
      %v6432 = vunpack.c.l.b16 %v6336
      %v6433 = vunpack.c.l.b16 %v6337
      %v6434 = vunpack.c.l.b16 %v6338
      %v6435 = vunpack.c.l.b16 %v6339
      %v6436 = vunpack.c.l.b16 %v6340
      %v6437 = vunpack.c.l.b16 %v6341
      %v6438 = vunpack.c.l.b16 %v6342
      %v6439 = vunpack.c.l.b16 %v6343
      %v6440 = vunpack.c.l.b16 %v6344
      %v6441 = vunpack.c.l.b16 %v6345
      %v6442 = vunpack.c.l.b16 %v6346
      %v6443 = vunpack.c.l.b16 %v6347
      %v6444 = vunpack.c.l.b16 %v6348
      %v6445 = vunpack.c.l.b16 %v6349
      %v6446 = vunpack.c.l.b16 %v6350
      %v6447 = vunpack.c.l.b16 %v6351
      %v6448 = vpack.c.b16 %v6417, %v6416
      %v6449 = vpack.c.b16 %v6419, %v6418
      %v6450 = vpack.c.b16 %v6421, %v6420
      %v6451 = vpack.c.b16 %v6423, %v6422
      %v6452 = vpack.c.b16 %v6425, %v6424
      %v6453 = vpack.c.b16 %v6427, %v6426
      %v6454 = vpack.c.b16 %v6429, %v6428
      %v6455 = vpack.c.b16 %v6431, %v6430
      %v6456 = vpack.c.b16 %v6433, %v6432
      %v6457 = vpack.c.b16 %v6435, %v6434
      %v6458 = vpack.c.b16 %v6437, %v6436
      %v6459 = vpack.c.b16 %v6439, %v6438
      %v6460 = vpack.c.b16 %v6441, %v6440
      %v6461 = vpack.c.b16 %v6443, %v6442
      %v6462 = vpack.c.b16 %v6445, %v6444
      %v6463 = vpack.c.b16 %v6447, %v6446
      %6480 = vmatprep.subr.bf16.mxu0 0
      %6481 = vmatpush1.bf16.msra.mxu0 %v6448
      %6482 = vmatprep.subr.bf16.mxu0 0
      %6483 = vmatpush1.bf16.msra.mxu0 %v6449
      %6484 = vmatprep.subr.bf16.mxu0 0
      %6485 = vmatpush1.bf16.msra.mxu0 %v6450
      %6486 = vmatprep.subr.bf16.mxu0 0
      %6487 = vmatpush1.bf16.msra.mxu0 %v6451
      %6488 = vmatprep.subr.bf16.mxu0 0
      %6489 = vmatpush1.bf16.msra.mxu0 %v6452
      %6490 = vmatprep.subr.bf16.mxu0 0
      %6491 = vmatpush1.bf16.msra.mxu0 %v6453
      %6492 = vmatprep.subr.bf16.mxu0 0
      %6493 = vmatpush1.bf16.msra.mxu0 %v6454
      %6494 = vmatprep.subr.bf16.mxu0 0
      %6495 = vmatpush1.bf16.msra.mxu0 %v6455
      %6496 = vmatprep.subr.bf16.mxu0 0
      %6497 = vmatpush1.bf16.msra.mxu0 %v6456
      %6498 = vmatprep.subr.bf16.mxu0 0
      %6499 = vmatpush1.bf16.msra.mxu0 %v6457
      %6500 = vmatprep.subr.bf16.mxu0 0
      %6501 = vmatpush1.bf16.msra.mxu0 %v6458
      %6502 = vmatprep.subr.bf16.mxu0 0
      %6503 = vmatpush1.bf16.msra.mxu0 %v6459
      %6504 = vmatprep.subr.bf16.mxu0 0
      %6505 = vmatpush1.bf16.msra.mxu0 %v6460
      %6506 = vmatprep.subr.bf16.mxu0 0
      %6507 = vmatpush1.bf16.msra.mxu0 %v6461
      %6508 = vmatprep.subr.bf16.mxu0 0
      %6509 = vmatpush1.bf16.msra.mxu0 %v6462
      %6510 = vmatprep.subr.bf16.mxu0 0
      %6511 = vmatpush1.bf16.msra.mxu0 %v6463
      %6512 = vmatprep.mubr.bf16.mxu0 %v6369
      %6513 = vmatmul.mubr.bf16.gmra.mrb[0].mxu0 %v6368
      %v6514 = vpop.f32.mrb[0].mxu0
      %v6515 = vadd.f32 0.0, %v6514
      %v6516 = vpop.f32.mrb[0].mxu0
      %v6517 = vpop.f32.mrb[0].mxu0
      %v6518 = vadd.f32 0.0, %v6517
      %v6519 = vpop.f32.mrb[0].mxu0
      %6520 = vmatprep.mubr.bf16.mxu0 %v6371
      %6521 = vmatmul.mubr.bf16.gmra.mrb[0].mxu0 %v6370
      %v6522 = vpop.f32.mrb[0].mxu0
      %v6523 = vadd.f32 0.0, %v6522
      %v6524 = vpop.f32.mrb[0].mxu0
      %v6525 = vpop.f32.mrb[0].mxu0
      %v6526 = vadd.f32 0.0, %v6525
      %v6527 = vpop.f32.mrb[0].mxu0
      %6528 = vmatprep.mubr.bf16.mxu0 %v6373
      %6529 = vmatmul.mubr.bf16.gmra.mrb[0].mxu0 %v6372
      %v6530 = vpop.f32.mrb[0].mxu0
      %v6531 = vadd.f32 0.0, %v6530
      %v6532 = vpop.f32.mrb[0].mxu0
      %v6533 = vpop.f32.mrb[0].mxu0
      %v6534 = vadd.f32 0.0, %v6533
      %v6535 = vpop.f32.mrb[0].mxu0
      %6536 = vmatprep.mubr.bf16.mxu0 %v6375
      %6537 = vmatmul.mubr.bf16.gmra.mrb[0].mxu0 %v6374
      %v6538 = vpop.f32.mrb[0].mxu0
      %v6539 = vadd.f32 0.0, %v6538
      %v6540 = vpop.f32.mrb[0].mxu0
      %v6541 = vpop.f32.mrb[0].mxu0
      %v6542 = vadd.f32 0.0, %v6541
      %v6543 = vpop.f32.mrb[0].mxu0
      %6544 = vdwg.mxu0
      %v6545 = vadd.f32 %v6267, %v6515
      %v6546 = vadd.f32 %v6268, %v6518
      %v6547 = vadd.f32 %v6269, %v6523
      %v6548 = vadd.f32 %v6270, %v6526
      %v6549 = vadd.f32 %v6271, %v6531
      %v6550 = vadd.f32 %v6272, %v6534
      %v6551 = vadd.f32 %v6273, %v6539
      %v6552 = vadd.f32 %v6274, %v6542
      %v6553 = vld [vmem:[%s6] sm:$0x1]
      %v6555 = vlaneseq
      %v6556 = vshrl.u32 %v6555, 7
      %v6557 = vsub.s32 0, %v6556
      %v6558 = vrot.slane %v6553, %v6557
      %v6560 = vadd.f32 %v6545, %v6558
      %v6561 = vadd.f32 %v6546, %v6558
      %v6562 = vadd.f32 %v6547, %v6558
      %v6563 = vadd.f32 %v6548, %v6558
      %v6564 = vadd.f32 %v6549, %v6558
      %v6565 = vadd.f32 %v6550, %v6558
      %v6566 = vadd.f32 %v6551, %v6558
      %v6567 = vadd.f32 %v6552, %v6558
      %vm6568 = vcmp.ge.f32.partialorder %v6560, 0.0
      %vm6569 = vcmp.ge.f32.partialorder %v6561, 0.0
      %vm6570 = vcmp.ge.f32.partialorder %v6562, 0.0
      %vm6571 = vcmp.ge.f32.partialorder %v6563, 0.0
      %vm6572 = vcmp.ge.f32.partialorder %v6564, 0.0
      %vm6573 = vcmp.ge.f32.partialorder %v6565, 0.0
      %vm6574 = vcmp.ge.f32.partialorder %v6566, 0.0
      %vm6575 = vcmp.ge.f32.partialorder %v6567, 0.0
      %v6576 = vmul.f32 %v6560, 0.2
      %v6577 = vmul.f32 %v6561, 0.2
      %v6578 = vmul.f32 %v6562, 0.2
      %v6579 = vmul.f32 %v6563, 0.2
      %v6580 = vmul.f32 %v6564, 0.2
      %v6581 = vmul.f32 %v6565, 0.2
      %v6582 = vmul.f32 %v6566, 0.2
      %v6583 = vmul.f32 %v6567, 0.2
      %v6584 = vsel %vm6568, %v6560, %v6576
      %v6585 = vsel %vm6569, %v6561, %v6577
      %v6586 = vsel %vm6570, %v6562, %v6578
      %v6587 = vsel %vm6571, %v6563, %v6579
      %v6588 = vsel %vm6572, %v6564, %v6580
      %v6589 = vsel %vm6573, %v6565, %v6581
      %v6590 = vsel %vm6574, %v6566, %v6582
      %v6591 = vsel %vm6575, %v6567, %v6583
      %v6592 = vpack.c.bf16 %v6585, %v6584
      %v6593 = vpack.c.bf16 %v6587, %v6586
      %v6594 = vpack.c.bf16 %v6589, %v6588
      %v6595 = vpack.c.bf16 %v6591, %v6590
      %6596 = vst [vmem:[#allocation4] sm:$0xf] 0
      %6597 = vst [vmem:[#allocation4 + $0x4] sm:$0xf] 0
      %6598 = vst [vmem:[#allocation4 + $0x8] sm:$0x1] 0
      %6599 = vst [vmem:[#allocation4 + $0xc] sm:$0xf] 0
      %6600 = vst [vmem:[#allocation4 + $0x10] sm:$0xf] 0
      %6601 = vst [vmem:[#allocation4 + $0x14] sm:$0x1] 0
      %6602 = vst [vmem:[#allocation4 + $0x18] sm:$0xf] 0
      %6603 = vst [vmem:[#allocation4 + $0x1c] sm:$0xf] 0
      %6604 = vst [vmem:[#allocation4 + $0x20] sm:$0x1] 0
      %6605 = vst [vmem:[#allocation4 + $0x24] sm:$0xf] 0
      %6606 = vst [vmem:[#allocation4 + $0x28] sm:$0xf] 0
      %6607 = vst [vmem:[#allocation4 + $0x2c] sm:$0x1] 0
      %6608 = vst [vmem:[#allocation4 + $0x30] sm:$0xf] 0
      %6609 = vst [vmem:[#allocation4 + $0x34] sm:$0xf] 0
      %6610 = vst [vmem:[#allocation4 + $0x38] sm:$0x1] 0
      %6611 = vst [vmem:[#allocation4 + $0x3c] sm:$0xf] 0
      %6612 = vst [vmem:[#allocation4 + $0x40] sm:$0xf] 0
      %6613 = vst [vmem:[#allocation4 + $0x44] sm:$0x1] 0
      %v6618 = vunpack.c.l.b16 %v6592
      %v6619 = vunpack.c.h.b16 %v6592
      %v6620 = vunpack.c.l.b16 %v6593
      %v6621 = vunpack.c.h.b16 %v6593
      %v6622 = vunpack.c.l.b16 %v6594
      %v6623 = vunpack.c.h.b16 %v6594
      %v6624 = vunpack.c.l.b16 %v6595
      %v6625 = vunpack.c.h.b16 %v6595
      %v6626 = vpack.c.b16 %v6618, %v6618
      %v6627 = vpack.c.b16 %v6619, %v6619
      %v6628 = vpack.c.b16 %v6620, %v6620
      %v6629 = vpack.c.b16 %v6621, %v6621
      %v6630 = vpack.c.b16 %v6622, %v6622
      %v6631 = vpack.c.b16 %v6623, %v6623
      %v6632 = vpack.c.b16 %v6624, %v6624
      %v6633 = vpack.c.b16 %v6625, %v6625
      %v6635 = vshrl.u32 %v6626, 16
      %v6637 = vrot.slane %v6635, 7
      %v6638 = vshll.u32 %v6626, 16
      %v6640 = vor.u32 %v6637, %v6638
      %v6641 = vrot.slane %v6637, 4
      %v6643 = vshrl.u32 %v6627, 16
      %v6645 = vrot.slane %v6643, 7
      %v6646 = vshll.u32 %v6627, 16
      %v6648 = vor.u32 %v6645, %v6646
      %v6649 = vsel %vm3753, %v6641, %v6648
      %v6650 = vrot.slane %v6645, 4
      %v6652 = vshrl.u32 %v6628, 16
      %v6654 = vrot.slane %v6652, 7
      %v6655 = vshll.u32 %v6628, 16
      %v6657 = vor.u32 %v6654, %v6655
      %v6658 = vrot.slane %v6654, 4
      %v6660 = vshrl.u32 %v6629, 16
      %v6662 = vrot.slane %v6660, 7
      %v6663 = vshll.u32 %v6629, 16
      %v6665 = vor.u32 %v6662, %v6663
      %v6666 = vsel %vm3753, %v6658, %v6665
      %v6667 = vrot.slane %v6662, 4
      %v6669 = vshrl.u32 %v6630, 16
      %v6671 = vrot.slane %v6669, 7
      %v6672 = vshll.u32 %v6630, 16
      %v6674 = vor.u32 %v6671, %v6672
      %v6675 = vrot.slane %v6671, 4
      %v6677 = vshrl.u32 %v6631, 16
      %v6679 = vrot.slane %v6677, 7
      %v6680 = vshll.u32 %v6631, 16
      %v6682 = vor.u32 %v6679, %v6680
      %v6683 = vsel %vm3753, %v6675, %v6682
      %v6684 = vrot.slane %v6679, 4
      %v6686 = vshrl.u32 %v6632, 16
      %v6688 = vrot.slane %v6686, 7
      %v6689 = vshll.u32 %v6632, 16
      %v6691 = vor.u32 %v6688, %v6689
      %v6692 = vrot.slane %v6688, 4
      %v6694 = vshrl.u32 %v6633, 16
      %v6696 = vrot.slane %v6694, 7
      %v6697 = vshll.u32 %v6633, 16
      %v6699 = vor.u32 %v6696, %v6697
      %v6700 = vsel %vm3753, %v6692, %v6699
      %v6701 = vrot.slane %v6696, 4
      %s6714 = scalar_lea.vmem [#allocation4], 12
      %v6715 = vld [vmem:[%s6714] sm:$0xf]
      %v6716 = vsel %vm793, %v6640, %v6715
      %6717 = vst [vmem:[%s6714] sm:$0xf] %v6716
      %6718 = vst [vmem:[%s6714 + $0x4] sm:$0xf] %v6649
      %v6719 = vld [vmem:[%s6714 + $0x8] sm:$0x1]
      %v6720 = vsel %vm799, %v6650, %v6719
      %6721 = vst [vmem:[%s6714 + $0x8] sm:$0x1] %v6720
      %v6722 = vld [vmem:[%s6714 + $0xc] sm:$0xf]
      %v6723 = vsel %vm793, %v6657, %v6722
      %6724 = vst [vmem:[%s6714 + $0xc] sm:$0xf] %v6723
      %6725 = vst [vmem:[%s6714 + $0x10] sm:$0xf] %v6666
      %v6726 = vld [vmem:[%s6714 + $0x14] sm:$0x1]
      %v6727 = vsel %vm799, %v6667, %v6726
      %6728 = vst [vmem:[%s6714 + $0x14] sm:$0x1] %v6727
      %v6729 = vld [vmem:[%s6714 + $0x18] sm:$0xf]
      %v6730 = vsel %vm793, %v6674, %v6729
      %6731 = vst [vmem:[%s6714 + $0x18] sm:$0xf] %v6730
      %6732 = vst [vmem:[%s6714 + $0x1c] sm:$0xf] %v6683
      %v6733 = vld [vmem:[%s6714 + $0x20] sm:$0x1]
      %v6734 = vsel %vm799, %v6684, %v6733
      %6735 = vst [vmem:[%s6714 + $0x20] sm:$0x1] %v6734
      %v6736 = vld [vmem:[%s6714 + $0x24] sm:$0xf]
      %v6737 = vsel %vm793, %v6691, %v6736
      %6738 = vst [vmem:[%s6714 + $0x24] sm:$0xf] %v6737
      %6739 = vst [vmem:[%s6714 + $0x28] sm:$0xf] %v6700
      %v6740 = vld [vmem:[%s6714 + $0x2c] sm:$0x1]
      %v6741 = vsel %vm799, %v6701, %v6740
      %6742 = vst [vmem:[%s6714 + $0x2c] sm:$0x1] %v6741
      %v6743 = vld [vmem:[#allocation4] sm:$0xf]
      %v6744 = vld [vmem:[#allocation4 + $0x4] sm:$0xf]
      %v6745 = vld [vmem:[#allocation4 + $0xc] sm:$0xf]
      %v6746 = vld [vmem:[#allocation4 + $0x10] sm:$0xf]
      %v6747 = vld [vmem:[#allocation4 + $0x18] sm:$0xf]
      %v6748 = vld [vmem:[#allocation4 + $0x1c] sm:$0xf]
      %v6749 = vld [vmem:[#allocation4 + $0x24] sm:$0xf]
      %v6750 = vld [vmem:[#allocation4 + $0x28] sm:$0xf]
      %v6751 = vld [vmem:[%s7] sm:$0xf]
      %v6752 = vld [vmem:[%s7 + $0x4] sm:$0xf]
      %v6753 = vld [vmem:[%s7 + $0x8] sm:$0xf]
      %v6754 = vld [vmem:[%s7 + $0xc] sm:$0xf]
      %v6755 = vld [vmem:[%s7 + $0x10] sm:$0xf]
      %v6756 = vld [vmem:[%s7 + $0x14] sm:$0xf]
      %v6757 = vld [vmem:[%s7 + $0x18] sm:$0xf]
      %v6758 = vld [vmem:[%s7 + $0x1c] sm:$0xf]
      %v6759 = vld [vmem:[%s7 + $0x20] sm:$0xf]
      %v6760 = vld [vmem:[%s7 + $0x24] sm:$0xf]
      %v6761 = vld [vmem:[%s7 + $0x28] sm:$0xf]
      %v6762 = vld [vmem:[%s7 + $0x2c] sm:$0xf]
      %v6763 = vld [vmem:[%s7 + $0x30] sm:$0xf]
      %v6764 = vld [vmem:[%s7 + $0x34] sm:$0xf]
      %v6765 = vld [vmem:[%s7 + $0x38] sm:$0xf]
      %v6766 = vld [vmem:[%s7 + $0x3c] sm:$0xf]
      %v6767 = vld [vmem:[#allocation4 + $0x8] sm:$0x1]
      %v6768 = vld [vmem:[#allocation4 + $0x14] sm:$0x1]
      %v6769 = vld [vmem:[#allocation4 + $0x20] sm:$0x1]
      %v6770 = vld [vmem:[#allocation4 + $0x2c] sm:$0x1]
      %v6772 = vshrl.u32 %v6743, 16
      %v6774 = vrot.slane %v6772, 4
      %v6775 = vshll.u32 %v6743, 16
      %v6777 = vrot.slane %v6775, 5
      %v6778 = vor.u32 %v6774, %v6777
      %v6779 = vrot.slane %v6778, 4
      %v6781 = vshll.u32 %v6744, 16
      %v6783 = vrot.slane %v6781, 5
      %v6784 = vsel %vm927, %v6779, %v6783
      %v6785 = vshrl.u32 %v6744, 16
      %v6787 = vrot.slane %v6785, 4
      %v6788 = vor.u32 %v6787, %v6783
      %v6789 = vrot.slane %v6788, 4
      %v6791 = vshll.u32 %v6767, 16
      %v6793 = vrot.slane %v6791, 5
      %v6794 = vsel %vm927, %v6789, %v6793
      %v6796 = vshrl.u32 %v6745, 16
      %v6798 = vrot.slane %v6796, 4
      %v6799 = vshll.u32 %v6745, 16
      %v6801 = vrot.slane %v6799, 5
      %v6802 = vor.u32 %v6798, %v6801
      %v6803 = vrot.slane %v6802, 4
      %v6805 = vshll.u32 %v6746, 16
      %v6807 = vrot.slane %v6805, 5
      %v6808 = vsel %vm927, %v6803, %v6807
      %v6809 = vshrl.u32 %v6746, 16
      %v6811 = vrot.slane %v6809, 4
      %v6812 = vor.u32 %v6811, %v6807
      %v6813 = vrot.slane %v6812, 4
      %v6815 = vshll.u32 %v6768, 16
      %v6817 = vrot.slane %v6815, 5
      %v6818 = vsel %vm927, %v6813, %v6817
      %v6820 = vshrl.u32 %v6747, 16
      %v6822 = vrot.slane %v6820, 4
      %v6823 = vshll.u32 %v6747, 16
      %v6825 = vrot.slane %v6823, 5
      %v6826 = vor.u32 %v6822, %v6825
      %v6827 = vrot.slane %v6826, 4
      %v6829 = vshll.u32 %v6748, 16
      %v6831 = vrot.slane %v6829, 5
      %v6832 = vsel %vm927, %v6827, %v6831
      %v6833 = vshrl.u32 %v6748, 16
      %v6835 = vrot.slane %v6833, 4
      %v6836 = vor.u32 %v6835, %v6831
      %v6837 = vrot.slane %v6836, 4
      %v6839 = vshll.u32 %v6769, 16
      %v6841 = vrot.slane %v6839, 5
      %v6842 = vsel %vm927, %v6837, %v6841
      %v6844 = vshrl.u32 %v6749, 16
      %v6846 = vrot.slane %v6844, 4
      %v6847 = vshll.u32 %v6749, 16
      %v6849 = vrot.slane %v6847, 5
      %v6850 = vor.u32 %v6846, %v6849
      %v6851 = vrot.slane %v6850, 4
      %v6853 = vshll.u32 %v6750, 16
      %v6855 = vrot.slane %v6853, 5
      %v6856 = vsel %vm927, %v6851, %v6855
      %v6857 = vshrl.u32 %v6750, 16
      %v6859 = vrot.slane %v6857, 4
      %v6860 = vor.u32 %v6859, %v6855
      %v6861 = vrot.slane %v6860, 4
      %v6863 = vshll.u32 %v6770, 16
      %v6865 = vrot.slane %v6863, 5
      %v6866 = vsel %vm927, %v6861, %v6865
      %s6867 = scalar_lea.vmem %s7, 64
      %v6868 = vld [vmem:[%s6867] sm:$0xf]
      %v6869 = vld [vmem:[%s6867 + $0x4] sm:$0xf]
      %v6870 = vld [vmem:[%s6867 + $0x8] sm:$0xf]
      %v6871 = vld [vmem:[%s6867 + $0xc] sm:$0xf]
      %v6872 = vld [vmem:[%s6867 + $0x10] sm:$0xf]
      %v6873 = vld [vmem:[%s6867 + $0x14] sm:$0xf]
      %v6874 = vld [vmem:[%s6867 + $0x18] sm:$0xf]
      %v6875 = vld [vmem:[%s6867 + $0x1c] sm:$0xf]
      %v6876 = vld [vmem:[%s6867 + $0x20] sm:$0xf]
      %v6877 = vld [vmem:[%s6867 + $0x24] sm:$0xf]
      %v6878 = vld [vmem:[%s6867 + $0x28] sm:$0xf]
      %v6879 = vld [vmem:[%s6867 + $0x2c] sm:$0xf]
      %v6880 = vld [vmem:[%s6867 + $0x30] sm:$0xf]
      %v6881 = vld [vmem:[%s6867 + $0x34] sm:$0xf]
      %v6882 = vld [vmem:[%s6867 + $0x38] sm:$0xf]
      %v6883 = vld [vmem:[%s6867 + $0x3c] sm:$0xf]
      %v6884 = vunpack.c.l.b16 %v6784
      %v6885 = vunpack.c.l.b16 %v6794
      %v6886 = vunpack.c.l.b16 %v6808
      %v6887 = vunpack.c.l.b16 %v6818
      %v6888 = vunpack.c.l.b16 %v6832
      %v6889 = vunpack.c.l.b16 %v6842
      %v6890 = vunpack.c.l.b16 %v6856
      %v6891 = vunpack.c.l.b16 %v6866
      %v6892 = vpack.c.b16 %v6885, %v6884
      %v6893 = vpack.c.b16 %v6887, %v6886
      %v6894 = vpack.c.b16 %v6889, %v6888
      %v6895 = vpack.c.b16 %v6891, %v6890
      %v6916 = vunpack.c.l.b16 %v6868
      %v6917 = vunpack.c.l.b16 %v6869
      %v6918 = vunpack.c.l.b16 %v6870
      %v6919 = vunpack.c.l.b16 %v6871
      %v6920 = vunpack.c.l.b16 %v6872
      %v6921 = vunpack.c.l.b16 %v6873
      %v6922 = vunpack.c.l.b16 %v6874
      %v6923 = vunpack.c.l.b16 %v6875
      %v6924 = vunpack.c.l.b16 %v6876
      %v6925 = vunpack.c.l.b16 %v6877
      %v6926 = vunpack.c.l.b16 %v6878
      %v6927 = vunpack.c.l.b16 %v6879
      %v6928 = vunpack.c.l.b16 %v6880
      %v6929 = vunpack.c.l.b16 %v6881
      %v6930 = vunpack.c.l.b16 %v6882
      %v6931 = vunpack.c.l.b16 %v6883
      %v6932 = vpack.c.b16 %v6917, %v6916
      %v6933 = vpack.c.b16 %v6919, %v6918
      %v6934 = vpack.c.b16 %v6921, %v6920
      %v6935 = vpack.c.b16 %v6923, %v6922
      %v6936 = vpack.c.b16 %v6925, %v6924
      %v6937 = vpack.c.b16 %v6927, %v6926
      %v6938 = vpack.c.b16 %v6929, %v6928
      %v6939 = vpack.c.b16 %v6931, %v6930
      %6948 = vmatprep.subr.bf16.mxu0 0
      %6949 = vmatpush1.bf16.msra.mxu0 %v6932
      %6950 = vmatprep.subr.bf16.mxu0 0
      %6951 = vmatpush1.bf16.msra.mxu0 %v6933
      %6952 = vmatprep.subr.bf16.mxu0 0
      %6953 = vmatpush1.bf16.msra.mxu0 %v6934
      %6954 = vmatprep.subr.bf16.mxu0 0
      %6955 = vmatpush1.bf16.msra.mxu0 %v6935
      %6956 = vmatprep.subr.bf16.mxu0 0
      %6957 = vmatpush1.bf16.msra.mxu0 %v6936
      %6958 = vmatprep.subr.bf16.mxu0 0
      %6959 = vmatpush1.bf16.msra.mxu0 %v6937
      %6960 = vmatprep.subr.bf16.mxu0 0
      %6961 = vmatpush1.bf16.msra.mxu0 %v6938
      %6962 = vmatprep.subr.bf16.mxu0 0
      %6963 = vmatpush1.bf16.msra.mxu0 %v6939
      %6964 = vmatprep.subr.bf16.mxu0 0
      %6965 = vmatpush1.bf16.msra.mxu0 0
      %6966 = vmatprep.subr.bf16.mxu0 0
      %6967 = vmatpush1.bf16.msra.mxu0 0
      %6968 = vmatprep.subr.bf16.mxu0 0
      %6969 = vmatpush1.bf16.msra.mxu0 0
      %6970 = vmatprep.subr.bf16.mxu0 0
      %6971 = vmatpush1.bf16.msra.mxu0 0
      %6972 = vmatprep.subr.bf16.mxu0 0
      %6973 = vmatpush1.bf16.msra.mxu0 0
      %6974 = vmatprep.subr.bf16.mxu0 0
      %6975 = vmatpush1.bf16.msra.mxu0 0
      %6976 = vmatprep.subr.bf16.mxu0 0
      %6977 = vmatpush1.bf16.msra.mxu0 0
      %6978 = vmatprep.subr.bf16.mxu0 0
      %6979 = vmatpush1.bf16.msra.mxu0 0
      %6980 = vmatprep.mubr.bf16.mxu0 0
      %6981 = vmatmul.mubr.bf16.gmra.mrb[0].mxu0 %v6892
      %v6982 = vpop.f32.mrb[0].mxu0
      %v6983 = vadd.f32 0.0, %v6982
      %v6984 = vpop.f32.mrb[0].mxu0
      %v6985 = vpop.f32.mrb[0].mxu0
      %v6986 = vadd.f32 0.0, %v6985
      %v6987 = vpop.f32.mrb[0].mxu0
      %6988 = vmatprep.mubr.bf16.mxu0 0
      %6989 = vmatmul.mubr.bf16.gmra.mrb[0].mxu0 %v6893
      %v6990 = vpop.f32.mrb[0].mxu0
      %v6991 = vadd.f32 0.0, %v6990
      %v6992 = vpop.f32.mrb[0].mxu0
      %v6993 = vpop.f32.mrb[0].mxu0
      %v6994 = vadd.f32 0.0, %v6993
      %v6995 = vpop.f32.mrb[0].mxu0
      %6996 = vmatprep.mubr.bf16.mxu0 0
      %6997 = vmatmul.mubr.bf16.gmra.mrb[0].mxu0 %v6894
      %v6998 = vpop.f32.mrb[0].mxu0
      %v6999 = vadd.f32 0.0, %v6998
      %v7000 = vpop.f32.mrb[0].mxu0
      %v7001 = vpop.f32.mrb[0].mxu0
      %v7002 = vadd.f32 0.0, %v7001
      %v7003 = vpop.f32.mrb[0].mxu0
      %7004 = vmatprep.mubr.bf16.mxu0 0
      %7005 = vmatmul.mubr.bf16.gmra.mrb[0].mxu0 %v6895
      %v7006 = vpop.f32.mrb[0].mxu0
      %v7007 = vadd.f32 0.0, %v7006
      %v7008 = vpop.f32.mrb[0].mxu0
      %v7009 = vpop.f32.mrb[0].mxu0
      %v7010 = vadd.f32 0.0, %v7009
      %v7011 = vpop.f32.mrb[0].mxu0
      %7012 = vdwg.mxu0
      %v7021 = vunpack.c.l.b16 %v6743
      %v7022 = vunpack.c.l.b16 %v6744
      %v7023 = vunpack.c.l.b16 %v6745
      %v7024 = vunpack.c.l.b16 %v6746
      %v7025 = vunpack.c.l.b16 %v6747
      %v7026 = vunpack.c.l.b16 %v6748
      %v7027 = vunpack.c.l.b16 %v6749
      %v7028 = vunpack.c.l.b16 %v6750
      %v7029 = vpack.c.b16 %v7022, %v7021
      %v7030 = vpack.c.b16 %v7024, %v7023
      %v7031 = vpack.c.b16 %v7026, %v7025
      %v7032 = vpack.c.b16 %v7028, %v7027
      %v7053 = vunpack.c.l.b16 %v6751
      %v7054 = vunpack.c.l.b16 %v6752
      %v7055 = vunpack.c.l.b16 %v6753
      %v7056 = vunpack.c.l.b16 %v6754
      %v7057 = vunpack.c.l.b16 %v6755
      %v7058 = vunpack.c.l.b16 %v6756
      %v7059 = vunpack.c.l.b16 %v6757
      %v7060 = vunpack.c.l.b16 %v6758
      %v7061 = vunpack.c.l.b16 %v6759
      %v7062 = vunpack.c.l.b16 %v6760
      %v7063 = vunpack.c.l.b16 %v6761
      %v7064 = vunpack.c.l.b16 %v6762
      %v7065 = vunpack.c.l.b16 %v6763
      %v7066 = vunpack.c.l.b16 %v6764
      %v7067 = vunpack.c.l.b16 %v6765
      %v7068 = vunpack.c.l.b16 %v6766
      %v7069 = vpack.c.b16 %v7054, %v7053
      %v7070 = vpack.c.b16 %v7056, %v7055
      %v7071 = vpack.c.b16 %v7058, %v7057
      %v7072 = vpack.c.b16 %v7060, %v7059
      %v7073 = vpack.c.b16 %v7062, %v7061
      %v7074 = vpack.c.b16 %v7064, %v7063
      %v7075 = vpack.c.b16 %v7066, %v7065
      %v7076 = vpack.c.b16 %v7068, %v7067
      %7085 = vmatprep.subr.bf16.mxu0 0
      %7086 = vmatpush1.bf16.msra.mxu0 %v7069
      %7087 = vmatprep.subr.bf16.mxu0 0
      %7088 = vmatpush1.bf16.msra.mxu0 %v7070
      %7089 = vmatprep.subr.bf16.mxu0 0
      %7090 = vmatpush1.bf16.msra.mxu0 %v7071
      %7091 = vmatprep.subr.bf16.mxu0 0
      %7092 = vmatpush1.bf16.msra.mxu0 %v7072
      %7093 = vmatprep.subr.bf16.mxu0 0
      %7094 = vmatpush1.bf16.msra.mxu0 %v7073
      %7095 = vmatprep.subr.bf16.mxu0 0
      %7096 = vmatpush1.bf16.msra.mxu0 %v7074
      %7097 = vmatprep.subr.bf16.mxu0 0
      %7098 = vmatpush1.bf16.msra.mxu0 %v7075
      %7099 = vmatprep.subr.bf16.mxu0 0
      %7100 = vmatpush1.bf16.msra.mxu0 %v7076
      %7101 = vmatprep.subr.bf16.mxu0 0
      %7102 = vmatpush1.bf16.msra.mxu0 0
      %7103 = vmatprep.subr.bf16.mxu0 0
      %7104 = vmatpush1.bf16.msra.mxu0 0
      %7105 = vmatprep.subr.bf16.mxu0 0
      %7106 = vmatpush1.bf16.msra.mxu0 0
      %7107 = vmatprep.subr.bf16.mxu0 0
      %7108 = vmatpush1.bf16.msra.mxu0 0
      %7109 = vmatprep.subr.bf16.mxu0 0
      %7110 = vmatpush1.bf16.msra.mxu0 0
      %7111 = vmatprep.subr.bf16.mxu0 0
      %7112 = vmatpush1.bf16.msra.mxu0 0
      %7113 = vmatprep.subr.bf16.mxu0 0
      %7114 = vmatpush1.bf16.msra.mxu0 0
      %7115 = vmatprep.subr.bf16.mxu0 0
      %7116 = vmatpush1.bf16.msra.mxu0 0
      %7117 = vmatprep.mubr.bf16.mxu0 0
      %7118 = vmatmul.mubr.bf16.gmra.mrb[0].mxu0 %v7029
      %v7119 = vpop.f32.mrb[0].mxu0
      %v7120 = vadd.f32 %v6983, %v7119
      %v7121 = vpop.f32.mrb[0].mxu0
      %v7122 = vpop.f32.mrb[0].mxu0
      %v7123 = vadd.f32 %v6986, %v7122
      %v7124 = vpop.f32.mrb[0].mxu0
      %7125 = vmatprep.mubr.bf16.mxu0 0
      %7126 = vmatmul.mubr.bf16.gmra.mrb[0].mxu0 %v7030
      %v7127 = vpop.f32.mrb[0].mxu0
      %v7128 = vadd.f32 %v6991, %v7127
      %v7129 = vpop.f32.mrb[0].mxu0
      %v7130 = vpop.f32.mrb[0].mxu0
      %v7131 = vadd.f32 %v6994, %v7130
      %v7132 = vpop.f32.mrb[0].mxu0
      %7133 = vmatprep.mubr.bf16.mxu0 0
      %7134 = vmatmul.mubr.bf16.gmra.mrb[0].mxu0 %v7031
      %v7135 = vpop.f32.mrb[0].mxu0
      %v7136 = vadd.f32 %v6999, %v7135
      %v7137 = vpop.f32.mrb[0].mxu0
      %v7138 = vpop.f32.mrb[0].mxu0
      %v7139 = vadd.f32 %v7002, %v7138
      %v7140 = vpop.f32.mrb[0].mxu0
      %7141 = vmatprep.mubr.bf16.mxu0 0
      %7142 = vmatmul.mubr.bf16.gmra.mrb[0].mxu0 %v7032
      %v7143 = vpop.f32.mrb[0].mxu0
      %v7144 = vadd.f32 %v7007, %v7143
      %v7145 = vpop.f32.mrb[0].mxu0
      %v7146 = vpop.f32.mrb[0].mxu0
      %v7147 = vadd.f32 %v7010, %v7146
      %v7148 = vpop.f32.mrb[0].mxu0
      %7149 = vdwg.mxu0
      %v7150 = vld [vmem:[#allocation4] sm:$0xe]
      %v7151 = vld [vmem:[#allocation4 + $0xc] sm:$0xe]
      %v7152 = vld [vmem:[#allocation4 + $0x18] sm:$0xe]
      %v7153 = vld [vmem:[#allocation4 + $0x24] sm:$0xe]
      %v7162 = vrot.slane %v7150, 5
      %v7163 = vrot.slane %v7162, 4
      %v7164 = vrot.slane %v6744, 5
      %v7165 = vsel %vm1357, %v7163, %v7164
      %v7166 = vrot.slane %v7164, 4
      %v7167 = vrot.slane %v6767, 5
      %v7168 = vsel %vm1357, %v7166, %v7167
      %v7169 = vrot.slane %v7151, 5
      %v7170 = vrot.slane %v7169, 4
      %v7171 = vrot.slane %v6746, 5
      %v7172 = vsel %vm1357, %v7170, %v7171
      %v7173 = vrot.slane %v7171, 4
      %v7174 = vrot.slane %v6768, 5
      %v7175 = vsel %vm1357, %v7173, %v7174
      %v7176 = vrot.slane %v7152, 5
      %v7177 = vrot.slane %v7176, 4
      %v7178 = vrot.slane %v6748, 5
      %v7179 = vsel %vm1357, %v7177, %v7178
      %v7180 = vrot.slane %v7178, 4
      %v7181 = vrot.slane %v6769, 5
      %v7182 = vsel %vm1357, %v7180, %v7181
      %v7183 = vrot.slane %v7153, 5
      %v7184 = vrot.slane %v7183, 4
      %v7185 = vrot.slane %v6750, 5
      %v7186 = vsel %vm1357, %v7184, %v7185
      %v7187 = vrot.slane %v7185, 4
      %v7188 = vrot.slane %v6770, 5
      %v7189 = vsel %vm1357, %v7187, %v7188
      %s7190 = scalar_lea.vmem %s7, 128
      %v7191 = vld [vmem:[%s7190] sm:$0xf]
      %v7192 = vld [vmem:[%s7190 + $0x4] sm:$0xf]
      %v7193 = vld [vmem:[%s7190 + $0x8] sm:$0xf]
      %v7194 = vld [vmem:[%s7190 + $0xc] sm:$0xf]
      %v7195 = vld [vmem:[%s7190 + $0x10] sm:$0xf]
      %v7196 = vld [vmem:[%s7190 + $0x14] sm:$0xf]
      %v7197 = vld [vmem:[%s7190 + $0x18] sm:$0xf]
      %v7198 = vld [vmem:[%s7190 + $0x1c] sm:$0xf]
      %v7199 = vld [vmem:[%s7190 + $0x20] sm:$0xf]
      %v7200 = vld [vmem:[%s7190 + $0x24] sm:$0xf]
      %v7201 = vld [vmem:[%s7190 + $0x28] sm:$0xf]
      %v7202 = vld [vmem:[%s7190 + $0x2c] sm:$0xf]
      %v7203 = vld [vmem:[%s7190 + $0x30] sm:$0xf]
      %v7204 = vld [vmem:[%s7190 + $0x34] sm:$0xf]
      %v7205 = vld [vmem:[%s7190 + $0x38] sm:$0xf]
      %v7206 = vld [vmem:[%s7190 + $0x3c] sm:$0xf]
      %v7207 = vunpack.c.l.b16 %v7165
      %v7208 = vunpack.c.l.b16 %v7168
      %v7209 = vunpack.c.l.b16 %v7172
      %v7210 = vunpack.c.l.b16 %v7175
      %v7211 = vunpack.c.l.b16 %v7179
      %v7212 = vunpack.c.l.b16 %v7182
      %v7213 = vunpack.c.l.b16 %v7186
      %v7214 = vunpack.c.l.b16 %v7189
      %v7215 = vpack.c.b16 %v7208, %v7207
      %v7216 = vpack.c.b16 %v7210, %v7209
      %v7217 = vpack.c.b16 %v7212, %v7211
      %v7218 = vpack.c.b16 %v7214, %v7213
      %v7239 = vunpack.c.l.b16 %v7191
      %v7240 = vunpack.c.l.b16 %v7192
      %v7241 = vunpack.c.l.b16 %v7193
      %v7242 = vunpack.c.l.b16 %v7194
      %v7243 = vunpack.c.l.b16 %v7195
      %v7244 = vunpack.c.l.b16 %v7196
      %v7245 = vunpack.c.l.b16 %v7197
      %v7246 = vunpack.c.l.b16 %v7198
      %v7247 = vunpack.c.l.b16 %v7199
      %v7248 = vunpack.c.l.b16 %v7200
      %v7249 = vunpack.c.l.b16 %v7201
      %v7250 = vunpack.c.l.b16 %v7202
      %v7251 = vunpack.c.l.b16 %v7203
      %v7252 = vunpack.c.l.b16 %v7204
      %v7253 = vunpack.c.l.b16 %v7205
      %v7254 = vunpack.c.l.b16 %v7206
      %v7255 = vpack.c.b16 %v7240, %v7239
      %v7256 = vpack.c.b16 %v7242, %v7241
      %v7257 = vpack.c.b16 %v7244, %v7243
      %v7258 = vpack.c.b16 %v7246, %v7245
      %v7259 = vpack.c.b16 %v7248, %v7247
      %v7260 = vpack.c.b16 %v7250, %v7249
      %v7261 = vpack.c.b16 %v7252, %v7251
      %v7262 = vpack.c.b16 %v7254, %v7253
      %7271 = vmatprep.subr.bf16.mxu0 0
      %7272 = vmatpush1.bf16.msra.mxu0 %v7255
      %7273 = vmatprep.subr.bf16.mxu0 0
      %7274 = vmatpush1.bf16.msra.mxu0 %v7256
      %7275 = vmatprep.subr.bf16.mxu0 0
      %7276 = vmatpush1.bf16.msra.mxu0 %v7257
      %7277 = vmatprep.subr.bf16.mxu0 0
      %7278 = vmatpush1.bf16.msra.mxu0 %v7258
      %7279 = vmatprep.subr.bf16.mxu0 0
      %7280 = vmatpush1.bf16.msra.mxu0 %v7259
      %7281 = vmatprep.subr.bf16.mxu0 0
      %7282 = vmatpush1.bf16.msra.mxu0 %v7260
      %7283 = vmatprep.subr.bf16.mxu0 0
      %7284 = vmatpush1.bf16.msra.mxu0 %v7261
      %7285 = vmatprep.subr.bf16.mxu0 0
      %7286 = vmatpush1.bf16.msra.mxu0 %v7262
      %7287 = vmatprep.subr.bf16.mxu0 0
      %7288 = vmatpush1.bf16.msra.mxu0 0
      %7289 = vmatprep.subr.bf16.mxu0 0
      %7290 = vmatpush1.bf16.msra.mxu0 0
      %7291 = vmatprep.subr.bf16.mxu0 0
      %7292 = vmatpush1.bf16.msra.mxu0 0
      %7293 = vmatprep.subr.bf16.mxu0 0
      %7294 = vmatpush1.bf16.msra.mxu0 0
      %7295 = vmatprep.subr.bf16.mxu0 0
      %7296 = vmatpush1.bf16.msra.mxu0 0
      %7297 = vmatprep.subr.bf16.mxu0 0
      %7298 = vmatpush1.bf16.msra.mxu0 0
      %7299 = vmatprep.subr.bf16.mxu0 0
      %7300 = vmatpush1.bf16.msra.mxu0 0
      %7301 = vmatprep.subr.bf16.mxu0 0
      %7302 = vmatpush1.bf16.msra.mxu0 0
      %7303 = vmatprep.mubr.bf16.mxu0 0
      %7304 = vmatmul.mubr.bf16.gmra.mrb[0].mxu0 %v7215
      %v7305 = vpop.f32.mrb[0].mxu0
      %v7306 = vadd.f32 0.0, %v7305
      %v7307 = vpop.f32.mrb[0].mxu0
      %v7308 = vpop.f32.mrb[0].mxu0
      %v7309 = vadd.f32 0.0, %v7308
      %v7310 = vpop.f32.mrb[0].mxu0
      %7311 = vmatprep.mubr.bf16.mxu0 0
      %7312 = vmatmul.mubr.bf16.gmra.mrb[0].mxu0 %v7216
      %v7313 = vpop.f32.mrb[0].mxu0
      %v7314 = vadd.f32 0.0, %v7313
      %v7315 = vpop.f32.mrb[0].mxu0
      %v7316 = vpop.f32.mrb[0].mxu0
      %v7317 = vadd.f32 0.0, %v7316
      %v7318 = vpop.f32.mrb[0].mxu0
      %7319 = vmatprep.mubr.bf16.mxu0 0
      %7320 = vmatmul.mubr.bf16.gmra.mrb[0].mxu0 %v7217
      %v7321 = vpop.f32.mrb[0].mxu0
      %v7322 = vadd.f32 0.0, %v7321
      %v7323 = vpop.f32.mrb[0].mxu0
      %v7324 = vpop.f32.mrb[0].mxu0
      %v7325 = vadd.f32 0.0, %v7324
      %v7326 = vpop.f32.mrb[0].mxu0
      %7327 = vmatprep.mubr.bf16.mxu0 0
      %7328 = vmatmul.mubr.bf16.gmra.mrb[0].mxu0 %v7218
      %v7329 = vpop.f32.mrb[0].mxu0
      %v7330 = vadd.f32 0.0, %v7329
      %v7331 = vpop.f32.mrb[0].mxu0
      %v7332 = vpop.f32.mrb[0].mxu0
      %v7333 = vadd.f32 0.0, %v7332
      %v7334 = vpop.f32.mrb[0].mxu0
      %7335 = vdwg.mxu0
      %v7336 = vadd.f32 %v7120, %v7306
      %v7337 = vadd.f32 %v7123, %v7309
      %v7338 = vadd.f32 %v7128, %v7314
      %v7339 = vadd.f32 %v7131, %v7317
      %v7340 = vadd.f32 %v7136, %v7322
      %v7341 = vadd.f32 %v7139, %v7325
      %v7342 = vadd.f32 %v7144, %v7330
      %v7343 = vadd.f32 %v7147, %v7333
      %v7344 = vld [vmem:[%s6714] sm:$0xf]
      %v7345 = vld [vmem:[%s6714 + $0x4] sm:$0xf]
      %v7346 = vld [vmem:[%s6714 + $0xc] sm:$0xf]
      %v7347 = vld [vmem:[%s6714 + $0x10] sm:$0xf]
      %v7348 = vld [vmem:[%s6714 + $0x18] sm:$0xf]
      %v7349 = vld [vmem:[%s6714 + $0x1c] sm:$0xf]
      %v7350 = vld [vmem:[%s6714 + $0x24] sm:$0xf]
      %v7351 = vld [vmem:[%s6714 + $0x28] sm:$0xf]
      %s7352 = scalar_lea.vmem %s7, 192
      %v7353 = vld [vmem:[%s7352] sm:$0xf]
      %v7354 = vld [vmem:[%s7352 + $0x4] sm:$0xf]
      %v7355 = vld [vmem:[%s7352 + $0x8] sm:$0xf]
      %v7356 = vld [vmem:[%s7352 + $0xc] sm:$0xf]
      %v7357 = vld [vmem:[%s7352 + $0x10] sm:$0xf]
      %v7358 = vld [vmem:[%s7352 + $0x14] sm:$0xf]
      %v7359 = vld [vmem:[%s7352 + $0x18] sm:$0xf]
      %v7360 = vld [vmem:[%s7352 + $0x1c] sm:$0xf]
      %v7361 = vld [vmem:[%s7352 + $0x20] sm:$0xf]
      %v7362 = vld [vmem:[%s7352 + $0x24] sm:$0xf]
      %v7363 = vld [vmem:[%s7352 + $0x28] sm:$0xf]
      %v7364 = vld [vmem:[%s7352 + $0x2c] sm:$0xf]
      %v7365 = vld [vmem:[%s7352 + $0x30] sm:$0xf]
      %v7366 = vld [vmem:[%s7352 + $0x34] sm:$0xf]
      %v7367 = vld [vmem:[%s7352 + $0x38] sm:$0xf]
      %v7368 = vld [vmem:[%s7352 + $0x3c] sm:$0xf]
      %v7377 = vunpack.c.l.b16 %v7344
      %v7378 = vunpack.c.l.b16 %v7345
      %v7379 = vunpack.c.l.b16 %v7346
      %v7380 = vunpack.c.l.b16 %v7347
      %v7381 = vunpack.c.l.b16 %v7348
      %v7382 = vunpack.c.l.b16 %v7349
      %v7383 = vunpack.c.l.b16 %v7350
      %v7384 = vunpack.c.l.b16 %v7351
      %v7385 = vpack.c.b16 %v7378, %v7377
      %v7386 = vpack.c.b16 %v7380, %v7379
      %v7387 = vpack.c.b16 %v7382, %v7381
      %v7388 = vpack.c.b16 %v7384, %v7383
      %v7409 = vunpack.c.l.b16 %v7353
      %v7410 = vunpack.c.l.b16 %v7354
      %v7411 = vunpack.c.l.b16 %v7355
      %v7412 = vunpack.c.l.b16 %v7356
      %v7413 = vunpack.c.l.b16 %v7357
      %v7414 = vunpack.c.l.b16 %v7358
      %v7415 = vunpack.c.l.b16 %v7359
      %v7416 = vunpack.c.l.b16 %v7360
      %v7417 = vunpack.c.l.b16 %v7361
      %v7418 = vunpack.c.l.b16 %v7362
      %v7419 = vunpack.c.l.b16 %v7363
      %v7420 = vunpack.c.l.b16 %v7364
      %v7421 = vunpack.c.l.b16 %v7365
      %v7422 = vunpack.c.l.b16 %v7366
      %v7423 = vunpack.c.l.b16 %v7367
      %v7424 = vunpack.c.l.b16 %v7368
      %v7425 = vpack.c.b16 %v7410, %v7409
      %v7426 = vpack.c.b16 %v7412, %v7411
      %v7427 = vpack.c.b16 %v7414, %v7413
      %v7428 = vpack.c.b16 %v7416, %v7415
      %v7429 = vpack.c.b16 %v7418, %v7417
      %v7430 = vpack.c.b16 %v7420, %v7419
      %v7431 = vpack.c.b16 %v7422, %v7421
      %v7432 = vpack.c.b16 %v7424, %v7423
      %7441 = vmatprep.subr.bf16.mxu0 0
      %7442 = vmatpush1.bf16.msra.mxu0 %v7425
      %7443 = vmatprep.subr.bf16.mxu0 0
      %7444 = vmatpush1.bf16.msra.mxu0 %v7426
      %7445 = vmatprep.subr.bf16.mxu0 0
      %7446 = vmatpush1.bf16.msra.mxu0 %v7427
      %7447 = vmatprep.subr.bf16.mxu0 0
      %7448 = vmatpush1.bf16.msra.mxu0 %v7428
      %7449 = vmatprep.subr.bf16.mxu0 0
      %7450 = vmatpush1.bf16.msra.mxu0 %v7429
      %7451 = vmatprep.subr.bf16.mxu0 0
      %7452 = vmatpush1.bf16.msra.mxu0 %v7430
      %7453 = vmatprep.subr.bf16.mxu0 0
      %7454 = vmatpush1.bf16.msra.mxu0 %v7431
      %7455 = vmatprep.subr.bf16.mxu0 0
      %7456 = vmatpush1.bf16.msra.mxu0 %v7432
      %7457 = vmatprep.subr.bf16.mxu0 0
      %7458 = vmatpush1.bf16.msra.mxu0 0
      %7459 = vmatprep.subr.bf16.mxu0 0
      %7460 = vmatpush1.bf16.msra.mxu0 0
      %7461 = vmatprep.subr.bf16.mxu0 0
      %7462 = vmatpush1.bf16.msra.mxu0 0
      %7463 = vmatprep.subr.bf16.mxu0 0
      %7464 = vmatpush1.bf16.msra.mxu0 0
      %7465 = vmatprep.subr.bf16.mxu0 0
      %7466 = vmatpush1.bf16.msra.mxu0 0
      %7467 = vmatprep.subr.bf16.mxu0 0
      %7468 = vmatpush1.bf16.msra.mxu0 0
      %7469 = vmatprep.subr.bf16.mxu0 0
      %7470 = vmatpush1.bf16.msra.mxu0 0
      %7471 = vmatprep.subr.bf16.mxu0 0
      %7472 = vmatpush1.bf16.msra.mxu0 0
      %7473 = vmatprep.mubr.bf16.mxu0 0
      %7474 = vmatmul.mubr.bf16.gmra.mrb[0].mxu0 %v7385
      %v7475 = vpop.f32.mrb[0].mxu0
      %v7476 = vadd.f32 0.0, %v7475
      %v7477 = vpop.f32.mrb[0].mxu0
      %v7478 = vpop.f32.mrb[0].mxu0
      %v7479 = vadd.f32 0.0, %v7478
      %v7480 = vpop.f32.mrb[0].mxu0
      %7481 = vmatprep.mubr.bf16.mxu0 0
      %7482 = vmatmul.mubr.bf16.gmra.mrb[0].mxu0 %v7386
      %v7483 = vpop.f32.mrb[0].mxu0
      %v7484 = vadd.f32 0.0, %v7483
      %v7485 = vpop.f32.mrb[0].mxu0
      %v7486 = vpop.f32.mrb[0].mxu0
      %v7487 = vadd.f32 0.0, %v7486
      %v7488 = vpop.f32.mrb[0].mxu0
      %7489 = vmatprep.mubr.bf16.mxu0 0
      %7490 = vmatmul.mubr.bf16.gmra.mrb[0].mxu0 %v7387
      %v7491 = vpop.f32.mrb[0].mxu0
      %v7492 = vadd.f32 0.0, %v7491
      %v7493 = vpop.f32.mrb[0].mxu0
      %v7494 = vpop.f32.mrb[0].mxu0
      %v7495 = vadd.f32 0.0, %v7494
      %v7496 = vpop.f32.mrb[0].mxu0
      %7497 = vmatprep.mubr.bf16.mxu0 0
      %7498 = vmatmul.mubr.bf16.gmra.mrb[0].mxu0 %v7388
      %v7499 = vpop.f32.mrb[0].mxu0
      %v7500 = vadd.f32 0.0, %v7499
      %v7501 = vpop.f32.mrb[0].mxu0
      %v7502 = vpop.f32.mrb[0].mxu0
      %v7503 = vadd.f32 0.0, %v7502
      %v7504 = vpop.f32.mrb[0].mxu0
      %7505 = vdwg.mxu0
      %v7506 = vadd.f32 %v7336, %v7476
      %v7507 = vadd.f32 %v7337, %v7479
      %v7508 = vadd.f32 %v7338, %v7484
      %v7509 = vadd.f32 %v7339, %v7487
      %v7510 = vadd.f32 %v7340, %v7492
      %v7511 = vadd.f32 %v7341, %v7495
      %v7512 = vadd.f32 %v7342, %v7500
      %v7513 = vadd.f32 %v7343, %v7503
      %v7514 = vld [vmem:[%s6714] sm:$0xf]
      %v7515 = vld [vmem:[%s6714 + $0x4] sm:$0xf]
      %v7516 = vld [vmem:[%s6714 + $0x8] sm:$0x1]
      %v7517 = vld [vmem:[%s6714 + $0xc] sm:$0xf]
      %v7518 = vld [vmem:[%s6714 + $0x10] sm:$0xf]
      %v7519 = vld [vmem:[%s6714 + $0x14] sm:$0x1]
      %v7520 = vld [vmem:[%s6714 + $0x18] sm:$0xf]
      %v7521 = vld [vmem:[%s6714 + $0x1c] sm:$0xf]
      %v7522 = vld [vmem:[%s6714 + $0x20] sm:$0x1]
      %v7523 = vld [vmem:[%s6714 + $0x24] sm:$0xf]
      %v7524 = vld [vmem:[%s6714 + $0x28] sm:$0xf]
      %v7525 = vld [vmem:[%s6714 + $0x2c] sm:$0x1]
      %v7527 = vshrl.u32 %v7514, 16
      %v7529 = vrot.slane %v7527, 4
      %v7530 = vshll.u32 %v7514, 16
      %v7532 = vrot.slane %v7530, 5
      %v7533 = vor.u32 %v7529, %v7532
      %v7534 = vrot.slane %v7533, 4
      %v7536 = vshll.u32 %v7515, 16
      %v7538 = vrot.slane %v7536, 5
      %v7539 = vsel %vm927, %v7534, %v7538
      %v7540 = vshrl.u32 %v7515, 16
      %v7542 = vrot.slane %v7540, 4
      %v7543 = vor.u32 %v7542, %v7538
      %v7544 = vrot.slane %v7543, 4
      %v7546 = vshll.u32 %v7516, 16
      %v7548 = vrot.slane %v7546, 5
      %v7549 = vsel %vm927, %v7544, %v7548
      %v7551 = vshrl.u32 %v7517, 16
      %v7553 = vrot.slane %v7551, 4
      %v7554 = vshll.u32 %v7517, 16
      %v7556 = vrot.slane %v7554, 5
      %v7557 = vor.u32 %v7553, %v7556
      %v7558 = vrot.slane %v7557, 4
      %v7560 = vshll.u32 %v7518, 16
      %v7562 = vrot.slane %v7560, 5
      %v7563 = vsel %vm927, %v7558, %v7562
      %v7564 = vshrl.u32 %v7518, 16
      %v7566 = vrot.slane %v7564, 4
      %v7567 = vor.u32 %v7566, %v7562
      %v7568 = vrot.slane %v7567, 4
      %v7570 = vshll.u32 %v7519, 16
      %v7572 = vrot.slane %v7570, 5
      %v7573 = vsel %vm927, %v7568, %v7572
      %v7575 = vshrl.u32 %v7520, 16
      %v7577 = vrot.slane %v7575, 4
      %v7578 = vshll.u32 %v7520, 16
      %v7580 = vrot.slane %v7578, 5
      %v7581 = vor.u32 %v7577, %v7580
      %v7582 = vrot.slane %v7581, 4
      %v7584 = vshll.u32 %v7521, 16
      %v7586 = vrot.slane %v7584, 5
      %v7587 = vsel %vm927, %v7582, %v7586
      %v7588 = vshrl.u32 %v7521, 16
      %v7590 = vrot.slane %v7588, 4
      %v7591 = vor.u32 %v7590, %v7586
      %v7592 = vrot.slane %v7591, 4
      %v7594 = vshll.u32 %v7522, 16
      %v7596 = vrot.slane %v7594, 5
      %v7597 = vsel %vm927, %v7592, %v7596
      %v7599 = vshrl.u32 %v7523, 16
      %v7601 = vrot.slane %v7599, 4
      %v7602 = vshll.u32 %v7523, 16
      %v7604 = vrot.slane %v7602, 5
      %v7605 = vor.u32 %v7601, %v7604
      %v7606 = vrot.slane %v7605, 4
      %v7608 = vshll.u32 %v7524, 16
      %v7610 = vrot.slane %v7608, 5
      %v7611 = vsel %vm927, %v7606, %v7610
      %v7612 = vshrl.u32 %v7524, 16
      %v7614 = vrot.slane %v7612, 4
      %v7615 = vor.u32 %v7614, %v7610
      %v7616 = vrot.slane %v7615, 4
      %v7618 = vshll.u32 %v7525, 16
      %v7620 = vrot.slane %v7618, 5
      %v7621 = vsel %vm927, %v7616, %v7620
      %s7622 = scalar_lea.vmem %s7, 256
      %v7623 = vld [vmem:[%s7622] sm:$0xf]
      %v7624 = vld [vmem:[%s7622 + $0x4] sm:$0xf]
      %v7625 = vld [vmem:[%s7622 + $0x8] sm:$0xf]
      %v7626 = vld [vmem:[%s7622 + $0xc] sm:$0xf]
      %v7627 = vld [vmem:[%s7622 + $0x10] sm:$0xf]
      %v7628 = vld [vmem:[%s7622 + $0x14] sm:$0xf]
      %v7629 = vld [vmem:[%s7622 + $0x18] sm:$0xf]
      %v7630 = vld [vmem:[%s7622 + $0x1c] sm:$0xf]
      %v7631 = vld [vmem:[%s7622 + $0x20] sm:$0xf]
      %v7632 = vld [vmem:[%s7622 + $0x24] sm:$0xf]
      %v7633 = vld [vmem:[%s7622 + $0x28] sm:$0xf]
      %v7634 = vld [vmem:[%s7622 + $0x2c] sm:$0xf]
      %v7635 = vld [vmem:[%s7622 + $0x30] sm:$0xf]
      %v7636 = vld [vmem:[%s7622 + $0x34] sm:$0xf]
      %v7637 = vld [vmem:[%s7622 + $0x38] sm:$0xf]
      %v7638 = vld [vmem:[%s7622 + $0x3c] sm:$0xf]
      %v7639 = vunpack.c.l.b16 %v7539
      %v7640 = vunpack.c.l.b16 %v7549
      %v7641 = vunpack.c.l.b16 %v7563
      %v7642 = vunpack.c.l.b16 %v7573
      %v7643 = vunpack.c.l.b16 %v7587
      %v7644 = vunpack.c.l.b16 %v7597
      %v7645 = vunpack.c.l.b16 %v7611
      %v7646 = vunpack.c.l.b16 %v7621
      %v7647 = vpack.c.b16 %v7640, %v7639
      %v7648 = vpack.c.b16 %v7642, %v7641
      %v7649 = vpack.c.b16 %v7644, %v7643
      %v7650 = vpack.c.b16 %v7646, %v7645
      %v7671 = vunpack.c.l.b16 %v7623
      %v7672 = vunpack.c.l.b16 %v7624
      %v7673 = vunpack.c.l.b16 %v7625
      %v7674 = vunpack.c.l.b16 %v7626
      %v7675 = vunpack.c.l.b16 %v7627
      %v7676 = vunpack.c.l.b16 %v7628
      %v7677 = vunpack.c.l.b16 %v7629
      %v7678 = vunpack.c.l.b16 %v7630
      %v7679 = vunpack.c.l.b16 %v7631
      %v7680 = vunpack.c.l.b16 %v7632
      %v7681 = vunpack.c.l.b16 %v7633
      %v7682 = vunpack.c.l.b16 %v7634
      %v7683 = vunpack.c.l.b16 %v7635
      %v7684 = vunpack.c.l.b16 %v7636
      %v7685 = vunpack.c.l.b16 %v7637
      %v7686 = vunpack.c.l.b16 %v7638
      %v7687 = vpack.c.b16 %v7672, %v7671
      %v7688 = vpack.c.b16 %v7674, %v7673
      %v7689 = vpack.c.b16 %v7676, %v7675
      %v7690 = vpack.c.b16 %v7678, %v7677
      %v7691 = vpack.c.b16 %v7680, %v7679
      %v7692 = vpack.c.b16 %v7682, %v7681
      %v7693 = vpack.c.b16 %v7684, %v7683
      %v7694 = vpack.c.b16 %v7686, %v7685
      %7703 = vmatprep.subr.bf16.mxu0 0
      %7704 = vmatpush1.bf16.msra.mxu0 %v7687
      %7705 = vmatprep.subr.bf16.mxu0 0
      %7706 = vmatpush1.bf16.msra.mxu0 %v7688
      %7707 = vmatprep.subr.bf16.mxu0 0
      %7708 = vmatpush1.bf16.msra.mxu0 %v7689
      %7709 = vmatprep.subr.bf16.mxu0 0
      %7710 = vmatpush1.bf16.msra.mxu0 %v7690
      %7711 = vmatprep.subr.bf16.mxu0 0
      %7712 = vmatpush1.bf16.msra.mxu0 %v7691
      %7713 = vmatprep.subr.bf16.mxu0 0
      %7714 = vmatpush1.bf16.msra.mxu0 %v7692
      %7715 = vmatprep.subr.bf16.mxu0 0
      %7716 = vmatpush1.bf16.msra.mxu0 %v7693
      %7717 = vmatprep.subr.bf16.mxu0 0
      %7718 = vmatpush1.bf16.msra.mxu0 %v7694
      %7719 = vmatprep.subr.bf16.mxu0 0
      %7720 = vmatpush1.bf16.msra.mxu0 0
      %7721 = vmatprep.subr.bf16.mxu0 0
      %7722 = vmatpush1.bf16.msra.mxu0 0
      %7723 = vmatprep.subr.bf16.mxu0 0
      %7724 = vmatpush1.bf16.msra.mxu0 0
      %7725 = vmatprep.subr.bf16.mxu0 0
      %7726 = vmatpush1.bf16.msra.mxu0 0
      %7727 = vmatprep.subr.bf16.mxu0 0
      %7728 = vmatpush1.bf16.msra.mxu0 0
      %7729 = vmatprep.subr.bf16.mxu0 0
      %7730 = vmatpush1.bf16.msra.mxu0 0
      %7731 = vmatprep.subr.bf16.mxu0 0
      %7732 = vmatpush1.bf16.msra.mxu0 0
      %7733 = vmatprep.subr.bf16.mxu0 0
      %7734 = vmatpush1.bf16.msra.mxu0 0
      %7735 = vmatprep.mubr.bf16.mxu0 0
      %7736 = vmatmul.mubr.bf16.gmra.mrb[0].mxu0 %v7647
      %v7737 = vpop.f32.mrb[0].mxu0
      %v7738 = vadd.f32 0.0, %v7737
      %v7739 = vpop.f32.mrb[0].mxu0
      %v7740 = vpop.f32.mrb[0].mxu0
      %v7741 = vadd.f32 0.0, %v7740
      %v7742 = vpop.f32.mrb[0].mxu0
      %7743 = vmatprep.mubr.bf16.mxu0 0
      %7744 = vmatmul.mubr.bf16.gmra.mrb[0].mxu0 %v7648
      %v7745 = vpop.f32.mrb[0].mxu0
      %v7746 = vadd.f32 0.0, %v7745
      %v7747 = vpop.f32.mrb[0].mxu0
      %v7748 = vpop.f32.mrb[0].mxu0
      %v7749 = vadd.f32 0.0, %v7748
      %v7750 = vpop.f32.mrb[0].mxu0
      %7751 = vmatprep.mubr.bf16.mxu0 0
      %7752 = vmatmul.mubr.bf16.gmra.mrb[0].mxu0 %v7649
      %v7753 = vpop.f32.mrb[0].mxu0
      %v7754 = vadd.f32 0.0, %v7753
      %v7755 = vpop.f32.mrb[0].mxu0
      %v7756 = vpop.f32.mrb[0].mxu0
      %v7757 = vadd.f32 0.0, %v7756
      %v7758 = vpop.f32.mrb[0].mxu0
      %7759 = vmatprep.mubr.bf16.mxu0 0
      %7760 = vmatmul.mubr.bf16.gmra.mrb[0].mxu0 %v7650
      %v7761 = vpop.f32.mrb[0].mxu0
      %v7762 = vadd.f32 0.0, %v7761
      %v7763 = vpop.f32.mrb[0].mxu0
      %v7764 = vpop.f32.mrb[0].mxu0
      %v7765 = vadd.f32 0.0, %v7764
      %v7766 = vpop.f32.mrb[0].mxu0
      %7767 = vdwg.mxu0
      %v7768 = vadd.f32 %v7506, %v7738
      %v7769 = vadd.f32 %v7507, %v7741
      %v7770 = vadd.f32 %v7508, %v7746
      %v7771 = vadd.f32 %v7509, %v7749
      %v7772 = vadd.f32 %v7510, %v7754
      %v7773 = vadd.f32 %v7511, %v7757
      %v7774 = vadd.f32 %v7512, %v7762
      %v7775 = vadd.f32 %v7513, %v7765
      %v7776 = vld [vmem:[%s6714] sm:$0xe]
      %v7777 = vld [vmem:[%s6714 + $0xc] sm:$0xe]
      %v7778 = vld [vmem:[%s6714 + $0x18] sm:$0xe]
      %v7779 = vld [vmem:[%s6714 + $0x24] sm:$0xe]
      %v7792 = vrot.slane %v7776, 5
      %v7793 = vrot.slane %v7792, 4
      %v7794 = vrot.slane %v7515, 5
      %v7795 = vsel %vm1357, %v7793, %v7794
      %v7796 = vrot.slane %v7794, 4
      %v7797 = vrot.slane %v7516, 5
      %v7798 = vsel %vm1357, %v7796, %v7797
      %v7799 = vrot.slane %v7777, 5
      %v7800 = vrot.slane %v7799, 4
      %v7801 = vrot.slane %v7518, 5
      %v7802 = vsel %vm1357, %v7800, %v7801
      %v7803 = vrot.slane %v7801, 4
      %v7804 = vrot.slane %v7519, 5
      %v7805 = vsel %vm1357, %v7803, %v7804
      %v7806 = vrot.slane %v7778, 5
      %v7807 = vrot.slane %v7806, 4
      %v7808 = vrot.slane %v7521, 5
      %v7809 = vsel %vm1357, %v7807, %v7808
      %v7810 = vrot.slane %v7808, 4
      %v7811 = vrot.slane %v7522, 5
      %v7812 = vsel %vm1357, %v7810, %v7811
      %v7813 = vrot.slane %v7779, 5
      %v7814 = vrot.slane %v7813, 4
      %v7815 = vrot.slane %v7524, 5
      %v7816 = vsel %vm1357, %v7814, %v7815
      %v7817 = vrot.slane %v7815, 4
      %v7818 = vrot.slane %v7525, 5
      %v7819 = vsel %vm1357, %v7817, %v7818
      %s7820 = scalar_lea.vmem %s7, 320
      %v7821 = vld [vmem:[%s7820] sm:$0xf]
      %v7822 = vld [vmem:[%s7820 + $0x4] sm:$0xf]
      %v7823 = vld [vmem:[%s7820 + $0x8] sm:$0xf]
      %v7824 = vld [vmem:[%s7820 + $0xc] sm:$0xf]
      %v7825 = vld [vmem:[%s7820 + $0x10] sm:$0xf]
      %v7826 = vld [vmem:[%s7820 + $0x14] sm:$0xf]
      %v7827 = vld [vmem:[%s7820 + $0x18] sm:$0xf]
      %v7828 = vld [vmem:[%s7820 + $0x1c] sm:$0xf]
      %v7829 = vld [vmem:[%s7820 + $0x20] sm:$0xf]
      %v7830 = vld [vmem:[%s7820 + $0x24] sm:$0xf]
      %v7831 = vld [vmem:[%s7820 + $0x28] sm:$0xf]
      %v7832 = vld [vmem:[%s7820 + $0x2c] sm:$0xf]
      %v7833 = vld [vmem:[%s7820 + $0x30] sm:$0xf]
      %v7834 = vld [vmem:[%s7820 + $0x34] sm:$0xf]
      %v7835 = vld [vmem:[%s7820 + $0x38] sm:$0xf]
      %v7836 = vld [vmem:[%s7820 + $0x3c] sm:$0xf]
      %v7837 = vunpack.c.l.b16 %v7795
      %v7838 = vunpack.c.l.b16 %v7798
      %v7839 = vunpack.c.l.b16 %v7802
      %v7840 = vunpack.c.l.b16 %v7805
      %v7841 = vunpack.c.l.b16 %v7809
      %v7842 = vunpack.c.l.b16 %v7812
      %v7843 = vunpack.c.l.b16 %v7816
      %v7844 = vunpack.c.l.b16 %v7819
      %v7845 = vpack.c.b16 %v7838, %v7837
      %v7846 = vpack.c.b16 %v7840, %v7839
      %v7847 = vpack.c.b16 %v7842, %v7841
      %v7848 = vpack.c.b16 %v7844, %v7843
      %v7869 = vunpack.c.l.b16 %v7821
      %v7870 = vunpack.c.l.b16 %v7822
      %v7871 = vunpack.c.l.b16 %v7823
      %v7872 = vunpack.c.l.b16 %v7824
      %v7873 = vunpack.c.l.b16 %v7825
      %v7874 = vunpack.c.l.b16 %v7826
      %v7875 = vunpack.c.l.b16 %v7827
      %v7876 = vunpack.c.l.b16 %v7828
      %v7877 = vunpack.c.l.b16 %v7829
      %v7878 = vunpack.c.l.b16 %v7830
      %v7879 = vunpack.c.l.b16 %v7831
      %v7880 = vunpack.c.l.b16 %v7832
      %v7881 = vunpack.c.l.b16 %v7833
      %v7882 = vunpack.c.l.b16 %v7834
      %v7883 = vunpack.c.l.b16 %v7835
      %v7884 = vunpack.c.l.b16 %v7836
      %v7885 = vpack.c.b16 %v7870, %v7869
      %v7886 = vpack.c.b16 %v7872, %v7871
      %v7887 = vpack.c.b16 %v7874, %v7873
      %v7888 = vpack.c.b16 %v7876, %v7875
      %v7889 = vpack.c.b16 %v7878, %v7877
      %v7890 = vpack.c.b16 %v7880, %v7879
      %v7891 = vpack.c.b16 %v7882, %v7881
      %v7892 = vpack.c.b16 %v7884, %v7883
      %7901 = vmatprep.subr.bf16.mxu0 0
      %7902 = vmatpush1.bf16.msra.mxu0 %v7885
      %7903 = vmatprep.subr.bf16.mxu0 0
      %7904 = vmatpush1.bf16.msra.mxu0 %v7886
      %7905 = vmatprep.subr.bf16.mxu0 0
      %7906 = vmatpush1.bf16.msra.mxu0 %v7887
      %7907 = vmatprep.subr.bf16.mxu0 0
      %7908 = vmatpush1.bf16.msra.mxu0 %v7888
      %7909 = vmatprep.subr.bf16.mxu0 0
      %7910 = vmatpush1.bf16.msra.mxu0 %v7889
      %7911 = vmatprep.subr.bf16.mxu0 0
      %7912 = vmatpush1.bf16.msra.mxu0 %v7890
      %7913 = vmatprep.subr.bf16.mxu0 0
      %7914 = vmatpush1.bf16.msra.mxu0 %v7891
      %7915 = vmatprep.subr.bf16.mxu0 0
      %7916 = vmatpush1.bf16.msra.mxu0 %v7892
      %7917 = vmatprep.subr.bf16.mxu0 0
      %7918 = vmatpush1.bf16.msra.mxu0 0
      %7919 = vmatprep.subr.bf16.mxu0 0
      %7920 = vmatpush1.bf16.msra.mxu0 0
      %7921 = vmatprep.subr.bf16.mxu0 0
      %7922 = vmatpush1.bf16.msra.mxu0 0
      %7923 = vmatprep.subr.bf16.mxu0 0
      %7924 = vmatpush1.bf16.msra.mxu0 0
      %7925 = vmatprep.subr.bf16.mxu0 0
      %7926 = vmatpush1.bf16.msra.mxu0 0
      %7927 = vmatprep.subr.bf16.mxu0 0
      %7928 = vmatpush1.bf16.msra.mxu0 0
      %7929 = vmatprep.subr.bf16.mxu0 0
      %7930 = vmatpush1.bf16.msra.mxu0 0
      %7931 = vmatprep.subr.bf16.mxu0 0
      %7932 = vmatpush1.bf16.msra.mxu0 0
      %7933 = vmatprep.mubr.bf16.mxu0 0
      %7934 = vmatmul.mubr.bf16.gmra.mrb[0].mxu0 %v7845
      %v7935 = vpop.f32.mrb[0].mxu0
      %v7936 = vadd.f32 0.0, %v7935
      %v7937 = vpop.f32.mrb[0].mxu0
      %v7938 = vpop.f32.mrb[0].mxu0
      %v7939 = vadd.f32 0.0, %v7938
      %v7940 = vpop.f32.mrb[0].mxu0
      %7941 = vmatprep.mubr.bf16.mxu0 0
      %7942 = vmatmul.mubr.bf16.gmra.mrb[0].mxu0 %v7846
      %v7943 = vpop.f32.mrb[0].mxu0
      %v7944 = vadd.f32 0.0, %v7943
      %v7945 = vpop.f32.mrb[0].mxu0
      %v7946 = vpop.f32.mrb[0].mxu0
      %v7947 = vadd.f32 0.0, %v7946
      %v7948 = vpop.f32.mrb[0].mxu0
      %7949 = vmatprep.mubr.bf16.mxu0 0
      %7950 = vmatmul.mubr.bf16.gmra.mrb[0].mxu0 %v7847
      %v7951 = vpop.f32.mrb[0].mxu0
      %v7952 = vadd.f32 0.0, %v7951
      %v7953 = vpop.f32.mrb[0].mxu0
      %v7954 = vpop.f32.mrb[0].mxu0
      %v7955 = vadd.f32 0.0, %v7954
      %v7956 = vpop.f32.mrb[0].mxu0
      %7957 = vmatprep.mubr.bf16.mxu0 0
      %7958 = vmatmul.mubr.bf16.gmra.mrb[0].mxu0 %v7848
      %v7959 = vpop.f32.mrb[0].mxu0
      %v7960 = vadd.f32 0.0, %v7959
      %v7961 = vpop.f32.mrb[0].mxu0
      %v7962 = vpop.f32.mrb[0].mxu0
      %v7963 = vadd.f32 0.0, %v7962
      %v7964 = vpop.f32.mrb[0].mxu0
      %7965 = vdwg.mxu0
      %v7966 = vadd.f32 %v7768, %v7936
      %v7967 = vadd.f32 %v7769, %v7939
      %v7968 = vadd.f32 %v7770, %v7944
      %v7969 = vadd.f32 %v7771, %v7947
      %v7970 = vadd.f32 %v7772, %v7952
      %v7971 = vadd.f32 %v7773, %v7955
      %v7972 = vadd.f32 %v7774, %v7960
      %v7973 = vadd.f32 %v7775, %v7963
      %s7974 = scalar_lea.vmem [#allocation4], 24
      %v7975 = vld [vmem:[%s7974] sm:$0xf]
      %v7976 = vld [vmem:[%s7974 + $0x4] sm:$0xf]
      %v7977 = vld [vmem:[%s7974 + $0xc] sm:$0xf]
      %v7978 = vld [vmem:[%s7974 + $0x10] sm:$0xf]
      %v7979 = vld [vmem:[%s7974 + $0x18] sm:$0xf]
      %v7980 = vld [vmem:[%s7974 + $0x1c] sm:$0xf]
      %v7981 = vld [vmem:[%s7974 + $0x24] sm:$0xf]
      %v7982 = vld [vmem:[%s7974 + $0x28] sm:$0xf]
      %s7983 = scalar_lea.vmem %s7, 384
      %v7984 = vld [vmem:[%s7983] sm:$0xf]
      %v7985 = vld [vmem:[%s7983 + $0x4] sm:$0xf]
      %v7986 = vld [vmem:[%s7983 + $0x8] sm:$0xf]
      %v7987 = vld [vmem:[%s7983 + $0xc] sm:$0xf]
      %v7988 = vld [vmem:[%s7983 + $0x10] sm:$0xf]
      %v7989 = vld [vmem:[%s7983 + $0x14] sm:$0xf]
      %v7990 = vld [vmem:[%s7983 + $0x18] sm:$0xf]
      %v7991 = vld [vmem:[%s7983 + $0x1c] sm:$0xf]
      %v7992 = vld [vmem:[%s7983 + $0x20] sm:$0xf]
      %v7993 = vld [vmem:[%s7983 + $0x24] sm:$0xf]
      %v7994 = vld [vmem:[%s7983 + $0x28] sm:$0xf]
      %v7995 = vld [vmem:[%s7983 + $0x2c] sm:$0xf]
      %v7996 = vld [vmem:[%s7983 + $0x30] sm:$0xf]
      %v7997 = vld [vmem:[%s7983 + $0x34] sm:$0xf]
      %v7998 = vld [vmem:[%s7983 + $0x38] sm:$0xf]
      %v7999 = vld [vmem:[%s7983 + $0x3c] sm:$0xf]
      %v8008 = vunpack.c.l.b16 %v7975
      %v8009 = vunpack.c.l.b16 %v7976
      %v8010 = vunpack.c.l.b16 %v7977
      %v8011 = vunpack.c.l.b16 %v7978
      %v8012 = vunpack.c.l.b16 %v7979
      %v8013 = vunpack.c.l.b16 %v7980
      %v8014 = vunpack.c.l.b16 %v7981
      %v8015 = vunpack.c.l.b16 %v7982
      %v8016 = vpack.c.b16 %v8009, %v8008
      %v8017 = vpack.c.b16 %v8011, %v8010
      %v8018 = vpack.c.b16 %v8013, %v8012
      %v8019 = vpack.c.b16 %v8015, %v8014
      %v8040 = vunpack.c.l.b16 %v7984
      %v8041 = vunpack.c.l.b16 %v7985
      %v8042 = vunpack.c.l.b16 %v7986
      %v8043 = vunpack.c.l.b16 %v7987
      %v8044 = vunpack.c.l.b16 %v7988
      %v8045 = vunpack.c.l.b16 %v7989
      %v8046 = vunpack.c.l.b16 %v7990
      %v8047 = vunpack.c.l.b16 %v7991
      %v8048 = vunpack.c.l.b16 %v7992
      %v8049 = vunpack.c.l.b16 %v7993
      %v8050 = vunpack.c.l.b16 %v7994
      %v8051 = vunpack.c.l.b16 %v7995
      %v8052 = vunpack.c.l.b16 %v7996
      %v8053 = vunpack.c.l.b16 %v7997
      %v8054 = vunpack.c.l.b16 %v7998
      %v8055 = vunpack.c.l.b16 %v7999
      %v8056 = vpack.c.b16 %v8041, %v8040
      %v8057 = vpack.c.b16 %v8043, %v8042
      %v8058 = vpack.c.b16 %v8045, %v8044
      %v8059 = vpack.c.b16 %v8047, %v8046
      %v8060 = vpack.c.b16 %v8049, %v8048
      %v8061 = vpack.c.b16 %v8051, %v8050
      %v8062 = vpack.c.b16 %v8053, %v8052
      %v8063 = vpack.c.b16 %v8055, %v8054
      %8072 = vmatprep.subr.bf16.mxu0 0
      %8073 = vmatpush1.bf16.msra.mxu0 %v8056
      %8074 = vmatprep.subr.bf16.mxu0 0
      %8075 = vmatpush1.bf16.msra.mxu0 %v8057
      %8076 = vmatprep.subr.bf16.mxu0 0
      %8077 = vmatpush1.bf16.msra.mxu0 %v8058
      %8078 = vmatprep.subr.bf16.mxu0 0
      %8079 = vmatpush1.bf16.msra.mxu0 %v8059
      %8080 = vmatprep.subr.bf16.mxu0 0
      %8081 = vmatpush1.bf16.msra.mxu0 %v8060
      %8082 = vmatprep.subr.bf16.mxu0 0
      %8083 = vmatpush1.bf16.msra.mxu0 %v8061
      %8084 = vmatprep.subr.bf16.mxu0 0
      %8085 = vmatpush1.bf16.msra.mxu0 %v8062
      %8086 = vmatprep.subr.bf16.mxu0 0
      %8087 = vmatpush1.bf16.msra.mxu0 %v8063
      %8088 = vmatprep.subr.bf16.mxu0 0
      %8089 = vmatpush1.bf16.msra.mxu0 0
      %8090 = vmatprep.subr.bf16.mxu0 0
      %8091 = vmatpush1.bf16.msra.mxu0 0
      %8092 = vmatprep.subr.bf16.mxu0 0
      %8093 = vmatpush1.bf16.msra.mxu0 0
      %8094 = vmatprep.subr.bf16.mxu0 0
      %8095 = vmatpush1.bf16.msra.mxu0 0
      %8096 = vmatprep.subr.bf16.mxu0 0
      %8097 = vmatpush1.bf16.msra.mxu0 0
      %8098 = vmatprep.subr.bf16.mxu0 0
      %8099 = vmatpush1.bf16.msra.mxu0 0
      %8100 = vmatprep.subr.bf16.mxu0 0
      %8101 = vmatpush1.bf16.msra.mxu0 0
      %8102 = vmatprep.subr.bf16.mxu0 0
      %8103 = vmatpush1.bf16.msra.mxu0 0
      %8104 = vmatprep.mubr.bf16.mxu0 0
      %8105 = vmatmul.mubr.bf16.gmra.mrb[0].mxu0 %v8016
      %v8106 = vpop.f32.mrb[0].mxu0
      %v8107 = vadd.f32 0.0, %v8106
      %v8108 = vpop.f32.mrb[0].mxu0
      %v8109 = vpop.f32.mrb[0].mxu0
      %v8110 = vadd.f32 0.0, %v8109
      %v8111 = vpop.f32.mrb[0].mxu0
      %8112 = vmatprep.mubr.bf16.mxu0 0
      %8113 = vmatmul.mubr.bf16.gmra.mrb[0].mxu0 %v8017
      %v8114 = vpop.f32.mrb[0].mxu0
      %v8115 = vadd.f32 0.0, %v8114
      %v8116 = vpop.f32.mrb[0].mxu0
      %v8117 = vpop.f32.mrb[0].mxu0
      %v8118 = vadd.f32 0.0, %v8117
      %v8119 = vpop.f32.mrb[0].mxu0
      %8120 = vmatprep.mubr.bf16.mxu0 0
      %8121 = vmatmul.mubr.bf16.gmra.mrb[0].mxu0 %v8018
      %v8122 = vpop.f32.mrb[0].mxu0
      %v8123 = vadd.f32 0.0, %v8122
      %v8124 = vpop.f32.mrb[0].mxu0
      %v8125 = vpop.f32.mrb[0].mxu0
      %v8126 = vadd.f32 0.0, %v8125
      %v8127 = vpop.f32.mrb[0].mxu0
      %8128 = vmatprep.mubr.bf16.mxu0 0
      %8129 = vmatmul.mubr.bf16.gmra.mrb[0].mxu0 %v8019
      %v8130 = vpop.f32.mrb[0].mxu0
      %v8131 = vadd.f32 0.0, %v8130
      %v8132 = vpop.f32.mrb[0].mxu0
      %v8133 = vpop.f32.mrb[0].mxu0
      %v8134 = vadd.f32 0.0, %v8133
      %v8135 = vpop.f32.mrb[0].mxu0
      %8136 = vdwg.mxu0
      %v8137 = vadd.f32 %v7966, %v8107
      %v8138 = vadd.f32 %v7967, %v8110
      %v8139 = vadd.f32 %v7968, %v8115
      %v8140 = vadd.f32 %v7969, %v8118
      %v8141 = vadd.f32 %v7970, %v8123
      %v8142 = vadd.f32 %v7971, %v8126
      %v8143 = vadd.f32 %v7972, %v8131
      %v8144 = vadd.f32 %v7973, %v8134
      %v8145 = vld [vmem:[%s7974] sm:$0xf]
      %v8146 = vld [vmem:[%s7974 + $0x4] sm:$0xf]
      %v8147 = vld [vmem:[%s7974 + $0x8] sm:$0x1]
      %v8148 = vld [vmem:[%s7974 + $0xc] sm:$0xf]
      %v8149 = vld [vmem:[%s7974 + $0x10] sm:$0xf]
      %v8150 = vld [vmem:[%s7974 + $0x14] sm:$0x1]
      %v8151 = vld [vmem:[%s7974 + $0x18] sm:$0xf]
      %v8152 = vld [vmem:[%s7974 + $0x1c] sm:$0xf]
      %v8153 = vld [vmem:[%s7974 + $0x20] sm:$0x1]
      %v8154 = vld [vmem:[%s7974 + $0x24] sm:$0xf]
      %v8155 = vld [vmem:[%s7974 + $0x28] sm:$0xf]
      %v8156 = vld [vmem:[%s7974 + $0x2c] sm:$0x1]
      %v8158 = vshrl.u32 %v8145, 16
      %v8160 = vrot.slane %v8158, 4
      %v8161 = vshll.u32 %v8145, 16
      %v8163 = vrot.slane %v8161, 5
      %v8164 = vor.u32 %v8160, %v8163
      %v8165 = vrot.slane %v8164, 4
      %v8167 = vshll.u32 %v8146, 16
      %v8169 = vrot.slane %v8167, 5
      %v8170 = vsel %vm927, %v8165, %v8169
      %v8171 = vshrl.u32 %v8146, 16
      %v8173 = vrot.slane %v8171, 4
      %v8174 = vor.u32 %v8173, %v8169
      %v8175 = vrot.slane %v8174, 4
      %v8177 = vshll.u32 %v8147, 16
      %v8179 = vrot.slane %v8177, 5
      %v8180 = vsel %vm927, %v8175, %v8179
      %v8182 = vshrl.u32 %v8148, 16
      %v8184 = vrot.slane %v8182, 4
      %v8185 = vshll.u32 %v8148, 16
      %v8187 = vrot.slane %v8185, 5
      %v8188 = vor.u32 %v8184, %v8187
      %v8189 = vrot.slane %v8188, 4
      %v8191 = vshll.u32 %v8149, 16
      %v8193 = vrot.slane %v8191, 5
      %v8194 = vsel %vm927, %v8189, %v8193
      %v8195 = vshrl.u32 %v8149, 16
      %v8197 = vrot.slane %v8195, 4
      %v8198 = vor.u32 %v8197, %v8193
      %v8199 = vrot.slane %v8198, 4
      %v8201 = vshll.u32 %v8150, 16
      %v8203 = vrot.slane %v8201, 5
      %v8204 = vsel %vm927, %v8199, %v8203
      %v8206 = vshrl.u32 %v8151, 16
      %v8208 = vrot.slane %v8206, 4
      %v8209 = vshll.u32 %v8151, 16
      %v8211 = vrot.slane %v8209, 5
      %v8212 = vor.u32 %v8208, %v8211
      %v8213 = vrot.slane %v8212, 4
      %v8215 = vshll.u32 %v8152, 16
      %v8217 = vrot.slane %v8215, 5
      %v8218 = vsel %vm927, %v8213, %v8217
      %v8219 = vshrl.u32 %v8152, 16
      %v8221 = vrot.slane %v8219, 4
      %v8222 = vor.u32 %v8221, %v8217
      %v8223 = vrot.slane %v8222, 4
      %v8225 = vshll.u32 %v8153, 16
      %v8227 = vrot.slane %v8225, 5
      %v8228 = vsel %vm927, %v8223, %v8227
      %v8230 = vshrl.u32 %v8154, 16
      %v8232 = vrot.slane %v8230, 4
      %v8233 = vshll.u32 %v8154, 16
      %v8235 = vrot.slane %v8233, 5
      %v8236 = vor.u32 %v8232, %v8235
      %v8237 = vrot.slane %v8236, 4
      %v8239 = vshll.u32 %v8155, 16
      %v8241 = vrot.slane %v8239, 5
      %v8242 = vsel %vm927, %v8237, %v8241
      %v8243 = vshrl.u32 %v8155, 16
      %v8245 = vrot.slane %v8243, 4
      %v8246 = vor.u32 %v8245, %v8241
      %v8247 = vrot.slane %v8246, 4
      %v8249 = vshll.u32 %v8156, 16
      %v8251 = vrot.slane %v8249, 5
      %v8252 = vsel %vm927, %v8247, %v8251
      %s8253 = scalar_lea.vmem %s7, 448
      %v8254 = vld [vmem:[%s8253] sm:$0xf]
      %v8255 = vld [vmem:[%s8253 + $0x4] sm:$0xf]
      %v8256 = vld [vmem:[%s8253 + $0x8] sm:$0xf]
      %v8257 = vld [vmem:[%s8253 + $0xc] sm:$0xf]
      %v8258 = vld [vmem:[%s8253 + $0x10] sm:$0xf]
      %v8259 = vld [vmem:[%s8253 + $0x14] sm:$0xf]
      %v8260 = vld [vmem:[%s8253 + $0x18] sm:$0xf]
      %v8261 = vld [vmem:[%s8253 + $0x1c] sm:$0xf]
      %v8262 = vld [vmem:[%s8253 + $0x20] sm:$0xf]
      %v8263 = vld [vmem:[%s8253 + $0x24] sm:$0xf]
      %v8264 = vld [vmem:[%s8253 + $0x28] sm:$0xf]
      %v8265 = vld [vmem:[%s8253 + $0x2c] sm:$0xf]
      %v8266 = vld [vmem:[%s8253 + $0x30] sm:$0xf]
      %v8267 = vld [vmem:[%s8253 + $0x34] sm:$0xf]
      %v8268 = vld [vmem:[%s8253 + $0x38] sm:$0xf]
      %v8269 = vld [vmem:[%s8253 + $0x3c] sm:$0xf]
      %v8270 = vunpack.c.l.b16 %v8170
      %v8271 = vunpack.c.l.b16 %v8180
      %v8272 = vunpack.c.l.b16 %v8194
      %v8273 = vunpack.c.l.b16 %v8204
      %v8274 = vunpack.c.l.b16 %v8218
      %v8275 = vunpack.c.l.b16 %v8228
      %v8276 = vunpack.c.l.b16 %v8242
      %v8277 = vunpack.c.l.b16 %v8252
      %v8278 = vpack.c.b16 %v8271, %v8270
      %v8279 = vpack.c.b16 %v8273, %v8272
      %v8280 = vpack.c.b16 %v8275, %v8274
      %v8281 = vpack.c.b16 %v8277, %v8276
      %v8302 = vunpack.c.l.b16 %v8254
      %v8303 = vunpack.c.l.b16 %v8255
      %v8304 = vunpack.c.l.b16 %v8256
      %v8305 = vunpack.c.l.b16 %v8257
      %v8306 = vunpack.c.l.b16 %v8258
      %v8307 = vunpack.c.l.b16 %v8259
      %v8308 = vunpack.c.l.b16 %v8260
      %v8309 = vunpack.c.l.b16 %v8261
      %v8310 = vunpack.c.l.b16 %v8262
      %v8311 = vunpack.c.l.b16 %v8263
      %v8312 = vunpack.c.l.b16 %v8264
      %v8313 = vunpack.c.l.b16 %v8265
      %v8314 = vunpack.c.l.b16 %v8266
      %v8315 = vunpack.c.l.b16 %v8267
      %v8316 = vunpack.c.l.b16 %v8268
      %v8317 = vunpack.c.l.b16 %v8269
      %v8318 = vpack.c.b16 %v8303, %v8302
      %v8319 = vpack.c.b16 %v8305, %v8304
      %v8320 = vpack.c.b16 %v8307, %v8306
      %v8321 = vpack.c.b16 %v8309, %v8308
      %v8322 = vpack.c.b16 %v8311, %v8310
      %v8323 = vpack.c.b16 %v8313, %v8312
      %v8324 = vpack.c.b16 %v8315, %v8314
      %v8325 = vpack.c.b16 %v8317, %v8316
      %8334 = vmatprep.subr.bf16.mxu0 0
      %8335 = vmatpush1.bf16.msra.mxu0 %v8318
      %8336 = vmatprep.subr.bf16.mxu0 0
      %8337 = vmatpush1.bf16.msra.mxu0 %v8319
      %8338 = vmatprep.subr.bf16.mxu0 0
      %8339 = vmatpush1.bf16.msra.mxu0 %v8320
      %8340 = vmatprep.subr.bf16.mxu0 0
      %8341 = vmatpush1.bf16.msra.mxu0 %v8321
      %8342 = vmatprep.subr.bf16.mxu0 0
      %8343 = vmatpush1.bf16.msra.mxu0 %v8322
      %8344 = vmatprep.subr.bf16.mxu0 0
      %8345 = vmatpush1.bf16.msra.mxu0 %v8323
      %8346 = vmatprep.subr.bf16.mxu0 0
      %8347 = vmatpush1.bf16.msra.mxu0 %v8324
      %8348 = vmatprep.subr.bf16.mxu0 0
      %8349 = vmatpush1.bf16.msra.mxu0 %v8325
      %8350 = vmatprep.subr.bf16.mxu0 0
      %8351 = vmatpush1.bf16.msra.mxu0 0
      %8352 = vmatprep.subr.bf16.mxu0 0
      %8353 = vmatpush1.bf16.msra.mxu0 0
      %8354 = vmatprep.subr.bf16.mxu0 0
      %8355 = vmatpush1.bf16.msra.mxu0 0
      %8356 = vmatprep.subr.bf16.mxu0 0
      %8357 = vmatpush1.bf16.msra.mxu0 0
      %8358 = vmatprep.subr.bf16.mxu0 0
      %8359 = vmatpush1.bf16.msra.mxu0 0
      %8360 = vmatprep.subr.bf16.mxu0 0
      %8361 = vmatpush1.bf16.msra.mxu0 0
      %8362 = vmatprep.subr.bf16.mxu0 0
      %8363 = vmatpush1.bf16.msra.mxu0 0
      %8364 = vmatprep.subr.bf16.mxu0 0
      %8365 = vmatpush1.bf16.msra.mxu0 0
      %8366 = vmatprep.mubr.bf16.mxu0 0
      %8367 = vmatmul.mubr.bf16.gmra.mrb[0].mxu0 %v8278
      %v8368 = vpop.f32.mrb[0].mxu0
      %v8369 = vadd.f32 0.0, %v8368
      %v8370 = vpop.f32.mrb[0].mxu0
      %v8371 = vpop.f32.mrb[0].mxu0
      %v8372 = vadd.f32 0.0, %v8371
      %v8373 = vpop.f32.mrb[0].mxu0
      %8374 = vmatprep.mubr.bf16.mxu0 0
      %8375 = vmatmul.mubr.bf16.gmra.mrb[0].mxu0 %v8279
      %v8376 = vpop.f32.mrb[0].mxu0
      %v8377 = vadd.f32 0.0, %v8376
      %v8378 = vpop.f32.mrb[0].mxu0
      %v8379 = vpop.f32.mrb[0].mxu0
      %v8380 = vadd.f32 0.0, %v8379
      %v8381 = vpop.f32.mrb[0].mxu0
      %8382 = vmatprep.mubr.bf16.mxu0 0
      %8383 = vmatmul.mubr.bf16.gmra.mrb[0].mxu0 %v8280
      %v8384 = vpop.f32.mrb[0].mxu0
      %v8385 = vadd.f32 0.0, %v8384
      %v8386 = vpop.f32.mrb[0].mxu0
      %v8387 = vpop.f32.mrb[0].mxu0
      %v8388 = vadd.f32 0.0, %v8387
      %v8389 = vpop.f32.mrb[0].mxu0
      %8390 = vmatprep.mubr.bf16.mxu0 0
      %8391 = vmatmul.mubr.bf16.gmra.mrb[0].mxu0 %v8281
      %v8392 = vpop.f32.mrb[0].mxu0
      %v8393 = vadd.f32 0.0, %v8392
      %v8394 = vpop.f32.mrb[0].mxu0
      %v8395 = vpop.f32.mrb[0].mxu0
      %v8396 = vadd.f32 0.0, %v8395
      %v8397 = vpop.f32.mrb[0].mxu0
      %8398 = vdwg.mxu0
      %v8399 = vadd.f32 %v8137, %v8369
      %v8400 = vadd.f32 %v8138, %v8372
      %v8401 = vadd.f32 %v8139, %v8377
      %v8402 = vadd.f32 %v8140, %v8380
      %v8403 = vadd.f32 %v8141, %v8385
      %v8404 = vadd.f32 %v8142, %v8388
      %v8405 = vadd.f32 %v8143, %v8393
      %v8406 = vadd.f32 %v8144, %v8396
      %v8407 = vld [vmem:[%s7974] sm:$0xe]
      %v8408 = vld [vmem:[%s7974 + $0xc] sm:$0xe]
      %v8409 = vld [vmem:[%s7974 + $0x18] sm:$0xe]
      %v8410 = vld [vmem:[%s7974 + $0x24] sm:$0xe]
      %v8423 = vrot.slane %v8407, 5
      %v8424 = vrot.slane %v8423, 4
      %v8425 = vrot.slane %v8146, 5
      %v8426 = vsel %vm1357, %v8424, %v8425
      %v8427 = vrot.slane %v8425, 4
      %v8428 = vrot.slane %v8147, 5
      %v8429 = vsel %vm1357, %v8427, %v8428
      %v8430 = vrot.slane %v8408, 5
      %v8431 = vrot.slane %v8430, 4
      %v8432 = vrot.slane %v8149, 5
      %v8433 = vsel %vm1357, %v8431, %v8432
      %v8434 = vrot.slane %v8432, 4
      %v8435 = vrot.slane %v8150, 5
      %v8436 = vsel %vm1357, %v8434, %v8435
      %v8437 = vrot.slane %v8409, 5
      %v8438 = vrot.slane %v8437, 4
      %v8439 = vrot.slane %v8152, 5
      %v8440 = vsel %vm1357, %v8438, %v8439
      %v8441 = vrot.slane %v8439, 4
      %v8442 = vrot.slane %v8153, 5
      %v8443 = vsel %vm1357, %v8441, %v8442
      %v8444 = vrot.slane %v8410, 5
      %v8445 = vrot.slane %v8444, 4
      %v8446 = vrot.slane %v8155, 5
      %v8447 = vsel %vm1357, %v8445, %v8446
      %v8448 = vrot.slane %v8446, 4
      %v8449 = vrot.slane %v8156, 5
      %v8450 = vsel %vm1357, %v8448, %v8449
      %s8451 = scalar_lea.vmem %s7, 512
      %v8452 = vld [vmem:[%s8451] sm:$0xf]
      %v8453 = vld [vmem:[%s8451 + $0x4] sm:$0xf]
      %v8454 = vld [vmem:[%s8451 + $0x8] sm:$0xf]
      %v8455 = vld [vmem:[%s8451 + $0xc] sm:$0xf]
      %v8456 = vld [vmem:[%s8451 + $0x10] sm:$0xf]
      %v8457 = vld [vmem:[%s8451 + $0x14] sm:$0xf]
      %v8458 = vld [vmem:[%s8451 + $0x18] sm:$0xf]
      %v8459 = vld [vmem:[%s8451 + $0x1c] sm:$0xf]
      %v8460 = vld [vmem:[%s8451 + $0x20] sm:$0xf]
      %v8461 = vld [vmem:[%s8451 + $0x24] sm:$0xf]
      %v8462 = vld [vmem:[%s8451 + $0x28] sm:$0xf]
      %v8463 = vld [vmem:[%s8451 + $0x2c] sm:$0xf]
      %v8464 = vld [vmem:[%s8451 + $0x30] sm:$0xf]
      %v8465 = vld [vmem:[%s8451 + $0x34] sm:$0xf]
      %v8466 = vld [vmem:[%s8451 + $0x38] sm:$0xf]
      %v8467 = vld [vmem:[%s8451 + $0x3c] sm:$0xf]
      %v8468 = vunpack.c.l.b16 %v8426
      %v8469 = vunpack.c.l.b16 %v8429
      %v8470 = vunpack.c.l.b16 %v8433
      %v8471 = vunpack.c.l.b16 %v8436
      %v8472 = vunpack.c.l.b16 %v8440
      %v8473 = vunpack.c.l.b16 %v8443
      %v8474 = vunpack.c.l.b16 %v8447
      %v8475 = vunpack.c.l.b16 %v8450
      %v8476 = vpack.c.b16 %v8469, %v8468
      %v8477 = vpack.c.b16 %v8471, %v8470
      %v8478 = vpack.c.b16 %v8473, %v8472
      %v8479 = vpack.c.b16 %v8475, %v8474
      %v8500 = vunpack.c.l.b16 %v8452
      %v8501 = vunpack.c.l.b16 %v8453
      %v8502 = vunpack.c.l.b16 %v8454
      %v8503 = vunpack.c.l.b16 %v8455
      %v8504 = vunpack.c.l.b16 %v8456
      %v8505 = vunpack.c.l.b16 %v8457
      %v8506 = vunpack.c.l.b16 %v8458
      %v8507 = vunpack.c.l.b16 %v8459
      %v8508 = vunpack.c.l.b16 %v8460
      %v8509 = vunpack.c.l.b16 %v8461
      %v8510 = vunpack.c.l.b16 %v8462
      %v8511 = vunpack.c.l.b16 %v8463
      %v8512 = vunpack.c.l.b16 %v8464
      %v8513 = vunpack.c.l.b16 %v8465
      %v8514 = vunpack.c.l.b16 %v8466
      %v8515 = vunpack.c.l.b16 %v8467
      %v8516 = vpack.c.b16 %v8501, %v8500
      %v8517 = vpack.c.b16 %v8503, %v8502
      %v8518 = vpack.c.b16 %v8505, %v8504
      %v8519 = vpack.c.b16 %v8507, %v8506
      %v8520 = vpack.c.b16 %v8509, %v8508
      %v8521 = vpack.c.b16 %v8511, %v8510
      %v8522 = vpack.c.b16 %v8513, %v8512
      %v8523 = vpack.c.b16 %v8515, %v8514
      %8532 = vmatprep.subr.bf16.mxu0 0
      %8533 = vmatpush1.bf16.msra.mxu0 %v8516
      %8534 = vmatprep.subr.bf16.mxu0 0
      %8535 = vmatpush1.bf16.msra.mxu0 %v8517
      %8536 = vmatprep.subr.bf16.mxu0 0
      %8537 = vmatpush1.bf16.msra.mxu0 %v8518
      %8538 = vmatprep.subr.bf16.mxu0 0
      %8539 = vmatpush1.bf16.msra.mxu0 %v8519
      %8540 = vmatprep.subr.bf16.mxu0 0
      %8541 = vmatpush1.bf16.msra.mxu0 %v8520
      %8542 = vmatprep.subr.bf16.mxu0 0
      %8543 = vmatpush1.bf16.msra.mxu0 %v8521
      %8544 = vmatprep.subr.bf16.mxu0 0
      %8545 = vmatpush1.bf16.msra.mxu0 %v8522
      %8546 = vmatprep.subr.bf16.mxu0 0
      %8547 = vmatpush1.bf16.msra.mxu0 %v8523
      %8548 = vmatprep.subr.bf16.mxu0 0
      %8549 = vmatpush1.bf16.msra.mxu0 0
      %8550 = vmatprep.subr.bf16.mxu0 0
      %8551 = vmatpush1.bf16.msra.mxu0 0
      %8552 = vmatprep.subr.bf16.mxu0 0
      %8553 = vmatpush1.bf16.msra.mxu0 0
      %8554 = vmatprep.subr.bf16.mxu0 0
      %8555 = vmatpush1.bf16.msra.mxu0 0
      %8556 = vmatprep.subr.bf16.mxu0 0
      %8557 = vmatpush1.bf16.msra.mxu0 0
      %8558 = vmatprep.subr.bf16.mxu0 0
      %8559 = vmatpush1.bf16.msra.mxu0 0
      %8560 = vmatprep.subr.bf16.mxu0 0
      %8561 = vmatpush1.bf16.msra.mxu0 0
      %8562 = vmatprep.subr.bf16.mxu0 0
      %8563 = vmatpush1.bf16.msra.mxu0 0
      %8564 = vmatprep.mubr.bf16.mxu0 0
      %8565 = vmatmul.mubr.bf16.gmra.mrb[0].mxu0 %v8476
      %v8566 = vpop.f32.mrb[0].mxu0
      %v8567 = vadd.f32 0.0, %v8566
      %v8568 = vpop.f32.mrb[0].mxu0
      %v8569 = vpop.f32.mrb[0].mxu0
      %v8570 = vadd.f32 0.0, %v8569
      %v8571 = vpop.f32.mrb[0].mxu0
      %8572 = vmatprep.mubr.bf16.mxu0 0
      %8573 = vmatmul.mubr.bf16.gmra.mrb[0].mxu0 %v8477
      %v8574 = vpop.f32.mrb[0].mxu0
      %v8575 = vadd.f32 0.0, %v8574
      %v8576 = vpop.f32.mrb[0].mxu0
      %v8577 = vpop.f32.mrb[0].mxu0
      %v8578 = vadd.f32 0.0, %v8577
      %v8579 = vpop.f32.mrb[0].mxu0
      %8580 = vmatprep.mubr.bf16.mxu0 0
      %8581 = vmatmul.mubr.bf16.gmra.mrb[0].mxu0 %v8478
      %v8582 = vpop.f32.mrb[0].mxu0
      %v8583 = vadd.f32 0.0, %v8582
      %v8584 = vpop.f32.mrb[0].mxu0
      %v8585 = vpop.f32.mrb[0].mxu0
      %v8586 = vadd.f32 0.0, %v8585
      %v8587 = vpop.f32.mrb[0].mxu0
      %8588 = vmatprep.mubr.bf16.mxu0 0
      %8589 = vmatmul.mubr.bf16.gmra.mrb[0].mxu0 %v8479
      %v8590 = vpop.f32.mrb[0].mxu0
      %v8591 = vadd.f32 0.0, %v8590
      %v8592 = vpop.f32.mrb[0].mxu0
      %v8593 = vpop.f32.mrb[0].mxu0
      %v8594 = vadd.f32 0.0, %v8593
      %v8595 = vpop.f32.mrb[0].mxu0
      %8596 = vdwg.mxu0
      %v8597 = vadd.f32 %v8399, %v8567
      %v8598 = vadd.f32 %v8400, %v8570
      %v8599 = vadd.f32 %v8401, %v8575
      %v8600 = vadd.f32 %v8402, %v8578
      %v8601 = vadd.f32 %v8403, %v8583
      %v8602 = vadd.f32 %v8404, %v8586
      %v8603 = vadd.f32 %v8405, %v8591
      %v8604 = vadd.f32 %v8406, %v8594
      %v8605 = vld [vmem:[%s8] sm:$0x1]
      %v8607 = vlaneseq
      %v8608 = vshrl.u32 %v8607, 7
      %v8609 = vsub.s32 0, %v8608
      %v8610 = vrot.slane %v8605, %v8609
      %v8612 = vadd.f32 %v8597, %v8610
      %v8613 = vadd.f32 %v8598, %v8610
      %v8614 = vadd.f32 %v8599, %v8610
      %v8615 = vadd.f32 %v8600, %v8610
      %v8616 = vadd.f32 %v8601, %v8610
      %v8617 = vadd.f32 %v8602, %v8610
      %v8618 = vadd.f32 %v8603, %v8610
      %v8619 = vadd.f32 %v8604, %v8610
      %8620 = vst [vmem:[%s372] sm:$0xff] %v8612
      %8621 = vst [vmem:[%s372 + $0x8] sm:$0xff] %v8613
      %8622 = vst [vmem:[%s372 + $0x10] sm:$0xff] %v8614
      %8623 = vst [vmem:[%s372 + $0x18] sm:$0xff] %v8615
      %8624 = vst [vmem:[%s372 + $0x20] sm:$0xff] %v8616
      %8625 = vst [vmem:[%s372 + $0x28] sm:$0xff] %v8617
      %8626 = vst [vmem:[%s372 + $0x30] sm:$0xff] %v8618
      %8627 = vst [vmem:[%s372 + $0x38] sm:$0xff] %v8619
      %p8628 = scmp.lt.s32.totalorder %s20, 1
      %s8629 = scalar_select %p8628, %s20, 1
      %s8630 = smul.addr %s8629, 8
      %s8631 = smul.addr %s8630, 8
      %s8632 = scalar_lea.vmem %s9, %s8631
      // Predicated region
      $region57: #{unet3d_decoder_forward.1} parent=55 // pred_check
        %p8633 = pneg %p242
      $region58: #{unet3d_decoder_forward.1} parent=55 // pred_check_branch
        %8635 = sbr.rel (%p8633) target = $region60
      $region59: #{unet3d_decoder_forward.1} parent=55 // pred_region
        _
      $region60: #{unet3d_decoder_forward.1} parent=55 // pred_fallthru
        _
    $region56: #{unet3d_decoder_forward.1} parent=5 // pred_fallthru
      _
    %p8636 = scmp.le.s32.totalorder 2, %s15
    // Predicated region
    $region61: #{unet3d_decoder_forward.1} parent=5 // pred_check
      %p8637 = pneg %p8636
    $region62: #{unet3d_decoder_forward.1} parent=5 // pred_check_branch
      %8639 = sbr.rel (%p8637) target = $region64
    $region63: #{unet3d_decoder_forward.1} parent=5 // pred_region
      %s8640 = ssub.s32 %s15, 2
      // Predicated region
      $region65: #{unet3d_decoder_forward.1} parent=63 // pred_check
        %p8641 = pneg %p248
      $region66: #{unet3d_decoder_forward.1} parent=63 // pred_check_branch
        %8643 = sbr.rel (%p8641) target = $region68
      $region67: #{unet3d_decoder_forward.1} parent=63 // pred_region
        %p8644 = scmp.lt.s32.totalorder %s21, 1
        %s8645 = scalar_select %p8644, %s21, 1
        %s8646 = smul.addr %s8645, 8
        %s8647 = smul.addr %s8646, 8
        %s8648 = scalar_lea.vmem %s9, %s8647
      $region68: #{unet3d_decoder_forward.1} parent=63 // pred_fallthru
        _
    $region64: #{unet3d_decoder_forward.1} parent=5 // pred_fallthru
      _
  $region6: #{unet3d_decoder_forward.1} parent=0 // loop_footer
    %s19 = sadd.s32 1, %s15
  $region7: #{unet3d_decoder_forward.1} parent=0 // loop_footer_branch
    %14 = sbr.rel target = $region3
  $region8: #{unet3d_decoder_forward.1} parent=0 // loop_exit
    _

</llo_original>
